<compile_context>
chip_gen: v7x
topology: tpu7x:2x2x1
jax: 0.10.0
libtpu: 0.0.40
codegen_flags: <defaults>
</compile_context>

<pallas_src>
import jax
import jax.numpy as jnp
from jax.experimental import pallas as pl
from jax.experimental.pallas import tpu as pltpu


# --------------------------------------------------------------------------- kernel
def _neck_fused_kernel(
    # batch-folded activations, bf16, shape (N*H*W, Cin)
    small_ref, medium_ref, large_ref,
    # stem ConvBlocks (BN folded): bf16 weights, f32 (1, Cout) biases
    w_l_ref, b_l_ref, w_m_ref, b_m_ref, w_s_ref, b_s_ref,
    # fusion biases (f32) + bf16 block-diagonal nearest-2x row-duplication matrices
    b_fm_ref, b_fs_ref, u_l_ref, u_m_ref,
    # fusion weights left in HBM (pl.ANY); prefetched manually below
    w_fm_top_hbm, w_fm_bot_hbm, w_fs_top_hbm, w_fs_bot_hbm,
    # outputs (bf16)
    small_out_ref, medium_out_ref, large_out_ref,
    # scratch: VMEM destinations for fusion weights + DMA semaphores
    w_fm_top_v, w_fm_bot_v, w_fs_top_v, w_fs_bot_v, dma_sems,
):
    f32, bf16 = jnp.float32, jnp.bfloat16

    # Kick off the fusion-weight DMAs immediately so they overlap the stem matmuls.
    cp_fm_t = pltpu.make_async_copy(w_fm_top_hbm, w_fm_top_v, dma_sems.at[0])
    cp_fm_b = pltpu.make_async_copy(w_fm_bot_hbm, w_fm_bot_v, dma_sems.at[1])
    cp_fs_t = pltpu.make_async_copy(w_fs_top_hbm, w_fs_top_v, dma_sems.at[2])
    cp_fs_b = pltpu.make_async_copy(w_fs_bot_hbm, w_fs_bot_v, dma_sems.at[3])
    cp_fm_t.start(); cp_fm_b.start(); cp_fs_t.start(); cp_fs_b.start()

    def mm(x_bf16, w_bf16):                       # MXU matmul, f32 accumulation
        return jnp.dot(x_bf16, w_bf16, preferred_element_type=f32)

    def bias_silu(acc_f32, b_ref):                # f32 epilogue, bf16 result
        a = acc_f32 + b_ref[...]
        return (a * jax.nn.sigmoid(a)).astype(bf16)

    # Stage order keeps live ranges short:
    # large stem -> medium stem -> fusion_medium -> small stem -> fusion_small.
    large_o = bias_silu(mm(large_ref[...], w_l_ref[...]), b_l_ref)      # (Ml, 512)
    large_out_ref[...] = large_o
    med_c = bias_silu(mm(medium_ref[...], w_m_ref[...]), b_m_ref)       # (Mm, 256)

    # fusion_medium: cat([med_c, up2(large_o)]) @ W_fm == med_c@W_top + up2(large_o@W_bot)
    cp_fm_t.wait(); cp_fm_b.wait()
    bot = mm(large_o, w_fm_bot_v[...])                                   # (Ml, 256) f32
    up = mm(u_l_ref[...], bot.astype(bf16))                              # (Mm, 256) exact row-dup
    med_o = bias_silu(mm(med_c, w_fm_top_v[...]) + up, b_fm_ref)         # (Mm, 256)
    medium_out_ref[...] = med_o

    small_c = bias_silu(mm(small_ref[...], w_s_ref[...]), b_s_ref)       # (Ms, 128)

    # fusion_small
    cp_fs_t.wait(); cp_fs_b.wait()
    bot = mm(med_o, w_fs_bot_v[...])                                     # (Mm, 128) f32
    up = mm(u_m_ref[...], bot.astype(bf16))                              # (Ms, 128)
    small_o = bias_silu(mm(small_c, w_fs_top_v[...]) + up, b_fs_ref)     # (Ms, 128)
    small_out_ref[...] = small_o


def _neck_fused_rows(kp, small_r, medium_r, large_r, u_l, u_m):
    """Run the fused kernel on batch-folded row tensors of shape (N*H*W, C)."""
    m_s, m_m, m_l = small_r.shape[0], medium_r.shape[0], large_r.shape[0]
    c_l = kp["w_l"].shape[1]
    c_m = kp["w_fm_top"].shape[1]
    c_s = kp["w_fs_top"].shape[1]

    vmem = pl.BlockSpec(memory_space=pltpu.MemorySpace.VMEM)   # whole array in VMEM
    hbm = pl.BlockSpec(memory_space=pl.ANY)                    # raw HBM ref, manual DMA

    operands = (
        small_r, medium_r, large_r,
        kp["w_l"], kp["b_l"], kp["w_m"], kp["b_m"], kp["w_s"], kp["b_s"],
        kp["b_fm"], kp["b_fs"], u_l, u_m,
        kp["w_fm_top"], kp["w_fm_bot"], kp["w_fs_top"], kp["w_fs_bot"],
    )
    in_specs = [vmem] * 13 + [hbm] * 4

    out_shape = (
        jax.ShapeDtypeStruct((m_s, c_s), jnp.bfloat16),
        jax.ShapeDtypeStruct((m_m, c_m), jnp.bfloat16),
        jax.ShapeDtypeStruct((m_l, c_l), jnp.bfloat16),
    )
    out_specs = (vmem, vmem, vmem)

    scratch_shapes = [
        pltpu.VMEM(kp["w_fm_top"].shape, jnp.bfloat16),
        pltpu.VMEM(kp["w_fm_bot"].shape, jnp.bfloat16),
        pltpu.VMEM(kp["w_fs_top"].shape, jnp.bfloat16),
        pltpu.VMEM(kp["w_fs_bot"].shape, jnp.bfloat16),
        pltpu.SemaphoreType.DMA((4,)),
    ]

    # Advisory cost estimate (launch-dominated op -> helps XLA overlap boundary ops).
    def mm_flops(m, k, n):
        return 2 * m * k * n

    flops = (
        mm_flops(m_l, kp["w_l"].shape[0], c_l)
        + mm_flops(m_m, kp["w_m"].shape[0], kp["w_m"].shape[1])
        + mm_flops(m_s, kp["w_s"].shape[0], kp["w_s"].shape[1])
        + mm_flops(m_l, kp["w_fm_bot"].shape[0], c_m)
        + mm_flops(m_m, m_l, c_m)
        + mm_flops(m_m, kp["w_fm_top"].shape[0], c_m)
        + mm_flops(m_m, kp["w_fs_bot"].shape[0], c_s)
        + mm_flops(m_s, m_m, c_s)
        + mm_flops(m_s, kp["w_fs_top"].shape[0], c_s)
    )
    transcendentals = (m_l * c_l + m_m * kp["w_m"].shape[1] + m_s * kp["w_s"].shape[1]
                       + m_m * c_m + m_s * c_s)
    bytes_accessed = sum(int(a.size) * a.dtype.itemsize for a in operands)
    bytes_accessed += 2 * (m_s * c_s + m_m * c_m + m_l * c_l)   # bf16 outputs

    return pl.pallas_call(
        _neck_fused_kernel,
        out_shape=out_shape,
        in_specs=in_specs,
        out_specs=out_specs,
        scratch_shapes=scratch_shapes,
        cost_estimate=pl.CostEstimate(
            flops=int(flops),
            transcendentals=int(transcendentals),
            bytes_accessed=int(bytes_accessed),
        ),
    )(*operands)


# --------------------------------------------------------------------- param helpers
def _make_convblock_params(key, cin: int, cout: int):
    """Deterministic Conv2d(bias=False)+BatchNorm2d params, BN folded into (W, b)
    such that y = silu(x @ W + b) == silu(BN(Conv1x1(x)))."""
    k_w, k_g, k_b, k_m, k_v = jax.random.split(key, 5)
    conv_w = jax.random.normal(k_w, (cin, cout), jnp.float32) * (1.0 / jnp.sqrt(cin))
    gamma = 1.0 + 0.1 * jax.random.normal(k_g, (cout,), jnp.float32)
    beta = 0.1 * jax.random.normal(k_b, (cout,), jnp.float32)
    running_mean = 0.1 * jax.random.normal(k_m, (cout,), jnp.float32)
    running_var = jnp.abs(jax.random.normal(k_v, (cout,), jnp.float32)) + 0.5
    eps = 1e-5
    scale = gamma / jnp.sqrt(running_var + eps)
    return conv_w * scale[None, :], beta - running_mean * scale


def init_neck_params(seed: int = 0):
    keys = jax.random.split(jax.random.PRNGKey(seed), 5)
    return {
        "conv_large": _make_convblock_params(keys[0], 1024, 512),
        "conv_medium": _make_convblock_params(keys[1], 512, 256),
        "conv_small": _make_convblock_params(keys[2], 256, 128),
        "fusion_medium": _make_convblock_params(keys[3], 768, 256),
        "fusion_small": _make_convblock_params(keys[4], 384, 128),
    }


def pack_neck_params(params):
    """f32 folded (W, b) -> kernel layout: bf16 weights, (1, Cout) f32 biases,
    fusion weights split at the channel-concat boundary (top = direct path,
    bot = upsampled path)."""
    def wb(name):
        w, b = params[name]
        return w.astype(jnp.bfloat16), b.reshape(1, -1).astype(jnp.float32)

    w_l, b_l = wb("conv_large")
    w_m, b_m = wb("conv_medium")
    w_s, b_s = wb("conv_small")
    w_fm, b_fm = wb("fusion_medium")
    w_fs, b_fs = wb("fusion_small")
    c_m = w_m.shape[1]   # conv_medium outputs come first in the medium concat
    c_s = w_s.shape[1]   # conv_small outputs come first in the small concat
    return {
        "w_l": w_l, "b_l": b_l, "w_m": w_m, "b_m": b_m, "w_s": w_s, "b_s": b_s,
        "w_fm_top": w_fm[:c_m], "w_fm_bot": w_fm[c_m:], "b_fm": b_fm,
        "w_fs_top": w_fs[:c_s], "w_fs_bot": w_fs[c_s:], "b_fs": b_fs,
    }


def _nearest2x_rows_matrix(n, h, w):
    """(n*4hw, n*hw) block-diagonal 0/1 matrix: nearest-2x upsample of batch-folded
    row-major (h, w) maps.  bf16 is exact for 0/1."""
    hw = h * w
    r = jnp.arange(n * 4 * hw)
    b = r // (4 * hw)
    within = r % (4 * hw)
    oh = within // (2 * w)
    ow = within % (2 * w)
    src = b * hw + (oh // 2) * w + (ow // 2)
    return (src[:, None] == jnp.arange(n * hw)[None, :]).astype(jnp.bfloat16)


def make_upsample_operators(batch, h_large, w_large):
    """Precompute (once, host side) both nearest-2x operators for the batch-folded layout."""
    # TODO(synk): factor per-axis (O(hw) instead of O((hw)^2)) for large detector maps.
    u_l = _nearest2x_rows_matrix(batch, h_large, w_large)            # large -> medium rows
    u_m = _nearest2x_rows_matrix(batch, 2 * h_large, 2 * w_large)    # medium -> small rows
    return u_l, u_m


# ---------------------------------------------------------------------- forward pass
@jax.jit
def neck_concat_forward_nhwc(kernel_params, u_l, u_m, small, medium, large):
    """Fused neck on NHWC inputs; returns bf16 NHWC (small, medium, large). No transposes."""
    n, hs, ws, _ = small.shape
    _, hm, wm, _ = medium.shape
    _, hl, wl, _ = large.shape
    assert hm == 2 * hl and wm == 2 * wl and hs == 2 * hm and ws == 2 * wm
    assert u_l.shape == (n * hm * wm, n * hl * wl)
    assert u_m.shape == (n * hs * ws, n * hm * wm)

    rows = lambda x: x.reshape(-1, x.shape[-1]).astype(jnp.bfloat16)   # fold batch
    s_o, m_o, l_o = _neck_fused_rows(
        kernel_params, rows(small), rows(medium), rows(large), u_l, u_m)

    return (s_o.reshape(n, hs, ws, -1),
            m_o.reshape(n, hm, wm, -1),
            l_o.reshape(n, hl, wl, -1))


@jax.jit
def neck_concat_forward(kernel_params, u_l, u_m, small_nchw, medium_nchw, large_nchw):
    """PyTorch-convention entry (NCHW in / NCHW out, bf16 outputs): one boundary
    transpose per tensor, fused with the bf16 downcast of the matmul inputs."""
    to_nhwc_bf16 = lambda x: jnp.transpose(x, (0, 2, 3, 1)).astype(jnp.bfloat16)
    s_o, m_o, l_o = neck_concat_forward_nhwc(
        kernel_params, u_l, u_m,
        to_nhwc_bf16(small_nchw), to_nhwc_bf16(medium_nchw), to_nhwc_bf16(large_nchw))
    to_nchw = lambda x: jnp.transpose(x, (0, 3, 1, 2))
    return to_nchw(s_o), to_nchw(m_o), to_nchw(l_o)


# ------------------------------------------------------------------- pure-JAX reference
def _reference_forward(params, small_nchw, medium_nchw, large_nchw):
    """f32 reference mirroring the PyTorch module op-for-op (explicit upsample+concat)."""
    def conv_block(x, w, b):            # x: NHWC, w: (cin, cout), b: (cout,)
        y = jnp.einsum("nhwc,cd->nhwd", x, w) + b
        return y * jax.nn.sigmoid(y)

    def up2(x):                          # nearest, scale_factor=2 (NHWC)
        return jnp.repeat(jnp.repeat(x, 2, axis=1), 2, axis=2)

    to_nhwc = lambda t: jnp.transpose(t, (0, 2, 3, 1))
    to_nchw = lambda t: jnp.transpose(t, (0, 3, 1, 2))

    s, m, l = to_nhwc(small_nchw), to_nhwc(medium_nchw), to_nhwc(large_nchw)
    l = conv_block(l, *params["conv_large"])
    m = conv_block(m, *params["conv_medium"])
    s = conv_block(s, *params["conv_small"])
    m = conv_block(jnp.concatenate([m, up2(l)], axis=-1), *params["fusion_medium"])
    s = conv_block(jnp.concatenate([s, up2(m)], axis=-1), *params["fusion_small"])
    return to_nchw(s), to_nchw(m), to_nchw(l)


# --------------------------------------------------------------------------------- main
if __name__ == "__main__":
    key = jax.random.PRNGKey(0)
    k_s, k_m, k_l = jax.random.split(key, 3)

    batch = 2
    small_in = jax.random.normal(k_s, (batch, 256, 16, 16), jnp.float32)
    medium_in = jax.random.normal(k_m, (batch, 512, 8, 8), jnp.float32)
    large_in = jax.random.normal(k_l, (batch, 1024, 4, 4), jnp.float32)

    params = init_neck_params(seed=0)
    kparams = pack_neck_params(params)
    u_l, u_m = make_upsample_operators(batch, 4, 4)   # large map is 4x4

    outs = neck_concat_forward(kparams, u_l, u_m, small_in, medium_in, large_in)
    jax.block_until_ready(outs)
    small_out, medium_out, large_out = outs

    assert small_out.shape == (batch, 128, 16, 16), small_out.shape
    assert medium_out.shape == (batch, 256, 8, 8), medium_out.shape
    assert large_out.shape == (batch, 512, 4, 4), large_out.shape

    # Scale-aware numerical check vs the f32 reference (bf16 MXU inputs, bf16
    # intermediates and bf16 outputs account for the tolerance).
    refs = _reference_forward(params, small_in, medium_in, large_in)
    for got, ref in zip(outs, refs):
        got = got.astype(jnp.float32)
        err = jnp.abs(got - ref)
        tol = 0.07 + 0.07 * jnp.abs(ref)
        assert bool(jnp.all(err <= tol)), (
            f"max abs err {float(jnp.max(err))}, "
            f"max rel err {float(jnp.max(err / (jnp.abs(ref) + 1e-3)))}")

    print("KERNEL_OK")
</pallas_src>

<mosaic_0001>
module attributes {stable_mosaic.version = 11 : i64} {
  func.func @_neck_fused_kernel(%arg0: memref<512x256xbf16, #tpu.memory_space<vmem>>, %arg1: memref<128x512xbf16, #tpu.memory_space<vmem>>, %arg2: memref<32x1024xbf16, #tpu.memory_space<vmem>>, %arg3: memref<1024x512xbf16, #tpu.memory_space<vmem>>, %arg4: memref<1x512xf32, #tpu.memory_space<vmem>>, %arg5: memref<512x256xbf16, #tpu.memory_space<vmem>>, %arg6: memref<1x256xf32, #tpu.memory_space<vmem>>, %arg7: memref<256x128xbf16, #tpu.memory_space<vmem>>, %arg8: memref<1x128xf32, #tpu.memory_space<vmem>>, %arg9: memref<1x256xf32, #tpu.memory_space<vmem>>, %arg10: memref<1x128xf32, #tpu.memory_space<vmem>>, %arg11: memref<128x32xbf16, #tpu.memory_space<vmem>>, %arg12: memref<512x128xbf16, #tpu.memory_space<vmem>>, %arg13: memref<256x256xbf16, #tpu.memory_space<any>>, %arg14: memref<512x256xbf16, #tpu.memory_space<any>>, %arg15: memref<128x128xbf16, #tpu.memory_space<any>>, %arg16: memref<256x128xbf16, #tpu.memory_space<any>>, %arg17: memref<512x128xbf16, #tpu.memory_space<vmem>>, %arg18: memref<128x256xbf16, #tpu.memory_space<vmem>>, %arg19: memref<32x512xbf16, #tpu.memory_space<vmem>>, %arg20: memref<256x256xbf16, #tpu.memory_space<vmem>>, %arg21: memref<512x256xbf16, #tpu.memory_space<vmem>>, %arg22: memref<128x128xbf16, #tpu.memory_space<vmem>>, %arg23: memref<256x128xbf16, #tpu.memory_space<vmem>>, %arg24: memref<4x!tpu.dma_semaphore, #tpu.memory_space<semaphore_mem>>) attributes {dimension_semantics = [], scalar_prefetch = 0 : i64, scratch_operands = 5 : i64, tpu.core_type = #tpu.core_type<tc>} {
    %c0_i32 = arith.constant 0 : i32
    %0 = tpu.memref_slice %arg24[%c0_i32] : memref<4x!tpu.dma_semaphore, #tpu.memory_space<semaphore_mem>> -> memref<1x!tpu.dma_semaphore, #tpu.memory_space<semaphore_mem>>
    %1 = tpu.memref_squeeze %0 : memref<1x!tpu.dma_semaphore, #tpu.memory_space<semaphore_mem>> -> memref<!tpu.dma_semaphore, #tpu.memory_space<semaphore_mem>>
    tpu.enqueue_dma source(%arg13 : memref<256x256xbf16, #tpu.memory_space<any>>) target(%arg20 : memref<256x256xbf16, #tpu.memory_space<vmem>>) target_semaphore(%1 : memref<!tpu.dma_semaphore, #tpu.memory_space<semaphore_mem>>)
    %c1_i32 = arith.constant 1 : i32
    %2 = tpu.memref_slice %arg24[%c1_i32] : memref<4x!tpu.dma_semaphore, #tpu.memory_space<semaphore_mem>> -> memref<1x!tpu.dma_semaphore, #tpu.memory_space<semaphore_mem>>
    %3 = tpu.memref_squeeze %2 : memref<1x!tpu.dma_semaphore, #tpu.memory_space<semaphore_mem>> -> memref<!tpu.dma_semaphore, #tpu.memory_space<semaphore_mem>>
    tpu.enqueue_dma source(%arg14 : memref<512x256xbf16, #tpu.memory_space<any>>) target(%arg21 : memref<512x256xbf16, #tpu.memory_space<vmem>>) target_semaphore(%3 : memref<!tpu.dma_semaphore, #tpu.memory_space<semaphore_mem>>)
    %c2_i32 = arith.constant 2 : i32
    %4 = tpu.memref_slice %arg24[%c2_i32] : memref<4x!tpu.dma_semaphore, #tpu.memory_space<semaphore_mem>> -> memref<1x!tpu.dma_semaphore, #tpu.memory_space<semaphore_mem>>
    %5 = tpu.memref_squeeze %4 : memref<1x!tpu.dma_semaphore, #tpu.memory_space<semaphore_mem>> -> memref<!tpu.dma_semaphore, #tpu.memory_space<semaphore_mem>>
    tpu.enqueue_dma source(%arg15 : memref<128x128xbf16, #tpu.memory_space<any>>) target(%arg22 : memref<128x128xbf16, #tpu.memory_space<vmem>>) target_semaphore(%5 : memref<!tpu.dma_semaphore, #tpu.memory_space<semaphore_mem>>)
    %c3_i32 = arith.constant 3 : i32
    %6 = tpu.memref_slice %arg24[%c3_i32] : memref<4x!tpu.dma_semaphore, #tpu.memory_space<semaphore_mem>> -> memref<1x!tpu.dma_semaphore, #tpu.memory_space<semaphore_mem>>
    %7 = tpu.memref_squeeze %6 : memref<1x!tpu.dma_semaphore, #tpu.memory_space<semaphore_mem>> -> memref<!tpu.dma_semaphore, #tpu.memory_space<semaphore_mem>>
    tpu.enqueue_dma source(%arg16 : memref<256x128xbf16, #tpu.memory_space<any>>) target(%arg23 : memref<256x128xbf16, #tpu.memory_space<vmem>>) target_semaphore(%7 : memref<!tpu.dma_semaphore, #tpu.memory_space<semaphore_mem>>)
    %c0 = arith.constant 0 : index
    %c0_0 = arith.constant 0 : index
    %8 = vector.load %arg2[%c0, %c0_0] : memref<32x1024xbf16, #tpu.memory_space<vmem>>, vector<32x1024xbf16>
    %c0_1 = arith.constant 0 : index
    %c0_2 = arith.constant 0 : index
    %9 = vector.load %arg3[%c0_1, %c0_2] : memref<1024x512xbf16, #tpu.memory_space<vmem>>, vector<1024x512xbf16>
    %cst = arith.constant dense<0.000000e+00> : vector<32x512xf32>
    %10 = tpu.matmul %8, %9, %cst {dimension_numbers = #tpu.dot_dimension_numbers<[1], [0], [0], [1], [0, 0, 1, 1], [], []>} : vector<32x1024xbf16>, vector<1024x512xbf16>, vector<32x512xf32> -> vector<32x512xf32>
    %c0_3 = arith.constant 0 : index
    %c0_4 = arith.constant 0 : index
    %11 = vector.load %arg4[%c0_3, %c0_4] : memref<1x512xf32, #tpu.memory_space<vmem>>, vector<1x512xf32>
    %12 = vector.broadcast %11 : vector<1x512xf32> to vector<32x512xf32>
    %13 = arith.addf %10, %12 : vector<32x512xf32>
    %14 = arith.negf %13 : vector<32x512xf32>
    %15 = math.exp %14 : vector<32x512xf32>
    %cst_5 = arith.constant 1.000000e+00 : f32
    %16 = vector.broadcast %cst_5 : f32 to vector<32x512xf32>
    %17 = arith.addf %16, %15 : vector<32x512xf32>
    %18 = arith.divf %16, %17 : vector<32x512xf32>
    %19 = arith.mulf %13, %18 : vector<32x512xf32>
    %20 = arith.truncf %19 : vector<32x512xf32> to vector<32x512xbf16>
    %c0_6 = arith.constant 0 : index
    %c0_7 = arith.constant 0 : index
    %21 = vector.load %arg19[%c0_6, %c0_7] : memref<32x512xbf16, #tpu.memory_space<vmem>>, vector<32x512xbf16>
    tpu.vector_store %arg19[%c0_6, %c0_7], %20 {strides = array<i32>} : memref<32x512xbf16, #tpu.memory_space<vmem>>, vector<32x512xbf16>,
    %c0_8 = arith.constant 0 : index
    %c0_9 = arith.constant 0 : index
    %22 = vector.load %arg1[%c0_8, %c0_9] : memref<128x512xbf16, #tpu.memory_space<vmem>>, vector<128x512xbf16>
    %c0_10 = arith.constant 0 : index
    %c0_11 = arith.constant 0 : index
    %23 = vector.load %arg5[%c0_10, %c0_11] : memref<512x256xbf16, #tpu.memory_space<vmem>>, vector<512x256xbf16>
    %cst_12 = arith.constant dense<0.000000e+00> : vector<128x256xf32>
    %24 = tpu.matmul %22, %23, %cst_12 {dimension_numbers = #tpu.dot_dimension_numbers<[1], [0], [0], [1], [0, 0, 1, 1], [], []>} : vector<128x512xbf16>, vector<512x256xbf16>, vector<128x256xf32> -> vector<128x256xf32>
    %c0_13 = arith.constant 0 : index
    %c0_14 = arith.constant 0 : index
    %25 = vector.load %arg6[%c0_13, %c0_14] : memref<1x256xf32, #tpu.memory_space<vmem>>, vector<1x256xf32>
    %26 = vector.broadcast %25 : vector<1x256xf32> to vector<128x256xf32>
    %27 = arith.addf %24, %26 : vector<128x256xf32>
    %28 = arith.negf %27 : vector<128x256xf32>
    %29 = math.exp %28 : vector<128x256xf32>
    %cst_15 = arith.constant 1.000000e+00 : f32
    %30 = vector.broadcast %cst_15 : f32 to vector<128x256xf32>
    %31 = arith.addf %30, %29 : vector<128x256xf32>
    %32 = arith.divf %30, %31 : vector<128x256xf32>
    %33 = arith.mulf %27, %32 : vector<128x256xf32>
    %34 = arith.truncf %33 : vector<128x256xf32> to vector<128x256xbf16>
    %c0_i32_16 = arith.constant 0 : i32
    %35 = tpu.memref_slice %arg24[%c0_i32_16] : memref<4x!tpu.dma_semaphore, #tpu.memory_space<semaphore_mem>> -> memref<1x!tpu.dma_semaphore, #tpu.memory_space<semaphore_mem>>
    %36 = tpu.memref_squeeze %35 : memref<1x!tpu.dma_semaphore, #tpu.memory_space<semaphore_mem>> -> memref<!tpu.dma_semaphore, #tpu.memory_space<semaphore_mem>>
    tpu.wait_dma2 semaphore(%36 : memref<!tpu.dma_semaphore, #tpu.memory_space<semaphore_mem>>) src(%arg13 : memref<256x256xbf16, #tpu.memory_space<any>>) dst(%arg20 : memref<256x256xbf16, #tpu.memory_space<vmem>>)
    %c1_i32_17 = arith.constant 1 : i32
    %37 = tpu.memref_slice %arg24[%c1_i32_17] : memref<4x!tpu.dma_semaphore, #tpu.memory_space<semaphore_mem>> -> memref<1x!tpu.dma_semaphore, #tpu.memory_space<semaphore_mem>>
    %38 = tpu.memref_squeeze %37 : memref<1x!tpu.dma_semaphore, #tpu.memory_space<semaphore_mem>> -> memref<!tpu.dma_semaphore, #tpu.memory_space<semaphore_mem>>
    tpu.wait_dma2 semaphore(%38 : memref<!tpu.dma_semaphore, #tpu.memory_space<semaphore_mem>>) src(%arg14 : memref<512x256xbf16, #tpu.memory_space<any>>) dst(%arg21 : memref<512x256xbf16, #tpu.memory_space<vmem>>)
    %c0_18 = arith.constant 0 : index
    %c0_19 = arith.constant 0 : index
    %39 = vector.load %arg21[%c0_18, %c0_19] : memref<512x256xbf16, #tpu.memory_space<vmem>>, vector<512x256xbf16>
    %cst_20 = arith.constant dense<0.000000e+00> : vector<32x256xf32>
    %40 = tpu.matmul %20, %39, %cst_20 {dimension_numbers = #tpu.dot_dimension_numbers<[1], [0], [0], [1], [0, 0, 1, 1], [], []>} : vector<32x512xbf16>, vector<512x256xbf16>, vector<32x256xf32> -> vector<32x256xf32>
    %c0_21 = arith.constant 0 : index
    %c0_22 = arith.constant 0 : index
    %41 = vector.load %arg11[%c0_21, %c0_22] : memref<128x32xbf16, #tpu.memory_space<vmem>>, vector<128x32xbf16>
    %42 = arith.truncf %40 : vector<32x256xf32> to vector<32x256xbf16>
    %cst_23 = arith.constant dense<0.000000e+00> : vector<128x256xf32>
    %43 = tpu.matmul %41, %42, %cst_23 {dimension_numbers = #tpu.dot_dimension_numbers<[1], [0], [0], [1], [0, 0, 1, 1], [], []>} : vector<128x32xbf16>, vector<32x256xbf16>, vector<128x256xf32> -> vector<128x256xf32>
    %c0_24 = arith.constant 0 : index
    %c0_25 = arith.constant 0 : index
    %44 = vector.load %arg20[%c0_24, %c0_25] : memref<256x256xbf16, #tpu.memory_space<vmem>>, vector<256x256xbf16>
    %cst_26 = arith.constant dense<0.000000e+00> : vector<128x256xf32>
    %45 = tpu.matmul %34, %44, %cst_26 {dimension_numbers = #tpu.dot_dimension_numbers<[1], [0], [0], [1], [0, 0, 1, 1], [], []>} : vector<128x256xbf16>, vector<256x256xbf16>, vector<128x256xf32> -> vector<128x256xf32>
    %46 = arith.addf %45, %43 : vector<128x256xf32>
    %c0_27 = arith.constant 0 : index
    %c0_28 = arith.constant 0 : index
    %47 = vector.load %arg9[%c0_27, %c0_28] : memref<1x256xf32, #tpu.memory_space<vmem>>, vector<1x256xf32>
    %48 = vector.broadcast %47 : vector<1x256xf32> to vector<128x256xf32>
    %49 = arith.addf %46, %48 : vector<128x256xf32>
    %50 = arith.negf %49 : vector<128x256xf32>
    %51 = math.exp %50 : vector<128x256xf32>
    %cst_29 = arith.constant 1.000000e+00 : f32
    %52 = vector.broadcast %cst_29 : f32 to vector<128x256xf32>
    %53 = arith.addf %52, %51 : vector<128x256xf32>
    %54 = arith.divf %52, %53 : vector<128x256xf32>
    %55 = arith.mulf %49, %54 : vector<128x256xf32>
    %56 = arith.truncf %55 : vector<128x256xf32> to vector<128x256xbf16>
    %c0_30 = arith.constant 0 : index
    %c0_31 = arith.constant 0 : index
    %57 = vector.load %arg18[%c0_30, %c0_31] : memref<128x256xbf16, #tpu.memory_space<vmem>>, vector<128x256xbf16>
    tpu.vector_store %arg18[%c0_30, %c0_31], %56 {strides = array<i32>} : memref<128x256xbf16, #tpu.memory_space<vmem>>, vector<128x256xbf16>,
    %c0_32 = arith.constant 0 : index
    %c0_33 = arith.constant 0 : index
    %58 = vector.load %arg0[%c0_32, %c0_33] : memref<512x256xbf16, #tpu.memory_space<vmem>>, vector<512x256xbf16>
    %c0_34 = arith.constant 0 : index
    %c0_35 = arith.constant 0 : index
    %59 = vector.load %arg7[%c0_34, %c0_35] : memref<256x128xbf16, #tpu.memory_space<vmem>>, vector<256x128xbf16>
    %cst_36 = arith.constant dense<0.000000e+00> : vector<512x128xf32>
    %60 = tpu.matmul %58, %59, %cst_36 {dimension_numbers = #tpu.dot_dimension_numbers<[1], [0], [0], [1], [0, 0, 1, 1], [], []>} : vector<512x256xbf16>, vector<256x128xbf16>, vector<512x128xf32> -> vector<512x128xf32>
    %c0_37 = arith.constant 0 : index
    %c0_38 = arith.constant 0 : index
    %61 = vector.load %arg8[%c0_37, %c0_38] : memref<1x128xf32, #tpu.memory_space<vmem>>, vector<1x128xf32>
    %62 = vector.broadcast %61 : vector<1x128xf32> to vector<512x128xf32>
    %63 = arith.addf %60, %62 : vector<512x128xf32>
    %64 = arith.negf %63 : vector<512x128xf32>
    %65 = math.exp %64 : vector<512x128xf32>
    %cst_39 = arith.constant 1.000000e+00 : f32
    %66 = vector.broadcast %cst_39 : f32 to vector<512x128xf32>
    %67 = arith.addf %66, %65 : vector<512x128xf32>
    %68 = arith.divf %66, %67 : vector<512x128xf32>
    %69 = arith.mulf %63, %68 : vector<512x128xf32>
    %70 = arith.truncf %69 : vector<512x128xf32> to vector<512x128xbf16>
    %c2_i32_40 = arith.constant 2 : i32
    %71 = tpu.memref_slice %arg24[%c2_i32_40] : memref<4x!tpu.dma_semaphore, #tpu.memory_space<semaphore_mem>> -> memref<1x!tpu.dma_semaphore, #tpu.memory_space<semaphore_mem>>
    %72 = tpu.memref_squeeze %71 : memref<1x!tpu.dma_semaphore, #tpu.memory_space<semaphore_mem>> -> memref<!tpu.dma_semaphore, #tpu.memory_space<semaphore_mem>>
    tpu.wait_dma2 semaphore(%72 : memref<!tpu.dma_semaphore, #tpu.memory_space<semaphore_mem>>) src(%arg15 : memref<128x128xbf16, #tpu.memory_space<any>>) dst(%arg22 : memref<128x128xbf16, #tpu.memory_space<vmem>>)
    %c3_i32_41 = arith.constant 3 : i32
    %73 = tpu.memref_slice %arg24[%c3_i32_41] : memref<4x!tpu.dma_semaphore, #tpu.memory_space<semaphore_mem>> -> memref<1x!tpu.dma_semaphore, #tpu.memory_space<semaphore_mem>>
    %74 = tpu.memref_squeeze %73 : memref<1x!tpu.dma_semaphore, #tpu.memory_space<semaphore_mem>> -> memref<!tpu.dma_semaphore, #tpu.memory_space<semaphore_mem>>
    tpu.wait_dma2 semaphore(%74 : memref<!tpu.dma_semaphore, #tpu.memory_space<semaphore_mem>>) src(%arg16 : memref<256x128xbf16, #tpu.memory_space<any>>) dst(%arg23 : memref<256x128xbf16, #tpu.memory_space<vmem>>)
    %c0_42 = arith.constant 0 : index
    %c0_43 = arith.constant 0 : index
    %75 = vector.load %arg23[%c0_42, %c0_43] : memref<256x128xbf16, #tpu.memory_space<vmem>>, vector<256x128xbf16>
    %cst_44 = arith.constant dense<0.000000e+00> : vector<128x128xf32>
    %76 = tpu.matmul %56, %75, %cst_44 {dimension_numbers = #tpu.dot_dimension_numbers<[1], [0], [0], [1], [0, 0, 1, 1], [], []>} : vector<128x256xbf16>, vector<256x128xbf16>, vector<128x128xf32> -> vector<128x128xf32>
    %c0_45 = arith.constant 0 : index
    %c0_46 = arith.constant 0 : index
    %77 = vector.load %arg12[%c0_45, %c0_46] : memref<512x128xbf16, #tpu.memory_space<vmem>>, vector<512x128xbf16>
    %78 = arith.truncf %76 : vector<128x128xf32> to vector<128x128xbf16>
    %cst_47 = arith.constant dense<0.000000e+00> : vector<512x128xf32>
    %79 = tpu.matmul %77, %78, %cst_47 {dimension_numbers = #tpu.dot_dimension_numbers<[1], [0], [0], [1], [0, 0, 1, 1], [], []>} : vector<512x128xbf16>, vector<128x128xbf16>, vector<512x128xf32> -> vector<512x128xf32>
    %c0_48 = arith.constant 0 : index
    %c0_49 = arith.constant 0 : index
    %80 = vector.load %arg22[%c0_48, %c0_49] : memref<128x128xbf16, #tpu.memory_space<vmem>>, vector<128x128xbf16>
    %cst_50 = arith.constant dense<0.000000e+00> : vector<512x128xf32>
    %81 = tpu.matmul %70, %80, %cst_50 {dimension_numbers = #tpu.dot_dimension_numbers<[1], [0], [0], [1], [0, 0, 1, 1], [], []>} : vector<512x128xbf16>, vector<128x128xbf16>, vector<512x128xf32> -> vector<512x128xf32>
    %82 = arith.addf %81, %79 : vector<512x128xf32>
    %c0_51 = arith.constant 0 : index
    %c0_52 = arith.constant 0 : index
    %83 = vector.load %arg10[%c0_51, %c0_52] : memref<1x128xf32, #tpu.memory_space<vmem>>, vector<1x128xf32>
    %84 = vector.broadcast %83 : vector<1x128xf32> to vector<512x128xf32>
    %85 = arith.addf %82, %84 : vector<512x128xf32>
    %86 = arith.negf %85 : vector<512x128xf32>
    %87 = math.exp %86 : vector<512x128xf32>
    %cst_53 = arith.constant 1.000000e+00 : f32
    %88 = vector.broadcast %cst_53 : f32 to vector<512x128xf32>
    %89 = arith.addf %88, %87 : vector<512x128xf32>
    %90 = arith.divf %88, %89 : vector<512x128xf32>
    %91 = arith.mulf %85, %90 : vector<512x128xf32>
    %92 = arith.truncf %91 : vector<512x128xf32> to vector<512x128xbf16>
    %c0_54 = arith.constant 0 : index
    %c0_55 = arith.constant 0 : index
    %93 = vector.load %arg17[%c0_54, %c0_55] : memref<512x128xbf16, #tpu.memory_space<vmem>>, vector<512x128xbf16>
    tpu.vector_store %arg17[%c0_54, %c0_55], %92 {strides = array<i32>} : memref<512x128xbf16, #tpu.memory_space<vmem>>, vector<512x128xbf16>,
    return
  }
}

</mosaic_0001>

<llo_original>
// kernel: neck_concat_forward_nhwc.1
$region0: #{neck_concat_forward_nhwc.1}
  #allocation0 [shape = 'u32[]', space=smem, size = 0x4, offset = 0x4, fixed_abs, tag = 'smem constant byte address 0x4 - core index']
  #allocation1 [shape = 'u32[144,128]{1,0:T(1,128)}', space=vmem, size = 0x12000, scoped, tag = 'internal scratch']
  #allocation2 [shape = 'bf16[256,256]{1,0:T(16,128)(2,1)}', space=vmem, size = 0x20000, scoped, tag = 'scratch operand']
  #allocation3 [shape = 'bf16[512,256]{1,0:T(16,128)(2,1)}', space=vmem, size = 0x40000, scoped, tag = 'scratch operand']
  #allocation4 [shape = 'bf16[128,128]{1,0:T(16,128)(2,1)}', space=vmem, size = 0x8000, scoped, tag = 'scratch operand']
  #allocation5 [shape = 'bf16[256,128]{1,0:T(16,128)(2,1)}', space=vmem, size = 0x10000, scoped, tag = 'scratch operand']
  #allocation6 [shape = 's32[4]{0}', space=sflag, size = 0x10, scoped, tag = 'scratch operand']
  #allocation18 [shape = 's32[]', space=sflag, size = 0x4, offset = 0, fixed_abs, tag = 'sflag constant byte address 0x0 - dummy sync flag']
  #allocation20 [shape = 's32[]', space=sflag, size = 0x4, offset = 0, fixed_abs, tag = 'sflag constant byte address 0x0 - dummy sync flag']
  #allocation22 [shape = 's32[]', space=sflag, size = 0x4, offset = 0, fixed_abs, tag = 'sflag constant byte address 0x0 - dummy sync flag']
  #allocation23 [shape = 's32[]', space=sflag, size = 0x4, offset = 0, fixed_abs, tag = 'sflag constant byte address 0x0 - dummy sync flag']
  #allocation24 [shape = 'u32[]', space=smem, size = 0x4, offset = 0x44, fixed_abs, tag = 'smem constant byte address 0x44 - assertion arg 0']
  #allocation25 [shape = 'u32[]', space=smem, size = 0x4, offset = 0x48, fixed_abs, tag = 'smem constant byte address 0x48 - assertion arg 1']
  #allocation26 [shape = 's32[]', space=sflag, size = 0x4, offset = 0, fixed_abs, tag = 'sflag constant byte address 0x0 - dummy sync flag']
  #allocation27 [shape = 's32[]', space=sflag, size = 0x4, offset = 0, fixed_abs, tag = 'sflag constant byte address 0x0 - dummy sync flag']
  %s0 = inlined_call_operand.hbm [shape: bf16[512,256], index: 0, kind: input, shape index: {}]
  %s1 = inlined_call_operand.vmem [shape: bf16[128,512], index: 1, kind: input, shape index: {}]
  %s2 = inlined_call_operand.vmem [shape: bf16[32,1024], index: 2, kind: input, shape index: {}]
  %s3 = inlined_call_operand.hbm [shape: bf16[1024,512], index: 3, kind: input, shape index: {}]
  %s4 = inlined_call_operand.vmem [shape: f32[1,512], index: 4, kind: input, shape index: {}]
  %s5 = inlined_call_operand.hbm [shape: bf16[512,256], index: 5, kind: input, shape index: {}]
  %s6 = inlined_call_operand.vmem [shape: f32[1,256], index: 6, kind: input, shape index: {}]
  %s7 = inlined_call_operand.vmem [shape: bf16[256,128], index: 7, kind: input, shape index: {}]
  %s8 = inlined_call_operand.vmem [shape: f32[1,128], index: 8, kind: input, shape index: {}]
  %s9 = inlined_call_operand.vmem [shape: f32[1,256], index: 9, kind: input, shape index: {}]
  %s10 = inlined_call_operand.vmem [shape: f32[1,128], index: 10, kind: input, shape index: {}]
  %s11 = inlined_call_operand.vmem [shape: bf16[128,32], index: 11, kind: input, shape index: {}]
  %s12 = inlined_call_operand.hbm [shape: bf16[512,128], index: 12, kind: input, shape index: {}]
  %s13 = inlined_call_operand.hbm [shape: bf16[256,256], index: 13, kind: input, shape index: {}]
  %s14 = inlined_call_operand.hbm [shape: bf16[512,256], index: 14, kind: input, shape index: {}]
  %s15 = inlined_call_operand.hbm [shape: bf16[128,128], index: 15, kind: input, shape index: {}]
  %s16 = inlined_call_operand.hbm [shape: bf16[256,128], index: 16, kind: input, shape index: {}]
  %s17 = inlined_call_operand.hbm [shape: bf16[512,128], index: 17, kind: output, shape index: {0}]
  %s18 = inlined_call_operand.hbm [shape: bf16[128,256], index: 18, kind: output, shape index: {1}]
  %s19 = inlined_call_operand.vmem [shape: bf16[32,512], index: 19, kind: output, shape index: {2}]
  %20 = xla_tuple %s17, %s18, %s19
  %s21 = sld [smem:[#allocation0]]
  $region102: #{neck_concat_forward_nhwc.1} parent=0
    _
  %s23 = ssub.s32 1, %s21
  %s24 = scalar_select 0, %s23, %s21
  $region1: #{neck_concat_forward_nhwc.1} parent=0
    #allocation7 [shape = 'u8[262144]{0}', space=vmem, size = 0x40000, scoped, tag = 'input window, operand 0, single buffered']
    #allocation8 [shape = 's32[1]{0}', space=sflag, size = 0x4, scoped, tag = 'scoped memory for neck_concat_forward_nhwc.1']
    #allocation9 [shape = 's32[1]{0}', space=sflag, size = 0x4, scoped, tag = 'scoped memory for neck_concat_forward_nhwc.1']
    #allocation10 [shape = 'u8[1048576]{0}', space=vmem, size = 0x100000, scoped, tag = 'input window, operand 3, single buffered']
    #allocation11 [shape = 's32[1]{0}', space=sflag, size = 0x4, scoped, tag = 'scoped memory for neck_concat_forward_nhwc.1']
    #allocation12 [shape = 'u8[262144]{0}', space=vmem, size = 0x40000, scoped, tag = 'input window, operand 5, single buffered']
    #allocation13 [shape = 'u8[131072]{0}', space=vmem, size = 0x20000, scoped, tag = 'input window, operand 12, single buffered']
    #allocation14 [shape = 's32[1]{0}', space=sflag, size = 0x4, scoped, tag = 'scoped memory for neck_concat_forward_nhwc.1']
    #allocation15 [shape = 'u8[131072]{0}', space=vmem, size = 0x20000, scoped, tag = 'output window, operand 0, single buffered']
    #allocation16 [shape = 'u8[65536]{0}', space=vmem, size = 0x10000, scoped, tag = 'output window, operand 1, single buffered']
    #allocation17 [shape = 's32[1]{0}', space=sflag, size = 0x4, scoped, tag = 'scoped memory for neck_concat_forward_nhwc.1']
    #allocation19 [shape = 'u32[9]{0}', space=smem, size = 0x24, scoped, tag = 'DMA stride descriptor']
    #allocation21 [shape = 'u32[9]{0}', space=smem, size = 0x24, scoped, tag = 'DMA stride descriptor']
    %25 = vsyncpa [#allocation8], 0
    %26 = vsyncpa [#allocation11], 0
    %27 = vsyncpa [#allocation14], 0
    %28 = vsyncpa [#allocation9], 0
    %29 = vsyncpa [#allocation17], 0
    // Predicated region
    $region2: #{neck_concat_forward_nhwc.1} parent=1 // pred_check
      _
    $region3: #{neck_concat_forward_nhwc.1} parent=1 // pred_check_branch
      %31 = sbr.rel (0) target = $region5
    $region4: #{neck_concat_forward_nhwc.1} parent=1 // pred_region
      %s33 = ssub.s32 8192, 8192
      %34 = vsyncadd [#allocation8], %s33
      %s35 = sshll.u32 [#allocation7], 4
      %s36 = int_to_ptr.vmem [resolvable:$true] %s35
      %41 = dma.hbm_to_vmem [thread:$0]  %s0, 8192, %s36, [#allocation8], 128, 128, 8
    $region5: #{neck_concat_forward_nhwc.1} parent=1 // pred_fallthru
      _
    // Predicated region
    $region6: #{neck_concat_forward_nhwc.1} parent=1 // pred_check
      _
    $region7: #{neck_concat_forward_nhwc.1} parent=1 // pred_check_branch
      %43 = sbr.rel (0) target = $region9
    $region8: #{neck_concat_forward_nhwc.1} parent=1 // pred_region
      _
    $region9: #{neck_concat_forward_nhwc.1} parent=1 // pred_fallthru
      _
    // Predicated region
    $region10: #{neck_concat_forward_nhwc.1} parent=1 // pred_check
      _
    $region11: #{neck_concat_forward_nhwc.1} parent=1 // pred_check_branch
      %45 = sbr.rel (0) target = $region13
    $region12: #{neck_concat_forward_nhwc.1} parent=1 // pred_region
      _
    $region13: #{neck_concat_forward_nhwc.1} parent=1 // pred_fallthru
      _
    // Predicated region
    $region14: #{neck_concat_forward_nhwc.1} parent=1 // pred_check
      _
    $region15: #{neck_concat_forward_nhwc.1} parent=1 // pred_check_branch
      %47 = sbr.rel (0) target = $region17
    $region16: #{neck_concat_forward_nhwc.1} parent=1 // pred_region
      %s49 = ssub.s32 32768, 32768
      %50 = vsyncadd [#allocation11], %s49
      %s51 = sshll.u32 [#allocation10], 4
      %s52 = int_to_ptr.vmem [resolvable:$true] %s51
      %57 = dma.hbm_to_vmem [thread:$0]  %s3, 32768, %s52, [#allocation11], 256, 256, 16
    $region17: #{neck_concat_forward_nhwc.1} parent=1 // pred_fallthru
      _
    // Predicated region
    $region18: #{neck_concat_forward_nhwc.1} parent=1 // pred_check
      _
    $region19: #{neck_concat_forward_nhwc.1} parent=1 // pred_check_branch
      %59 = sbr.rel (0) target = $region21
    $region20: #{neck_concat_forward_nhwc.1} parent=1 // pred_region
      _
    $region21: #{neck_concat_forward_nhwc.1} parent=1 // pred_fallthru
      _
    // Predicated region
    $region22: #{neck_concat_forward_nhwc.1} parent=1 // pred_check
      _
    $region23: #{neck_concat_forward_nhwc.1} parent=1 // pred_check_branch
      %61 = sbr.rel (0) target = $region25
    $region24: #{neck_concat_forward_nhwc.1} parent=1 // pred_region
      %s63 = ssub.s32 8192, 8192
      %64 = vsyncadd [#allocation11], %s63
      %s65 = sshll.u32 [#allocation12], 4
      %s66 = int_to_ptr.vmem [resolvable:$true] %s65
      %71 = dma.hbm_to_vmem [thread:$0]  %s5, 8192, %s66, [#allocation11], 128, 128, 8
    $region25: #{neck_concat_forward_nhwc.1} parent=1 // pred_fallthru
      _
    // Predicated region
    $region26: #{neck_concat_forward_nhwc.1} parent=1 // pred_check
      _
    $region27: #{neck_concat_forward_nhwc.1} parent=1 // pred_check_branch
      %73 = sbr.rel (0) target = $region29
    $region28: #{neck_concat_forward_nhwc.1} parent=1 // pred_region
      _
    $region29: #{neck_concat_forward_nhwc.1} parent=1 // pred_fallthru
      _
    // Predicated region
    $region30: #{neck_concat_forward_nhwc.1} parent=1 // pred_check
      _
    $region31: #{neck_concat_forward_nhwc.1} parent=1 // pred_check_branch
      %75 = sbr.rel (0) target = $region33
    $region32: #{neck_concat_forward_nhwc.1} parent=1 // pred_region
      _
    $region33: #{neck_concat_forward_nhwc.1} parent=1 // pred_fallthru
      _
    // Predicated region
    $region34: #{neck_concat_forward_nhwc.1} parent=1 // pred_check
      _
    $region35: #{neck_concat_forward_nhwc.1} parent=1 // pred_check_branch
      %77 = sbr.rel (0) target = $region37
    $region36: #{neck_concat_forward_nhwc.1} parent=1 // pred_region
      _
    $region37: #{neck_concat_forward_nhwc.1} parent=1 // pred_fallthru
      _
    // Predicated region
    $region38: #{neck_concat_forward_nhwc.1} parent=1 // pred_check
      _
    $region39: #{neck_concat_forward_nhwc.1} parent=1 // pred_check_branch
      %79 = sbr.rel (0) target = $region41
    $region40: #{neck_concat_forward_nhwc.1} parent=1 // pred_region
      _
    $region41: #{neck_concat_forward_nhwc.1} parent=1 // pred_fallthru
      _
    // Predicated region
    $region42: #{neck_concat_forward_nhwc.1} parent=1 // pred_check
      _
    $region43: #{neck_concat_forward_nhwc.1} parent=1 // pred_check_branch
      %81 = sbr.rel (0) target = $region45
    $region44: #{neck_concat_forward_nhwc.1} parent=1 // pred_region
      _
    $region45: #{neck_concat_forward_nhwc.1} parent=1 // pred_fallthru
      _
    // Predicated region
    $region46: #{neck_concat_forward_nhwc.1} parent=1 // pred_check
      _
    $region47: #{neck_concat_forward_nhwc.1} parent=1 // pred_check_branch
      %83 = sbr.rel (0) target = $region49
    $region48: #{neck_concat_forward_nhwc.1} parent=1 // pred_region
      _
    $region49: #{neck_concat_forward_nhwc.1} parent=1 // pred_fallthru
      _
    // Predicated region
    $region50: #{neck_concat_forward_nhwc.1} parent=1 // pred_check
      _
    $region51: #{neck_concat_forward_nhwc.1} parent=1 // pred_check_branch
      %85 = sbr.rel (0) target = $region53
    $region52: #{neck_concat_forward_nhwc.1} parent=1 // pred_region
      %s87 = ssub.s32 4096, 4096
      %88 = vsyncadd [#allocation14], %s87
      %s89 = sshll.u32 [#allocation13], 4
      %s90 = int_to_ptr.vmem [resolvable:$true] %s89
      %95 = dma.hbm_to_vmem [thread:$0]  %s12, 4096, %s90, [#allocation14], 64, 64, 4
    $region53: #{neck_concat_forward_nhwc.1} parent=1 // pred_fallthru
      _
    // Predicated region
    $region54: #{neck_concat_forward_nhwc.1} parent=1 // pred_check
      _
    $region55: #{neck_concat_forward_nhwc.1} parent=1 // pred_check_branch
      %97 = sbr.rel (0) target = $region57
    $region56: #{neck_concat_forward_nhwc.1} parent=1 // pred_region
      %98 = dma.done [#allocation8], 8192
    $region57: #{neck_concat_forward_nhwc.1} parent=1 // pred_fallthru
      _
    // Predicated region
    $region58: #{neck_concat_forward_nhwc.1} parent=1 // pred_check
      _
    $region59: #{neck_concat_forward_nhwc.1} parent=1 // pred_check_branch
      %100 = sbr.rel (0) target = $region61
    $region60: #{neck_concat_forward_nhwc.1} parent=1 // pred_region
      %101 = dma.done [#allocation11], 32768
    $region61: #{neck_concat_forward_nhwc.1} parent=1 // pred_fallthru
      _
    // Predicated region
    $region62: #{neck_concat_forward_nhwc.1} parent=1 // pred_check
      _
    $region63: #{neck_concat_forward_nhwc.1} parent=1 // pred_check_branch
      %103 = sbr.rel (0) target = $region65
    $region64: #{neck_concat_forward_nhwc.1} parent=1 // pred_region
      %104 = dma.done [#allocation11], 8192
    $region65: #{neck_concat_forward_nhwc.1} parent=1 // pred_fallthru
      _
    // Predicated region
    $region66: #{neck_concat_forward_nhwc.1} parent=1 // pred_check
      _
    $region67: #{neck_concat_forward_nhwc.1} parent=1 // pred_check_branch
      %106 = sbr.rel (0) target = $region69
    $region68: #{neck_concat_forward_nhwc.1} parent=1 // pred_region
      %107 = dma.done [#allocation14], 4096
    $region69: #{neck_concat_forward_nhwc.1} parent=1 // pred_fallthru
      _
    %s110 = sshll.u32 1, 14
    %s111 = sxor.u32 4294967295, %s110
    %s113 = sld [smem:[#allocation0]]
    %s114 = sadd.s32 2, %s113
    %s116 = sshll.u32 7, 26
    %s117 = sxor.u32 4294967295, %s116
    %s118 = sand.u32 0, %s117
    %s119 = sshll.u32 %s114, 26
    %s120 = sor.u32 %s118, %s119
    %s121 = sshll.u32 [#allocation2], 4
    %s122 = int_to_ptr.vmem [resolvable:$true] %s121
    %125 = sst [smem:[#allocation19]] 256
    %s126 = scalar_lea.smem [#allocation19], 1
    %127 = sst [smem:[%s126]] 256
    %s128 = scalar_lea.smem [#allocation19], 2
    %129 = sst [smem:[%s128]] 2
    %s130 = scalar_lea.smem [#allocation19], 3
    %131 = sst [smem:[%s130]] 64
    %s132 = scalar_lea.smem [#allocation19], 4
    %133 = sst [smem:[%s132]] 128
    %s134 = scalar_lea.smem [#allocation19], 5
    %135 = sst [smem:[%s134]] 2
    %s136 = scalar_lea.smem [#allocation19], 6
    %137 = sst [smem:[%s136]] 128
    %s138 = scalar_lea.smem [#allocation19], 7
    %139 = sst [smem:[%s138]] 64
    %s140 = scalar_lea.smem [#allocation19], 8
    %141 = sst [smem:[%s140]] 4
    %143 = dma.general %s13, 4096, %s122, [#allocation6], [#allocation18], [#allocation19], %s120, 0
    %s144 = scalar_lea.sflag [#allocation6], 1
    %s146 = sshll.u32 1, 14
    %s147 = sxor.u32 4294967295, %s146
    %s149 = sadd.s32 2, %s113
    %s151 = sshll.u32 7, 26
    %s152 = sxor.u32 4294967295, %s151
    %s153 = sand.u32 0, %s152
    %s154 = sshll.u32 %s149, 26
    %s155 = sor.u32 %s153, %s154
    %s156 = sshll.u32 [#allocation3], 4
    %s157 = int_to_ptr.vmem [resolvable:$true] %s156
    %160 = sst [smem:[#allocation21]] 256
    %s161 = scalar_lea.smem [#allocation21], 1
    %162 = sst [smem:[%s161]] 256
    %s163 = scalar_lea.smem [#allocation21], 2
    %164 = sst [smem:[%s163]] 2
    %s165 = scalar_lea.smem [#allocation21], 3
    %166 = sst [smem:[%s165]] 64
    %s167 = scalar_lea.smem [#allocation21], 4
    %168 = sst [smem:[%s167]] 128
    %s169 = scalar_lea.smem [#allocation21], 5
    %170 = sst [smem:[%s169]] 2
    %s171 = scalar_lea.smem [#allocation21], 6
    %172 = sst [smem:[%s171]] 128
    %s173 = scalar_lea.smem [#allocation21], 7
    %174 = sst [smem:[%s173]] 64
    %s175 = scalar_lea.smem [#allocation21], 8
    %176 = sst [smem:[%s175]] 4
    %178 = dma.general %s14, 8192, %s157, %s144, [#allocation20], [#allocation21], %s155, 0
    %s179 = scalar_lea.sflag [#allocation6], 2
    // Predicated region
    $region70: #{neck_concat_forward_nhwc.1} parent=1 // pred_check
      _
    $region71: #{neck_concat_forward_nhwc.1} parent=1 // pred_check_branch
      %181 = sbr.rel target = $region73
    $region72: #{neck_concat_forward_nhwc.1} parent=1 // pred_region
      %182 = sst [smem:[#allocation24]] [#allocation23]
      %183 = sst [smem:[#allocation25]] [#allocation22]
    $region73: #{neck_concat_forward_nhwc.1} parent=1 // pred_fallthru
      _
    %185 = shalt.err (0)
    %s187 = sshll.u32 [#allocation4], 4
    %s188 = int_to_ptr.vmem [resolvable:$true] %s187
    %190 = dma.hbm_to_vmem [thread:$0]  %s15, 1024, %s188, %s179
    %s191 = scalar_lea.sflag [#allocation6], 3
    // Predicated region
    $region74: #{neck_concat_forward_nhwc.1} parent=1 // pred_check
      _
    $region75: #{neck_concat_forward_nhwc.1} parent=1 // pred_check_branch
      %193 = sbr.rel target = $region77
    $region76: #{neck_concat_forward_nhwc.1} parent=1 // pred_region
      %194 = sst [smem:[#allocation24]] [#allocation27]
      %195 = sst [smem:[#allocation25]] [#allocation26]
    $region77: #{neck_concat_forward_nhwc.1} parent=1 // pred_fallthru
      _
    %197 = shalt.err (0)
    %s199 = sshll.u32 [#allocation5], 4
    %s200 = int_to_ptr.vmem [resolvable:$true] %s199
    %202 = dma.hbm_to_vmem [thread:$0]  %s16, 2048, %s200, %s191
    %v203 = vld [vmem:[%s2] sm:$0xff]
    %v204 = vld [vmem:[%s2 + $0x8] sm:$0xff]
    %v205 = vld [vmem:[%s2 + $0x10] sm:$0xff]
    %v206 = vld [vmem:[%s2 + $0x18] sm:$0xff]
    %v207 = vld [vmem:[%s2 + $0x20] sm:$0xff]
    %v208 = vld [vmem:[%s2 + $0x28] sm:$0xff]
    %v209 = vld [vmem:[%s2 + $0x30] sm:$0xff]
    %v210 = vld [vmem:[%s2 + $0x38] sm:$0xff]
    %v211 = vld [vmem:[%s2 + $0x40] sm:$0xff]
    %v212 = vld [vmem:[%s2 + $0x48] sm:$0xff]
    %v213 = vld [vmem:[%s2 + $0x50] sm:$0xff]
    %v214 = vld [vmem:[%s2 + $0x58] sm:$0xff]
    %v215 = vld [vmem:[%s2 + $0x60] sm:$0xff]
    %v216 = vld [vmem:[%s2 + $0x68] sm:$0xff]
    %v217 = vld [vmem:[%s2 + $0x70] sm:$0xff]
    %v218 = vld [vmem:[%s2 + $0x78] sm:$0xff]
    %v219 = vld [vmem:[#allocation10] sm:$0xff]
    %v220 = vld [vmem:[#allocation10 + $0x8] sm:$0xff]
    %v221 = vld [vmem:[#allocation10 + $0x10] sm:$0xff]
    %v222 = vld [vmem:[#allocation10 + $0x18] sm:$0xff]
    %v223 = vld [vmem:[#allocation10 + $0x20] sm:$0xff]
    %v224 = vld [vmem:[#allocation10 + $0x28] sm:$0xff]
    %v225 = vld [vmem:[#allocation10 + $0x30] sm:$0xff]
    %v226 = vld [vmem:[#allocation10 + $0x38] sm:$0xff]
    %v227 = vld [vmem:[#allocation10 + $0x40] sm:$0xff]
    %v228 = vld [vmem:[#allocation10 + $0x48] sm:$0xff]
    %v229 = vld [vmem:[#allocation10 + $0x50] sm:$0xff]
    %v230 = vld [vmem:[#allocation10 + $0x58] sm:$0xff]
    %v231 = vld [vmem:[#allocation10 + $0x60] sm:$0xff]
    %v232 = vld [vmem:[#allocation10 + $0x68] sm:$0xff]
    %v233 = vld [vmem:[#allocation10 + $0x70] sm:$0xff]
    %v234 = vld [vmem:[#allocation10 + $0x78] sm:$0xff]
    %v235 = vld [vmem:[#allocation10 + $0x80] sm:$0xff]
    %v236 = vld [vmem:[#allocation10 + $0x88] sm:$0xff]
    %v237 = vld [vmem:[#allocation10 + $0x90] sm:$0xff]
    %v238 = vld [vmem:[#allocation10 + $0x98] sm:$0xff]
    %v239 = vld [vmem:[#allocation10 + $0xa0] sm:$0xff]
    %v240 = vld [vmem:[#allocation10 + $0xa8] sm:$0xff]
    %v241 = vld [vmem:[#allocation10 + $0xb0] sm:$0xff]
    %v242 = vld [vmem:[#allocation10 + $0xb8] sm:$0xff]
    %v243 = vld [vmem:[#allocation10 + $0xc0] sm:$0xff]
    %v244 = vld [vmem:[#allocation10 + $0xc8] sm:$0xff]
    %v245 = vld [vmem:[#allocation10 + $0xd0] sm:$0xff]
    %v246 = vld [vmem:[#allocation10 + $0xd8] sm:$0xff]
    %v247 = vld [vmem:[#allocation10 + $0xe0] sm:$0xff]
    %v248 = vld [vmem:[#allocation10 + $0xe8] sm:$0xff]
    %v249 = vld [vmem:[#allocation10 + $0xf0] sm:$0xff]
    %v250 = vld [vmem:[#allocation10 + $0xf8] sm:$0xff]
    %v251 = vld [vmem:[#allocation10 + $0x100] sm:$0xff]
    %v252 = vld [vmem:[#allocation10 + $0x108] sm:$0xff]
    %v253 = vld [vmem:[#allocation10 + $0x110] sm:$0xff]
    %v254 = vld [vmem:[#allocation10 + $0x118] sm:$0xff]
    %v255 = vld [vmem:[#allocation10 + $0x120] sm:$0xff]
    %v256 = vld [vmem:[#allocation10 + $0x128] sm:$0xff]
    %v257 = vld [vmem:[#allocation10 + $0x130] sm:$0xff]
    %v258 = vld [vmem:[#allocation10 + $0x138] sm:$0xff]
    %v259 = vld [vmem:[#allocation10 + $0x140] sm:$0xff]
    %v260 = vld [vmem:[#allocation10 + $0x148] sm:$0xff]
    %v261 = vld [vmem:[#allocation10 + $0x150] sm:$0xff]
    %v262 = vld [vmem:[#allocation10 + $0x158] sm:$0xff]
    %v263 = vld [vmem:[#allocation10 + $0x160] sm:$0xff]
    %v264 = vld [vmem:[#allocation10 + $0x168] sm:$0xff]
    %v265 = vld [vmem:[#allocation10 + $0x170] sm:$0xff]
    %v266 = vld [vmem:[#allocation10 + $0x178] sm:$0xff]
    %v267 = vld [vmem:[#allocation10 + $0x180] sm:$0xff]
    %v268 = vld [vmem:[#allocation10 + $0x188] sm:$0xff]
    %v269 = vld [vmem:[#allocation10 + $0x190] sm:$0xff]
    %v270 = vld [vmem:[#allocation10 + $0x198] sm:$0xff]
    %v271 = vld [vmem:[#allocation10 + $0x1a0] sm:$0xff]
    %v272 = vld [vmem:[#allocation10 + $0x1a8] sm:$0xff]
    %v273 = vld [vmem:[#allocation10 + $0x1b0] sm:$0xff]
    %v274 = vld [vmem:[#allocation10 + $0x1b8] sm:$0xff]
    %v275 = vld [vmem:[#allocation10 + $0x1c0] sm:$0xff]
    %v276 = vld [vmem:[#allocation10 + $0x1c8] sm:$0xff]
    %v277 = vld [vmem:[#allocation10 + $0x1d0] sm:$0xff]
    %v278 = vld [vmem:[#allocation10 + $0x1d8] sm:$0xff]
    %v279 = vld [vmem:[#allocation10 + $0x1e0] sm:$0xff]
    %v280 = vld [vmem:[#allocation10 + $0x1e8] sm:$0xff]
    %v281 = vld [vmem:[#allocation10 + $0x1f0] sm:$0xff]
    %v282 = vld [vmem:[#allocation10 + $0x1f8] sm:$0xff]
    %v283 = vld [vmem:[#allocation10 + $0x200] sm:$0xff]
    %v284 = vld [vmem:[#allocation10 + $0x208] sm:$0xff]
    %v285 = vld [vmem:[#allocation10 + $0x210] sm:$0xff]
    %v286 = vld [vmem:[#allocation10 + $0x218] sm:$0xff]
    %v287 = vld [vmem:[#allocation10 + $0x220] sm:$0xff]
    %v288 = vld [vmem:[#allocation10 + $0x228] sm:$0xff]
    %v289 = vld [vmem:[#allocation10 + $0x230] sm:$0xff]
    %v290 = vld [vmem:[#allocation10 + $0x238] sm:$0xff]
    %v291 = vld [vmem:[#allocation10 + $0x240] sm:$0xff]
    %v292 = vld [vmem:[#allocation10 + $0x248] sm:$0xff]
    %v293 = vld [vmem:[#allocation10 + $0x250] sm:$0xff]
    %v294 = vld [vmem:[#allocation10 + $0x258] sm:$0xff]
    %v295 = vld [vmem:[#allocation10 + $0x260] sm:$0xff]
    %v296 = vld [vmem:[#allocation10 + $0x268] sm:$0xff]
    %v297 = vld [vmem:[#allocation10 + $0x270] sm:$0xff]
    %v298 = vld [vmem:[#allocation10 + $0x278] sm:$0xff]
    %v299 = vld [vmem:[#allocation10 + $0x280] sm:$0xff]
    %v300 = vld [vmem:[#allocation10 + $0x288] sm:$0xff]
    %v301 = vld [vmem:[#allocation10 + $0x290] sm:$0xff]
    %v302 = vld [vmem:[#allocation10 + $0x298] sm:$0xff]
    %v303 = vld [vmem:[#allocation10 + $0x2a0] sm:$0xff]
    %v304 = vld [vmem:[#allocation10 + $0x2a8] sm:$0xff]
    %v305 = vld [vmem:[#allocation10 + $0x2b0] sm:$0xff]
    %v306 = vld [vmem:[#allocation10 + $0x2b8] sm:$0xff]
    %v307 = vld [vmem:[#allocation10 + $0x2c0] sm:$0xff]
    %v308 = vld [vmem:[#allocation10 + $0x2c8] sm:$0xff]
    %v309 = vld [vmem:[#allocation10 + $0x2d0] sm:$0xff]
    %v310 = vld [vmem:[#allocation10 + $0x2d8] sm:$0xff]
    %v311 = vld [vmem:[#allocation10 + $0x2e0] sm:$0xff]
    %v312 = vld [vmem:[#allocation10 + $0x2e8] sm:$0xff]
    %v313 = vld [vmem:[#allocation10 + $0x2f0] sm:$0xff]
    %v314 = vld [vmem:[#allocation10 + $0x2f8] sm:$0xff]
    %v315 = vld [vmem:[#allocation10 + $0x300] sm:$0xff]
    %v316 = vld [vmem:[#allocation10 + $0x308] sm:$0xff]
    %v317 = vld [vmem:[#allocation10 + $0x310] sm:$0xff]
    %v318 = vld [vmem:[#allocation10 + $0x318] sm:$0xff]
    %v319 = vld [vmem:[#allocation10 + $0x320] sm:$0xff]
    %v320 = vld [vmem:[#allocation10 + $0x328] sm:$0xff]
    %v321 = vld [vmem:[#allocation10 + $0x330] sm:$0xff]
    %v322 = vld [vmem:[#allocation10 + $0x338] sm:$0xff]
    %v323 = vld [vmem:[#allocation10 + $0x340] sm:$0xff]
    %v324 = vld [vmem:[#allocation10 + $0x348] sm:$0xff]
    %v325 = vld [vmem:[#allocation10 + $0x350] sm:$0xff]
    %v326 = vld [vmem:[#allocation10 + $0x358] sm:$0xff]
    %v327 = vld [vmem:[#allocation10 + $0x360] sm:$0xff]
    %v328 = vld [vmem:[#allocation10 + $0x368] sm:$0xff]
    %v329 = vld [vmem:[#allocation10 + $0x370] sm:$0xff]
    %v330 = vld [vmem:[#allocation10 + $0x378] sm:$0xff]
    %v331 = vld [vmem:[#allocation10 + $0x380] sm:$0xff]
    %v332 = vld [vmem:[#allocation10 + $0x388] sm:$0xff]
    %v333 = vld [vmem:[#allocation10 + $0x390] sm:$0xff]
    %v334 = vld [vmem:[#allocation10 + $0x398] sm:$0xff]
    %v335 = vld [vmem:[#allocation10 + $0x3a0] sm:$0xff]
    %v336 = vld [vmem:[#allocation10 + $0x3a8] sm:$0xff]
    %v337 = vld [vmem:[#allocation10 + $0x3b0] sm:$0xff]
    %v338 = vld [vmem:[#allocation10 + $0x3b8] sm:$0xff]
    %v339 = vld [vmem:[#allocation10 + $0x3c0] sm:$0xff]
    %v340 = vld [vmem:[#allocation10 + $0x3c8] sm:$0xff]
    %v341 = vld [vmem:[#allocation10 + $0x3d0] sm:$0xff]
    %v342 = vld [vmem:[#allocation10 + $0x3d8] sm:$0xff]
    %v343 = vld [vmem:[#allocation10 + $0x3e0] sm:$0xff]
    %v344 = vld [vmem:[#allocation10 + $0x3e8] sm:$0xff]
    %v345 = vld [vmem:[#allocation10 + $0x3f0] sm:$0xff]
    %v346 = vld [vmem:[#allocation10 + $0x3f8] sm:$0xff]
    %v347 = vld [vmem:[#allocation10 + $0x400] sm:$0xff]
    %v348 = vld [vmem:[#allocation10 + $0x408] sm:$0xff]
    %v349 = vld [vmem:[#allocation10 + $0x410] sm:$0xff]
    %v350 = vld [vmem:[#allocation10 + $0x418] sm:$0xff]
    %v351 = vld [vmem:[#allocation10 + $0x420] sm:$0xff]
    %v352 = vld [vmem:[#allocation10 + $0x428] sm:$0xff]
    %v353 = vld [vmem:[#allocation10 + $0x430] sm:$0xff]
    %v354 = vld [vmem:[#allocation10 + $0x438] sm:$0xff]
    %v355 = vld [vmem:[#allocation10 + $0x440] sm:$0xff]
    %v356 = vld [vmem:[#allocation10 + $0x448] sm:$0xff]
    %v357 = vld [vmem:[#allocation10 + $0x450] sm:$0xff]
    %v358 = vld [vmem:[#allocation10 + $0x458] sm:$0xff]
    %v359 = vld [vmem:[#allocation10 + $0x460] sm:$0xff]
    %v360 = vld [vmem:[#allocation10 + $0x468] sm:$0xff]
    %v361 = vld [vmem:[#allocation10 + $0x470] sm:$0xff]
    %v362 = vld [vmem:[#allocation10 + $0x478] sm:$0xff]
    %v363 = vld [vmem:[#allocation10 + $0x480] sm:$0xff]
    %v364 = vld [vmem:[#allocation10 + $0x488] sm:$0xff]
    %v365 = vld [vmem:[#allocation10 + $0x490] sm:$0xff]
    %v366 = vld [vmem:[#allocation10 + $0x498] sm:$0xff]
    %v367 = vld [vmem:[#allocation10 + $0x4a0] sm:$0xff]
    %v368 = vld [vmem:[#allocation10 + $0x4a8] sm:$0xff]
    %v369 = vld [vmem:[#allocation10 + $0x4b0] sm:$0xff]
    %v370 = vld [vmem:[#allocation10 + $0x4b8] sm:$0xff]
    %v371 = vld [vmem:[#allocation10 + $0x4c0] sm:$0xff]
    %v372 = vld [vmem:[#allocation10 + $0x4c8] sm:$0xff]
    %v373 = vld [vmem:[#allocation10 + $0x4d0] sm:$0xff]
    %v374 = vld [vmem:[#allocation10 + $0x4d8] sm:$0xff]
    %v375 = vld [vmem:[#allocation10 + $0x4e0] sm:$0xff]
    %v376 = vld [vmem:[#allocation10 + $0x4e8] sm:$0xff]
    %v377 = vld [vmem:[#allocation10 + $0x4f0] sm:$0xff]
    %v378 = vld [vmem:[#allocation10 + $0x4f8] sm:$0xff]
    %v379 = vld [vmem:[#allocation10 + $0x500] sm:$0xff]
    %v380 = vld [vmem:[#allocation10 + $0x508] sm:$0xff]
    %v381 = vld [vmem:[#allocation10 + $0x510] sm:$0xff]
    %v382 = vld [vmem:[#allocation10 + $0x518] sm:$0xff]
    %v383 = vld [vmem:[#allocation10 + $0x520] sm:$0xff]
    %v384 = vld [vmem:[#allocation10 + $0x528] sm:$0xff]
    %v385 = vld [vmem:[#allocation10 + $0x530] sm:$0xff]
    %v386 = vld [vmem:[#allocation10 + $0x538] sm:$0xff]
    %v387 = vld [vmem:[#allocation10 + $0x540] sm:$0xff]
    %v388 = vld [vmem:[#allocation10 + $0x548] sm:$0xff]
    %v389 = vld [vmem:[#allocation10 + $0x550] sm:$0xff]
    %v390 = vld [vmem:[#allocation10 + $0x558] sm:$0xff]
    %v391 = vld [vmem:[#allocation10 + $0x560] sm:$0xff]
    %v392 = vld [vmem:[#allocation10 + $0x568] sm:$0xff]
    %v393 = vld [vmem:[#allocation10 + $0x570] sm:$0xff]
    %v394 = vld [vmem:[#allocation10 + $0x578] sm:$0xff]
    %v395 = vld [vmem:[#allocation10 + $0x580] sm:$0xff]
    %v396 = vld [vmem:[#allocation10 + $0x588] sm:$0xff]
    %v397 = vld [vmem:[#allocation10 + $0x590] sm:$0xff]
    %v398 = vld [vmem:[#allocation10 + $0x598] sm:$0xff]
    %v399 = vld [vmem:[#allocation10 + $0x5a0] sm:$0xff]
    %v400 = vld [vmem:[#allocation10 + $0x5a8] sm:$0xff]
    %v401 = vld [vmem:[#allocation10 + $0x5b0] sm:$0xff]
    %v402 = vld [vmem:[#allocation10 + $0x5b8] sm:$0xff]
    %v403 = vld [vmem:[#allocation10 + $0x5c0] sm:$0xff]
    %v404 = vld [vmem:[#allocation10 + $0x5c8] sm:$0xff]
    %v405 = vld [vmem:[#allocation10 + $0x5d0] sm:$0xff]
    %v406 = vld [vmem:[#allocation10 + $0x5d8] sm:$0xff]
    %v407 = vld [vmem:[#allocation10 + $0x5e0] sm:$0xff]
    %v408 = vld [vmem:[#allocation10 + $0x5e8] sm:$0xff]
    %v409 = vld [vmem:[#allocation10 + $0x5f0] sm:$0xff]
    %v410 = vld [vmem:[#allocation10 + $0x5f8] sm:$0xff]
    %v411 = vld [vmem:[#allocation10 + $0x600] sm:$0xff]
    %v412 = vld [vmem:[#allocation10 + $0x608] sm:$0xff]
    %v413 = vld [vmem:[#allocation10 + $0x610] sm:$0xff]
    %v414 = vld [vmem:[#allocation10 + $0x618] sm:$0xff]
    %v415 = vld [vmem:[#allocation10 + $0x620] sm:$0xff]
    %v416 = vld [vmem:[#allocation10 + $0x628] sm:$0xff]
    %v417 = vld [vmem:[#allocation10 + $0x630] sm:$0xff]
    %v418 = vld [vmem:[#allocation10 + $0x638] sm:$0xff]
    %v419 = vld [vmem:[#allocation10 + $0x640] sm:$0xff]
    %v420 = vld [vmem:[#allocation10 + $0x648] sm:$0xff]
    %v421 = vld [vmem:[#allocation10 + $0x650] sm:$0xff]
    %v422 = vld [vmem:[#allocation10 + $0x658] sm:$0xff]
    %v423 = vld [vmem:[#allocation10 + $0x660] sm:$0xff]
    %v424 = vld [vmem:[#allocation10 + $0x668] sm:$0xff]
    %v425 = vld [vmem:[#allocation10 + $0x670] sm:$0xff]
    %v426 = vld [vmem:[#allocation10 + $0x678] sm:$0xff]
    %v427 = vld [vmem:[#allocation10 + $0x680] sm:$0xff]
    %v428 = vld [vmem:[#allocation10 + $0x688] sm:$0xff]
    %v429 = vld [vmem:[#allocation10 + $0x690] sm:$0xff]
    %v430 = vld [vmem:[#allocation10 + $0x698] sm:$0xff]
    %v431 = vld [vmem:[#allocation10 + $0x6a0] sm:$0xff]
    %v432 = vld [vmem:[#allocation10 + $0x6a8] sm:$0xff]
    %v433 = vld [vmem:[#allocation10 + $0x6b0] sm:$0xff]
    %v434 = vld [vmem:[#allocation10 + $0x6b8] sm:$0xff]
    %v435 = vld [vmem:[#allocation10 + $0x6c0] sm:$0xff]
    %v436 = vld [vmem:[#allocation10 + $0x6c8] sm:$0xff]
    %v437 = vld [vmem:[#allocation10 + $0x6d0] sm:$0xff]
    %v438 = vld [vmem:[#allocation10 + $0x6d8] sm:$0xff]
    %v439 = vld [vmem:[#allocation10 + $0x6e0] sm:$0xff]
    %v440 = vld [vmem:[#allocation10 + $0x6e8] sm:$0xff]
    %v441 = vld [vmem:[#allocation10 + $0x6f0] sm:$0xff]
    %v442 = vld [vmem:[#allocation10 + $0x6f8] sm:$0xff]
    %v443 = vld [vmem:[#allocation10 + $0x700] sm:$0xff]
    %v444 = vld [vmem:[#allocation10 + $0x708] sm:$0xff]
    %v445 = vld [vmem:[#allocation10 + $0x710] sm:$0xff]
    %v446 = vld [vmem:[#allocation10 + $0x718] sm:$0xff]
    %v447 = vld [vmem:[#allocation10 + $0x720] sm:$0xff]
    %v448 = vld [vmem:[#allocation10 + $0x728] sm:$0xff]
    %v449 = vld [vmem:[#allocation10 + $0x730] sm:$0xff]
    %v450 = vld [vmem:[#allocation10 + $0x738] sm:$0xff]
    %v451 = vld [vmem:[#allocation10 + $0x740] sm:$0xff]
    %v452 = vld [vmem:[#allocation10 + $0x748] sm:$0xff]
    %v453 = vld [vmem:[#allocation10 + $0x750] sm:$0xff]
    %v454 = vld [vmem:[#allocation10 + $0x758] sm:$0xff]
    %v455 = vld [vmem:[#allocation10 + $0x760] sm:$0xff]
    %v456 = vld [vmem:[#allocation10 + $0x768] sm:$0xff]
    %v457 = vld [vmem:[#allocation10 + $0x770] sm:$0xff]
    %v458 = vld [vmem:[#allocation10 + $0x778] sm:$0xff]
    %v459 = vld [vmem:[#allocation10 + $0x780] sm:$0xff]
    %v460 = vld [vmem:[#allocation10 + $0x788] sm:$0xff]
    %v461 = vld [vmem:[#allocation10 + $0x790] sm:$0xff]
    %v462 = vld [vmem:[#allocation10 + $0x798] sm:$0xff]
    %v463 = vld [vmem:[#allocation10 + $0x7a0] sm:$0xff]
    %v464 = vld [vmem:[#allocation10 + $0x7a8] sm:$0xff]
    %v465 = vld [vmem:[#allocation10 + $0x7b0] sm:$0xff]
    %v466 = vld [vmem:[#allocation10 + $0x7b8] sm:$0xff]
    %v467 = vld [vmem:[#allocation10 + $0x7c0] sm:$0xff]
    %v468 = vld [vmem:[#allocation10 + $0x7c8] sm:$0xff]
    %v469 = vld [vmem:[#allocation10 + $0x7d0] sm:$0xff]
    %v470 = vld [vmem:[#allocation10 + $0x7d8] sm:$0xff]
    %v471 = vld [vmem:[#allocation10 + $0x7e0] sm:$0xff]
    %v472 = vld [vmem:[#allocation10 + $0x7e8] sm:$0xff]
    %v473 = vld [vmem:[#allocation10 + $0x7f0] sm:$0xff]
    %v474 = vld [vmem:[#allocation10 + $0x7f8] sm:$0xff]
    %v475 = vld [vmem:[%s4] sm:$0xf]
    %v477 = vlaneseq
    %v478 = vshrl.u32 %v477, 7
    %v479 = vsub.s32 0, %v478
    %v480 = vrot.slane %v475, %v479
    %v481 = vlaneseq
    %v482 = vshrl.u32 %v481, 7
    %v483 = vsub.s32 1, %v482
    %v484 = vrot.slane %v475, %v483
    %v485 = vlaneseq
    %v486 = vshrl.u32 %v485, 7
    %v487 = vsub.s32 2, %v486
    %v488 = vrot.slane %v475, %v487
    %v489 = vlaneseq
    %v490 = vshrl.u32 %v489, 7
    %v491 = vsub.s32 3, %v490
    %v492 = vrot.slane %v475, %v491
    %v513 = vunpack.c.l.b16 %v203
    %v514 = vunpack.c.h.b16 %v203
    %v515 = vunpack.c.l.b16 %v204
    %v516 = vunpack.c.h.b16 %v204
    %v517 = vunpack.c.l.b16 %v205
    %v518 = vunpack.c.h.b16 %v205
    %v519 = vunpack.c.l.b16 %v206
    %v520 = vunpack.c.h.b16 %v206
    %v521 = vunpack.c.l.b16 %v207
    %v522 = vunpack.c.h.b16 %v207
    %v523 = vunpack.c.l.b16 %v208
    %v524 = vunpack.c.h.b16 %v208
    %v525 = vunpack.c.l.b16 %v209
    %v526 = vunpack.c.h.b16 %v209
    %v527 = vunpack.c.l.b16 %v210
    %v528 = vunpack.c.h.b16 %v210
    %v529 = vunpack.c.l.b16 %v211
    %v530 = vunpack.c.h.b16 %v211
    %v531 = vunpack.c.l.b16 %v212
    %v532 = vunpack.c.h.b16 %v212
    %v533 = vunpack.c.l.b16 %v213
    %v534 = vunpack.c.h.b16 %v213
    %v535 = vunpack.c.l.b16 %v214
    %v536 = vunpack.c.h.b16 %v214
    %v537 = vunpack.c.l.b16 %v215
    %v538 = vunpack.c.h.b16 %v215
    %v539 = vunpack.c.l.b16 %v216
    %v540 = vunpack.c.h.b16 %v216
    %v541 = vunpack.c.l.b16 %v217
    %v542 = vunpack.c.h.b16 %v217
    %v543 = vunpack.c.l.b16 %v218
    %v544 = vunpack.c.h.b16 %v218
    %v545 = vpack.c.b16 %v521, %v513
    %v546 = vpack.c.b16 %v522, %v514
    %v547 = vpack.c.b16 %v523, %v515
    %v548 = vpack.c.b16 %v524, %v516
    %v549 = vpack.c.b16 %v525, %v517
    %v550 = vpack.c.b16 %v526, %v518
    %v551 = vpack.c.b16 %v527, %v519
    %v552 = vpack.c.b16 %v528, %v520
    %v553 = vpack.c.b16 %v537, %v529
    %v554 = vpack.c.b16 %v538, %v530
    %v555 = vpack.c.b16 %v539, %v531
    %v556 = vpack.c.b16 %v540, %v532
    %v557 = vpack.c.b16 %v541, %v533
    %v558 = vpack.c.b16 %v542, %v534
    %v559 = vpack.c.b16 %v543, %v535
    %v560 = vpack.c.b16 %v544, %v536
    %v833 = vunpack.c.l.b16 %v219
    %v834 = vunpack.c.h.b16 %v219
    %v835 = vunpack.c.l.b16 %v220
    %v836 = vunpack.c.h.b16 %v220
    %v837 = vunpack.c.l.b16 %v221
    %v838 = vunpack.c.h.b16 %v221
    %v839 = vunpack.c.l.b16 %v222
    %v840 = vunpack.c.h.b16 %v222
    %v841 = vunpack.c.l.b16 %v223
    %v842 = vunpack.c.h.b16 %v223
    %v843 = vunpack.c.l.b16 %v224
    %v844 = vunpack.c.h.b16 %v224
    %v845 = vunpack.c.l.b16 %v225
    %v846 = vunpack.c.h.b16 %v225
    %v847 = vunpack.c.l.b16 %v226
    %v848 = vunpack.c.h.b16 %v226
    %v849 = vunpack.c.l.b16 %v227
    %v850 = vunpack.c.h.b16 %v227
    %v851 = vunpack.c.l.b16 %v228
    %v852 = vunpack.c.h.b16 %v228
    %v853 = vunpack.c.l.b16 %v229
    %v854 = vunpack.c.h.b16 %v229
    %v855 = vunpack.c.l.b16 %v230
    %v856 = vunpack.c.h.b16 %v230
    %v857 = vunpack.c.l.b16 %v231
    %v858 = vunpack.c.h.b16 %v231
    %v859 = vunpack.c.l.b16 %v232
    %v860 = vunpack.c.h.b16 %v232
    %v861 = vunpack.c.l.b16 %v233
    %v862 = vunpack.c.h.b16 %v233
    %v863 = vunpack.c.l.b16 %v234
    %v864 = vunpack.c.h.b16 %v234
    %v865 = vunpack.c.l.b16 %v235
    %v866 = vunpack.c.h.b16 %v235
    %v867 = vunpack.c.l.b16 %v236
    %v868 = vunpack.c.h.b16 %v236
    %v869 = vunpack.c.l.b16 %v237
    %v870 = vunpack.c.h.b16 %v237
    %v871 = vunpack.c.l.b16 %v238
    %v872 = vunpack.c.h.b16 %v238
    %v873 = vunpack.c.l.b16 %v239
    %v874 = vunpack.c.h.b16 %v239
    %v875 = vunpack.c.l.b16 %v240
    %v876 = vunpack.c.h.b16 %v240
    %v877 = vunpack.c.l.b16 %v241
    %v878 = vunpack.c.h.b16 %v241
    %v879 = vunpack.c.l.b16 %v242
    %v880 = vunpack.c.h.b16 %v242
    %v881 = vunpack.c.l.b16 %v243
    %v882 = vunpack.c.h.b16 %v243
    %v883 = vunpack.c.l.b16 %v244
    %v884 = vunpack.c.h.b16 %v244
    %v885 = vunpack.c.l.b16 %v245
    %v886 = vunpack.c.h.b16 %v245
    %v887 = vunpack.c.l.b16 %v246
    %v888 = vunpack.c.h.b16 %v246
    %v889 = vunpack.c.l.b16 %v247
    %v890 = vunpack.c.h.b16 %v247
    %v891 = vunpack.c.l.b16 %v248
    %v892 = vunpack.c.h.b16 %v248
    %v893 = vunpack.c.l.b16 %v249
    %v894 = vunpack.c.h.b16 %v249
    %v895 = vunpack.c.l.b16 %v250
    %v896 = vunpack.c.h.b16 %v250
    %v897 = vunpack.c.l.b16 %v251
    %v898 = vunpack.c.h.b16 %v251
    %v899 = vunpack.c.l.b16 %v252
    %v900 = vunpack.c.h.b16 %v252
    %v901 = vunpack.c.l.b16 %v253
    %v902 = vunpack.c.h.b16 %v253
    %v903 = vunpack.c.l.b16 %v254
    %v904 = vunpack.c.h.b16 %v254
    %v905 = vunpack.c.l.b16 %v255
    %v906 = vunpack.c.h.b16 %v255
    %v907 = vunpack.c.l.b16 %v256
    %v908 = vunpack.c.h.b16 %v256
    %v909 = vunpack.c.l.b16 %v257
    %v910 = vunpack.c.h.b16 %v257
    %v911 = vunpack.c.l.b16 %v258
    %v912 = vunpack.c.h.b16 %v258
    %v913 = vunpack.c.l.b16 %v259
    %v914 = vunpack.c.h.b16 %v259
    %v915 = vunpack.c.l.b16 %v260
    %v916 = vunpack.c.h.b16 %v260
    %v917 = vunpack.c.l.b16 %v261
    %v918 = vunpack.c.h.b16 %v261
    %v919 = vunpack.c.l.b16 %v262
    %v920 = vunpack.c.h.b16 %v262
    %v921 = vunpack.c.l.b16 %v263
    %v922 = vunpack.c.h.b16 %v263
    %v923 = vunpack.c.l.b16 %v264
    %v924 = vunpack.c.h.b16 %v264
    %v925 = vunpack.c.l.b16 %v265
    %v926 = vunpack.c.h.b16 %v265
    %v927 = vunpack.c.l.b16 %v266
    %v928 = vunpack.c.h.b16 %v266
    %v929 = vunpack.c.l.b16 %v267
    %v930 = vunpack.c.h.b16 %v267
    %v931 = vunpack.c.l.b16 %v268
    %v932 = vunpack.c.h.b16 %v268
    %v933 = vunpack.c.l.b16 %v269
    %v934 = vunpack.c.h.b16 %v269
    %v935 = vunpack.c.l.b16 %v270
    %v936 = vunpack.c.h.b16 %v270
    %v937 = vunpack.c.l.b16 %v271
    %v938 = vunpack.c.h.b16 %v271
    %v939 = vunpack.c.l.b16 %v272
    %v940 = vunpack.c.h.b16 %v272
    %v941 = vunpack.c.l.b16 %v273
    %v942 = vunpack.c.h.b16 %v273
    %v943 = vunpack.c.l.b16 %v274
    %v944 = vunpack.c.h.b16 %v274
    %v945 = vunpack.c.l.b16 %v275
    %v946 = vunpack.c.h.b16 %v275
    %v947 = vunpack.c.l.b16 %v276
    %v948 = vunpack.c.h.b16 %v276
    %v949 = vunpack.c.l.b16 %v277
    %v950 = vunpack.c.h.b16 %v277
    %v951 = vunpack.c.l.b16 %v278
    %v952 = vunpack.c.h.b16 %v278
    %v953 = vunpack.c.l.b16 %v279
    %v954 = vunpack.c.h.b16 %v279
    %v955 = vunpack.c.l.b16 %v280
    %v956 = vunpack.c.h.b16 %v280
    %v957 = vunpack.c.l.b16 %v281
    %v958 = vunpack.c.h.b16 %v281
    %v959 = vunpack.c.l.b16 %v282
    %v960 = vunpack.c.h.b16 %v282
    %v961 = vunpack.c.l.b16 %v283
    %v962 = vunpack.c.h.b16 %v283
    %v963 = vunpack.c.l.b16 %v284
    %v964 = vunpack.c.h.b16 %v284
    %v965 = vunpack.c.l.b16 %v285
    %v966 = vunpack.c.h.b16 %v285
    %v967 = vunpack.c.l.b16 %v286
    %v968 = vunpack.c.h.b16 %v286
    %v969 = vunpack.c.l.b16 %v287
    %v970 = vunpack.c.h.b16 %v287
    %v971 = vunpack.c.l.b16 %v288
    %v972 = vunpack.c.h.b16 %v288
    %v973 = vunpack.c.l.b16 %v289
    %v974 = vunpack.c.h.b16 %v289
    %v975 = vunpack.c.l.b16 %v290
    %v976 = vunpack.c.h.b16 %v290
    %v977 = vunpack.c.l.b16 %v291
    %v978 = vunpack.c.h.b16 %v291
    %v979 = vunpack.c.l.b16 %v292
    %v980 = vunpack.c.h.b16 %v292
    %v981 = vunpack.c.l.b16 %v293
    %v982 = vunpack.c.h.b16 %v293
    %v983 = vunpack.c.l.b16 %v294
    %v984 = vunpack.c.h.b16 %v294
    %v985 = vunpack.c.l.b16 %v295
    %v986 = vunpack.c.h.b16 %v295
    %v987 = vunpack.c.l.b16 %v296
    %v988 = vunpack.c.h.b16 %v296
    %v989 = vunpack.c.l.b16 %v297
    %v990 = vunpack.c.h.b16 %v297
    %v991 = vunpack.c.l.b16 %v298
    %v992 = vunpack.c.h.b16 %v298
    %v993 = vunpack.c.l.b16 %v299
    %v994 = vunpack.c.h.b16 %v299
    %v995 = vunpack.c.l.b16 %v300
    %v996 = vunpack.c.h.b16 %v300
    %v997 = vunpack.c.l.b16 %v301
    %v998 = vunpack.c.h.b16 %v301
    %v999 = vunpack.c.l.b16 %v302
    %v1000 = vunpack.c.h.b16 %v302
    %v1001 = vunpack.c.l.b16 %v303
    %v1002 = vunpack.c.h.b16 %v303
    %v1003 = vunpack.c.l.b16 %v304
    %v1004 = vunpack.c.h.b16 %v304
    %v1005 = vunpack.c.l.b16 %v305
    %v1006 = vunpack.c.h.b16 %v305
    %v1007 = vunpack.c.l.b16 %v306
    %v1008 = vunpack.c.h.b16 %v306
    %v1009 = vunpack.c.l.b16 %v307
    %v1010 = vunpack.c.h.b16 %v307
    %v1011 = vunpack.c.l.b16 %v308
    %v1012 = vunpack.c.h.b16 %v308
    %v1013 = vunpack.c.l.b16 %v309
    %v1014 = vunpack.c.h.b16 %v309
    %v1015 = vunpack.c.l.b16 %v310
    %v1016 = vunpack.c.h.b16 %v310
    %v1017 = vunpack.c.l.b16 %v311
    %v1018 = vunpack.c.h.b16 %v311
    %v1019 = vunpack.c.l.b16 %v312
    %v1020 = vunpack.c.h.b16 %v312
    %v1021 = vunpack.c.l.b16 %v313
    %v1022 = vunpack.c.h.b16 %v313
    %v1023 = vunpack.c.l.b16 %v314
    %v1024 = vunpack.c.h.b16 %v314
    %v1025 = vunpack.c.l.b16 %v315
    %v1026 = vunpack.c.h.b16 %v315
    %v1027 = vunpack.c.l.b16 %v316
    %v1028 = vunpack.c.h.b16 %v316
    %v1029 = vunpack.c.l.b16 %v317
    %v1030 = vunpack.c.h.b16 %v317
    %v1031 = vunpack.c.l.b16 %v318
    %v1032 = vunpack.c.h.b16 %v318
    %v1033 = vunpack.c.l.b16 %v319
    %v1034 = vunpack.c.h.b16 %v319
    %v1035 = vunpack.c.l.b16 %v320
    %v1036 = vunpack.c.h.b16 %v320
    %v1037 = vunpack.c.l.b16 %v321
    %v1038 = vunpack.c.h.b16 %v321
    %v1039 = vunpack.c.l.b16 %v322
    %v1040 = vunpack.c.h.b16 %v322
    %v1041 = vunpack.c.l.b16 %v323
    %v1042 = vunpack.c.h.b16 %v323
    %v1043 = vunpack.c.l.b16 %v324
    %v1044 = vunpack.c.h.b16 %v324
    %v1045 = vunpack.c.l.b16 %v325
    %v1046 = vunpack.c.h.b16 %v325
    %v1047 = vunpack.c.l.b16 %v326
    %v1048 = vunpack.c.h.b16 %v326
    %v1049 = vunpack.c.l.b16 %v327
    %v1050 = vunpack.c.h.b16 %v327
    %v1051 = vunpack.c.l.b16 %v328
    %v1052 = vunpack.c.h.b16 %v328
    %v1053 = vunpack.c.l.b16 %v329
    %v1054 = vunpack.c.h.b16 %v329
    %v1055 = vunpack.c.l.b16 %v330
    %v1056 = vunpack.c.h.b16 %v330
    %v1057 = vunpack.c.l.b16 %v331
    %v1058 = vunpack.c.h.b16 %v331
    %v1059 = vunpack.c.l.b16 %v332
    %v1060 = vunpack.c.h.b16 %v332
    %v1061 = vunpack.c.l.b16 %v333
    %v1062 = vunpack.c.h.b16 %v333
    %v1063 = vunpack.c.l.b16 %v334
    %v1064 = vunpack.c.h.b16 %v334
    %v1065 = vunpack.c.l.b16 %v335
    %v1066 = vunpack.c.h.b16 %v335
    %v1067 = vunpack.c.l.b16 %v336
    %v1068 = vunpack.c.h.b16 %v336
    %v1069 = vunpack.c.l.b16 %v337
    %v1070 = vunpack.c.h.b16 %v337
    %v1071 = vunpack.c.l.b16 %v338
    %v1072 = vunpack.c.h.b16 %v338
    %v1073 = vunpack.c.l.b16 %v339
    %v1074 = vunpack.c.h.b16 %v339
    %v1075 = vunpack.c.l.b16 %v340
    %v1076 = vunpack.c.h.b16 %v340
    %v1077 = vunpack.c.l.b16 %v341
    %v1078 = vunpack.c.h.b16 %v341
    %v1079 = vunpack.c.l.b16 %v342
    %v1080 = vunpack.c.h.b16 %v342
    %v1081 = vunpack.c.l.b16 %v343
    %v1082 = vunpack.c.h.b16 %v343
    %v1083 = vunpack.c.l.b16 %v344
    %v1084 = vunpack.c.h.b16 %v344
    %v1085 = vunpack.c.l.b16 %v345
    %v1086 = vunpack.c.h.b16 %v345
    %v1087 = vunpack.c.l.b16 %v346
    %v1088 = vunpack.c.h.b16 %v346
    %v1089 = vunpack.c.l.b16 %v347
    %v1090 = vunpack.c.h.b16 %v347
    %v1091 = vunpack.c.l.b16 %v348
    %v1092 = vunpack.c.h.b16 %v348
    %v1093 = vunpack.c.l.b16 %v349
    %v1094 = vunpack.c.h.b16 %v349
    %v1095 = vunpack.c.l.b16 %v350
    %v1096 = vunpack.c.h.b16 %v350
    %v1097 = vunpack.c.l.b16 %v351
    %v1098 = vunpack.c.h.b16 %v351
    %v1099 = vunpack.c.l.b16 %v352
    %v1100 = vunpack.c.h.b16 %v352
    %v1101 = vunpack.c.l.b16 %v353
    %v1102 = vunpack.c.h.b16 %v353
    %v1103 = vunpack.c.l.b16 %v354
    %v1104 = vunpack.c.h.b16 %v354
    %v1105 = vunpack.c.l.b16 %v355
    %v1106 = vunpack.c.h.b16 %v355
    %v1107 = vunpack.c.l.b16 %v356
    %v1108 = vunpack.c.h.b16 %v356
    %v1109 = vunpack.c.l.b16 %v357
    %v1110 = vunpack.c.h.b16 %v357
    %v1111 = vunpack.c.l.b16 %v358
    %v1112 = vunpack.c.h.b16 %v358
    %v1113 = vunpack.c.l.b16 %v359
    %v1114 = vunpack.c.h.b16 %v359
    %v1115 = vunpack.c.l.b16 %v360
    %v1116 = vunpack.c.h.b16 %v360
    %v1117 = vunpack.c.l.b16 %v361
    %v1118 = vunpack.c.h.b16 %v361
    %v1119 = vunpack.c.l.b16 %v362
    %v1120 = vunpack.c.h.b16 %v362
    %v1121 = vunpack.c.l.b16 %v363
    %v1122 = vunpack.c.h.b16 %v363
    %v1123 = vunpack.c.l.b16 %v364
    %v1124 = vunpack.c.h.b16 %v364
    %v1125 = vunpack.c.l.b16 %v365
    %v1126 = vunpack.c.h.b16 %v365
    %v1127 = vunpack.c.l.b16 %v366
    %v1128 = vunpack.c.h.b16 %v366
    %v1129 = vunpack.c.l.b16 %v367
    %v1130 = vunpack.c.h.b16 %v367
    %v1131 = vunpack.c.l.b16 %v368
    %v1132 = vunpack.c.h.b16 %v368
    %v1133 = vunpack.c.l.b16 %v369
    %v1134 = vunpack.c.h.b16 %v369
    %v1135 = vunpack.c.l.b16 %v370
    %v1136 = vunpack.c.h.b16 %v370
    %v1137 = vunpack.c.l.b16 %v371
    %v1138 = vunpack.c.h.b16 %v371
    %v1139 = vunpack.c.l.b16 %v372
    %v1140 = vunpack.c.h.b16 %v372
    %v1141 = vunpack.c.l.b16 %v373
    %v1142 = vunpack.c.h.b16 %v373
    %v1143 = vunpack.c.l.b16 %v374
    %v1144 = vunpack.c.h.b16 %v374
    %v1145 = vunpack.c.l.b16 %v375
    %v1146 = vunpack.c.h.b16 %v375
    %v1147 = vunpack.c.l.b16 %v376
    %v1148 = vunpack.c.h.b16 %v376
    %v1149 = vunpack.c.l.b16 %v377
    %v1150 = vunpack.c.h.b16 %v377
    %v1151 = vunpack.c.l.b16 %v378
    %v1152 = vunpack.c.h.b16 %v378
    %v1153 = vunpack.c.l.b16 %v379
    %v1154 = vunpack.c.h.b16 %v379
    %v1155 = vunpack.c.l.b16 %v380
    %v1156 = vunpack.c.h.b16 %v380
    %v1157 = vunpack.c.l.b16 %v381
    %v1158 = vunpack.c.h.b16 %v381
    %v1159 = vunpack.c.l.b16 %v382
    %v1160 = vunpack.c.h.b16 %v382
    %v1161 = vunpack.c.l.b16 %v383
    %v1162 = vunpack.c.h.b16 %v383
    %v1163 = vunpack.c.l.b16 %v384
    %v1164 = vunpack.c.h.b16 %v384
    %v1165 = vunpack.c.l.b16 %v385
    %v1166 = vunpack.c.h.b16 %v385
    %v1167 = vunpack.c.l.b16 %v386
    %v1168 = vunpack.c.h.b16 %v386
    %v1169 = vunpack.c.l.b16 %v387
    %v1170 = vunpack.c.h.b16 %v387
    %v1171 = vunpack.c.l.b16 %v388
    %v1172 = vunpack.c.h.b16 %v388
    %v1173 = vunpack.c.l.b16 %v389
    %v1174 = vunpack.c.h.b16 %v389
    %v1175 = vunpack.c.l.b16 %v390
    %v1176 = vunpack.c.h.b16 %v390
    %v1177 = vunpack.c.l.b16 %v391
    %v1178 = vunpack.c.h.b16 %v391
    %v1179 = vunpack.c.l.b16 %v392
    %v1180 = vunpack.c.h.b16 %v392
    %v1181 = vunpack.c.l.b16 %v393
    %v1182 = vunpack.c.h.b16 %v393
    %v1183 = vunpack.c.l.b16 %v394
    %v1184 = vunpack.c.h.b16 %v394
    %v1185 = vunpack.c.l.b16 %v395
    %v1186 = vunpack.c.h.b16 %v395
    %v1187 = vunpack.c.l.b16 %v396
    %v1188 = vunpack.c.h.b16 %v396
    %v1189 = vunpack.c.l.b16 %v397
    %v1190 = vunpack.c.h.b16 %v397
    %v1191 = vunpack.c.l.b16 %v398
    %v1192 = vunpack.c.h.b16 %v398
    %v1193 = vunpack.c.l.b16 %v399
    %v1194 = vunpack.c.h.b16 %v399
    %v1195 = vunpack.c.l.b16 %v400
    %v1196 = vunpack.c.h.b16 %v400
    %v1197 = vunpack.c.l.b16 %v401
    %v1198 = vunpack.c.h.b16 %v401
    %v1199 = vunpack.c.l.b16 %v402
    %v1200 = vunpack.c.h.b16 %v402
    %v1201 = vunpack.c.l.b16 %v403
    %v1202 = vunpack.c.h.b16 %v403
    %v1203 = vunpack.c.l.b16 %v404
    %v1204 = vunpack.c.h.b16 %v404
    %v1205 = vunpack.c.l.b16 %v405
    %v1206 = vunpack.c.h.b16 %v405
    %v1207 = vunpack.c.l.b16 %v406
    %v1208 = vunpack.c.h.b16 %v406
    %v1209 = vunpack.c.l.b16 %v407
    %v1210 = vunpack.c.h.b16 %v407
    %v1211 = vunpack.c.l.b16 %v408
    %v1212 = vunpack.c.h.b16 %v408
    %v1213 = vunpack.c.l.b16 %v409
    %v1214 = vunpack.c.h.b16 %v409
    %v1215 = vunpack.c.l.b16 %v410
    %v1216 = vunpack.c.h.b16 %v410
    %v1217 = vunpack.c.l.b16 %v411
    %v1218 = vunpack.c.h.b16 %v411
    %v1219 = vunpack.c.l.b16 %v412
    %v1220 = vunpack.c.h.b16 %v412
    %v1221 = vunpack.c.l.b16 %v413
    %v1222 = vunpack.c.h.b16 %v413
    %v1223 = vunpack.c.l.b16 %v414
    %v1224 = vunpack.c.h.b16 %v414
    %v1225 = vunpack.c.l.b16 %v415
    %v1226 = vunpack.c.h.b16 %v415
    %v1227 = vunpack.c.l.b16 %v416
    %v1228 = vunpack.c.h.b16 %v416
    %v1229 = vunpack.c.l.b16 %v417
    %v1230 = vunpack.c.h.b16 %v417
    %v1231 = vunpack.c.l.b16 %v418
    %v1232 = vunpack.c.h.b16 %v418
    %v1233 = vunpack.c.l.b16 %v419
    %v1234 = vunpack.c.h.b16 %v419
    %v1235 = vunpack.c.l.b16 %v420
    %v1236 = vunpack.c.h.b16 %v420
    %v1237 = vunpack.c.l.b16 %v421
    %v1238 = vunpack.c.h.b16 %v421
    %v1239 = vunpack.c.l.b16 %v422
    %v1240 = vunpack.c.h.b16 %v422
    %v1241 = vunpack.c.l.b16 %v423
    %v1242 = vunpack.c.h.b16 %v423
    %v1243 = vunpack.c.l.b16 %v424
    %v1244 = vunpack.c.h.b16 %v424
    %v1245 = vunpack.c.l.b16 %v425
    %v1246 = vunpack.c.h.b16 %v425
    %v1247 = vunpack.c.l.b16 %v426
    %v1248 = vunpack.c.h.b16 %v426
    %v1249 = vunpack.c.l.b16 %v427
    %v1250 = vunpack.c.h.b16 %v427
    %v1251 = vunpack.c.l.b16 %v428
    %v1252 = vunpack.c.h.b16 %v428
    %v1253 = vunpack.c.l.b16 %v429
    %v1254 = vunpack.c.h.b16 %v429
    %v1255 = vunpack.c.l.b16 %v430
    %v1256 = vunpack.c.h.b16 %v430
    %v1257 = vunpack.c.l.b16 %v431
    %v1258 = vunpack.c.h.b16 %v431
    %v1259 = vunpack.c.l.b16 %v432
    %v1260 = vunpack.c.h.b16 %v432
    %v1261 = vunpack.c.l.b16 %v433
    %v1262 = vunpack.c.h.b16 %v433
    %v1263 = vunpack.c.l.b16 %v434
    %v1264 = vunpack.c.h.b16 %v434
    %v1265 = vunpack.c.l.b16 %v435
    %v1266 = vunpack.c.h.b16 %v435
    %v1267 = vunpack.c.l.b16 %v436
    %v1268 = vunpack.c.h.b16 %v436
    %v1269 = vunpack.c.l.b16 %v437
    %v1270 = vunpack.c.h.b16 %v437
    %v1271 = vunpack.c.l.b16 %v438
    %v1272 = vunpack.c.h.b16 %v438
    %v1273 = vunpack.c.l.b16 %v439
    %v1274 = vunpack.c.h.b16 %v439
    %v1275 = vunpack.c.l.b16 %v440
    %v1276 = vunpack.c.h.b16 %v440
    %v1277 = vunpack.c.l.b16 %v441
    %v1278 = vunpack.c.h.b16 %v441
    %v1279 = vunpack.c.l.b16 %v442
    %v1280 = vunpack.c.h.b16 %v442
    %v1281 = vunpack.c.l.b16 %v443
    %v1282 = vunpack.c.h.b16 %v443
    %v1283 = vunpack.c.l.b16 %v444
    %v1284 = vunpack.c.h.b16 %v444
    %v1285 = vunpack.c.l.b16 %v445
    %v1286 = vunpack.c.h.b16 %v445
    %v1287 = vunpack.c.l.b16 %v446
    %v1288 = vunpack.c.h.b16 %v446
    %v1289 = vunpack.c.l.b16 %v447
    %v1290 = vunpack.c.h.b16 %v447
    %v1291 = vunpack.c.l.b16 %v448
    %v1292 = vunpack.c.h.b16 %v448
    %v1293 = vunpack.c.l.b16 %v449
    %v1294 = vunpack.c.h.b16 %v449
    %v1295 = vunpack.c.l.b16 %v450
    %v1296 = vunpack.c.h.b16 %v450
    %v1297 = vunpack.c.l.b16 %v451
    %v1298 = vunpack.c.h.b16 %v451
    %v1299 = vunpack.c.l.b16 %v452
    %v1300 = vunpack.c.h.b16 %v452
    %v1301 = vunpack.c.l.b16 %v453
    %v1302 = vunpack.c.h.b16 %v453
    %v1303 = vunpack.c.l.b16 %v454
    %v1304 = vunpack.c.h.b16 %v454
    %v1305 = vunpack.c.l.b16 %v455
    %v1306 = vunpack.c.h.b16 %v455
    %v1307 = vunpack.c.l.b16 %v456
    %v1308 = vunpack.c.h.b16 %v456
    %v1309 = vunpack.c.l.b16 %v457
    %v1310 = vunpack.c.h.b16 %v457
    %v1311 = vunpack.c.l.b16 %v458
    %v1312 = vunpack.c.h.b16 %v458
    %v1313 = vunpack.c.l.b16 %v459
    %v1314 = vunpack.c.h.b16 %v459
    %v1315 = vunpack.c.l.b16 %v460
    %v1316 = vunpack.c.h.b16 %v460
    %v1317 = vunpack.c.l.b16 %v461
    %v1318 = vunpack.c.h.b16 %v461
    %v1319 = vunpack.c.l.b16 %v462
    %v1320 = vunpack.c.h.b16 %v462
    %v1321 = vunpack.c.l.b16 %v463
    %v1322 = vunpack.c.h.b16 %v463
    %v1323 = vunpack.c.l.b16 %v464
    %v1324 = vunpack.c.h.b16 %v464
    %v1325 = vunpack.c.l.b16 %v465
    %v1326 = vunpack.c.h.b16 %v465
    %v1327 = vunpack.c.l.b16 %v466
    %v1328 = vunpack.c.h.b16 %v466
    %v1329 = vunpack.c.l.b16 %v467
    %v1330 = vunpack.c.h.b16 %v467
    %v1331 = vunpack.c.l.b16 %v468
    %v1332 = vunpack.c.h.b16 %v468
    %v1333 = vunpack.c.l.b16 %v469
    %v1334 = vunpack.c.h.b16 %v469
    %v1335 = vunpack.c.l.b16 %v470
    %v1336 = vunpack.c.h.b16 %v470
    %v1337 = vunpack.c.l.b16 %v471
    %v1338 = vunpack.c.h.b16 %v471
    %v1339 = vunpack.c.l.b16 %v472
    %v1340 = vunpack.c.h.b16 %v472
    %v1341 = vunpack.c.l.b16 %v473
    %v1342 = vunpack.c.h.b16 %v473
    %v1343 = vunpack.c.l.b16 %v474
    %v1344 = vunpack.c.h.b16 %v474
    %v1345 = vpack.c.b16 %v837, %v833
    %v1346 = vpack.c.b16 %v838, %v834
    %v1347 = vpack.c.b16 %v839, %v835
    %v1348 = vpack.c.b16 %v840, %v836
    %v1349 = vpack.c.b16 %v845, %v841
    %v1350 = vpack.c.b16 %v846, %v842
    %v1351 = vpack.c.b16 %v847, %v843
    %v1352 = vpack.c.b16 %v848, %v844
    %v1353 = vpack.c.b16 %v853, %v849
    %v1354 = vpack.c.b16 %v854, %v850
    %v1355 = vpack.c.b16 %v855, %v851
    %v1356 = vpack.c.b16 %v856, %v852
    %v1357 = vpack.c.b16 %v861, %v857
    %v1358 = vpack.c.b16 %v862, %v858
    %v1359 = vpack.c.b16 %v863, %v859
    %v1360 = vpack.c.b16 %v864, %v860
    %v1361 = vpack.c.b16 %v869, %v865
    %v1362 = vpack.c.b16 %v870, %v866
    %v1363 = vpack.c.b16 %v871, %v867
    %v1364 = vpack.c.b16 %v872, %v868
    %v1365 = vpack.c.b16 %v877, %v873
    %v1366 = vpack.c.b16 %v878, %v874
    %v1367 = vpack.c.b16 %v879, %v875
    %v1368 = vpack.c.b16 %v880, %v876
    %v1369 = vpack.c.b16 %v885, %v881
    %v1370 = vpack.c.b16 %v886, %v882
    %v1371 = vpack.c.b16 %v887, %v883
    %v1372 = vpack.c.b16 %v888, %v884
    %v1373 = vpack.c.b16 %v893, %v889
    %v1374 = vpack.c.b16 %v894, %v890
    %v1375 = vpack.c.b16 %v895, %v891
    %v1376 = vpack.c.b16 %v896, %v892
    %v1377 = vpack.c.b16 %v901, %v897
    %v1378 = vpack.c.b16 %v902, %v898
    %v1379 = vpack.c.b16 %v903, %v899
    %v1380 = vpack.c.b16 %v904, %v900
    %v1381 = vpack.c.b16 %v909, %v905
    %v1382 = vpack.c.b16 %v910, %v906
    %v1383 = vpack.c.b16 %v911, %v907
    %v1384 = vpack.c.b16 %v912, %v908
    %v1385 = vpack.c.b16 %v917, %v913
    %v1386 = vpack.c.b16 %v918, %v914
    %v1387 = vpack.c.b16 %v919, %v915
    %v1388 = vpack.c.b16 %v920, %v916
    %v1389 = vpack.c.b16 %v925, %v921
    %v1390 = vpack.c.b16 %v926, %v922
    %v1391 = vpack.c.b16 %v927, %v923
    %v1392 = vpack.c.b16 %v928, %v924
    %v1393 = vpack.c.b16 %v933, %v929
    %v1394 = vpack.c.b16 %v934, %v930
    %v1395 = vpack.c.b16 %v935, %v931
    %v1396 = vpack.c.b16 %v936, %v932
    %v1397 = vpack.c.b16 %v941, %v937
    %v1398 = vpack.c.b16 %v942, %v938
    %v1399 = vpack.c.b16 %v943, %v939
    %v1400 = vpack.c.b16 %v944, %v940
    %v1401 = vpack.c.b16 %v949, %v945
    %v1402 = vpack.c.b16 %v950, %v946
    %v1403 = vpack.c.b16 %v951, %v947
    %v1404 = vpack.c.b16 %v952, %v948
    %v1405 = vpack.c.b16 %v957, %v953
    %v1406 = vpack.c.b16 %v958, %v954
    %v1407 = vpack.c.b16 %v959, %v955
    %v1408 = vpack.c.b16 %v960, %v956
    %v1409 = vpack.c.b16 %v965, %v961
    %v1410 = vpack.c.b16 %v966, %v962
    %v1411 = vpack.c.b16 %v967, %v963
    %v1412 = vpack.c.b16 %v968, %v964
    %v1413 = vpack.c.b16 %v973, %v969
    %v1414 = vpack.c.b16 %v974, %v970
    %v1415 = vpack.c.b16 %v975, %v971
    %v1416 = vpack.c.b16 %v976, %v972
    %v1417 = vpack.c.b16 %v981, %v977
    %v1418 = vpack.c.b16 %v982, %v978
    %v1419 = vpack.c.b16 %v983, %v979
    %v1420 = vpack.c.b16 %v984, %v980
    %v1421 = vpack.c.b16 %v989, %v985
    %v1422 = vpack.c.b16 %v990, %v986
    %v1423 = vpack.c.b16 %v991, %v987
    %v1424 = vpack.c.b16 %v992, %v988
    %v1425 = vpack.c.b16 %v997, %v993
    %v1426 = vpack.c.b16 %v998, %v994
    %v1427 = vpack.c.b16 %v999, %v995
    %v1428 = vpack.c.b16 %v1000, %v996
    %v1429 = vpack.c.b16 %v1005, %v1001
    %v1430 = vpack.c.b16 %v1006, %v1002
    %v1431 = vpack.c.b16 %v1007, %v1003
    %v1432 = vpack.c.b16 %v1008, %v1004
    %v1433 = vpack.c.b16 %v1013, %v1009
    %v1434 = vpack.c.b16 %v1014, %v1010
    %v1435 = vpack.c.b16 %v1015, %v1011
    %v1436 = vpack.c.b16 %v1016, %v1012
    %v1437 = vpack.c.b16 %v1021, %v1017
    %v1438 = vpack.c.b16 %v1022, %v1018
    %v1439 = vpack.c.b16 %v1023, %v1019
    %v1440 = vpack.c.b16 %v1024, %v1020
    %v1441 = vpack.c.b16 %v1029, %v1025
    %v1442 = vpack.c.b16 %v1030, %v1026
    %v1443 = vpack.c.b16 %v1031, %v1027
    %v1444 = vpack.c.b16 %v1032, %v1028
    %v1445 = vpack.c.b16 %v1037, %v1033
    %v1446 = vpack.c.b16 %v1038, %v1034
    %v1447 = vpack.c.b16 %v1039, %v1035
    %v1448 = vpack.c.b16 %v1040, %v1036
    %v1449 = vpack.c.b16 %v1045, %v1041
    %v1450 = vpack.c.b16 %v1046, %v1042
    %v1451 = vpack.c.b16 %v1047, %v1043
    %v1452 = vpack.c.b16 %v1048, %v1044
    %v1453 = vpack.c.b16 %v1053, %v1049
    %v1454 = vpack.c.b16 %v1054, %v1050
    %v1455 = vpack.c.b16 %v1055, %v1051
    %v1456 = vpack.c.b16 %v1056, %v1052
    %v1457 = vpack.c.b16 %v1061, %v1057
    %v1458 = vpack.c.b16 %v1062, %v1058
    %v1459 = vpack.c.b16 %v1063, %v1059
    %v1460 = vpack.c.b16 %v1064, %v1060
    %v1461 = vpack.c.b16 %v1069, %v1065
    %v1462 = vpack.c.b16 %v1070, %v1066
    %v1463 = vpack.c.b16 %v1071, %v1067
    %v1464 = vpack.c.b16 %v1072, %v1068
    %v1465 = vpack.c.b16 %v1077, %v1073
    %v1466 = vpack.c.b16 %v1078, %v1074
    %v1467 = vpack.c.b16 %v1079, %v1075
    %v1468 = vpack.c.b16 %v1080, %v1076
    %v1469 = vpack.c.b16 %v1085, %v1081
    %v1470 = vpack.c.b16 %v1086, %v1082
    %v1471 = vpack.c.b16 %v1087, %v1083
    %v1472 = vpack.c.b16 %v1088, %v1084
    %v1473 = vpack.c.b16 %v1093, %v1089
    %v1474 = vpack.c.b16 %v1094, %v1090
    %v1475 = vpack.c.b16 %v1095, %v1091
    %v1476 = vpack.c.b16 %v1096, %v1092
    %v1477 = vpack.c.b16 %v1101, %v1097
    %v1478 = vpack.c.b16 %v1102, %v1098
    %v1479 = vpack.c.b16 %v1103, %v1099
    %v1480 = vpack.c.b16 %v1104, %v1100
    %v1481 = vpack.c.b16 %v1109, %v1105
    %v1482 = vpack.c.b16 %v1110, %v1106
    %v1483 = vpack.c.b16 %v1111, %v1107
    %v1484 = vpack.c.b16 %v1112, %v1108
    %v1485 = vpack.c.b16 %v1117, %v1113
    %v1486 = vpack.c.b16 %v1118, %v1114
    %v1487 = vpack.c.b16 %v1119, %v1115
    %v1488 = vpack.c.b16 %v1120, %v1116
    %v1489 = vpack.c.b16 %v1125, %v1121
    %v1490 = vpack.c.b16 %v1126, %v1122
    %v1491 = vpack.c.b16 %v1127, %v1123
    %v1492 = vpack.c.b16 %v1128, %v1124
    %v1493 = vpack.c.b16 %v1133, %v1129
    %v1494 = vpack.c.b16 %v1134, %v1130
    %v1495 = vpack.c.b16 %v1135, %v1131
    %v1496 = vpack.c.b16 %v1136, %v1132
    %v1497 = vpack.c.b16 %v1141, %v1137
    %v1498 = vpack.c.b16 %v1142, %v1138
    %v1499 = vpack.c.b16 %v1143, %v1139
    %v1500 = vpack.c.b16 %v1144, %v1140
    %v1501 = vpack.c.b16 %v1149, %v1145
    %v1502 = vpack.c.b16 %v1150, %v1146
    %v1503 = vpack.c.b16 %v1151, %v1147
    %v1504 = vpack.c.b16 %v1152, %v1148
    %v1505 = vpack.c.b16 %v1157, %v1153
    %v1506 = vpack.c.b16 %v1158, %v1154
    %v1507 = vpack.c.b16 %v1159, %v1155
    %v1508 = vpack.c.b16 %v1160, %v1156
    %v1509 = vpack.c.b16 %v1165, %v1161
    %v1510 = vpack.c.b16 %v1166, %v1162
    %v1511 = vpack.c.b16 %v1167, %v1163
    %v1512 = vpack.c.b16 %v1168, %v1164
    %v1513 = vpack.c.b16 %v1173, %v1169
    %v1514 = vpack.c.b16 %v1174, %v1170
    %v1515 = vpack.c.b16 %v1175, %v1171
    %v1516 = vpack.c.b16 %v1176, %v1172
    %v1517 = vpack.c.b16 %v1181, %v1177
    %v1518 = vpack.c.b16 %v1182, %v1178
    %v1519 = vpack.c.b16 %v1183, %v1179
    %v1520 = vpack.c.b16 %v1184, %v1180
    %v1521 = vpack.c.b16 %v1189, %v1185
    %v1522 = vpack.c.b16 %v1190, %v1186
    %v1523 = vpack.c.b16 %v1191, %v1187
    %v1524 = vpack.c.b16 %v1192, %v1188
    %v1525 = vpack.c.b16 %v1197, %v1193
    %v1526 = vpack.c.b16 %v1198, %v1194
    %v1527 = vpack.c.b16 %v1199, %v1195
    %v1528 = vpack.c.b16 %v1200, %v1196
    %v1529 = vpack.c.b16 %v1205, %v1201
    %v1530 = vpack.c.b16 %v1206, %v1202
    %v1531 = vpack.c.b16 %v1207, %v1203
    %v1532 = vpack.c.b16 %v1208, %v1204
    %v1533 = vpack.c.b16 %v1213, %v1209
    %v1534 = vpack.c.b16 %v1214, %v1210
    %v1535 = vpack.c.b16 %v1215, %v1211
    %v1536 = vpack.c.b16 %v1216, %v1212
    %v1537 = vpack.c.b16 %v1221, %v1217
    %v1538 = vpack.c.b16 %v1222, %v1218
    %v1539 = vpack.c.b16 %v1223, %v1219
    %v1540 = vpack.c.b16 %v1224, %v1220
    %v1541 = vpack.c.b16 %v1229, %v1225
    %v1542 = vpack.c.b16 %v1230, %v1226
    %v1543 = vpack.c.b16 %v1231, %v1227
    %v1544 = vpack.c.b16 %v1232, %v1228
    %v1545 = vpack.c.b16 %v1237, %v1233
    %v1546 = vpack.c.b16 %v1238, %v1234
    %v1547 = vpack.c.b16 %v1239, %v1235
    %v1548 = vpack.c.b16 %v1240, %v1236
    %v1549 = vpack.c.b16 %v1245, %v1241
    %v1550 = vpack.c.b16 %v1246, %v1242
    %v1551 = vpack.c.b16 %v1247, %v1243
    %v1552 = vpack.c.b16 %v1248, %v1244
    %v1553 = vpack.c.b16 %v1253, %v1249
    %v1554 = vpack.c.b16 %v1254, %v1250
    %v1555 = vpack.c.b16 %v1255, %v1251
    %v1556 = vpack.c.b16 %v1256, %v1252
    %v1557 = vpack.c.b16 %v1261, %v1257
    %v1558 = vpack.c.b16 %v1262, %v1258
    %v1559 = vpack.c.b16 %v1263, %v1259
    %v1560 = vpack.c.b16 %v1264, %v1260
    %v1561 = vpack.c.b16 %v1269, %v1265
    %v1562 = vpack.c.b16 %v1270, %v1266
    %v1563 = vpack.c.b16 %v1271, %v1267
    %v1564 = vpack.c.b16 %v1272, %v1268
    %v1565 = vpack.c.b16 %v1277, %v1273
    %v1566 = vpack.c.b16 %v1278, %v1274
    %v1567 = vpack.c.b16 %v1279, %v1275
    %v1568 = vpack.c.b16 %v1280, %v1276
    %v1569 = vpack.c.b16 %v1285, %v1281
    %v1570 = vpack.c.b16 %v1286, %v1282
    %v1571 = vpack.c.b16 %v1287, %v1283
    %v1572 = vpack.c.b16 %v1288, %v1284
    %v1573 = vpack.c.b16 %v1293, %v1289
    %v1574 = vpack.c.b16 %v1294, %v1290
    %v1575 = vpack.c.b16 %v1295, %v1291
    %v1576 = vpack.c.b16 %v1296, %v1292
    %v1577 = vpack.c.b16 %v1301, %v1297
    %v1578 = vpack.c.b16 %v1302, %v1298
    %v1579 = vpack.c.b16 %v1303, %v1299
    %v1580 = vpack.c.b16 %v1304, %v1300
    %v1581 = vpack.c.b16 %v1309, %v1305
    %v1582 = vpack.c.b16 %v1310, %v1306
    %v1583 = vpack.c.b16 %v1311, %v1307
    %v1584 = vpack.c.b16 %v1312, %v1308
    %v1585 = vpack.c.b16 %v1317, %v1313
    %v1586 = vpack.c.b16 %v1318, %v1314
    %v1587 = vpack.c.b16 %v1319, %v1315
    %v1588 = vpack.c.b16 %v1320, %v1316
    %v1589 = vpack.c.b16 %v1325, %v1321
    %v1590 = vpack.c.b16 %v1326, %v1322
    %v1591 = vpack.c.b16 %v1327, %v1323
    %v1592 = vpack.c.b16 %v1328, %v1324
    %v1593 = vpack.c.b16 %v1333, %v1329
    %v1594 = vpack.c.b16 %v1334, %v1330
    %v1595 = vpack.c.b16 %v1335, %v1331
    %v1596 = vpack.c.b16 %v1336, %v1332
    %v1597 = vpack.c.b16 %v1341, %v1337
    %v1598 = vpack.c.b16 %v1342, %v1338
    %v1599 = vpack.c.b16 %v1343, %v1339
    %v1600 = vpack.c.b16 %v1344, %v1340
    %1857 = vmatprep.subr.bf16.mxu0 %v1346
    %1858 = vmatpush1.bf16.msra.mxu0 %v1345
    %1859 = vmatprep.subr.bf16.mxu0 %v1350
    %1860 = vmatpush1.bf16.msra.mxu0 %v1349
    %1861 = vmatprep.subr.bf16.mxu0 %v1354
    %1862 = vmatpush1.bf16.msra.mxu0 %v1353
    %1863 = vmatprep.subr.bf16.mxu0 %v1358
    %1864 = vmatpush1.bf16.msra.mxu0 %v1357
    %1865 = vmatprep.subr.bf16.mxu0 %v1362
    %1866 = vmatpush1.bf16.msra.mxu0 %v1361
    %1867 = vmatprep.subr.bf16.mxu0 %v1366
    %1868 = vmatpush1.bf16.msra.mxu0 %v1365
    %1869 = vmatprep.subr.bf16.mxu0 %v1370
    %1870 = vmatpush1.bf16.msra.mxu0 %v1369
    %1871 = vmatprep.subr.bf16.mxu0 %v1374
    %1872 = vmatpush1.bf16.msra.mxu0 %v1373
    %1873 = vmatprep.subr.bf16.mxu0 %v1378
    %1874 = vmatpush1.bf16.msra.mxu0 %v1377
    %1875 = vmatprep.subr.bf16.mxu0 %v1382
    %1876 = vmatpush1.bf16.msra.mxu0 %v1381
    %1877 = vmatprep.subr.bf16.mxu0 %v1386
    %1878 = vmatpush1.bf16.msra.mxu0 %v1385
    %1879 = vmatprep.subr.bf16.mxu0 %v1390
    %1880 = vmatpush1.bf16.msra.mxu0 %v1389
    %1881 = vmatprep.subr.bf16.mxu0 %v1394
    %1882 = vmatpush1.bf16.msra.mxu0 %v1393
    %1883 = vmatprep.subr.bf16.mxu0 %v1398
    %1884 = vmatpush1.bf16.msra.mxu0 %v1397
    %1885 = vmatprep.subr.bf16.mxu0 %v1402
    %1886 = vmatpush1.bf16.msra.mxu0 %v1401
    %1887 = vmatprep.subr.bf16.mxu0 %v1406
    %1888 = vmatpush1.bf16.msra.mxu0 %v1405
    %1889 = vmatprep.mubr.bf16.mxu0 %v546
    %1890 = vmatmul.mubr.bf16.gmra.mrb[0].mxu0 %v545
    %v1891 = vpop.f32.mrb[0].mxu0
    %v1892 = vadd.f32 %v480, %v1891
    %v1893 = vpop.f32.mrb[0].mxu0
    %v1894 = vadd.f32 %v484, %v1893
    %v1895 = vpop.f32.mrb[0].mxu0
    %v1896 = vadd.f32 %v480, %v1895
    %v1897 = vpop.f32.mrb[0].mxu0
    %v1898 = vadd.f32 %v484, %v1897
    %1899 = vmatprep.mubr.bf16.mxu0 %v554
    %1900 = vmatmul.mubr.bf16.gmra.mrb[0].mxu0 %v553
    %v1901 = vpop.f32.mrb[0].mxu0
    %v1902 = vadd.f32 %v480, %v1901
    %v1903 = vpop.f32.mrb[0].mxu0
    %v1904 = vadd.f32 %v484, %v1903
    %v1905 = vpop.f32.mrb[0].mxu0
    %v1906 = vadd.f32 %v480, %v1905
    %v1907 = vpop.f32.mrb[0].mxu0
    %v1908 = vadd.f32 %v484, %v1907
    %1909 = vdwg.mxu0
    %1910 = vmatprep.subr.bf16.mxu0 %v1410
    %1911 = vmatpush1.bf16.msra.mxu0 %v1409
    %1912 = vmatprep.subr.bf16.mxu0 %v1414
    %1913 = vmatpush1.bf16.msra.mxu0 %v1413
    %1914 = vmatprep.subr.bf16.mxu0 %v1418
    %1915 = vmatpush1.bf16.msra.mxu0 %v1417
    %1916 = vmatprep.subr.bf16.mxu0 %v1422
    %1917 = vmatpush1.bf16.msra.mxu0 %v1421
    %1918 = vmatprep.subr.bf16.mxu0 %v1426
    %1919 = vmatpush1.bf16.msra.mxu0 %v1425
    %1920 = vmatprep.subr.bf16.mxu0 %v1430
    %1921 = vmatpush1.bf16.msra.mxu0 %v1429
    %1922 = vmatprep.subr.bf16.mxu0 %v1434
    %1923 = vmatpush1.bf16.msra.mxu0 %v1433
    %1924 = vmatprep.subr.bf16.mxu0 %v1438
    %1925 = vmatpush1.bf16.msra.mxu0 %v1437
    %1926 = vmatprep.subr.bf16.mxu0 %v1442
    %1927 = vmatpush1.bf16.msra.mxu0 %v1441
    %1928 = vmatprep.subr.bf16.mxu0 %v1446
    %1929 = vmatpush1.bf16.msra.mxu0 %v1445
    %1930 = vmatprep.subr.bf16.mxu0 %v1450
    %1931 = vmatpush1.bf16.msra.mxu0 %v1449
    %1932 = vmatprep.subr.bf16.mxu0 %v1454
    %1933 = vmatpush1.bf16.msra.mxu0 %v1453
    %1934 = vmatprep.subr.bf16.mxu0 %v1458
    %1935 = vmatpush1.bf16.msra.mxu0 %v1457
    %1936 = vmatprep.subr.bf16.mxu0 %v1462
    %1937 = vmatpush1.bf16.msra.mxu0 %v1461
    %1938 = vmatprep.subr.bf16.mxu0 %v1466
    %1939 = vmatpush1.bf16.msra.mxu0 %v1465
    %1940 = vmatprep.subr.bf16.mxu0 %v1470
    %1941 = vmatpush1.bf16.msra.mxu0 %v1469
    %1942 = vmatprep.mubr.bf16.mxu0 %v548
    %1943 = vmatmul.mubr.bf16.gmra.mrb[0].mxu0 %v547
    %v1944 = vpop.f32.mrb[0].mxu0
    %v1945 = vadd.f32 %v1892, %v1944
    %v1946 = vpop.f32.mrb[0].mxu0
    %v1947 = vadd.f32 %v1894, %v1946
    %v1948 = vpop.f32.mrb[0].mxu0
    %v1949 = vadd.f32 %v1896, %v1948
    %v1950 = vpop.f32.mrb[0].mxu0
    %v1951 = vadd.f32 %v1898, %v1950
    %1952 = vmatprep.mubr.bf16.mxu0 %v556
    %1953 = vmatmul.mubr.bf16.gmra.mrb[0].mxu0 %v555
    %v1954 = vpop.f32.mrb[0].mxu0
    %v1955 = vadd.f32 %v1902, %v1954
    %v1956 = vpop.f32.mrb[0].mxu0
    %v1957 = vadd.f32 %v1904, %v1956
    %v1958 = vpop.f32.mrb[0].mxu0
    %v1959 = vadd.f32 %v1906, %v1958
    %v1960 = vpop.f32.mrb[0].mxu0
    %v1961 = vadd.f32 %v1908, %v1960
    %1962 = vdwg.mxu0
    %1963 = vmatprep.subr.bf16.mxu0 %v1474
    %1964 = vmatpush1.bf16.msra.mxu0 %v1473
    %1965 = vmatprep.subr.bf16.mxu0 %v1478
    %1966 = vmatpush1.bf16.msra.mxu0 %v1477
    %1967 = vmatprep.subr.bf16.mxu0 %v1482
    %1968 = vmatpush1.bf16.msra.mxu0 %v1481
    %1969 = vmatprep.subr.bf16.mxu0 %v1486
    %1970 = vmatpush1.bf16.msra.mxu0 %v1485
    %1971 = vmatprep.subr.bf16.mxu0 %v1490
    %1972 = vmatpush1.bf16.msra.mxu0 %v1489
    %1973 = vmatprep.subr.bf16.mxu0 %v1494
    %1974 = vmatpush1.bf16.msra.mxu0 %v1493
    %1975 = vmatprep.subr.bf16.mxu0 %v1498
    %1976 = vmatpush1.bf16.msra.mxu0 %v1497
    %1977 = vmatprep.subr.bf16.mxu0 %v1502
    %1978 = vmatpush1.bf16.msra.mxu0 %v1501
    %1979 = vmatprep.subr.bf16.mxu0 %v1506
    %1980 = vmatpush1.bf16.msra.mxu0 %v1505
    %1981 = vmatprep.subr.bf16.mxu0 %v1510
    %1982 = vmatpush1.bf16.msra.mxu0 %v1509
    %1983 = vmatprep.subr.bf16.mxu0 %v1514
    %1984 = vmatpush1.bf16.msra.mxu0 %v1513
    %1985 = vmatprep.subr.bf16.mxu0 %v1518
    %1986 = vmatpush1.bf16.msra.mxu0 %v1517
    %1987 = vmatprep.subr.bf16.mxu0 %v1522
    %1988 = vmatpush1.bf16.msra.mxu0 %v1521
    %1989 = vmatprep.subr.bf16.mxu0 %v1526
    %1990 = vmatpush1.bf16.msra.mxu0 %v1525
    %1991 = vmatprep.subr.bf16.mxu0 %v1530
    %1992 = vmatpush1.bf16.msra.mxu0 %v1529
    %1993 = vmatprep.subr.bf16.mxu0 %v1534
    %1994 = vmatpush1.bf16.msra.mxu0 %v1533
    %1995 = vmatprep.mubr.bf16.mxu0 %v550
    %1996 = vmatmul.mubr.bf16.gmra.mrb[0].mxu0 %v549
    %v1997 = vpop.f32.mrb[0].mxu0
    %v1998 = vadd.f32 %v1945, %v1997
    %v1999 = vpop.f32.mrb[0].mxu0
    %v2000 = vadd.f32 %v1947, %v1999
    %v2001 = vpop.f32.mrb[0].mxu0
    %v2002 = vadd.f32 %v1949, %v2001
    %v2003 = vpop.f32.mrb[0].mxu0
    %v2004 = vadd.f32 %v1951, %v2003
    %2005 = vmatprep.mubr.bf16.mxu0 %v558
    %2006 = vmatmul.mubr.bf16.gmra.mrb[0].mxu0 %v557
    %v2007 = vpop.f32.mrb[0].mxu0
    %v2008 = vadd.f32 %v1955, %v2007
    %v2009 = vpop.f32.mrb[0].mxu0
    %v2010 = vadd.f32 %v1957, %v2009
    %v2011 = vpop.f32.mrb[0].mxu0
    %v2012 = vadd.f32 %v1959, %v2011
    %v2013 = vpop.f32.mrb[0].mxu0
    %v2014 = vadd.f32 %v1961, %v2013
    %2015 = vdwg.mxu0
    %2016 = vmatprep.subr.bf16.mxu0 %v1538
    %2017 = vmatpush1.bf16.msra.mxu0 %v1537
    %2018 = vmatprep.subr.bf16.mxu0 %v1542
    %2019 = vmatpush1.bf16.msra.mxu0 %v1541
    %2020 = vmatprep.subr.bf16.mxu0 %v1546
    %2021 = vmatpush1.bf16.msra.mxu0 %v1545
    %2022 = vmatprep.subr.bf16.mxu0 %v1550
    %2023 = vmatpush1.bf16.msra.mxu0 %v1549
    %2024 = vmatprep.subr.bf16.mxu0 %v1554
    %2025 = vmatpush1.bf16.msra.mxu0 %v1553
    %2026 = vmatprep.subr.bf16.mxu0 %v1558
    %2027 = vmatpush1.bf16.msra.mxu0 %v1557
    %2028 = vmatprep.subr.bf16.mxu0 %v1562
    %2029 = vmatpush1.bf16.msra.mxu0 %v1561
    %2030 = vmatprep.subr.bf16.mxu0 %v1566
    %2031 = vmatpush1.bf16.msra.mxu0 %v1565
    %2032 = vmatprep.subr.bf16.mxu0 %v1570
    %2033 = vmatpush1.bf16.msra.mxu0 %v1569
    %2034 = vmatprep.subr.bf16.mxu0 %v1574
    %2035 = vmatpush1.bf16.msra.mxu0 %v1573
    %2036 = vmatprep.subr.bf16.mxu0 %v1578
    %2037 = vmatpush1.bf16.msra.mxu0 %v1577
    %2038 = vmatprep.subr.bf16.mxu0 %v1582
    %2039 = vmatpush1.bf16.msra.mxu0 %v1581
    %2040 = vmatprep.subr.bf16.mxu0 %v1586
    %2041 = vmatpush1.bf16.msra.mxu0 %v1585
    %2042 = vmatprep.subr.bf16.mxu0 %v1590
    %2043 = vmatpush1.bf16.msra.mxu0 %v1589
    %2044 = vmatprep.subr.bf16.mxu0 %v1594
    %2045 = vmatpush1.bf16.msra.mxu0 %v1593
    %2046 = vmatprep.subr.bf16.mxu0 %v1598
    %2047 = vmatpush1.bf16.msra.mxu0 %v1597
    %2048 = vmatprep.mubr.bf16.mxu0 %v552
    %2049 = vmatmul.mubr.bf16.gmra.mrb[0].mxu0 %v551
    %v2050 = vpop.f32.mrb[0].mxu0
    %v2051 = vadd.f32 %v1998, %v2050
    %v2052 = vpop.f32.mrb[0].mxu0
    %v2053 = vadd.f32 %v2000, %v2052
    %v2054 = vpop.f32.mrb[0].mxu0
    %v2055 = vadd.f32 %v2002, %v2054
    %v2056 = vpop.f32.mrb[0].mxu0
    %v2057 = vadd.f32 %v2004, %v2056
    %2058 = vmatprep.mubr.bf16.mxu0 %v560
    %2059 = vmatmul.mubr.bf16.gmra.mrb[0].mxu0 %v559
    %v2060 = vpop.f32.mrb[0].mxu0
    %v2061 = vadd.f32 %v2008, %v2060
    %v2062 = vpop.f32.mrb[0].mxu0
    %v2063 = vadd.f32 %v2010, %v2062
    %v2064 = vpop.f32.mrb[0].mxu0
    %v2065 = vadd.f32 %v2012, %v2064
    %v2066 = vpop.f32.mrb[0].mxu0
    %v2067 = vadd.f32 %v2014, %v2066
    %2068 = vdwg.mxu0
    %2069 = vmatprep.subr.bf16.mxu0 %v1348
    %2070 = vmatpush1.bf16.msra.mxu0 %v1347
    %2071 = vmatprep.subr.bf16.mxu0 %v1352
    %2072 = vmatpush1.bf16.msra.mxu0 %v1351
    %2073 = vmatprep.subr.bf16.mxu0 %v1356
    %2074 = vmatpush1.bf16.msra.mxu0 %v1355
    %2075 = vmatprep.subr.bf16.mxu0 %v1360
    %2076 = vmatpush1.bf16.msra.mxu0 %v1359
    %2077 = vmatprep.subr.bf16.mxu0 %v1364
    %2078 = vmatpush1.bf16.msra.mxu0 %v1363
    %2079 = vmatprep.subr.bf16.mxu0 %v1368
    %2080 = vmatpush1.bf16.msra.mxu0 %v1367
    %2081 = vmatprep.subr.bf16.mxu0 %v1372
    %2082 = vmatpush1.bf16.msra.mxu0 %v1371
    %2083 = vmatprep.subr.bf16.mxu0 %v1376
    %2084 = vmatpush1.bf16.msra.mxu0 %v1375
    %2085 = vmatprep.subr.bf16.mxu0 %v1380
    %2086 = vmatpush1.bf16.msra.mxu0 %v1379
    %2087 = vmatprep.subr.bf16.mxu0 %v1384
    %2088 = vmatpush1.bf16.msra.mxu0 %v1383
    %2089 = vmatprep.subr.bf16.mxu0 %v1388
    %2090 = vmatpush1.bf16.msra.mxu0 %v1387
    %2091 = vmatprep.subr.bf16.mxu0 %v1392
    %2092 = vmatpush1.bf16.msra.mxu0 %v1391
    %2093 = vmatprep.subr.bf16.mxu0 %v1396
    %2094 = vmatpush1.bf16.msra.mxu0 %v1395
    %2095 = vmatprep.subr.bf16.mxu0 %v1400
    %2096 = vmatpush1.bf16.msra.mxu0 %v1399
    %2097 = vmatprep.subr.bf16.mxu0 %v1404
    %2098 = vmatpush1.bf16.msra.mxu0 %v1403
    %2099 = vmatprep.subr.bf16.mxu0 %v1408
    %2100 = vmatpush1.bf16.msra.mxu0 %v1407
    %2101 = vmatprep.mubr.bf16.mxu0 %v546
    %2102 = vmatmul.mubr.bf16.gmra.mrb[0].mxu0 %v545
    %v2103 = vpop.f32.mrb[0].mxu0
    %v2104 = vadd.f32 %v488, %v2103
    %v2105 = vpop.f32.mrb[0].mxu0
    %v2106 = vadd.f32 %v492, %v2105
    %v2107 = vpop.f32.mrb[0].mxu0
    %v2108 = vadd.f32 %v488, %v2107
    %v2109 = vpop.f32.mrb[0].mxu0
    %v2110 = vadd.f32 %v492, %v2109
    %2111 = vmatprep.mubr.bf16.mxu0 %v554
    %2112 = vmatmul.mubr.bf16.gmra.mrb[0].mxu0 %v553
    %v2113 = vpop.f32.mrb[0].mxu0
    %v2114 = vadd.f32 %v488, %v2113
    %v2115 = vpop.f32.mrb[0].mxu0
    %v2116 = vadd.f32 %v492, %v2115
    %v2117 = vpop.f32.mrb[0].mxu0
    %v2118 = vadd.f32 %v488, %v2117
    %v2119 = vpop.f32.mrb[0].mxu0
    %v2120 = vadd.f32 %v492, %v2119
    %2121 = vdwg.mxu0
    %2122 = vmatprep.subr.bf16.mxu0 %v1412
    %2123 = vmatpush1.bf16.msra.mxu0 %v1411
    %2124 = vmatprep.subr.bf16.mxu0 %v1416
    %2125 = vmatpush1.bf16.msra.mxu0 %v1415
    %2126 = vmatprep.subr.bf16.mxu0 %v1420
    %2127 = vmatpush1.bf16.msra.mxu0 %v1419
    %2128 = vmatprep.subr.bf16.mxu0 %v1424
    %2129 = vmatpush1.bf16.msra.mxu0 %v1423
    %2130 = vmatprep.subr.bf16.mxu0 %v1428
    %2131 = vmatpush1.bf16.msra.mxu0 %v1427
    %2132 = vmatprep.subr.bf16.mxu0 %v1432
    %2133 = vmatpush1.bf16.msra.mxu0 %v1431
    %2134 = vmatprep.subr.bf16.mxu0 %v1436
    %2135 = vmatpush1.bf16.msra.mxu0 %v1435
    %2136 = vmatprep.subr.bf16.mxu0 %v1440
    %2137 = vmatpush1.bf16.msra.mxu0 %v1439
    %2138 = vmatprep.subr.bf16.mxu0 %v1444
    %2139 = vmatpush1.bf16.msra.mxu0 %v1443
    %2140 = vmatprep.subr.bf16.mxu0 %v1448
    %2141 = vmatpush1.bf16.msra.mxu0 %v1447
    %2142 = vmatprep.subr.bf16.mxu0 %v1452
    %2143 = vmatpush1.bf16.msra.mxu0 %v1451
    %2144 = vmatprep.subr.bf16.mxu0 %v1456
    %2145 = vmatpush1.bf16.msra.mxu0 %v1455
    %2146 = vmatprep.subr.bf16.mxu0 %v1460
    %2147 = vmatpush1.bf16.msra.mxu0 %v1459
    %2148 = vmatprep.subr.bf16.mxu0 %v1464
    %2149 = vmatpush1.bf16.msra.mxu0 %v1463
    %2150 = vmatprep.subr.bf16.mxu0 %v1468
    %2151 = vmatpush1.bf16.msra.mxu0 %v1467
    %2152 = vmatprep.subr.bf16.mxu0 %v1472
    %2153 = vmatpush1.bf16.msra.mxu0 %v1471
    %2154 = vmatprep.mubr.bf16.mxu0 %v548
    %2155 = vmatmul.mubr.bf16.gmra.mrb[0].mxu0 %v547
    %v2156 = vpop.f32.mrb[0].mxu0
    %v2157 = vadd.f32 %v2104, %v2156
    %v2158 = vpop.f32.mrb[0].mxu0
    %v2159 = vadd.f32 %v2106, %v2158
    %v2160 = vpop.f32.mrb[0].mxu0
    %v2161 = vadd.f32 %v2108, %v2160
    %v2162 = vpop.f32.mrb[0].mxu0
    %v2163 = vadd.f32 %v2110, %v2162
    %2164 = vmatprep.mubr.bf16.mxu0 %v556
    %2165 = vmatmul.mubr.bf16.gmra.mrb[0].mxu0 %v555
    %v2166 = vpop.f32.mrb[0].mxu0
    %v2167 = vadd.f32 %v2114, %v2166
    %v2168 = vpop.f32.mrb[0].mxu0
    %v2169 = vadd.f32 %v2116, %v2168
    %v2170 = vpop.f32.mrb[0].mxu0
    %v2171 = vadd.f32 %v2118, %v2170
    %v2172 = vpop.f32.mrb[0].mxu0
    %v2173 = vadd.f32 %v2120, %v2172
    %2174 = vdwg.mxu0
    %2175 = vmatprep.subr.bf16.mxu0 %v1476
    %2176 = vmatpush1.bf16.msra.mxu0 %v1475
    %2177 = vmatprep.subr.bf16.mxu0 %v1480
    %2178 = vmatpush1.bf16.msra.mxu0 %v1479
    %2179 = vmatprep.subr.bf16.mxu0 %v1484
    %2180 = vmatpush1.bf16.msra.mxu0 %v1483
    %2181 = vmatprep.subr.bf16.mxu0 %v1488
    %2182 = vmatpush1.bf16.msra.mxu0 %v1487
    %2183 = vmatprep.subr.bf16.mxu0 %v1492
    %2184 = vmatpush1.bf16.msra.mxu0 %v1491
    %2185 = vmatprep.subr.bf16.mxu0 %v1496
    %2186 = vmatpush1.bf16.msra.mxu0 %v1495
    %2187 = vmatprep.subr.bf16.mxu0 %v1500
    %2188 = vmatpush1.bf16.msra.mxu0 %v1499
    %2189 = vmatprep.subr.bf16.mxu0 %v1504
    %2190 = vmatpush1.bf16.msra.mxu0 %v1503
    %2191 = vmatprep.subr.bf16.mxu0 %v1508
    %2192 = vmatpush1.bf16.msra.mxu0 %v1507
    %2193 = vmatprep.subr.bf16.mxu0 %v1512
    %2194 = vmatpush1.bf16.msra.mxu0 %v1511
    %2195 = vmatprep.subr.bf16.mxu0 %v1516
    %2196 = vmatpush1.bf16.msra.mxu0 %v1515
    %2197 = vmatprep.subr.bf16.mxu0 %v1520
    %2198 = vmatpush1.bf16.msra.mxu0 %v1519
    %2199 = vmatprep.subr.bf16.mxu0 %v1524
    %2200 = vmatpush1.bf16.msra.mxu0 %v1523
    %2201 = vmatprep.subr.bf16.mxu0 %v1528
    %2202 = vmatpush1.bf16.msra.mxu0 %v1527
    %2203 = vmatprep.subr.bf16.mxu0 %v1532
    %2204 = vmatpush1.bf16.msra.mxu0 %v1531
    %2205 = vmatprep.subr.bf16.mxu0 %v1536
    %2206 = vmatpush1.bf16.msra.mxu0 %v1535
    %2207 = vmatprep.mubr.bf16.mxu0 %v550
    %2208 = vmatmul.mubr.bf16.gmra.mrb[0].mxu0 %v549
    %v2209 = vpop.f32.mrb[0].mxu0
    %v2210 = vadd.f32 %v2157, %v2209
    %v2211 = vpop.f32.mrb[0].mxu0
    %v2212 = vadd.f32 %v2159, %v2211
    %v2213 = vpop.f32.mrb[0].mxu0
    %v2214 = vadd.f32 %v2161, %v2213
    %v2215 = vpop.f32.mrb[0].mxu0
    %v2216 = vadd.f32 %v2163, %v2215
    %2217 = vmatprep.mubr.bf16.mxu0 %v558
    %2218 = vmatmul.mubr.bf16.gmra.mrb[0].mxu0 %v557
    %v2219 = vpop.f32.mrb[0].mxu0
    %v2220 = vadd.f32 %v2167, %v2219
    %v2221 = vpop.f32.mrb[0].mxu0
    %v2222 = vadd.f32 %v2169, %v2221
    %v2223 = vpop.f32.mrb[0].mxu0
    %v2224 = vadd.f32 %v2171, %v2223
    %v2225 = vpop.f32.mrb[0].mxu0
    %v2226 = vadd.f32 %v2173, %v2225
    %2227 = vdwg.mxu0
    %2228 = vmatprep.subr.bf16.mxu0 %v1540
    %2229 = vmatpush1.bf16.msra.mxu0 %v1539
    %2230 = vmatprep.subr.bf16.mxu0 %v1544
    %2231 = vmatpush1.bf16.msra.mxu0 %v1543
    %2232 = vmatprep.subr.bf16.mxu0 %v1548
    %2233 = vmatpush1.bf16.msra.mxu0 %v1547
    %2234 = vmatprep.subr.bf16.mxu0 %v1552
    %2235 = vmatpush1.bf16.msra.mxu0 %v1551
    %2236 = vmatprep.subr.bf16.mxu0 %v1556
    %2237 = vmatpush1.bf16.msra.mxu0 %v1555
    %2238 = vmatprep.subr.bf16.mxu0 %v1560
    %2239 = vmatpush1.bf16.msra.mxu0 %v1559
    %2240 = vmatprep.subr.bf16.mxu0 %v1564
    %2241 = vmatpush1.bf16.msra.mxu0 %v1563
    %2242 = vmatprep.subr.bf16.mxu0 %v1568
    %2243 = vmatpush1.bf16.msra.mxu0 %v1567
    %2244 = vmatprep.subr.bf16.mxu0 %v1572
    %2245 = vmatpush1.bf16.msra.mxu0 %v1571
    %2246 = vmatprep.subr.bf16.mxu0 %v1576
    %2247 = vmatpush1.bf16.msra.mxu0 %v1575
    %2248 = vmatprep.subr.bf16.mxu0 %v1580
    %2249 = vmatpush1.bf16.msra.mxu0 %v1579
    %2250 = vmatprep.subr.bf16.mxu0 %v1584
    %2251 = vmatpush1.bf16.msra.mxu0 %v1583
    %2252 = vmatprep.subr.bf16.mxu0 %v1588
    %2253 = vmatpush1.bf16.msra.mxu0 %v1587
    %2254 = vmatprep.subr.bf16.mxu0 %v1592
    %2255 = vmatpush1.bf16.msra.mxu0 %v1591
    %2256 = vmatprep.subr.bf16.mxu0 %v1596
    %2257 = vmatpush1.bf16.msra.mxu0 %v1595
    %2258 = vmatprep.subr.bf16.mxu0 %v1600
    %2259 = vmatpush1.bf16.msra.mxu0 %v1599
    %2260 = vmatprep.mubr.bf16.mxu0 %v552
    %2261 = vmatmul.mubr.bf16.gmra.mrb[0].mxu0 %v551
    %v2262 = vpop.f32.mrb[0].mxu0
    %v2263 = vadd.f32 %v2210, %v2262
    %v2264 = vpop.f32.mrb[0].mxu0
    %v2265 = vadd.f32 %v2212, %v2264
    %v2266 = vpop.f32.mrb[0].mxu0
    %v2267 = vadd.f32 %v2214, %v2266
    %v2268 = vpop.f32.mrb[0].mxu0
    %v2269 = vadd.f32 %v2216, %v2268
    %2270 = vmatprep.mubr.bf16.mxu0 %v560
    %2271 = vmatmul.mubr.bf16.gmra.mrb[0].mxu0 %v559
    %v2272 = vpop.f32.mrb[0].mxu0
    %v2273 = vadd.f32 %v2220, %v2272
    %v2274 = vpop.f32.mrb[0].mxu0
    %v2275 = vadd.f32 %v2222, %v2274
    %v2276 = vpop.f32.mrb[0].mxu0
    %v2277 = vadd.f32 %v2224, %v2276
    %v2278 = vpop.f32.mrb[0].mxu0
    %v2279 = vadd.f32 %v2226, %v2278
    %2280 = vdwg.mxu0
    %v2281 = vxor.u32 %v2051, 2147483648
    %v2282 = vxor.u32 %v2053, 2147483648
    %v2283 = vxor.u32 %v2263, 2147483648
    %v2284 = vxor.u32 %v2265, 2147483648
    %v2285 = vxor.u32 %v2055, 2147483648
    %v2286 = vxor.u32 %v2057, 2147483648
    %v2287 = vxor.u32 %v2267, 2147483648
    %v2288 = vxor.u32 %v2269, 2147483648
    %v2289 = vxor.u32 %v2061, 2147483648
    %v2290 = vxor.u32 %v2063, 2147483648
    %v2291 = vxor.u32 %v2273, 2147483648
    %v2292 = vxor.u32 %v2275, 2147483648
    %v2293 = vxor.u32 %v2065, 2147483648
    %v2294 = vxor.u32 %v2067, 2147483648
    %v2295 = vxor.u32 %v2277, 2147483648
    %v2296 = vxor.u32 %v2279, 2147483648
    %v2297 = vmul.f32 %v2281, 1.442695
    %v2298 = vpow.pop %v2297
    %v2299 = vmul.f32 %v2282, 1.442695
    %v2300 = vpow.pop %v2299
    %v2301 = vmul.f32 %v2283, 1.442695
    %v2302 = vpow.pop %v2301
    %v2303 = vmul.f32 %v2284, 1.442695
    %v2304 = vpow.pop %v2303
    %v2305 = vmul.f32 %v2285, 1.442695
    %v2306 = vpow.pop %v2305
    %v2307 = vmul.f32 %v2286, 1.442695
    %v2308 = vpow.pop %v2307
    %v2309 = vmul.f32 %v2287, 1.442695
    %v2310 = vpow.pop %v2309
    %v2311 = vmul.f32 %v2288, 1.442695
    %v2312 = vpow.pop %v2311
    %v2313 = vmul.f32 %v2289, 1.442695
    %v2314 = vpow.pop %v2313
    %v2315 = vmul.f32 %v2290, 1.442695
    %v2316 = vpow.pop %v2315
    %v2317 = vmul.f32 %v2291, 1.442695
    %v2318 = vpow.pop %v2317
    %v2319 = vmul.f32 %v2292, 1.442695
    %v2320 = vpow.pop %v2319
    %v2321 = vmul.f32 %v2293, 1.442695
    %v2322 = vpow.pop %v2321
    %v2323 = vmul.f32 %v2294, 1.442695
    %v2324 = vpow.pop %v2323
    %v2325 = vmul.f32 %v2295, 1.442695
    %v2326 = vpow.pop %v2325
    %v2327 = vmul.f32 %v2296, 1.442695
    %v2328 = vpow.pop %v2327
    %v2329 = vadd.f32 %v2298, 1.0
    %v2330 = vadd.f32 %v2300, 1.0
    %v2331 = vadd.f32 %v2302, 1.0
    %v2332 = vadd.f32 %v2304, 1.0
    %v2333 = vadd.f32 %v2306, 1.0
    %v2334 = vadd.f32 %v2308, 1.0
    %v2335 = vadd.f32 %v2310, 1.0
    %v2336 = vadd.f32 %v2312, 1.0
    %v2337 = vadd.f32 %v2314, 1.0
    %v2338 = vadd.f32 %v2316, 1.0
    %v2339 = vadd.f32 %v2318, 1.0
    %v2340 = vadd.f32 %v2320, 1.0
    %v2341 = vadd.f32 %v2322, 1.0
    %v2342 = vadd.f32 %v2324, 1.0
    %v2343 = vadd.f32 %v2326, 1.0
    %v2344 = vadd.f32 %v2328, 1.0
    %v2345 = vrcp.pop %v2329
    %v2346 = vmul.f32 1.0, %v2345
    %v2347 = vrcp.pop %v2330
    %v2348 = vmul.f32 1.0, %v2347
    %v2349 = vrcp.pop %v2331
    %v2350 = vmul.f32 1.0, %v2349
    %v2351 = vrcp.pop %v2332
    %v2352 = vmul.f32 1.0, %v2351
    %v2353 = vrcp.pop %v2333
    %v2354 = vmul.f32 1.0, %v2353
    %v2355 = vrcp.pop %v2334
    %v2356 = vmul.f32 1.0, %v2355
    %v2357 = vrcp.pop %v2335
    %v2358 = vmul.f32 1.0, %v2357
    %v2359 = vrcp.pop %v2336
    %v2360 = vmul.f32 1.0, %v2359
    %v2361 = vrcp.pop %v2337
    %v2362 = vmul.f32 1.0, %v2361
    %v2363 = vrcp.pop %v2338
    %v2364 = vmul.f32 1.0, %v2363
    %v2365 = vrcp.pop %v2339
    %v2366 = vmul.f32 1.0, %v2365
    %v2367 = vrcp.pop %v2340
    %v2368 = vmul.f32 1.0, %v2367
    %v2369 = vrcp.pop %v2341
    %v2370 = vmul.f32 1.0, %v2369
    %v2371 = vrcp.pop %v2342
    %v2372 = vmul.f32 1.0, %v2371
    %v2373 = vrcp.pop %v2343
    %v2374 = vmul.f32 1.0, %v2373
    %v2375 = vrcp.pop %v2344
    %v2376 = vmul.f32 1.0, %v2375
    %v2377 = vmul.f32 %v2051, %v2346
    %v2378 = vmul.f32 %v2053, %v2348
    %v2379 = vmul.f32 %v2263, %v2350
    %v2380 = vmul.f32 %v2265, %v2352
    %v2381 = vmul.f32 %v2055, %v2354
    %v2382 = vmul.f32 %v2057, %v2356
    %v2383 = vmul.f32 %v2267, %v2358
    %v2384 = vmul.f32 %v2269, %v2360
    %v2385 = vmul.f32 %v2061, %v2362
    %v2386 = vmul.f32 %v2063, %v2364
    %v2387 = vmul.f32 %v2273, %v2366
    %v2388 = vmul.f32 %v2275, %v2368
    %v2389 = vmul.f32 %v2065, %v2370
    %v2390 = vmul.f32 %v2067, %v2372
    %v2391 = vmul.f32 %v2277, %v2374
    %v2392 = vmul.f32 %v2279, %v2376
    %v2393 = vpack.c.bf16 %v2381, %v2377
    %v2394 = vpack.c.bf16 %v2382, %v2378
    %v2395 = vpack.c.bf16 %v2383, %v2379
    %v2396 = vpack.c.bf16 %v2384, %v2380
    %v2397 = vpack.c.bf16 %v2389, %v2385
    %v2398 = vpack.c.bf16 %v2390, %v2386
    %v2399 = vpack.c.bf16 %v2391, %v2387
    %v2400 = vpack.c.bf16 %v2392, %v2388
    %v2409 = vunpack.c.l.b16 %v2393
    %v2410 = vunpack.c.l.b16 %v2394
    %v2411 = vunpack.c.l.b16 %v2395
    %v2412 = vunpack.c.l.b16 %v2396
    %v2413 = vunpack.c.h.b16 %v2393
    %v2414 = vunpack.c.h.b16 %v2394
    %v2415 = vunpack.c.h.b16 %v2395
    %v2416 = vunpack.c.h.b16 %v2396
    %v2417 = vunpack.c.l.b16 %v2397
    %v2418 = vunpack.c.l.b16 %v2398
    %v2419 = vunpack.c.l.b16 %v2399
    %v2420 = vunpack.c.l.b16 %v2400
    %v2421 = vunpack.c.h.b16 %v2397
    %v2422 = vunpack.c.h.b16 %v2398
    %v2423 = vunpack.c.h.b16 %v2399
    %v2424 = vunpack.c.h.b16 %v2400
    %v2425 = vpack.c.b16 %v2410, %v2409
    %v2426 = vpack.c.b16 %v2412, %v2411
    %v2427 = vpack.c.b16 %v2414, %v2413
    %v2428 = vpack.c.b16 %v2416, %v2415
    %v2429 = vpack.c.b16 %v2418, %v2417
    %v2430 = vpack.c.b16 %v2420, %v2419
    %v2431 = vpack.c.b16 %v2422, %v2421
    %v2432 = vpack.c.b16 %v2424, %v2423
    %2441 = vst [vmem:[%s19] sm:$0xff] %v2425
    %2442 = vst [vmem:[%s19 + $0x8] sm:$0xff] %v2426
    %2443 = vst [vmem:[%s19 + $0x10] sm:$0xff] %v2427
    %2444 = vst [vmem:[%s19 + $0x18] sm:$0xff] %v2428
    %2445 = vst [vmem:[%s19 + $0x20] sm:$0xff] %v2429
    %2446 = vst [vmem:[%s19 + $0x28] sm:$0xff] %v2430
    %2447 = vst [vmem:[%s19 + $0x30] sm:$0xff] %v2431
    %2448 = vst [vmem:[%s19 + $0x38] sm:$0xff] %v2432
    %v2449 = vld [vmem:[%s1] sm:$0xff]
    %v2450 = vld [vmem:[%s1 + $0x8] sm:$0xff]
    %v2451 = vld [vmem:[%s1 + $0x10] sm:$0xff]
    %v2452 = vld [vmem:[%s1 + $0x18] sm:$0xff]
    %v2453 = vld [vmem:[%s1 + $0x20] sm:$0xff]
    %v2454 = vld [vmem:[%s1 + $0x28] sm:$0xff]
    %v2455 = vld [vmem:[%s1 + $0x30] sm:$0xff]
    %v2456 = vld [vmem:[%s1 + $0x38] sm:$0xff]
    %v2457 = vld [vmem:[%s1 + $0x40] sm:$0xff]
    %v2458 = vld [vmem:[%s1 + $0x48] sm:$0xff]
    %v2459 = vld [vmem:[%s1 + $0x50] sm:$0xff]
    %v2460 = vld [vmem:[%s1 + $0x58] sm:$0xff]
    %v2461 = vld [vmem:[%s1 + $0x60] sm:$0xff]
    %v2462 = vld [vmem:[%s1 + $0x68] sm:$0xff]
    %v2463 = vld [vmem:[%s1 + $0x70] sm:$0xff]
    %v2464 = vld [vmem:[%s1 + $0x78] sm:$0xff]
    %v2465 = vld [vmem:[%s1 + $0x80] sm:$0xff]
    %v2466 = vld [vmem:[%s1 + $0x88] sm:$0xff]
    %v2467 = vld [vmem:[%s1 + $0x90] sm:$0xff]
    %v2468 = vld [vmem:[%s1 + $0x98] sm:$0xff]
    %v2469 = vld [vmem:[%s1 + $0xa0] sm:$0xff]
    %v2470 = vld [vmem:[%s1 + $0xa8] sm:$0xff]
    %v2471 = vld [vmem:[%s1 + $0xb0] sm:$0xff]
    %v2472 = vld [vmem:[%s1 + $0xb8] sm:$0xff]
    %v2473 = vld [vmem:[%s1 + $0xc0] sm:$0xff]
    %v2474 = vld [vmem:[%s1 + $0xc8] sm:$0xff]
    %v2475 = vld [vmem:[%s1 + $0xd0] sm:$0xff]
    %v2476 = vld [vmem:[%s1 + $0xd8] sm:$0xff]
    %v2477 = vld [vmem:[%s1 + $0xe0] sm:$0xff]
    %v2478 = vld [vmem:[%s1 + $0xe8] sm:$0xff]
    %v2479 = vld [vmem:[%s1 + $0xf0] sm:$0xff]
    %v2480 = vld [vmem:[%s1 + $0xf8] sm:$0xff]
    %v2481 = vld [vmem:[#allocation12] sm:$0xff]
    %v2482 = vld [vmem:[#allocation12 + $0x8] sm:$0xff]
    %v2483 = vld [vmem:[#allocation12 + $0x10] sm:$0xff]
    %v2484 = vld [vmem:[#allocation12 + $0x18] sm:$0xff]
    %v2485 = vld [vmem:[#allocation12 + $0x20] sm:$0xff]
    %v2486 = vld [vmem:[#allocation12 + $0x28] sm:$0xff]
    %v2487 = vld [vmem:[#allocation12 + $0x30] sm:$0xff]
    %v2488 = vld [vmem:[#allocation12 + $0x38] sm:$0xff]
    %v2489 = vld [vmem:[#allocation12 + $0x40] sm:$0xff]
    %v2490 = vld [vmem:[#allocation12 + $0x48] sm:$0xff]
    %v2491 = vld [vmem:[#allocation12 + $0x50] sm:$0xff]
    %v2492 = vld [vmem:[#allocation12 + $0x58] sm:$0xff]
    %v2493 = vld [vmem:[#allocation12 + $0x60] sm:$0xff]
    %v2494 = vld [vmem:[#allocation12 + $0x68] sm:$0xff]
    %v2495 = vld [vmem:[#allocation12 + $0x70] sm:$0xff]
    %v2496 = vld [vmem:[#allocation12 + $0x78] sm:$0xff]
    %v2497 = vld [vmem:[#allocation12 + $0x80] sm:$0xff]
    %v2498 = vld [vmem:[#allocation12 + $0x88] sm:$0xff]
    %v2499 = vld [vmem:[#allocation12 + $0x90] sm:$0xff]
    %v2500 = vld [vmem:[#allocation12 + $0x98] sm:$0xff]
    %v2501 = vld [vmem:[#allocation12 + $0xa0] sm:$0xff]
    %v2502 = vld [vmem:[#allocation12 + $0xa8] sm:$0xff]
    %v2503 = vld [vmem:[#allocation12 + $0xb0] sm:$0xff]
    %v2504 = vld [vmem:[#allocation12 + $0xb8] sm:$0xff]
    %v2505 = vld [vmem:[#allocation12 + $0xc0] sm:$0xff]
    %v2506 = vld [vmem:[#allocation12 + $0xc8] sm:$0xff]
    %v2507 = vld [vmem:[#allocation12 + $0xd0] sm:$0xff]
    %v2508 = vld [vmem:[#allocation12 + $0xd8] sm:$0xff]
    %v2509 = vld [vmem:[#allocation12 + $0xe0] sm:$0xff]
    %v2510 = vld [vmem:[#allocation12 + $0xe8] sm:$0xff]
    %v2511 = vld [vmem:[#allocation12 + $0xf0] sm:$0xff]
    %v2512 = vld [vmem:[#allocation12 + $0xf8] sm:$0xff]
    %v2513 = vld [vmem:[#allocation12 + $0x100] sm:$0xff]
    %v2514 = vld [vmem:[#allocation12 + $0x108] sm:$0xff]
    %v2515 = vld [vmem:[#allocation12 + $0x110] sm:$0xff]
    %v2516 = vld [vmem:[#allocation12 + $0x118] sm:$0xff]
    %v2517 = vld [vmem:[#allocation12 + $0x120] sm:$0xff]
    %v2518 = vld [vmem:[#allocation12 + $0x128] sm:$0xff]
    %v2519 = vld [vmem:[#allocation12 + $0x130] sm:$0xff]
    %v2520 = vld [vmem:[#allocation12 + $0x138] sm:$0xff]
    %v2521 = vld [vmem:[#allocation12 + $0x140] sm:$0xff]
    %v2522 = vld [vmem:[#allocation12 + $0x148] sm:$0xff]
    %v2523 = vld [vmem:[#allocation12 + $0x150] sm:$0xff]
    %v2524 = vld [vmem:[#allocation12 + $0x158] sm:$0xff]
    %v2525 = vld [vmem:[#allocation12 + $0x160] sm:$0xff]
    %v2526 = vld [vmem:[#allocation12 + $0x168] sm:$0xff]
    %v2527 = vld [vmem:[#allocation12 + $0x170] sm:$0xff]
    %v2528 = vld [vmem:[#allocation12 + $0x178] sm:$0xff]
    %v2529 = vld [vmem:[#allocation12 + $0x180] sm:$0xff]
    %v2530 = vld [vmem:[#allocation12 + $0x188] sm:$0xff]
    %v2531 = vld [vmem:[#allocation12 + $0x190] sm:$0xff]
    %v2532 = vld [vmem:[#allocation12 + $0x198] sm:$0xff]
    %v2533 = vld [vmem:[#allocation12 + $0x1a0] sm:$0xff]
    %v2534 = vld [vmem:[#allocation12 + $0x1a8] sm:$0xff]
    %v2535 = vld [vmem:[#allocation12 + $0x1b0] sm:$0xff]
    %v2536 = vld [vmem:[#allocation12 + $0x1b8] sm:$0xff]
    %v2537 = vld [vmem:[#allocation12 + $0x1c0] sm:$0xff]
    %v2538 = vld [vmem:[#allocation12 + $0x1c8] sm:$0xff]
    %v2539 = vld [vmem:[#allocation12 + $0x1d0] sm:$0xff]
    %v2540 = vld [vmem:[#allocation12 + $0x1d8] sm:$0xff]
    %v2541 = vld [vmem:[#allocation12 + $0x1e0] sm:$0xff]
    %v2542 = vld [vmem:[#allocation12 + $0x1e8] sm:$0xff]
    %v2543 = vld [vmem:[#allocation12 + $0x1f0] sm:$0xff]
    %v2544 = vld [vmem:[#allocation12 + $0x1f8] sm:$0xff]
    %v2545 = vld [vmem:[%s6] sm:$0x3]
    %v2547 = vlaneseq
    %v2548 = vshrl.u32 %v2547, 7
    %v2549 = vsub.s32 0, %v2548
    %v2550 = vrot.slane %v2545, %v2549
    %v2551 = vlaneseq
    %v2552 = vshrl.u32 %v2551, 7
    %v2553 = vsub.s32 1, %v2552
    %v2554 = vrot.slane %v2545, %v2553
    %v2589 = vunpack.c.l.b16 %v2449
    %v2590 = vunpack.c.h.b16 %v2449
    %v2591 = vunpack.c.l.b16 %v2450
    %v2592 = vunpack.c.h.b16 %v2450
    %v2593 = vunpack.c.l.b16 %v2451
    %v2594 = vunpack.c.h.b16 %v2451
    %v2595 = vunpack.c.l.b16 %v2452
    %v2596 = vunpack.c.h.b16 %v2452
    %v2597 = vunpack.c.l.b16 %v2453
    %v2598 = vunpack.c.h.b16 %v2453
    %v2599 = vunpack.c.l.b16 %v2454
    %v2600 = vunpack.c.h.b16 %v2454
    %v2601 = vunpack.c.l.b16 %v2455
    %v2602 = vunpack.c.h.b16 %v2455
    %v2603 = vunpack.c.l.b16 %v2456
    %v2604 = vunpack.c.h.b16 %v2456
    %v2605 = vunpack.c.l.b16 %v2457
    %v2606 = vunpack.c.h.b16 %v2457
    %v2607 = vunpack.c.l.b16 %v2458
    %v2608 = vunpack.c.h.b16 %v2458
    %v2609 = vunpack.c.l.b16 %v2459
    %v2610 = vunpack.c.h.b16 %v2459
    %v2611 = vunpack.c.l.b16 %v2460
    %v2612 = vunpack.c.h.b16 %v2460
    %v2613 = vunpack.c.l.b16 %v2461
    %v2614 = vunpack.c.h.b16 %v2461
    %v2615 = vunpack.c.l.b16 %v2462
    %v2616 = vunpack.c.h.b16 %v2462
    %v2617 = vunpack.c.l.b16 %v2463
    %v2618 = vunpack.c.h.b16 %v2463
    %v2619 = vunpack.c.l.b16 %v2464
    %v2620 = vunpack.c.h.b16 %v2464
    %v2621 = vunpack.c.l.b16 %v2465
    %v2622 = vunpack.c.h.b16 %v2465
    %v2623 = vunpack.c.l.b16 %v2466
    %v2624 = vunpack.c.h.b16 %v2466
    %v2625 = vunpack.c.l.b16 %v2467
    %v2626 = vunpack.c.h.b16 %v2467
    %v2627 = vunpack.c.l.b16 %v2468
    %v2628 = vunpack.c.h.b16 %v2468
    %v2629 = vunpack.c.l.b16 %v2469
    %v2630 = vunpack.c.h.b16 %v2469
    %v2631 = vunpack.c.l.b16 %v2470
    %v2632 = vunpack.c.h.b16 %v2470
    %v2633 = vunpack.c.l.b16 %v2471
    %v2634 = vunpack.c.h.b16 %v2471
    %v2635 = vunpack.c.l.b16 %v2472
    %v2636 = vunpack.c.h.b16 %v2472
    %v2637 = vunpack.c.l.b16 %v2473
    %v2638 = vunpack.c.h.b16 %v2473
    %v2639 = vunpack.c.l.b16 %v2474
    %v2640 = vunpack.c.h.b16 %v2474
    %v2641 = vunpack.c.l.b16 %v2475
    %v2642 = vunpack.c.h.b16 %v2475
    %v2643 = vunpack.c.l.b16 %v2476
    %v2644 = vunpack.c.h.b16 %v2476
    %v2645 = vunpack.c.l.b16 %v2477
    %v2646 = vunpack.c.h.b16 %v2477
    %v2647 = vunpack.c.l.b16 %v2478
    %v2648 = vunpack.c.h.b16 %v2478
    %v2649 = vunpack.c.l.b16 %v2479
    %v2650 = vunpack.c.h.b16 %v2479
    %v2651 = vunpack.c.l.b16 %v2480
    %v2652 = vunpack.c.h.b16 %v2480
    %v2653 = vpack.c.b16 %v2593, %v2589
    %v2654 = vpack.c.b16 %v2594, %v2590
    %v2655 = vpack.c.b16 %v2595, %v2591
    %v2656 = vpack.c.b16 %v2596, %v2592
    %v2657 = vpack.c.b16 %v2601, %v2597
    %v2658 = vpack.c.b16 %v2602, %v2598
    %v2659 = vpack.c.b16 %v2603, %v2599
    %v2660 = vpack.c.b16 %v2604, %v2600
    %v2661 = vpack.c.b16 %v2609, %v2605
    %v2662 = vpack.c.b16 %v2610, %v2606
    %v2663 = vpack.c.b16 %v2611, %v2607
    %v2664 = vpack.c.b16 %v2612, %v2608
    %v2665 = vpack.c.b16 %v2617, %v2613
    %v2666 = vpack.c.b16 %v2618, %v2614
    %v2667 = vpack.c.b16 %v2619, %v2615
    %v2668 = vpack.c.b16 %v2620, %v2616
    %v2669 = vpack.c.b16 %v2625, %v2621
    %v2670 = vpack.c.b16 %v2626, %v2622
    %v2671 = vpack.c.b16 %v2627, %v2623
    %v2672 = vpack.c.b16 %v2628, %v2624
    %v2673 = vpack.c.b16 %v2633, %v2629
    %v2674 = vpack.c.b16 %v2634, %v2630
    %v2675 = vpack.c.b16 %v2635, %v2631
    %v2676 = vpack.c.b16 %v2636, %v2632
    %v2677 = vpack.c.b16 %v2641, %v2637
    %v2678 = vpack.c.b16 %v2642, %v2638
    %v2679 = vpack.c.b16 %v2643, %v2639
    %v2680 = vpack.c.b16 %v2644, %v2640
    %v2681 = vpack.c.b16 %v2649, %v2645
    %v2682 = vpack.c.b16 %v2650, %v2646
    %v2683 = vpack.c.b16 %v2651, %v2647
    %v2684 = vpack.c.b16 %v2652, %v2648
    %v2781 = vunpack.c.l.b16 %v2481
    %v2782 = vunpack.c.h.b16 %v2481
    %v2783 = vunpack.c.l.b16 %v2482
    %v2784 = vunpack.c.h.b16 %v2482
    %v2785 = vunpack.c.l.b16 %v2483
    %v2786 = vunpack.c.h.b16 %v2483
    %v2787 = vunpack.c.l.b16 %v2484
    %v2788 = vunpack.c.h.b16 %v2484
    %v2789 = vunpack.c.l.b16 %v2485
    %v2790 = vunpack.c.h.b16 %v2485
    %v2791 = vunpack.c.l.b16 %v2486
    %v2792 = vunpack.c.h.b16 %v2486
    %v2793 = vunpack.c.l.b16 %v2487
    %v2794 = vunpack.c.h.b16 %v2487
    %v2795 = vunpack.c.l.b16 %v2488
    %v2796 = vunpack.c.h.b16 %v2488
    %v2797 = vunpack.c.l.b16 %v2489
    %v2798 = vunpack.c.h.b16 %v2489
    %v2799 = vunpack.c.l.b16 %v2490
    %v2800 = vunpack.c.h.b16 %v2490
    %v2801 = vunpack.c.l.b16 %v2491
    %v2802 = vunpack.c.h.b16 %v2491
    %v2803 = vunpack.c.l.b16 %v2492
    %v2804 = vunpack.c.h.b16 %v2492
    %v2805 = vunpack.c.l.b16 %v2493
    %v2806 = vunpack.c.h.b16 %v2493
    %v2807 = vunpack.c.l.b16 %v2494
    %v2808 = vunpack.c.h.b16 %v2494
    %v2809 = vunpack.c.l.b16 %v2495
    %v2810 = vunpack.c.h.b16 %v2495
    %v2811 = vunpack.c.l.b16 %v2496
    %v2812 = vunpack.c.h.b16 %v2496
    %v2813 = vunpack.c.l.b16 %v2497
    %v2814 = vunpack.c.h.b16 %v2497
    %v2815 = vunpack.c.l.b16 %v2498
    %v2816 = vunpack.c.h.b16 %v2498
    %v2817 = vunpack.c.l.b16 %v2499
    %v2818 = vunpack.c.h.b16 %v2499
    %v2819 = vunpack.c.l.b16 %v2500
    %v2820 = vunpack.c.h.b16 %v2500
    %v2821 = vunpack.c.l.b16 %v2501
    %v2822 = vunpack.c.h.b16 %v2501
    %v2823 = vunpack.c.l.b16 %v2502
    %v2824 = vunpack.c.h.b16 %v2502
    %v2825 = vunpack.c.l.b16 %v2503
    %v2826 = vunpack.c.h.b16 %v2503
    %v2827 = vunpack.c.l.b16 %v2504
    %v2828 = vunpack.c.h.b16 %v2504
    %v2829 = vunpack.c.l.b16 %v2505
    %v2830 = vunpack.c.h.b16 %v2505
    %v2831 = vunpack.c.l.b16 %v2506
    %v2832 = vunpack.c.h.b16 %v2506
    %v2833 = vunpack.c.l.b16 %v2507
    %v2834 = vunpack.c.h.b16 %v2507
    %v2835 = vunpack.c.l.b16 %v2508
    %v2836 = vunpack.c.h.b16 %v2508
    %v2837 = vunpack.c.l.b16 %v2509
    %v2838 = vunpack.c.h.b16 %v2509
    %v2839 = vunpack.c.l.b16 %v2510
    %v2840 = vunpack.c.h.b16 %v2510
    %v2841 = vunpack.c.l.b16 %v2511
    %v2842 = vunpack.c.h.b16 %v2511
    %v2843 = vunpack.c.l.b16 %v2512
    %v2844 = vunpack.c.h.b16 %v2512
    %v2845 = vunpack.c.l.b16 %v2513
    %v2846 = vunpack.c.h.b16 %v2513
    %v2847 = vunpack.c.l.b16 %v2514
    %v2848 = vunpack.c.h.b16 %v2514
    %v2849 = vunpack.c.l.b16 %v2515
    %v2850 = vunpack.c.h.b16 %v2515
    %v2851 = vunpack.c.l.b16 %v2516
    %v2852 = vunpack.c.h.b16 %v2516
    %v2853 = vunpack.c.l.b16 %v2517
    %v2854 = vunpack.c.h.b16 %v2517
    %v2855 = vunpack.c.l.b16 %v2518
    %v2856 = vunpack.c.h.b16 %v2518
    %v2857 = vunpack.c.l.b16 %v2519
    %v2858 = vunpack.c.h.b16 %v2519
    %v2859 = vunpack.c.l.b16 %v2520
    %v2860 = vunpack.c.h.b16 %v2520
    %v2861 = vunpack.c.l.b16 %v2521
    %v2862 = vunpack.c.h.b16 %v2521
    %v2863 = vunpack.c.l.b16 %v2522
    %v2864 = vunpack.c.h.b16 %v2522
    %v2865 = vunpack.c.l.b16 %v2523
    %v2866 = vunpack.c.h.b16 %v2523
    %v2867 = vunpack.c.l.b16 %v2524
    %v2868 = vunpack.c.h.b16 %v2524
    %v2869 = vunpack.c.l.b16 %v2525
    %v2870 = vunpack.c.h.b16 %v2525
    %v2871 = vunpack.c.l.b16 %v2526
    %v2872 = vunpack.c.h.b16 %v2526
    %v2873 = vunpack.c.l.b16 %v2527
    %v2874 = vunpack.c.h.b16 %v2527
    %v2875 = vunpack.c.l.b16 %v2528
    %v2876 = vunpack.c.h.b16 %v2528
    %v2877 = vunpack.c.l.b16 %v2529
    %v2878 = vunpack.c.h.b16 %v2529
    %v2879 = vunpack.c.l.b16 %v2530
    %v2880 = vunpack.c.h.b16 %v2530
    %v2881 = vunpack.c.l.b16 %v2531
    %v2882 = vunpack.c.h.b16 %v2531
    %v2883 = vunpack.c.l.b16 %v2532
    %v2884 = vunpack.c.h.b16 %v2532
    %v2885 = vunpack.c.l.b16 %v2533
    %v2886 = vunpack.c.h.b16 %v2533
    %v2887 = vunpack.c.l.b16 %v2534
    %v2888 = vunpack.c.h.b16 %v2534
    %v2889 = vunpack.c.l.b16 %v2535
    %v2890 = vunpack.c.h.b16 %v2535
    %v2891 = vunpack.c.l.b16 %v2536
    %v2892 = vunpack.c.h.b16 %v2536
    %v2893 = vunpack.c.l.b16 %v2537
    %v2894 = vunpack.c.h.b16 %v2537
    %v2895 = vunpack.c.l.b16 %v2538
    %v2896 = vunpack.c.h.b16 %v2538
    %v2897 = vunpack.c.l.b16 %v2539
    %v2898 = vunpack.c.h.b16 %v2539
    %v2899 = vunpack.c.l.b16 %v2540
    %v2900 = vunpack.c.h.b16 %v2540
    %v2901 = vunpack.c.l.b16 %v2541
    %v2902 = vunpack.c.h.b16 %v2541
    %v2903 = vunpack.c.l.b16 %v2542
    %v2904 = vunpack.c.h.b16 %v2542
    %v2905 = vunpack.c.l.b16 %v2543
    %v2906 = vunpack.c.h.b16 %v2543
    %v2907 = vunpack.c.l.b16 %v2544
    %v2908 = vunpack.c.h.b16 %v2544
    %v2909 = vpack.c.b16 %v2783, %v2781
    %v2910 = vpack.c.b16 %v2784, %v2782
    %v2911 = vpack.c.b16 %v2787, %v2785
    %v2912 = vpack.c.b16 %v2788, %v2786
    %v2913 = vpack.c.b16 %v2791, %v2789
    %v2914 = vpack.c.b16 %v2792, %v2790
    %v2915 = vpack.c.b16 %v2795, %v2793
    %v2916 = vpack.c.b16 %v2796, %v2794
    %v2917 = vpack.c.b16 %v2799, %v2797
    %v2918 = vpack.c.b16 %v2800, %v2798
    %v2919 = vpack.c.b16 %v2803, %v2801
    %v2920 = vpack.c.b16 %v2804, %v2802
    %v2921 = vpack.c.b16 %v2807, %v2805
    %v2922 = vpack.c.b16 %v2808, %v2806
    %v2923 = vpack.c.b16 %v2811, %v2809
    %v2924 = vpack.c.b16 %v2812, %v2810
    %v2925 = vpack.c.b16 %v2815, %v2813
    %v2926 = vpack.c.b16 %v2816, %v2814
    %v2927 = vpack.c.b16 %v2819, %v2817
    %v2928 = vpack.c.b16 %v2820, %v2818
    %v2929 = vpack.c.b16 %v2823, %v2821
    %v2930 = vpack.c.b16 %v2824, %v2822
    %v2931 = vpack.c.b16 %v2827, %v2825
    %v2932 = vpack.c.b16 %v2828, %v2826
    %v2933 = vpack.c.b16 %v2831, %v2829
    %v2934 = vpack.c.b16 %v2832, %v2830
    %v2935 = vpack.c.b16 %v2835, %v2833
    %v2936 = vpack.c.b16 %v2836, %v2834
    %v2937 = vpack.c.b16 %v2839, %v2837
    %v2938 = vpack.c.b16 %v2840, %v2838
    %v2939 = vpack.c.b16 %v2843, %v2841
    %v2940 = vpack.c.b16 %v2844, %v2842
    %v2941 = vpack.c.b16 %v2847, %v2845
    %v2942 = vpack.c.b16 %v2848, %v2846
    %v2943 = vpack.c.b16 %v2851, %v2849
    %v2944 = vpack.c.b16 %v2852, %v2850
    %v2945 = vpack.c.b16 %v2855, %v2853
    %v2946 = vpack.c.b16 %v2856, %v2854
    %v2947 = vpack.c.b16 %v2859, %v2857
    %v2948 = vpack.c.b16 %v2860, %v2858
    %v2949 = vpack.c.b16 %v2863, %v2861
    %v2950 = vpack.c.b16 %v2864, %v2862
    %v2951 = vpack.c.b16 %v2867, %v2865
    %v2952 = vpack.c.b16 %v2868, %v2866
    %v2953 = vpack.c.b16 %v2871, %v2869
    %v2954 = vpack.c.b16 %v2872, %v2870
    %v2955 = vpack.c.b16 %v2875, %v2873
    %v2956 = vpack.c.b16 %v2876, %v2874
    %v2957 = vpack.c.b16 %v2879, %v2877
    %v2958 = vpack.c.b16 %v2880, %v2878
    %v2959 = vpack.c.b16 %v2883, %v2881
    %v2960 = vpack.c.b16 %v2884, %v2882
    %v2961 = vpack.c.b16 %v2887, %v2885
    %v2962 = vpack.c.b16 %v2888, %v2886
    %v2963 = vpack.c.b16 %v2891, %v2889
    %v2964 = vpack.c.b16 %v2892, %v2890
    %v2965 = vpack.c.b16 %v2895, %v2893
    %v2966 = vpack.c.b16 %v2896, %v2894
    %v2967 = vpack.c.b16 %v2899, %v2897
    %v2968 = vpack.c.b16 %v2900, %v2898
    %v2969 = vpack.c.b16 %v2903, %v2901
    %v2970 = vpack.c.b16 %v2904, %v2902
    %v2971 = vpack.c.b16 %v2907, %v2905
    %v2972 = vpack.c.b16 %v2908, %v2906
    %3037 = vmatprep.subr.bf16.mxu0 %v2910
    %3038 = vmatpush1.bf16.msra.mxu0 %v2909
    %3039 = vmatprep.subr.bf16.mxu0 %v2912
    %3040 = vmatpush1.bf16.msra.mxu0 %v2911
    %3041 = vmatprep.subr.bf16.mxu0 %v2914
    %3042 = vmatpush1.bf16.msra.mxu0 %v2913
    %3043 = vmatprep.subr.bf16.mxu0 %v2916
    %3044 = vmatpush1.bf16.msra.mxu0 %v2915
    %3045 = vmatprep.subr.bf16.mxu0 %v2918
    %3046 = vmatpush1.bf16.msra.mxu0 %v2917
    %3047 = vmatprep.subr.bf16.mxu0 %v2920
    %3048 = vmatpush1.bf16.msra.mxu0 %v2919
    %3049 = vmatprep.subr.bf16.mxu0 %v2922
    %3050 = vmatpush1.bf16.msra.mxu0 %v2921
    %3051 = vmatprep.subr.bf16.mxu0 %v2924
    %3052 = vmatpush1.bf16.msra.mxu0 %v2923
    %3053 = vmatprep.subr.bf16.mxu0 %v2926
    %3054 = vmatpush1.bf16.msra.mxu0 %v2925
    %3055 = vmatprep.subr.bf16.mxu0 %v2928
    %3056 = vmatpush1.bf16.msra.mxu0 %v2927
    %3057 = vmatprep.subr.bf16.mxu0 %v2930
    %3058 = vmatpush1.bf16.msra.mxu0 %v2929
    %3059 = vmatprep.subr.bf16.mxu0 %v2932
    %3060 = vmatpush1.bf16.msra.mxu0 %v2931
    %3061 = vmatprep.subr.bf16.mxu0 %v2934
    %3062 = vmatpush1.bf16.msra.mxu0 %v2933
    %3063 = vmatprep.subr.bf16.mxu0 %v2936
    %3064 = vmatpush1.bf16.msra.mxu0 %v2935
    %3065 = vmatprep.subr.bf16.mxu0 %v2938
    %3066 = vmatpush1.bf16.msra.mxu0 %v2937
    %3067 = vmatprep.subr.bf16.mxu0 %v2940
    %3068 = vmatpush1.bf16.msra.mxu0 %v2939
    %3069 = vmatprep.mubr.bf16.mxu0 %v2654
    %3070 = vmatmul.mubr.bf16.gmra.mrb[0].mxu0 %v2653
    %v3071 = vpop.f32.mrb[0].mxu0
    %v3072 = vadd.f32 %v2550, %v3071
    %v3073 = vpop.f32.mrb[0].mxu0
    %v3074 = vadd.f32 %v2554, %v3073
    %v3075 = vpop.f32.mrb[0].mxu0
    %v3076 = vadd.f32 %v2550, %v3075
    %v3077 = vpop.f32.mrb[0].mxu0
    %v3078 = vadd.f32 %v2554, %v3077
    %3079 = vmatprep.mubr.bf16.mxu0 %v2658
    %3080 = vmatmul.mubr.bf16.gmra.mrb[0].mxu0 %v2657
    %v3081 = vpop.f32.mrb[0].mxu0
    %v3082 = vadd.f32 %v2550, %v3081
    %v3083 = vpop.f32.mrb[0].mxu0
    %v3084 = vadd.f32 %v2554, %v3083
    %v3085 = vpop.f32.mrb[0].mxu0
    %v3086 = vadd.f32 %v2550, %v3085
    %v3087 = vpop.f32.mrb[0].mxu0
    %v3088 = vadd.f32 %v2554, %v3087
    %3089 = vmatprep.mubr.bf16.mxu0 %v2662
    %3090 = vmatmul.mubr.bf16.gmra.mrb[0].mxu0 %v2661
    %v3091 = vpop.f32.mrb[0].mxu0
    %v3092 = vadd.f32 %v2550, %v3091
    %v3093 = vpop.f32.mrb[0].mxu0
    %v3094 = vadd.f32 %v2554, %v3093
    %v3095 = vpop.f32.mrb[0].mxu0
    %v3096 = vadd.f32 %v2550, %v3095
    %v3097 = vpop.f32.mrb[0].mxu0
    %v3098 = vadd.f32 %v2554, %v3097
    %3099 = vmatprep.mubr.bf16.mxu0 %v2666
    %3100 = vmatmul.mubr.bf16.gmra.mrb[0].mxu0 %v2665
    %v3101 = vpop.f32.mrb[0].mxu0
    %v3102 = vadd.f32 %v2550, %v3101
    %v3103 = vpop.f32.mrb[0].mxu0
    %v3104 = vadd.f32 %v2554, %v3103
    %v3105 = vpop.f32.mrb[0].mxu0
    %v3106 = vadd.f32 %v2550, %v3105
    %v3107 = vpop.f32.mrb[0].mxu0
    %v3108 = vadd.f32 %v2554, %v3107
    %3109 = vmatprep.mubr.bf16.mxu0 %v2670
    %3110 = vmatmul.mubr.bf16.gmra.mrb[0].mxu0 %v2669
    %v3111 = vpop.f32.mrb[0].mxu0
    %v3112 = vadd.f32 %v2550, %v3111
    %v3113 = vpop.f32.mrb[0].mxu0
    %v3114 = vadd.f32 %v2554, %v3113
    %v3115 = vpop.f32.mrb[0].mxu0
    %v3116 = vadd.f32 %v2550, %v3115
    %v3117 = vpop.f32.mrb[0].mxu0
    %v3118 = vadd.f32 %v2554, %v3117
    %3119 = vmatprep.mubr.bf16.mxu0 %v2674
    %3120 = vmatmul.mubr.bf16.gmra.mrb[0].mxu0 %v2673
    %v3121 = vpop.f32.mrb[0].mxu0
    %v3122 = vadd.f32 %v2550, %v3121
    %v3123 = vpop.f32.mrb[0].mxu0
    %v3124 = vadd.f32 %v2554, %v3123
    %v3125 = vpop.f32.mrb[0].mxu0
    %v3126 = vadd.f32 %v2550, %v3125
    %v3127 = vpop.f32.mrb[0].mxu0
    %v3128 = vadd.f32 %v2554, %v3127
    %3129 = vmatprep.mubr.bf16.mxu0 %v2678
    %3130 = vmatmul.mubr.bf16.gmra.mrb[0].mxu0 %v2677
    %v3131 = vpop.f32.mrb[0].mxu0
    %v3132 = vadd.f32 %v2550, %v3131
    %v3133 = vpop.f32.mrb[0].mxu0
    %v3134 = vadd.f32 %v2554, %v3133
    %v3135 = vpop.f32.mrb[0].mxu0
    %v3136 = vadd.f32 %v2550, %v3135
    %v3137 = vpop.f32.mrb[0].mxu0
    %v3138 = vadd.f32 %v2554, %v3137
    %3139 = vmatprep.mubr.bf16.mxu0 %v2682
    %3140 = vmatmul.mubr.bf16.gmra.mrb[0].mxu0 %v2681
    %v3141 = vpop.f32.mrb[0].mxu0
    %v3142 = vadd.f32 %v2550, %v3141
    %v3143 = vpop.f32.mrb[0].mxu0
    %v3144 = vadd.f32 %v2554, %v3143
    %v3145 = vpop.f32.mrb[0].mxu0
    %v3146 = vadd.f32 %v2550, %v3145
    %v3147 = vpop.f32.mrb[0].mxu0
    %v3148 = vadd.f32 %v2554, %v3147
    %3149 = vdwg.mxu0
    %3150 = vmatprep.subr.bf16.mxu0 %v2942
    %3151 = vmatpush1.bf16.msra.mxu0 %v2941
    %3152 = vmatprep.subr.bf16.mxu0 %v2944
    %3153 = vmatpush1.bf16.msra.mxu0 %v2943
    %3154 = vmatprep.subr.bf16.mxu0 %v2946
    %3155 = vmatpush1.bf16.msra.mxu0 %v2945
    %3156 = vmatprep.subr.bf16.mxu0 %v2948
    %3157 = vmatpush1.bf16.msra.mxu0 %v2947
    %3158 = vmatprep.subr.bf16.mxu0 %v2950
    %3159 = vmatpush1.bf16.msra.mxu0 %v2949
    %3160 = vmatprep.subr.bf16.mxu0 %v2952
    %3161 = vmatpush1.bf16.msra.mxu0 %v2951
    %3162 = vmatprep.subr.bf16.mxu0 %v2954
    %3163 = vmatpush1.bf16.msra.mxu0 %v2953
    %3164 = vmatprep.subr.bf16.mxu0 %v2956
    %3165 = vmatpush1.bf16.msra.mxu0 %v2955
    %3166 = vmatprep.subr.bf16.mxu0 %v2958
    %3167 = vmatpush1.bf16.msra.mxu0 %v2957
    %3168 = vmatprep.subr.bf16.mxu0 %v2960
    %3169 = vmatpush1.bf16.msra.mxu0 %v2959
    %3170 = vmatprep.subr.bf16.mxu0 %v2962
    %3171 = vmatpush1.bf16.msra.mxu0 %v2961
    %3172 = vmatprep.subr.bf16.mxu0 %v2964
    %3173 = vmatpush1.bf16.msra.mxu0 %v2963
    %3174 = vmatprep.subr.bf16.mxu0 %v2966
    %3175 = vmatpush1.bf16.msra.mxu0 %v2965
    %3176 = vmatprep.subr.bf16.mxu0 %v2968
    %3177 = vmatpush1.bf16.msra.mxu0 %v2967
    %3178 = vmatprep.subr.bf16.mxu0 %v2970
    %3179 = vmatpush1.bf16.msra.mxu0 %v2969
    %3180 = vmatprep.subr.bf16.mxu0 %v2972
    %3181 = vmatpush1.bf16.msra.mxu0 %v2971
    %3182 = vmatprep.mubr.bf16.mxu0 %v2656
    %3183 = vmatmul.mubr.bf16.gmra.mrb[0].mxu0 %v2655
    %v3184 = vpop.f32.mrb[0].mxu0
    %v3185 = vadd.f32 %v3072, %v3184
    %v3186 = vpop.f32.mrb[0].mxu0
    %v3187 = vadd.f32 %v3074, %v3186
    %v3188 = vpop.f32.mrb[0].mxu0
    %v3189 = vadd.f32 %v3076, %v3188
    %v3190 = vpop.f32.mrb[0].mxu0
    %v3191 = vadd.f32 %v3078, %v3190
    %3192 = vmatprep.mubr.bf16.mxu0 %v2660
    %3193 = vmatmul.mubr.bf16.gmra.mrb[0].mxu0 %v2659
    %v3194 = vpop.f32.mrb[0].mxu0
    %v3195 = vadd.f32 %v3082, %v3194
    %v3196 = vpop.f32.mrb[0].mxu0
    %v3197 = vadd.f32 %v3084, %v3196
    %v3198 = vpop.f32.mrb[0].mxu0
    %v3199 = vadd.f32 %v3086, %v3198
    %v3200 = vpop.f32.mrb[0].mxu0
    %v3201 = vadd.f32 %v3088, %v3200
    %3202 = vmatprep.mubr.bf16.mxu0 %v2664
    %3203 = vmatmul.mubr.bf16.gmra.mrb[0].mxu0 %v2663
    %v3204 = vpop.f32.mrb[0].mxu0
    %v3205 = vadd.f32 %v3092, %v3204
    %v3206 = vpop.f32.mrb[0].mxu0
    %v3207 = vadd.f32 %v3094, %v3206
    %v3208 = vpop.f32.mrb[0].mxu0
    %v3209 = vadd.f32 %v3096, %v3208
    %v3210 = vpop.f32.mrb[0].mxu0
    %v3211 = vadd.f32 %v3098, %v3210
    %3212 = vmatprep.mubr.bf16.mxu0 %v2668
    %3213 = vmatmul.mubr.bf16.gmra.mrb[0].mxu0 %v2667
    %v3214 = vpop.f32.mrb[0].mxu0
    %v3215 = vadd.f32 %v3102, %v3214
    %v3216 = vpop.f32.mrb[0].mxu0
    %v3217 = vadd.f32 %v3104, %v3216
    %v3218 = vpop.f32.mrb[0].mxu0
    %v3219 = vadd.f32 %v3106, %v3218
    %v3220 = vpop.f32.mrb[0].mxu0
    %v3221 = vadd.f32 %v3108, %v3220
    %3222 = vmatprep.mubr.bf16.mxu0 %v2672
    %3223 = vmatmul.mubr.bf16.gmra.mrb[0].mxu0 %v2671
    %v3224 = vpop.f32.mrb[0].mxu0
    %v3225 = vadd.f32 %v3112, %v3224
    %v3226 = vpop.f32.mrb[0].mxu0
    %v3227 = vadd.f32 %v3114, %v3226
    %v3228 = vpop.f32.mrb[0].mxu0
    %v3229 = vadd.f32 %v3116, %v3228
    %v3230 = vpop.f32.mrb[0].mxu0
    %v3231 = vadd.f32 %v3118, %v3230
    %3232 = vmatprep.mubr.bf16.mxu0 %v2676
    %3233 = vmatmul.mubr.bf16.gmra.mrb[0].mxu0 %v2675
    %v3234 = vpop.f32.mrb[0].mxu0
    %v3235 = vadd.f32 %v3122, %v3234
    %v3236 = vpop.f32.mrb[0].mxu0
    %v3237 = vadd.f32 %v3124, %v3236
    %v3238 = vpop.f32.mrb[0].mxu0
    %v3239 = vadd.f32 %v3126, %v3238
    %v3240 = vpop.f32.mrb[0].mxu0
    %v3241 = vadd.f32 %v3128, %v3240
    %3242 = vmatprep.mubr.bf16.mxu0 %v2680
    %3243 = vmatmul.mubr.bf16.gmra.mrb[0].mxu0 %v2679
    %v3244 = vpop.f32.mrb[0].mxu0
    %v3245 = vadd.f32 %v3132, %v3244
    %v3246 = vpop.f32.mrb[0].mxu0
    %v3247 = vadd.f32 %v3134, %v3246
    %v3248 = vpop.f32.mrb[0].mxu0
    %v3249 = vadd.f32 %v3136, %v3248
    %v3250 = vpop.f32.mrb[0].mxu0
    %v3251 = vadd.f32 %v3138, %v3250
    %3252 = vmatprep.mubr.bf16.mxu0 %v2684
    %3253 = vmatmul.mubr.bf16.gmra.mrb[0].mxu0 %v2683
    %v3254 = vpop.f32.mrb[0].mxu0
    %v3255 = vadd.f32 %v3142, %v3254
    %v3256 = vpop.f32.mrb[0].mxu0
    %v3257 = vadd.f32 %v3144, %v3256
    %v3258 = vpop.f32.mrb[0].mxu0
    %v3259 = vadd.f32 %v3146, %v3258
    %v3260 = vpop.f32.mrb[0].mxu0
    %v3261 = vadd.f32 %v3148, %v3260
    %3262 = vdwg.mxu0
    %v3263 = vxor.u32 %v3185, 2147483648
    %v3264 = vxor.u32 %v3187, 2147483648
    %v3265 = vxor.u32 %v3189, 2147483648
    %v3266 = vxor.u32 %v3191, 2147483648
    %v3267 = vxor.u32 %v3195, 2147483648
    %v3268 = vxor.u32 %v3197, 2147483648
    %v3269 = vxor.u32 %v3199, 2147483648
    %v3270 = vxor.u32 %v3201, 2147483648
    %v3271 = vxor.u32 %v3205, 2147483648
    %v3272 = vxor.u32 %v3207, 2147483648
    %v3273 = vxor.u32 %v3209, 2147483648
    %v3274 = vxor.u32 %v3211, 2147483648
    %v3275 = vxor.u32 %v3215, 2147483648
    %v3276 = vxor.u32 %v3217, 2147483648
    %v3277 = vxor.u32 %v3219, 2147483648
    %v3278 = vxor.u32 %v3221, 2147483648
    %v3279 = vxor.u32 %v3225, 2147483648
    %v3280 = vxor.u32 %v3227, 2147483648
    %v3281 = vxor.u32 %v3229, 2147483648
    %v3282 = vxor.u32 %v3231, 2147483648
    %v3283 = vxor.u32 %v3235, 2147483648
    %v3284 = vxor.u32 %v3237, 2147483648
    %v3285 = vxor.u32 %v3239, 2147483648
    %v3286 = vxor.u32 %v3241, 2147483648
    %v3287 = vxor.u32 %v3245, 2147483648
    %v3288 = vxor.u32 %v3247, 2147483648
    %v3289 = vxor.u32 %v3249, 2147483648
    %v3290 = vxor.u32 %v3251, 2147483648
    %v3291 = vxor.u32 %v3255, 2147483648
    %v3292 = vxor.u32 %v3257, 2147483648
    %v3293 = vxor.u32 %v3259, 2147483648
    %v3294 = vxor.u32 %v3261, 2147483648
    %v3295 = vmul.f32 %v3263, 1.442695
    %v3296 = vpow.pop %v3295
    %v3297 = vmul.f32 %v3264, 1.442695
    %v3298 = vpow.pop %v3297
    %v3299 = vmul.f32 %v3265, 1.442695
    %v3300 = vpow.pop %v3299
    %v3301 = vmul.f32 %v3266, 1.442695
    %v3302 = vpow.pop %v3301
    %v3303 = vmul.f32 %v3267, 1.442695
    %v3304 = vpow.pop %v3303
    %v3305 = vmul.f32 %v3268, 1.442695
    %v3306 = vpow.pop %v3305
    %v3307 = vmul.f32 %v3269, 1.442695
    %v3308 = vpow.pop %v3307
    %v3309 = vmul.f32 %v3270, 1.442695
    %v3310 = vpow.pop %v3309
    %v3311 = vmul.f32 %v3271, 1.442695
    %v3312 = vpow.pop %v3311
    %v3313 = vmul.f32 %v3272, 1.442695
    %v3314 = vpow.pop %v3313
    %v3315 = vmul.f32 %v3273, 1.442695
    %v3316 = vpow.pop %v3315
    %v3317 = vmul.f32 %v3274, 1.442695
    %v3318 = vpow.pop %v3317
    %v3319 = vmul.f32 %v3275, 1.442695
    %v3320 = vpow.pop %v3319
    %v3321 = vmul.f32 %v3276, 1.442695
    %v3322 = vpow.pop %v3321
    %v3323 = vmul.f32 %v3277, 1.442695
    %v3324 = vpow.pop %v3323
    %v3325 = vmul.f32 %v3278, 1.442695
    %v3326 = vpow.pop %v3325
    %v3327 = vmul.f32 %v3279, 1.442695
    %v3328 = vpow.pop %v3327
    %v3329 = vmul.f32 %v3280, 1.442695
    %v3330 = vpow.pop %v3329
    %v3331 = vmul.f32 %v3281, 1.442695
    %v3332 = vpow.pop %v3331
    %v3333 = vmul.f32 %v3282, 1.442695
    %v3334 = vpow.pop %v3333
    %v3335 = vmul.f32 %v3283, 1.442695
    %v3336 = vpow.pop %v3335
    %v3337 = vmul.f32 %v3284, 1.442695
    %v3338 = vpow.pop %v3337
    %v3339 = vmul.f32 %v3285, 1.442695
    %v3340 = vpow.pop %v3339
    %v3341 = vmul.f32 %v3286, 1.442695
    %v3342 = vpow.pop %v3341
    %v3343 = vmul.f32 %v3287, 1.442695
    %v3344 = vpow.pop %v3343
    %v3345 = vmul.f32 %v3288, 1.442695
    %v3346 = vpow.pop %v3345
    %v3347 = vmul.f32 %v3289, 1.442695
    %v3348 = vpow.pop %v3347
    %v3349 = vmul.f32 %v3290, 1.442695
    %v3350 = vpow.pop %v3349
    %v3351 = vmul.f32 %v3291, 1.442695
    %v3352 = vpow.pop %v3351
    %v3353 = vmul.f32 %v3292, 1.442695
    %v3354 = vpow.pop %v3353
    %v3355 = vmul.f32 %v3293, 1.442695
    %v3356 = vpow.pop %v3355
    %v3357 = vmul.f32 %v3294, 1.442695
    %v3358 = vpow.pop %v3357
    %v3359 = vadd.f32 %v3296, 1.0
    %v3360 = vadd.f32 %v3298, 1.0
    %v3361 = vadd.f32 %v3300, 1.0
    %v3362 = vadd.f32 %v3302, 1.0
    %v3363 = vadd.f32 %v3304, 1.0
    %v3364 = vadd.f32 %v3306, 1.0
    %v3365 = vadd.f32 %v3308, 1.0
    %v3366 = vadd.f32 %v3310, 1.0
    %v3367 = vadd.f32 %v3312, 1.0
    %v3368 = vadd.f32 %v3314, 1.0
    %v3369 = vadd.f32 %v3316, 1.0
    %v3370 = vadd.f32 %v3318, 1.0
    %v3371 = vadd.f32 %v3320, 1.0
    %v3372 = vadd.f32 %v3322, 1.0
    %v3373 = vadd.f32 %v3324, 1.0
    %v3374 = vadd.f32 %v3326, 1.0
    %v3375 = vadd.f32 %v3328, 1.0
    %v3376 = vadd.f32 %v3330, 1.0
    %v3377 = vadd.f32 %v3332, 1.0
    %v3378 = vadd.f32 %v3334, 1.0
    %v3379 = vadd.f32 %v3336, 1.0
    %v3380 = vadd.f32 %v3338, 1.0
    %v3381 = vadd.f32 %v3340, 1.0
    %v3382 = vadd.f32 %v3342, 1.0
    %v3383 = vadd.f32 %v3344, 1.0
    %v3384 = vadd.f32 %v3346, 1.0
    %v3385 = vadd.f32 %v3348, 1.0
    %v3386 = vadd.f32 %v3350, 1.0
    %v3387 = vadd.f32 %v3352, 1.0
    %v3388 = vadd.f32 %v3354, 1.0
    %v3389 = vadd.f32 %v3356, 1.0
    %v3390 = vadd.f32 %v3358, 1.0
    %v3391 = vrcp.pop %v3359
    %v3392 = vmul.f32 1.0, %v3391
    %v3393 = vrcp.pop %v3360
    %v3394 = vmul.f32 1.0, %v3393
    %v3395 = vrcp.pop %v3361
    %v3396 = vmul.f32 1.0, %v3395
    %v3397 = vrcp.pop %v3362
    %v3398 = vmul.f32 1.0, %v3397
    %v3399 = vrcp.pop %v3363
    %v3400 = vmul.f32 1.0, %v3399
    %v3401 = vrcp.pop %v3364
    %v3402 = vmul.f32 1.0, %v3401
    %v3403 = vrcp.pop %v3365
    %v3404 = vmul.f32 1.0, %v3403
    %v3405 = vrcp.pop %v3366
    %v3406 = vmul.f32 1.0, %v3405
    %v3407 = vrcp.pop %v3367
    %v3408 = vmul.f32 1.0, %v3407
    %v3409 = vrcp.pop %v3368
    %v3410 = vmul.f32 1.0, %v3409
    %v3411 = vrcp.pop %v3369
    %v3412 = vmul.f32 1.0, %v3411
    %v3413 = vrcp.pop %v3370
    %v3414 = vmul.f32 1.0, %v3413
    %v3415 = vrcp.pop %v3371
    %v3416 = vmul.f32 1.0, %v3415
    %v3417 = vrcp.pop %v3372
    %v3418 = vmul.f32 1.0, %v3417
    %v3419 = vrcp.pop %v3373
    %v3420 = vmul.f32 1.0, %v3419
    %v3421 = vrcp.pop %v3374
    %v3422 = vmul.f32 1.0, %v3421
    %v3423 = vrcp.pop %v3375
    %v3424 = vmul.f32 1.0, %v3423
    %v3425 = vrcp.pop %v3376
    %v3426 = vmul.f32 1.0, %v3425
    %v3427 = vrcp.pop %v3377
    %v3428 = vmul.f32 1.0, %v3427
    %v3429 = vrcp.pop %v3378
    %v3430 = vmul.f32 1.0, %v3429
    %v3431 = vrcp.pop %v3379
    %v3432 = vmul.f32 1.0, %v3431
    %v3433 = vrcp.pop %v3380
    %v3434 = vmul.f32 1.0, %v3433
    %v3435 = vrcp.pop %v3381
    %v3436 = vmul.f32 1.0, %v3435
    %v3437 = vrcp.pop %v3382
    %v3438 = vmul.f32 1.0, %v3437
    %v3439 = vrcp.pop %v3383
    %v3440 = vmul.f32 1.0, %v3439
    %v3441 = vrcp.pop %v3384
    %v3442 = vmul.f32 1.0, %v3441
    %v3443 = vrcp.pop %v3385
    %v3444 = vmul.f32 1.0, %v3443
    %v3445 = vrcp.pop %v3386
    %v3446 = vmul.f32 1.0, %v3445
    %v3447 = vrcp.pop %v3387
    %v3448 = vmul.f32 1.0, %v3447
    %v3449 = vrcp.pop %v3388
    %v3450 = vmul.f32 1.0, %v3449
    %v3451 = vrcp.pop %v3389
    %v3452 = vmul.f32 1.0, %v3451
    %v3453 = vrcp.pop %v3390
    %v3454 = vmul.f32 1.0, %v3453
    %v3455 = vmul.f32 %v3185, %v3392
    %v3456 = vmul.f32 %v3187, %v3394
    %v3457 = vmul.f32 %v3189, %v3396
    %v3458 = vmul.f32 %v3191, %v3398
    %v3459 = vmul.f32 %v3195, %v3400
    %v3460 = vmul.f32 %v3197, %v3402
    %v3461 = vmul.f32 %v3199, %v3404
    %v3462 = vmul.f32 %v3201, %v3406
    %v3463 = vmul.f32 %v3205, %v3408
    %v3464 = vmul.f32 %v3207, %v3410
    %v3465 = vmul.f32 %v3209, %v3412
    %v3466 = vmul.f32 %v3211, %v3414
    %v3467 = vmul.f32 %v3215, %v3416
    %v3468 = vmul.f32 %v3217, %v3418
    %v3469 = vmul.f32 %v3219, %v3420
    %v3470 = vmul.f32 %v3221, %v3422
    %v3471 = vmul.f32 %v3225, %v3424
    %v3472 = vmul.f32 %v3227, %v3426
    %v3473 = vmul.f32 %v3229, %v3428
    %v3474 = vmul.f32 %v3231, %v3430
    %v3475 = vmul.f32 %v3235, %v3432
    %v3476 = vmul.f32 %v3237, %v3434
    %v3477 = vmul.f32 %v3239, %v3436
    %v3478 = vmul.f32 %v3241, %v3438
    %v3479 = vmul.f32 %v3245, %v3440
    %v3480 = vmul.f32 %v3247, %v3442
    %v3481 = vmul.f32 %v3249, %v3444
    %v3482 = vmul.f32 %v3251, %v3446
    %v3483 = vmul.f32 %v3255, %v3448
    %v3484 = vmul.f32 %v3257, %v3450
    %v3485 = vmul.f32 %v3259, %v3452
    %v3486 = vmul.f32 %v3261, %v3454
    %v3487 = vpack.c.bf16 %v3457, %v3455
    %v3488 = vpack.c.bf16 %v3458, %v3456
    %v3489 = vpack.c.bf16 %v3461, %v3459
    %v3490 = vpack.c.bf16 %v3462, %v3460
    %v3491 = vpack.c.bf16 %v3465, %v3463
    %v3492 = vpack.c.bf16 %v3466, %v3464
    %v3493 = vpack.c.bf16 %v3469, %v3467
    %v3494 = vpack.c.bf16 %v3470, %v3468
    %v3495 = vpack.c.bf16 %v3473, %v3471
    %v3496 = vpack.c.bf16 %v3474, %v3472
    %v3497 = vpack.c.bf16 %v3477, %v3475
    %v3498 = vpack.c.bf16 %v3478, %v3476
    %v3499 = vpack.c.bf16 %v3481, %v3479
    %v3500 = vpack.c.bf16 %v3482, %v3480
    %v3501 = vpack.c.bf16 %v3485, %v3483
    %v3502 = vpack.c.bf16 %v3486, %v3484
    %s3503 = smul.u32 4, 32
    %s3504 = smul.u32 %s3503, 2
    %s3505 = sshll.u32 %s3504, 4
    %3506 = dma.done [#allocation6], %s3505
    %s3507 = smul.u32 4, 64
    %s3508 = smul.u32 %s3507, 2
    %s3509 = sshll.u32 %s3508, 4
    %3510 = dma.done %s144, %s3509
    %v3511 = vld [vmem:[#allocation3] sm:$0xff]
    %v3512 = vld [vmem:[#allocation3 + $0x8] sm:$0xff]
    %v3513 = vld [vmem:[#allocation3 + $0x10] sm:$0xff]
    %v3514 = vld [vmem:[#allocation3 + $0x18] sm:$0xff]
    %v3515 = vld [vmem:[#allocation3 + $0x20] sm:$0xff]
    %v3516 = vld [vmem:[#allocation3 + $0x28] sm:$0xff]
    %v3517 = vld [vmem:[#allocation3 + $0x30] sm:$0xff]
    %v3518 = vld [vmem:[#allocation3 + $0x38] sm:$0xff]
    %v3519 = vld [vmem:[#allocation3 + $0x40] sm:$0xff]
    %v3520 = vld [vmem:[#allocation3 + $0x48] sm:$0xff]
    %v3521 = vld [vmem:[#allocation3 + $0x50] sm:$0xff]
    %v3522 = vld [vmem:[#allocation3 + $0x58] sm:$0xff]
    %v3523 = vld [vmem:[#allocation3 + $0x60] sm:$0xff]
    %v3524 = vld [vmem:[#allocation3 + $0x68] sm:$0xff]
    %v3525 = vld [vmem:[#allocation3 + $0x70] sm:$0xff]
    %v3526 = vld [vmem:[#allocation3 + $0x78] sm:$0xff]
    %v3527 = vld [vmem:[#allocation3 + $0x80] sm:$0xff]
    %v3528 = vld [vmem:[#allocation3 + $0x88] sm:$0xff]
    %v3529 = vld [vmem:[#allocation3 + $0x90] sm:$0xff]
    %v3530 = vld [vmem:[#allocation3 + $0x98] sm:$0xff]
    %v3531 = vld [vmem:[#allocation3 + $0xa0] sm:$0xff]
    %v3532 = vld [vmem:[#allocation3 + $0xa8] sm:$0xff]
    %v3533 = vld [vmem:[#allocation3 + $0xb0] sm:$0xff]
    %v3534 = vld [vmem:[#allocation3 + $0xb8] sm:$0xff]
    %v3535 = vld [vmem:[#allocation3 + $0xc0] sm:$0xff]
    %v3536 = vld [vmem:[#allocation3 + $0xc8] sm:$0xff]
    %v3537 = vld [vmem:[#allocation3 + $0xd0] sm:$0xff]
    %v3538 = vld [vmem:[#allocation3 + $0xd8] sm:$0xff]
    %v3539 = vld [vmem:[#allocation3 + $0xe0] sm:$0xff]
    %v3540 = vld [vmem:[#allocation3 + $0xe8] sm:$0xff]
    %v3541 = vld [vmem:[#allocation3 + $0xf0] sm:$0xff]
    %v3542 = vld [vmem:[#allocation3 + $0xf8] sm:$0xff]
    %v3543 = vld [vmem:[#allocation3 + $0x100] sm:$0xff]
    %v3544 = vld [vmem:[#allocation3 + $0x108] sm:$0xff]
    %v3545 = vld [vmem:[#allocation3 + $0x110] sm:$0xff]
    %v3546 = vld [vmem:[#allocation3 + $0x118] sm:$0xff]
    %v3547 = vld [vmem:[#allocation3 + $0x120] sm:$0xff]
    %v3548 = vld [vmem:[#allocation3 + $0x128] sm:$0xff]
    %v3549 = vld [vmem:[#allocation3 + $0x130] sm:$0xff]
    %v3550 = vld [vmem:[#allocation3 + $0x138] sm:$0xff]
    %v3551 = vld [vmem:[#allocation3 + $0x140] sm:$0xff]
    %v3552 = vld [vmem:[#allocation3 + $0x148] sm:$0xff]
    %v3553 = vld [vmem:[#allocation3 + $0x150] sm:$0xff]
    %v3554 = vld [vmem:[#allocation3 + $0x158] sm:$0xff]
    %v3555 = vld [vmem:[#allocation3 + $0x160] sm:$0xff]
    %v3556 = vld [vmem:[#allocation3 + $0x168] sm:$0xff]
    %v3557 = vld [vmem:[#allocation3 + $0x170] sm:$0xff]
    %v3558 = vld [vmem:[#allocation3 + $0x178] sm:$0xff]
    %v3559 = vld [vmem:[#allocation3 + $0x180] sm:$0xff]
    %v3560 = vld [vmem:[#allocation3 + $0x188] sm:$0xff]
    %v3561 = vld [vmem:[#allocation3 + $0x190] sm:$0xff]
    %v3562 = vld [vmem:[#allocation3 + $0x198] sm:$0xff]
    %v3563 = vld [vmem:[#allocation3 + $0x1a0] sm:$0xff]
    %v3564 = vld [vmem:[#allocation3 + $0x1a8] sm:$0xff]
    %v3565 = vld [vmem:[#allocation3 + $0x1b0] sm:$0xff]
    %v3566 = vld [vmem:[#allocation3 + $0x1b8] sm:$0xff]
    %v3567 = vld [vmem:[#allocation3 + $0x1c0] sm:$0xff]
    %v3568 = vld [vmem:[#allocation3 + $0x1c8] sm:$0xff]
    %v3569 = vld [vmem:[#allocation3 + $0x1d0] sm:$0xff]
    %v3570 = vld [vmem:[#allocation3 + $0x1d8] sm:$0xff]
    %v3571 = vld [vmem:[#allocation3 + $0x1e0] sm:$0xff]
    %v3572 = vld [vmem:[#allocation3 + $0x1e8] sm:$0xff]
    %v3573 = vld [vmem:[#allocation3 + $0x1f0] sm:$0xff]
    %v3574 = vld [vmem:[#allocation3 + $0x1f8] sm:$0xff]
    %3575 = vmatprep.subr.bf16.mxu0 %v3512
    %3576 = vmatpush1.bf16.msra.mxu0 %v3511
    %3577 = vmatprep.subr.bf16.mxu0 %v3514
    %3578 = vmatpush1.bf16.msra.mxu0 %v3513
    %3579 = vmatprep.subr.bf16.mxu0 %v3516
    %3580 = vmatpush1.bf16.msra.mxu0 %v3515
    %3581 = vmatprep.subr.bf16.mxu0 %v3518
    %3582 = vmatpush1.bf16.msra.mxu0 %v3517
    %3583 = vmatprep.subr.bf16.mxu0 %v3520
    %3584 = vmatpush1.bf16.msra.mxu0 %v3519
    %3585 = vmatprep.subr.bf16.mxu0 %v3522
    %3586 = vmatpush1.bf16.msra.mxu0 %v3521
    %3587 = vmatprep.subr.bf16.mxu0 %v3524
    %3588 = vmatpush1.bf16.msra.mxu0 %v3523
    %3589 = vmatprep.subr.bf16.mxu0 %v3526
    %3590 = vmatpush1.bf16.msra.mxu0 %v3525
    %3591 = vmatprep.subr.bf16.mxu0 %v3528
    %3592 = vmatpush1.bf16.msra.mxu0 %v3527
    %3593 = vmatprep.subr.bf16.mxu0 %v3530
    %3594 = vmatpush1.bf16.msra.mxu0 %v3529
    %3595 = vmatprep.subr.bf16.mxu0 %v3532
    %3596 = vmatpush1.bf16.msra.mxu0 %v3531
    %3597 = vmatprep.subr.bf16.mxu0 %v3534
    %3598 = vmatpush1.bf16.msra.mxu0 %v3533
    %3599 = vmatprep.subr.bf16.mxu0 %v3536
    %3600 = vmatpush1.bf16.msra.mxu0 %v3535
    %3601 = vmatprep.subr.bf16.mxu0 %v3538
    %3602 = vmatpush1.bf16.msra.mxu0 %v3537
    %3603 = vmatprep.subr.bf16.mxu0 %v3540
    %3604 = vmatpush1.bf16.msra.mxu0 %v3539
    %3605 = vmatprep.subr.bf16.mxu0 %v3542
    %3606 = vmatpush1.bf16.msra.mxu0 %v3541
    %3607 = vmatprep.mubr.bf16.mxu0 %v2394
    %3608 = vmatmul.mubr.bf16.gmra.mrb[0].mxu0 %v2393
    %v3609 = vpop.f32.mrb[0].mxu0
    %v3610 = vadd.f32 0.0, %v3609
    %v3611 = vpop.f32.mrb[0].mxu0
    %v3612 = vadd.f32 0.0, %v3611
    %v3613 = vpop.f32.mrb[0].mxu0
    %v3614 = vadd.f32 0.0, %v3613
    %v3615 = vpop.f32.mrb[0].mxu0
    %v3616 = vadd.f32 0.0, %v3615
    %3617 = vmatprep.mubr.bf16.mxu0 %v2398
    %3618 = vmatmul.mubr.bf16.gmra.mrb[0].mxu0 %v2397
    %v3619 = vpop.f32.mrb[0].mxu0
    %v3620 = vadd.f32 0.0, %v3619
    %v3621 = vpop.f32.mrb[0].mxu0
    %v3622 = vadd.f32 0.0, %v3621
    %v3623 = vpop.f32.mrb[0].mxu0
    %v3624 = vadd.f32 0.0, %v3623
    %v3625 = vpop.f32.mrb[0].mxu0
    %v3626 = vadd.f32 0.0, %v3625
    %3627 = vdwg.mxu0
    %3628 = vmatprep.subr.bf16.mxu0 %v3544
    %3629 = vmatpush1.bf16.msra.mxu0 %v3543
    %3630 = vmatprep.subr.bf16.mxu0 %v3546
    %3631 = vmatpush1.bf16.msra.mxu0 %v3545
    %3632 = vmatprep.subr.bf16.mxu0 %v3548
    %3633 = vmatpush1.bf16.msra.mxu0 %v3547
    %3634 = vmatprep.subr.bf16.mxu0 %v3550
    %3635 = vmatpush1.bf16.msra.mxu0 %v3549
    %3636 = vmatprep.subr.bf16.mxu0 %v3552
    %3637 = vmatpush1.bf16.msra.mxu0 %v3551
    %3638 = vmatprep.subr.bf16.mxu0 %v3554
    %3639 = vmatpush1.bf16.msra.mxu0 %v3553
    %3640 = vmatprep.subr.bf16.mxu0 %v3556
    %3641 = vmatpush1.bf16.msra.mxu0 %v3555
    %3642 = vmatprep.subr.bf16.mxu0 %v3558
    %3643 = vmatpush1.bf16.msra.mxu0 %v3557
    %3644 = vmatprep.subr.bf16.mxu0 %v3560
    %3645 = vmatpush1.bf16.msra.mxu0 %v3559
    %3646 = vmatprep.subr.bf16.mxu0 %v3562
    %3647 = vmatpush1.bf16.msra.mxu0 %v3561
    %3648 = vmatprep.subr.bf16.mxu0 %v3564
    %3649 = vmatpush1.bf16.msra.mxu0 %v3563
    %3650 = vmatprep.subr.bf16.mxu0 %v3566
    %3651 = vmatpush1.bf16.msra.mxu0 %v3565
    %3652 = vmatprep.subr.bf16.mxu0 %v3568
    %3653 = vmatpush1.bf16.msra.mxu0 %v3567
    %3654 = vmatprep.subr.bf16.mxu0 %v3570
    %3655 = vmatpush1.bf16.msra.mxu0 %v3569
    %3656 = vmatprep.subr.bf16.mxu0 %v3572
    %3657 = vmatpush1.bf16.msra.mxu0 %v3571
    %3658 = vmatprep.subr.bf16.mxu0 %v3574
    %3659 = vmatpush1.bf16.msra.mxu0 %v3573
    %3660 = vmatprep.mubr.bf16.mxu0 %v2396
    %3661 = vmatmul.mubr.bf16.gmra.mrb[0].mxu0 %v2395
    %v3662 = vpop.f32.mrb[0].mxu0
    %v3663 = vadd.f32 %v3610, %v3662
    %v3664 = vpop.f32.mrb[0].mxu0
    %v3665 = vadd.f32 %v3612, %v3664
    %v3666 = vpop.f32.mrb[0].mxu0
    %v3667 = vadd.f32 %v3614, %v3666
    %v3668 = vpop.f32.mrb[0].mxu0
    %v3669 = vadd.f32 %v3616, %v3668
    %3670 = vmatprep.mubr.bf16.mxu0 %v2400
    %3671 = vmatmul.mubr.bf16.gmra.mrb[0].mxu0 %v2399
    %v3672 = vpop.f32.mrb[0].mxu0
    %v3673 = vadd.f32 %v3620, %v3672
    %v3674 = vpop.f32.mrb[0].mxu0
    %v3675 = vadd.f32 %v3622, %v3674
    %v3676 = vpop.f32.mrb[0].mxu0
    %v3677 = vadd.f32 %v3624, %v3676
    %v3678 = vpop.f32.mrb[0].mxu0
    %v3679 = vadd.f32 %v3626, %v3678
    %3680 = vdwg.mxu0
    %v3681 = vld [vmem:[%s11] sm:$0xf]
    %v3682 = vld [vmem:[%s11 + $0x4] sm:$0xf]
    %v3683 = vld [vmem:[%s11 + $0x8] sm:$0xf]
    %v3684 = vld [vmem:[%s11 + $0xc] sm:$0xf]
    %v3685 = vld [vmem:[%s11 + $0x10] sm:$0xf]
    %v3686 = vld [vmem:[%s11 + $0x14] sm:$0xf]
    %v3687 = vld [vmem:[%s11 + $0x18] sm:$0xf]
    %v3688 = vld [vmem:[%s11 + $0x1c] sm:$0xf]
    %v3689 = vld [vmem:[%s11 + $0x20] sm:$0xf]
    %v3690 = vld [vmem:[%s11 + $0x24] sm:$0xf]
    %v3691 = vld [vmem:[%s11 + $0x28] sm:$0xf]
    %v3692 = vld [vmem:[%s11 + $0x2c] sm:$0xf]
    %v3693 = vld [vmem:[%s11 + $0x30] sm:$0xf]
    %v3694 = vld [vmem:[%s11 + $0x34] sm:$0xf]
    %v3695 = vld [vmem:[%s11 + $0x38] sm:$0xf]
    %v3696 = vld [vmem:[%s11 + $0x3c] sm:$0xf]
    %v3697 = vpack.c.bf16 %v3667, %v3663
    %v3698 = vpack.c.bf16 %v3669, %v3665
    %v3699 = vpack.c.bf16 %v3677, %v3673
    %v3700 = vpack.c.bf16 %v3679, %v3675
    %v3717 = vunpack.c.l.b16 %v3681
    %v3718 = vunpack.c.l.b16 %v3682
    %v3719 = vunpack.c.l.b16 %v3683
    %v3720 = vunpack.c.l.b16 %v3684
    %v3721 = vunpack.c.l.b16 %v3685
    %v3722 = vunpack.c.l.b16 %v3686
    %v3723 = vunpack.c.l.b16 %v3687
    %v3724 = vunpack.c.l.b16 %v3688
    %v3725 = vunpack.c.l.b16 %v3689
    %v3726 = vunpack.c.l.b16 %v3690
    %v3727 = vunpack.c.l.b16 %v3691
    %v3728 = vunpack.c.l.b16 %v3692
    %v3729 = vunpack.c.l.b16 %v3693
    %v3730 = vunpack.c.l.b16 %v3694
    %v3731 = vunpack.c.l.b16 %v3695
    %v3732 = vunpack.c.l.b16 %v3696
    %v3733 = vpack.c.b16 %v3718, %v3717
    %v3734 = vpack.c.b16 %v3720, %v3719
    %v3735 = vpack.c.b16 %v3722, %v3721
    %v3736 = vpack.c.b16 %v3724, %v3723
    %v3737 = vpack.c.b16 %v3726, %v3725
    %v3738 = vpack.c.b16 %v3728, %v3727
    %v3739 = vpack.c.b16 %v3730, %v3729
    %v3740 = vpack.c.b16 %v3732, %v3731
    %vm3741 = vcmask 261120
    %v3743 = vsel %vm3741, %v3733, 0
    %v3746 = vsel %vm3741, %v3734, 0
    %v3749 = vsel %vm3741, %v3735, 0
    %v3752 = vsel %vm3741, %v3736, 0
    %v3755 = vsel %vm3741, %v3737, 0
    %v3758 = vsel %vm3741, %v3738, 0
    %v3761 = vsel %vm3741, %v3739, 0
    %v3764 = vsel %vm3741, %v3740, 0
    %3766 = vmatprep.subr.bf16.mxu0 %v3698
    %3767 = vmatpush1.bf16.msra.mxu0 %v3697
    %3768 = vmatprep.subr.bf16.mxu0 %v3700
    %3769 = vmatpush1.bf16.msra.mxu0 %v3699
    %3770 = vmatprep.subr.bf16.mxu0 0
    %3771 = vmatpush1.bf16.msra.mxu0 0
    %3772 = vmatprep.subr.bf16.mxu0 0
    %3773 = vmatpush1.bf16.msra.mxu0 0
    %3774 = vmatprep.subr.bf16.mxu0 0
    %3775 = vmatpush1.bf16.msra.mxu0 0
    %3776 = vmatprep.subr.bf16.mxu0 0
    %3777 = vmatpush1.bf16.msra.mxu0 0
    %3778 = vmatprep.subr.bf16.mxu0 0
    %3779 = vmatpush1.bf16.msra.mxu0 0
    %3780 = vmatprep.subr.bf16.mxu0 0
    %3781 = vmatpush1.bf16.msra.mxu0 0
    %3782 = vmatprep.subr.bf16.mxu0 0
    %3783 = vmatpush1.bf16.msra.mxu0 0
    %3784 = vmatprep.subr.bf16.mxu0 0
    %3785 = vmatpush1.bf16.msra.mxu0 0
    %3786 = vmatprep.subr.bf16.mxu0 0
    %3787 = vmatpush1.bf16.msra.mxu0 0
    %3788 = vmatprep.subr.bf16.mxu0 0
    %3789 = vmatpush1.bf16.msra.mxu0 0
    %3790 = vmatprep.subr.bf16.mxu0 0
    %3791 = vmatpush1.bf16.msra.mxu0 0
    %3792 = vmatprep.subr.bf16.mxu0 0
    %3793 = vmatpush1.bf16.msra.mxu0 0
    %3794 = vmatprep.subr.bf16.mxu0 0
    %3795 = vmatpush1.bf16.msra.mxu0 0
    %3796 = vmatprep.subr.bf16.mxu0 0
    %3797 = vmatpush1.bf16.msra.mxu0 0
    %3798 = vmatprep.mubr.bf16.mxu0 0
    %3799 = vmatmul.mubr.bf16.gmra.mrb[0].mxu0 %v3743
    %v3800 = vpop.f32.mrb[0].mxu0
    %v3801 = vadd.f32 0.0, %v3800
    %v3802 = vpop.f32.mrb[0].mxu0
    %v3803 = vadd.f32 0.0, %v3802
    %v3804 = vpop.f32.mrb[0].mxu0
    %v3805 = vadd.f32 0.0, %v3804
    %v3806 = vpop.f32.mrb[0].mxu0
    %v3807 = vadd.f32 0.0, %v3806
    %3808 = vmatprep.mubr.bf16.mxu0 0
    %3809 = vmatmul.mubr.bf16.gmra.mrb[0].mxu0 %v3746
    %v3810 = vpop.f32.mrb[0].mxu0
    %v3811 = vadd.f32 0.0, %v3810
    %v3812 = vpop.f32.mrb[0].mxu0
    %v3813 = vadd.f32 0.0, %v3812
    %v3814 = vpop.f32.mrb[0].mxu0
    %v3815 = vadd.f32 0.0, %v3814
    %v3816 = vpop.f32.mrb[0].mxu0
    %v3817 = vadd.f32 0.0, %v3816
    %3818 = vmatprep.mubr.bf16.mxu0 0
    %3819 = vmatmul.mubr.bf16.gmra.mrb[0].mxu0 %v3749
    %v3820 = vpop.f32.mrb[0].mxu0
    %v3821 = vadd.f32 0.0, %v3820
    %v3822 = vpop.f32.mrb[0].mxu0
    %v3823 = vadd.f32 0.0, %v3822
    %v3824 = vpop.f32.mrb[0].mxu0
    %v3825 = vadd.f32 0.0, %v3824
    %v3826 = vpop.f32.mrb[0].mxu0
    %v3827 = vadd.f32 0.0, %v3826
    %3828 = vmatprep.mubr.bf16.mxu0 0
    %3829 = vmatmul.mubr.bf16.gmra.mrb[0].mxu0 %v3752
    %v3830 = vpop.f32.mrb[0].mxu0
    %v3831 = vadd.f32 0.0, %v3830
    %v3832 = vpop.f32.mrb[0].mxu0
    %v3833 = vadd.f32 0.0, %v3832
    %v3834 = vpop.f32.mrb[0].mxu0
    %v3835 = vadd.f32 0.0, %v3834
    %v3836 = vpop.f32.mrb[0].mxu0
    %v3837 = vadd.f32 0.0, %v3836
    %3838 = vmatprep.mubr.bf16.mxu0 0
    %3839 = vmatmul.mubr.bf16.gmra.mrb[0].mxu0 %v3755
    %v3840 = vpop.f32.mrb[0].mxu0
    %v3841 = vadd.f32 0.0, %v3840
    %v3842 = vpop.f32.mrb[0].mxu0
    %v3843 = vadd.f32 0.0, %v3842
    %v3844 = vpop.f32.mrb[0].mxu0
    %v3845 = vadd.f32 0.0, %v3844
    %v3846 = vpop.f32.mrb[0].mxu0
    %v3847 = vadd.f32 0.0, %v3846
    %3848 = vmatprep.mubr.bf16.mxu0 0
    %3849 = vmatmul.mubr.bf16.gmra.mrb[0].mxu0 %v3758
    %v3850 = vpop.f32.mrb[0].mxu0
    %v3851 = vadd.f32 0.0, %v3850
    %v3852 = vpop.f32.mrb[0].mxu0
    %v3853 = vadd.f32 0.0, %v3852
    %v3854 = vpop.f32.mrb[0].mxu0
    %v3855 = vadd.f32 0.0, %v3854
    %v3856 = vpop.f32.mrb[0].mxu0
    %v3857 = vadd.f32 0.0, %v3856
    %3858 = vmatprep.mubr.bf16.mxu0 0
    %3859 = vmatmul.mubr.bf16.gmra.mrb[0].mxu0 %v3761
    %v3860 = vpop.f32.mrb[0].mxu0
    %v3861 = vadd.f32 0.0, %v3860
    %v3862 = vpop.f32.mrb[0].mxu0
    %v3863 = vadd.f32 0.0, %v3862
    %v3864 = vpop.f32.mrb[0].mxu0
    %v3865 = vadd.f32 0.0, %v3864
    %v3866 = vpop.f32.mrb[0].mxu0
    %v3867 = vadd.f32 0.0, %v3866
    %3868 = vmatprep.mubr.bf16.mxu0 0
    %3869 = vmatmul.mubr.bf16.gmra.mrb[0].mxu0 %v3764
    %v3870 = vpop.f32.mrb[0].mxu0
    %v3871 = vadd.f32 0.0, %v3870
    %v3872 = vpop.f32.mrb[0].mxu0
    %v3873 = vadd.f32 0.0, %v3872
    %v3874 = vpop.f32.mrb[0].mxu0
    %v3875 = vadd.f32 0.0, %v3874
    %v3876 = vpop.f32.mrb[0].mxu0
    %v3877 = vadd.f32 0.0, %v3876
    %3878 = vdwg.mxu0
    %v3879 = vld [vmem:[#allocation2] sm:$0xff]
    %v3880 = vld [vmem:[#allocation2 + $0x8] sm:$0xff]
    %v3881 = vld [vmem:[#allocation2 + $0x10] sm:$0xff]
    %v3882 = vld [vmem:[#allocation2 + $0x18] sm:$0xff]
    %v3883 = vld [vmem:[#allocation2 + $0x20] sm:$0xff]
    %v3884 = vld [vmem:[#allocation2 + $0x28] sm:$0xff]
    %v3885 = vld [vmem:[#allocation2 + $0x30] sm:$0xff]
    %v3886 = vld [vmem:[#allocation2 + $0x38] sm:$0xff]
    %v3887 = vld [vmem:[#allocation2 + $0x40] sm:$0xff]
    %v3888 = vld [vmem:[#allocation2 + $0x48] sm:$0xff]
    %v3889 = vld [vmem:[#allocation2 + $0x50] sm:$0xff]
    %v3890 = vld [vmem:[#allocation2 + $0x58] sm:$0xff]
    %v3891 = vld [vmem:[#allocation2 + $0x60] sm:$0xff]
    %v3892 = vld [vmem:[#allocation2 + $0x68] sm:$0xff]
    %v3893 = vld [vmem:[#allocation2 + $0x70] sm:$0xff]
    %v3894 = vld [vmem:[#allocation2 + $0x78] sm:$0xff]
    %v3895 = vld [vmem:[#allocation2 + $0x80] sm:$0xff]
    %v3896 = vld [vmem:[#allocation2 + $0x88] sm:$0xff]
    %v3897 = vld [vmem:[#allocation2 + $0x90] sm:$0xff]
    %v3898 = vld [vmem:[#allocation2 + $0x98] sm:$0xff]
    %v3899 = vld [vmem:[#allocation2 + $0xa0] sm:$0xff]
    %v3900 = vld [vmem:[#allocation2 + $0xa8] sm:$0xff]
    %v3901 = vld [vmem:[#allocation2 + $0xb0] sm:$0xff]
    %v3902 = vld [vmem:[#allocation2 + $0xb8] sm:$0xff]
    %v3903 = vld [vmem:[#allocation2 + $0xc0] sm:$0xff]
    %v3904 = vld [vmem:[#allocation2 + $0xc8] sm:$0xff]
    %v3905 = vld [vmem:[#allocation2 + $0xd0] sm:$0xff]
    %v3906 = vld [vmem:[#allocation2 + $0xd8] sm:$0xff]
    %v3907 = vld [vmem:[#allocation2 + $0xe0] sm:$0xff]
    %v3908 = vld [vmem:[#allocation2 + $0xe8] sm:$0xff]
    %v3909 = vld [vmem:[#allocation2 + $0xf0] sm:$0xff]
    %v3910 = vld [vmem:[#allocation2 + $0xf8] sm:$0xff]
    %3911 = vmatprep.subr.bf16.mxu0 %v3880
    %3912 = vmatpush1.bf16.msra.mxu0 %v3879
    %3913 = vmatprep.subr.bf16.mxu0 %v3882
    %3914 = vmatpush1.bf16.msra.mxu0 %v3881
    %3915 = vmatprep.subr.bf16.mxu0 %v3884
    %3916 = vmatpush1.bf16.msra.mxu0 %v3883
    %3917 = vmatprep.subr.bf16.mxu0 %v3886
    %3918 = vmatpush1.bf16.msra.mxu0 %v3885
    %3919 = vmatprep.subr.bf16.mxu0 %v3888
    %3920 = vmatpush1.bf16.msra.mxu0 %v3887
    %3921 = vmatprep.subr.bf16.mxu0 %v3890
    %3922 = vmatpush1.bf16.msra.mxu0 %v3889
    %3923 = vmatprep.subr.bf16.mxu0 %v3892
    %3924 = vmatpush1.bf16.msra.mxu0 %v3891
    %3925 = vmatprep.subr.bf16.mxu0 %v3894
    %3926 = vmatpush1.bf16.msra.mxu0 %v3893
    %3927 = vmatprep.subr.bf16.mxu0 %v3896
    %3928 = vmatpush1.bf16.msra.mxu0 %v3895
    %3929 = vmatprep.subr.bf16.mxu0 %v3898
    %3930 = vmatpush1.bf16.msra.mxu0 %v3897
    %3931 = vmatprep.subr.bf16.mxu0 %v3900
    %3932 = vmatpush1.bf16.msra.mxu0 %v3899
    %3933 = vmatprep.subr.bf16.mxu0 %v3902
    %3934 = vmatpush1.bf16.msra.mxu0 %v3901
    %3935 = vmatprep.subr.bf16.mxu0 %v3904
    %3936 = vmatpush1.bf16.msra.mxu0 %v3903
    %3937 = vmatprep.subr.bf16.mxu0 %v3906
    %3938 = vmatpush1.bf16.msra.mxu0 %v3905
    %3939 = vmatprep.subr.bf16.mxu0 %v3908
    %3940 = vmatpush1.bf16.msra.mxu0 %v3907
    %3941 = vmatprep.subr.bf16.mxu0 %v3910
    %3942 = vmatpush1.bf16.msra.mxu0 %v3909
    %3943 = vmatprep.mubr.bf16.mxu0 %v3488
    %3944 = vmatmul.mubr.bf16.gmra.mrb[0].mxu0 %v3487
    %v3945 = vpop.f32.mrb[0].mxu0
    %v3946 = vadd.f32 %v3801, %v3945
    %v3947 = vpop.f32.mrb[0].mxu0
    %v3948 = vadd.f32 %v3803, %v3947
    %v3949 = vpop.f32.mrb[0].mxu0
    %v3950 = vadd.f32 %v3805, %v3949
    %v3951 = vpop.f32.mrb[0].mxu0
    %v3952 = vadd.f32 %v3807, %v3951
    %3953 = vmatprep.mubr.bf16.mxu0 %v3490
    %3954 = vmatmul.mubr.bf16.gmra.mrb[0].mxu0 %v3489
    %v3955 = vpop.f32.mrb[0].mxu0
    %v3956 = vadd.f32 %v3811, %v3955
    %v3957 = vpop.f32.mrb[0].mxu0
    %v3958 = vadd.f32 %v3813, %v3957
    %v3959 = vpop.f32.mrb[0].mxu0
    %v3960 = vadd.f32 %v3815, %v3959
    %v3961 = vpop.f32.mrb[0].mxu0
    %v3962 = vadd.f32 %v3817, %v3961
    %3963 = vmatprep.mubr.bf16.mxu0 %v3492
    %3964 = vmatmul.mubr.bf16.gmra.mrb[0].mxu0 %v3491
    %v3965 = vpop.f32.mrb[0].mxu0
    %v3966 = vadd.f32 %v3821, %v3965
    %v3967 = vpop.f32.mrb[0].mxu0
    %v3968 = vadd.f32 %v3823, %v3967
    %v3969 = vpop.f32.mrb[0].mxu0
    %v3970 = vadd.f32 %v3825, %v3969
    %v3971 = vpop.f32.mrb[0].mxu0
    %v3972 = vadd.f32 %v3827, %v3971
    %3973 = vmatprep.mubr.bf16.mxu0 %v3494
    %3974 = vmatmul.mubr.bf16.gmra.mrb[0].mxu0 %v3493
    %v3975 = vpop.f32.mrb[0].mxu0
    %v3976 = vadd.f32 %v3831, %v3975
    %v3977 = vpop.f32.mrb[0].mxu0
    %v3978 = vadd.f32 %v3833, %v3977
    %v3979 = vpop.f32.mrb[0].mxu0
    %v3980 = vadd.f32 %v3835, %v3979
    %v3981 = vpop.f32.mrb[0].mxu0
    %v3982 = vadd.f32 %v3837, %v3981
    %3983 = vmatprep.mubr.bf16.mxu0 %v3496
    %3984 = vmatmul.mubr.bf16.gmra.mrb[0].mxu0 %v3495
    %v3985 = vpop.f32.mrb[0].mxu0
    %v3986 = vadd.f32 %v3841, %v3985
    %v3987 = vpop.f32.mrb[0].mxu0
    %v3988 = vadd.f32 %v3843, %v3987
    %v3989 = vpop.f32.mrb[0].mxu0
    %v3990 = vadd.f32 %v3845, %v3989
    %v3991 = vpop.f32.mrb[0].mxu0
    %v3992 = vadd.f32 %v3847, %v3991
    %3993 = vmatprep.mubr.bf16.mxu0 %v3498
    %3994 = vmatmul.mubr.bf16.gmra.mrb[0].mxu0 %v3497
    %v3995 = vpop.f32.mrb[0].mxu0
    %v3996 = vadd.f32 %v3851, %v3995
    %v3997 = vpop.f32.mrb[0].mxu0
    %v3998 = vadd.f32 %v3853, %v3997
    %v3999 = vpop.f32.mrb[0].mxu0
    %v4000 = vadd.f32 %v3855, %v3999
    %v4001 = vpop.f32.mrb[0].mxu0
    %v4002 = vadd.f32 %v3857, %v4001
    %4003 = vmatprep.mubr.bf16.mxu0 %v3500
    %4004 = vmatmul.mubr.bf16.gmra.mrb[0].mxu0 %v3499
    %v4005 = vpop.f32.mrb[0].mxu0
    %v4006 = vadd.f32 %v3861, %v4005
    %v4007 = vpop.f32.mrb[0].mxu0
    %v4008 = vadd.f32 %v3863, %v4007
    %v4009 = vpop.f32.mrb[0].mxu0
    %v4010 = vadd.f32 %v3865, %v4009
    %v4011 = vpop.f32.mrb[0].mxu0
    %v4012 = vadd.f32 %v3867, %v4011
    %4013 = vmatprep.mubr.bf16.mxu0 %v3502
    %4014 = vmatmul.mubr.bf16.gmra.mrb[0].mxu0 %v3501
    %v4015 = vpop.f32.mrb[0].mxu0
    %v4016 = vadd.f32 %v3871, %v4015
    %v4017 = vpop.f32.mrb[0].mxu0
    %v4018 = vadd.f32 %v3873, %v4017
    %v4019 = vpop.f32.mrb[0].mxu0
    %v4020 = vadd.f32 %v3875, %v4019
    %v4021 = vpop.f32.mrb[0].mxu0
    %v4022 = vadd.f32 %v3877, %v4021
    %4023 = vdwg.mxu0
    %v4024 = vld [vmem:[%s9] sm:$0x3]
    %v4026 = vlaneseq
    %v4027 = vshrl.u32 %v4026, 7
    %v4028 = vsub.s32 0, %v4027
    %v4029 = vrot.slane %v4024, %v4028
    %v4030 = vlaneseq
    %v4031 = vshrl.u32 %v4030, 7
    %v4032 = vsub.s32 1, %v4031
    %v4033 = vrot.slane %v4024, %v4032
    %v4036 = vadd.f32 %v3946, %v4029
    %v4037 = vadd.f32 %v3948, %v4033
    %v4038 = vadd.f32 %v3950, %v4029
    %v4039 = vadd.f32 %v3952, %v4033
    %v4040 = vadd.f32 %v3956, %v4029
    %v4041 = vadd.f32 %v3958, %v4033
    %v4042 = vadd.f32 %v3960, %v4029
    %v4043 = vadd.f32 %v3962, %v4033
    %v4044 = vadd.f32 %v3966, %v4029
    %v4045 = vadd.f32 %v3968, %v4033
    %v4046 = vadd.f32 %v3970, %v4029
    %v4047 = vadd.f32 %v3972, %v4033
    %v4048 = vadd.f32 %v3976, %v4029
    %v4049 = vadd.f32 %v3978, %v4033
    %v4050 = vadd.f32 %v3980, %v4029
    %v4051 = vadd.f32 %v3982, %v4033
    %v4052 = vadd.f32 %v3986, %v4029
    %v4053 = vadd.f32 %v3988, %v4033
    %v4054 = vadd.f32 %v3990, %v4029
    %v4055 = vadd.f32 %v3992, %v4033
    %v4056 = vadd.f32 %v3996, %v4029
    %v4057 = vadd.f32 %v3998, %v4033
    %v4058 = vadd.f32 %v4000, %v4029
    %v4059 = vadd.f32 %v4002, %v4033
    %v4060 = vadd.f32 %v4006, %v4029
    %v4061 = vadd.f32 %v4008, %v4033
    %v4062 = vadd.f32 %v4010, %v4029
    %v4063 = vadd.f32 %v4012, %v4033
    %v4064 = vadd.f32 %v4016, %v4029
    %v4065 = vadd.f32 %v4018, %v4033
    %v4066 = vadd.f32 %v4020, %v4029
    %v4067 = vadd.f32 %v4022, %v4033
    %v4068 = vxor.u32 %v4036, 2147483648
    %v4069 = vxor.u32 %v4037, 2147483648
    %v4070 = vxor.u32 %v4038, 2147483648
    %v4071 = vxor.u32 %v4039, 2147483648
    %v4072 = vxor.u32 %v4040, 2147483648
    %v4073 = vxor.u32 %v4041, 2147483648
    %v4074 = vxor.u32 %v4042, 2147483648
    %v4075 = vxor.u32 %v4043, 2147483648
    %v4076 = vxor.u32 %v4044, 2147483648
    %v4077 = vxor.u32 %v4045, 2147483648
    %v4078 = vxor.u32 %v4046, 2147483648
    %v4079 = vxor.u32 %v4047, 2147483648
    %v4080 = vxor.u32 %v4048, 2147483648
    %v4081 = vxor.u32 %v4049, 2147483648
    %v4082 = vxor.u32 %v4050, 2147483648
    %v4083 = vxor.u32 %v4051, 2147483648
    %v4084 = vxor.u32 %v4052, 2147483648
    %v4085 = vxor.u32 %v4053, 2147483648
    %v4086 = vxor.u32 %v4054, 2147483648
    %v4087 = vxor.u32 %v4055, 2147483648
    %v4088 = vxor.u32 %v4056, 2147483648
    %v4089 = vxor.u32 %v4057, 2147483648
    %v4090 = vxor.u32 %v4058, 2147483648
    %v4091 = vxor.u32 %v4059, 2147483648
    %v4092 = vxor.u32 %v4060, 2147483648
    %v4093 = vxor.u32 %v4061, 2147483648
    %v4094 = vxor.u32 %v4062, 2147483648
    %v4095 = vxor.u32 %v4063, 2147483648
    %v4096 = vxor.u32 %v4064, 2147483648
    %v4097 = vxor.u32 %v4065, 2147483648
    %v4098 = vxor.u32 %v4066, 2147483648
    %v4099 = vxor.u32 %v4067, 2147483648
    %v4100 = vmul.f32 %v4068, 1.442695
    %v4101 = vpow.pop %v4100
    %v4102 = vmul.f32 %v4069, 1.442695
    %v4103 = vpow.pop %v4102
    %v4104 = vmul.f32 %v4070, 1.442695
    %v4105 = vpow.pop %v4104
    %v4106 = vmul.f32 %v4071, 1.442695
    %v4107 = vpow.pop %v4106
    %v4108 = vmul.f32 %v4072, 1.442695
    %v4109 = vpow.pop %v4108
    %v4110 = vmul.f32 %v4073, 1.442695
    %v4111 = vpow.pop %v4110
    %v4112 = vmul.f32 %v4074, 1.442695
    %v4113 = vpow.pop %v4112
    %v4114 = vmul.f32 %v4075, 1.442695
    %v4115 = vpow.pop %v4114
    %v4116 = vmul.f32 %v4076, 1.442695
    %v4117 = vpow.pop %v4116
    %v4118 = vmul.f32 %v4077, 1.442695
    %v4119 = vpow.pop %v4118
    %v4120 = vmul.f32 %v4078, 1.442695
    %v4121 = vpow.pop %v4120
    %v4122 = vmul.f32 %v4079, 1.442695
    %v4123 = vpow.pop %v4122
    %v4124 = vmul.f32 %v4080, 1.442695
    %v4125 = vpow.pop %v4124
    %v4126 = vmul.f32 %v4081, 1.442695
    %v4127 = vpow.pop %v4126
    %v4128 = vmul.f32 %v4082, 1.442695
    %v4129 = vpow.pop %v4128
    %v4130 = vmul.f32 %v4083, 1.442695
    %v4131 = vpow.pop %v4130
    %v4132 = vmul.f32 %v4084, 1.442695
    %v4133 = vpow.pop %v4132
    %v4134 = vmul.f32 %v4085, 1.442695
    %v4135 = vpow.pop %v4134
    %v4136 = vmul.f32 %v4086, 1.442695
    %v4137 = vpow.pop %v4136
    %v4138 = vmul.f32 %v4087, 1.442695
    %v4139 = vpow.pop %v4138
    %v4140 = vmul.f32 %v4088, 1.442695
    %v4141 = vpow.pop %v4140
    %v4142 = vmul.f32 %v4089, 1.442695
    %v4143 = vpow.pop %v4142
    %v4144 = vmul.f32 %v4090, 1.442695
    %v4145 = vpow.pop %v4144
    %v4146 = vmul.f32 %v4091, 1.442695
    %v4147 = vpow.pop %v4146
    %v4148 = vmul.f32 %v4092, 1.442695
    %v4149 = vpow.pop %v4148
    %v4150 = vmul.f32 %v4093, 1.442695
    %v4151 = vpow.pop %v4150
    %v4152 = vmul.f32 %v4094, 1.442695
    %v4153 = vpow.pop %v4152
    %v4154 = vmul.f32 %v4095, 1.442695
    %v4155 = vpow.pop %v4154
    %v4156 = vmul.f32 %v4096, 1.442695
    %v4157 = vpow.pop %v4156
    %v4158 = vmul.f32 %v4097, 1.442695
    %v4159 = vpow.pop %v4158
    %v4160 = vmul.f32 %v4098, 1.442695
    %v4161 = vpow.pop %v4160
    %v4162 = vmul.f32 %v4099, 1.442695
    %v4163 = vpow.pop %v4162
    %v4164 = vadd.f32 %v4101, 1.0
    %v4165 = vadd.f32 %v4103, 1.0
    %v4166 = vadd.f32 %v4105, 1.0
    %v4167 = vadd.f32 %v4107, 1.0
    %v4168 = vadd.f32 %v4109, 1.0
    %v4169 = vadd.f32 %v4111, 1.0
    %v4170 = vadd.f32 %v4113, 1.0
    %v4171 = vadd.f32 %v4115, 1.0
    %v4172 = vadd.f32 %v4117, 1.0
    %v4173 = vadd.f32 %v4119, 1.0
    %v4174 = vadd.f32 %v4121, 1.0
    %v4175 = vadd.f32 %v4123, 1.0
    %v4176 = vadd.f32 %v4125, 1.0
    %v4177 = vadd.f32 %v4127, 1.0
    %v4178 = vadd.f32 %v4129, 1.0
    %v4179 = vadd.f32 %v4131, 1.0
    %v4180 = vadd.f32 %v4133, 1.0
    %v4181 = vadd.f32 %v4135, 1.0
    %v4182 = vadd.f32 %v4137, 1.0
    %v4183 = vadd.f32 %v4139, 1.0
    %v4184 = vadd.f32 %v4141, 1.0
    %v4185 = vadd.f32 %v4143, 1.0
    %v4186 = vadd.f32 %v4145, 1.0
    %v4187 = vadd.f32 %v4147, 1.0
    %v4188 = vadd.f32 %v4149, 1.0
    %v4189 = vadd.f32 %v4151, 1.0
    %v4190 = vadd.f32 %v4153, 1.0
    %v4191 = vadd.f32 %v4155, 1.0
    %v4192 = vadd.f32 %v4157, 1.0
    %v4193 = vadd.f32 %v4159, 1.0
    %v4194 = vadd.f32 %v4161, 1.0
    %v4195 = vadd.f32 %v4163, 1.0
    %v4196 = vrcp.pop %v4164
    %v4197 = vmul.f32 1.0, %v4196
    %v4198 = vrcp.pop %v4165
    %v4199 = vmul.f32 1.0, %v4198
    %v4200 = vrcp.pop %v4166
    %v4201 = vmul.f32 1.0, %v4200
    %v4202 = vrcp.pop %v4167
    %v4203 = vmul.f32 1.0, %v4202
    %v4204 = vrcp.pop %v4168
    %v4205 = vmul.f32 1.0, %v4204
    %v4206 = vrcp.pop %v4169
    %v4207 = vmul.f32 1.0, %v4206
    %v4208 = vrcp.pop %v4170
    %v4209 = vmul.f32 1.0, %v4208
    %v4210 = vrcp.pop %v4171
    %v4211 = vmul.f32 1.0, %v4210
    %v4212 = vrcp.pop %v4172
    %v4213 = vmul.f32 1.0, %v4212
    %v4214 = vrcp.pop %v4173
    %v4215 = vmul.f32 1.0, %v4214
    %v4216 = vrcp.pop %v4174
    %v4217 = vmul.f32 1.0, %v4216
    %v4218 = vrcp.pop %v4175
    %v4219 = vmul.f32 1.0, %v4218
    %v4220 = vrcp.pop %v4176
    %v4221 = vmul.f32 1.0, %v4220
    %v4222 = vrcp.pop %v4177
    %v4223 = vmul.f32 1.0, %v4222
    %v4224 = vrcp.pop %v4178
    %v4225 = vmul.f32 1.0, %v4224
    %v4226 = vrcp.pop %v4179
    %v4227 = vmul.f32 1.0, %v4226
    %v4228 = vrcp.pop %v4180
    %v4229 = vmul.f32 1.0, %v4228
    %v4230 = vrcp.pop %v4181
    %v4231 = vmul.f32 1.0, %v4230
    %v4232 = vrcp.pop %v4182
    %v4233 = vmul.f32 1.0, %v4232
    %v4234 = vrcp.pop %v4183
    %v4235 = vmul.f32 1.0, %v4234
    %v4236 = vrcp.pop %v4184
    %v4237 = vmul.f32 1.0, %v4236
    %v4238 = vrcp.pop %v4185
    %v4239 = vmul.f32 1.0, %v4238
    %v4240 = vrcp.pop %v4186
    %v4241 = vmul.f32 1.0, %v4240
    %v4242 = vrcp.pop %v4187
    %v4243 = vmul.f32 1.0, %v4242
    %v4244 = vrcp.pop %v4188
    %v4245 = vmul.f32 1.0, %v4244
    %v4246 = vrcp.pop %v4189
    %v4247 = vmul.f32 1.0, %v4246
    %v4248 = vrcp.pop %v4190
    %v4249 = vmul.f32 1.0, %v4248
    %v4250 = vrcp.pop %v4191
    %v4251 = vmul.f32 1.0, %v4250
    %v4252 = vrcp.pop %v4192
    %v4253 = vmul.f32 1.0, %v4252
    %v4254 = vrcp.pop %v4193
    %v4255 = vmul.f32 1.0, %v4254
    %v4256 = vrcp.pop %v4194
    %v4257 = vmul.f32 1.0, %v4256
    %v4258 = vrcp.pop %v4195
    %v4259 = vmul.f32 1.0, %v4258
    %v4260 = vmul.f32 %v4036, %v4197
    %v4261 = vmul.f32 %v4037, %v4199
    %v4262 = vmul.f32 %v4038, %v4201
    %v4263 = vmul.f32 %v4039, %v4203
    %v4264 = vmul.f32 %v4040, %v4205
    %v4265 = vmul.f32 %v4041, %v4207
    %v4266 = vmul.f32 %v4042, %v4209
    %v4267 = vmul.f32 %v4043, %v4211
    %v4268 = vmul.f32 %v4044, %v4213
    %v4269 = vmul.f32 %v4045, %v4215
    %v4270 = vmul.f32 %v4046, %v4217
    %v4271 = vmul.f32 %v4047, %v4219
    %v4272 = vmul.f32 %v4048, %v4221
    %v4273 = vmul.f32 %v4049, %v4223
    %v4274 = vmul.f32 %v4050, %v4225
    %v4275 = vmul.f32 %v4051, %v4227
    %v4276 = vmul.f32 %v4052, %v4229
    %v4277 = vmul.f32 %v4053, %v4231
    %v4278 = vmul.f32 %v4054, %v4233
    %v4279 = vmul.f32 %v4055, %v4235
    %v4280 = vmul.f32 %v4056, %v4237
    %v4281 = vmul.f32 %v4057, %v4239
    %v4282 = vmul.f32 %v4058, %v4241
    %v4283 = vmul.f32 %v4059, %v4243
    %v4284 = vmul.f32 %v4060, %v4245
    %v4285 = vmul.f32 %v4061, %v4247
    %v4286 = vmul.f32 %v4062, %v4249
    %v4287 = vmul.f32 %v4063, %v4251
    %v4288 = vmul.f32 %v4064, %v4253
    %v4289 = vmul.f32 %v4065, %v4255
    %v4290 = vmul.f32 %v4066, %v4257
    %v4291 = vmul.f32 %v4067, %v4259
    %v4292 = vpack.c.bf16 %v4262, %v4260
    %v4293 = vpack.c.bf16 %v4263, %v4261
    %v4294 = vpack.c.bf16 %v4266, %v4264
    %v4295 = vpack.c.bf16 %v4267, %v4265
    %v4296 = vpack.c.bf16 %v4270, %v4268
    %v4297 = vpack.c.bf16 %v4271, %v4269
    %v4298 = vpack.c.bf16 %v4274, %v4272
    %v4299 = vpack.c.bf16 %v4275, %v4273
    %v4300 = vpack.c.bf16 %v4278, %v4276
    %v4301 = vpack.c.bf16 %v4279, %v4277
    %v4302 = vpack.c.bf16 %v4282, %v4280
    %v4303 = vpack.c.bf16 %v4283, %v4281
    %v4304 = vpack.c.bf16 %v4286, %v4284
    %v4305 = vpack.c.bf16 %v4287, %v4285
    %v4306 = vpack.c.bf16 %v4290, %v4288
    %v4307 = vpack.c.bf16 %v4291, %v4289
    %v4324 = vunpack.c.l.b16 %v4292
    %v4325 = vunpack.c.l.b16 %v4293
    %v4326 = vunpack.c.h.b16 %v4292
    %v4327 = vunpack.c.h.b16 %v4293
    %v4328 = vunpack.c.l.b16 %v4294
    %v4329 = vunpack.c.l.b16 %v4295
    %v4330 = vunpack.c.h.b16 %v4294
    %v4331 = vunpack.c.h.b16 %v4295
    %v4332 = vunpack.c.l.b16 %v4296
    %v4333 = vunpack.c.l.b16 %v4297
    %v4334 = vunpack.c.h.b16 %v4296
    %v4335 = vunpack.c.h.b16 %v4297
    %v4336 = vunpack.c.l.b16 %v4298
    %v4337 = vunpack.c.l.b16 %v4299
    %v4338 = vunpack.c.h.b16 %v4298
    %v4339 = vunpack.c.h.b16 %v4299
    %v4340 = vunpack.c.l.b16 %v4300
    %v4341 = vunpack.c.l.b16 %v4301
    %v4342 = vunpack.c.h.b16 %v4300
    %v4343 = vunpack.c.h.b16 %v4301
    %v4344 = vunpack.c.l.b16 %v4302
    %v4345 = vunpack.c.l.b16 %v4303
    %v4346 = vunpack.c.h.b16 %v4302
    %v4347 = vunpack.c.h.b16 %v4303
    %v4348 = vunpack.c.l.b16 %v4304
    %v4349 = vunpack.c.l.b16 %v4305
    %v4350 = vunpack.c.h.b16 %v4304
    %v4351 = vunpack.c.h.b16 %v4305
    %v4352 = vunpack.c.l.b16 %v4306
    %v4353 = vunpack.c.l.b16 %v4307
    %v4354 = vunpack.c.h.b16 %v4306
    %v4355 = vunpack.c.h.b16 %v4307
    %v4356 = vpack.c.b16 %v4325, %v4324
    %v4357 = vpack.c.b16 %v4327, %v4326
    %v4358 = vpack.c.b16 %v4329, %v4328
    %v4359 = vpack.c.b16 %v4331, %v4330
    %v4360 = vpack.c.b16 %v4333, %v4332
    %v4361 = vpack.c.b16 %v4335, %v4334
    %v4362 = vpack.c.b16 %v4337, %v4336
    %v4363 = vpack.c.b16 %v4339, %v4338
    %v4364 = vpack.c.b16 %v4341, %v4340
    %v4365 = vpack.c.b16 %v4343, %v4342
    %v4366 = vpack.c.b16 %v4345, %v4344
    %v4367 = vpack.c.b16 %v4347, %v4346
    %v4368 = vpack.c.b16 %v4349, %v4348
    %v4369 = vpack.c.b16 %v4351, %v4350
    %v4370 = vpack.c.b16 %v4353, %v4352
    %v4371 = vpack.c.b16 %v4355, %v4354
    %4388 = vst [vmem:[#allocation16] sm:$0xff] %v4356
    %4389 = vst [vmem:[#allocation16 + $0x8] sm:$0xff] %v4357
    %4390 = vst [vmem:[#allocation16 + $0x10] sm:$0xff] %v4358
    %4391 = vst [vmem:[#allocation16 + $0x18] sm:$0xff] %v4359
    %4392 = vst [vmem:[#allocation16 + $0x20] sm:$0xff] %v4360
    %4393 = vst [vmem:[#allocation16 + $0x28] sm:$0xff] %v4361
    %4394 = vst [vmem:[#allocation16 + $0x30] sm:$0xff] %v4362
    %4395 = vst [vmem:[#allocation16 + $0x38] sm:$0xff] %v4363
    %4396 = vst [vmem:[#allocation16 + $0x40] sm:$0xff] %v4364
    %4397 = vst [vmem:[#allocation16 + $0x48] sm:$0xff] %v4365
    %4398 = vst [vmem:[#allocation16 + $0x50] sm:$0xff] %v4366
    %4399 = vst [vmem:[#allocation16 + $0x58] sm:$0xff] %v4367
    %4400 = vst [vmem:[#allocation16 + $0x60] sm:$0xff] %v4368
    %4401 = vst [vmem:[#allocation16 + $0x68] sm:$0xff] %v4369
    %4402 = vst [vmem:[#allocation16 + $0x70] sm:$0xff] %v4370
    %4403 = vst [vmem:[#allocation16 + $0x78] sm:$0xff] %v4371
    %v4404 = vld [vmem:[#allocation7] sm:$0xff]
    %v4405 = vld [vmem:[#allocation7 + $0x8] sm:$0xff]
    %v4406 = vld [vmem:[#allocation7 + $0x10] sm:$0xff]
    %v4407 = vld [vmem:[#allocation7 + $0x18] sm:$0xff]
    %v4408 = vld [vmem:[#allocation7 + $0x20] sm:$0xff]
    %v4409 = vld [vmem:[#allocation7 + $0x28] sm:$0xff]
    %v4410 = vld [vmem:[#allocation7 + $0x30] sm:$0xff]
    %v4411 = vld [vmem:[#allocation7 + $0x38] sm:$0xff]
    %v4412 = vld [vmem:[#allocation7 + $0x40] sm:$0xff]
    %v4413 = vld [vmem:[#allocation7 + $0x48] sm:$0xff]
    %v4414 = vld [vmem:[#allocation7 + $0x50] sm:$0xff]
    %v4415 = vld [vmem:[#allocation7 + $0x58] sm:$0xff]
    %v4416 = vld [vmem:[#allocation7 + $0x60] sm:$0xff]
    %v4417 = vld [vmem:[#allocation7 + $0x68] sm:$0xff]
    %v4418 = vld [vmem:[#allocation7 + $0x70] sm:$0xff]
    %v4419 = vld [vmem:[#allocation7 + $0x78] sm:$0xff]
    %v4420 = vld [vmem:[#allocation7 + $0x80] sm:$0xff]
    %v4421 = vld [vmem:[#allocation7 + $0x88] sm:$0xff]
    %v4422 = vld [vmem:[#allocation7 + $0x90] sm:$0xff]
    %v4423 = vld [vmem:[#allocation7 + $0x98] sm:$0xff]
    %v4424 = vld [vmem:[#allocation7 + $0xa0] sm:$0xff]
    %v4425 = vld [vmem:[#allocation7 + $0xa8] sm:$0xff]
    %v4426 = vld [vmem:[#allocation7 + $0xb0] sm:$0xff]
    %v4427 = vld [vmem:[#allocation7 + $0xb8] sm:$0xff]
    %v4428 = vld [vmem:[#allocation7 + $0xc0] sm:$0xff]
    %v4429 = vld [vmem:[#allocation7 + $0xc8] sm:$0xff]
    %v4430 = vld [vmem:[#allocation7 + $0xd0] sm:$0xff]
    %v4431 = vld [vmem:[#allocation7 + $0xd8] sm:$0xff]
    %v4432 = vld [vmem:[#allocation7 + $0xe0] sm:$0xff]
    %v4433 = vld [vmem:[#allocation7 + $0xe8] sm:$0xff]
    %v4434 = vld [vmem:[#allocation7 + $0xf0] sm:$0xff]
    %v4435 = vld [vmem:[#allocation7 + $0xf8] sm:$0xff]
    %v4436 = vld [vmem:[#allocation7 + $0x100] sm:$0xff]
    %v4437 = vld [vmem:[#allocation7 + $0x108] sm:$0xff]
    %v4438 = vld [vmem:[#allocation7 + $0x110] sm:$0xff]
    %v4439 = vld [vmem:[#allocation7 + $0x118] sm:$0xff]
    %v4440 = vld [vmem:[#allocation7 + $0x120] sm:$0xff]
    %v4441 = vld [vmem:[#allocation7 + $0x128] sm:$0xff]
    %v4442 = vld [vmem:[#allocation7 + $0x130] sm:$0xff]
    %v4443 = vld [vmem:[#allocation7 + $0x138] sm:$0xff]
    %v4444 = vld [vmem:[#allocation7 + $0x140] sm:$0xff]
    %v4445 = vld [vmem:[#allocation7 + $0x148] sm:$0xff]
    %v4446 = vld [vmem:[#allocation7 + $0x150] sm:$0xff]
    %v4447 = vld [vmem:[#allocation7 + $0x158] sm:$0xff]
    %v4448 = vld [vmem:[#allocation7 + $0x160] sm:$0xff]
    %v4449 = vld [vmem:[#allocation7 + $0x168] sm:$0xff]
    %v4450 = vld [vmem:[#allocation7 + $0x170] sm:$0xff]
    %v4451 = vld [vmem:[#allocation7 + $0x178] sm:$0xff]
    %v4452 = vld [vmem:[#allocation7 + $0x180] sm:$0xff]
    %v4453 = vld [vmem:[#allocation7 + $0x188] sm:$0xff]
    %v4454 = vld [vmem:[#allocation7 + $0x190] sm:$0xff]
    %v4455 = vld [vmem:[#allocation7 + $0x198] sm:$0xff]
    %v4456 = vld [vmem:[#allocation7 + $0x1a0] sm:$0xff]
    %v4457 = vld [vmem:[#allocation7 + $0x1a8] sm:$0xff]
    %v4458 = vld [vmem:[#allocation7 + $0x1b0] sm:$0xff]
    %v4459 = vld [vmem:[#allocation7 + $0x1b8] sm:$0xff]
    %v4460 = vld [vmem:[#allocation7 + $0x1c0] sm:$0xff]
    %v4461 = vld [vmem:[#allocation7 + $0x1c8] sm:$0xff]
    %v4462 = vld [vmem:[#allocation7 + $0x1d0] sm:$0xff]
    %v4463 = vld [vmem:[#allocation7 + $0x1d8] sm:$0xff]
    %v4464 = vld [vmem:[#allocation7 + $0x1e0] sm:$0xff]
    %v4465 = vld [vmem:[#allocation7 + $0x1e8] sm:$0xff]
    %v4466 = vld [vmem:[#allocation7 + $0x1f0] sm:$0xff]
    %v4467 = vld [vmem:[#allocation7 + $0x1f8] sm:$0xff]
    %v4468 = vld [vmem:[%s7] sm:$0xf]
    %v4469 = vld [vmem:[%s7 + $0x4] sm:$0xf]
    %v4470 = vld [vmem:[%s7 + $0x8] sm:$0xf]
    %v4471 = vld [vmem:[%s7 + $0xc] sm:$0xf]
    %v4472 = vld [vmem:[%s7 + $0x10] sm:$0xf]
    %v4473 = vld [vmem:[%s7 + $0x14] sm:$0xf]
    %v4474 = vld [vmem:[%s7 + $0x18] sm:$0xf]
    %v4475 = vld [vmem:[%s7 + $0x1c] sm:$0xf]
    %v4476 = vld [vmem:[%s7 + $0x20] sm:$0xf]
    %v4477 = vld [vmem:[%s7 + $0x24] sm:$0xf]
    %v4478 = vld [vmem:[%s7 + $0x28] sm:$0xf]
    %v4479 = vld [vmem:[%s7 + $0x2c] sm:$0xf]
    %v4480 = vld [vmem:[%s7 + $0x30] sm:$0xf]
    %v4481 = vld [vmem:[%s7 + $0x34] sm:$0xf]
    %v4482 = vld [vmem:[%s7 + $0x38] sm:$0xf]
    %v4483 = vld [vmem:[%s7 + $0x3c] sm:$0xf]
    %v4484 = vld [vmem:[%s7 + $0x40] sm:$0xf]
    %v4485 = vld [vmem:[%s7 + $0x44] sm:$0xf]
    %v4486 = vld [vmem:[%s7 + $0x48] sm:$0xf]
    %v4487 = vld [vmem:[%s7 + $0x4c] sm:$0xf]
    %v4488 = vld [vmem:[%s7 + $0x50] sm:$0xf]
    %v4489 = vld [vmem:[%s7 + $0x54] sm:$0xf]
    %v4490 = vld [vmem:[%s7 + $0x58] sm:$0xf]
    %v4491 = vld [vmem:[%s7 + $0x5c] sm:$0xf]
    %v4492 = vld [vmem:[%s7 + $0x60] sm:$0xf]
    %v4493 = vld [vmem:[%s7 + $0x64] sm:$0xf]
    %v4494 = vld [vmem:[%s7 + $0x68] sm:$0xf]
    %v4495 = vld [vmem:[%s7 + $0x6c] sm:$0xf]
    %v4496 = vld [vmem:[%s7 + $0x70] sm:$0xf]
    %v4497 = vld [vmem:[%s7 + $0x74] sm:$0xf]
    %v4498 = vld [vmem:[%s7 + $0x78] sm:$0xf]
    %v4499 = vld [vmem:[%s7 + $0x7c] sm:$0xf]
    %v4500 = vld [vmem:[%s8] sm:$0x1]
    %v4502 = vlaneseq
    %v4503 = vshrl.u32 %v4502, 7
    %v4504 = vsub.s32 0, %v4503
    %v4505 = vrot.slane %v4500, %v4504
    %v4571 = vunpack.c.l.b16 %v4404
    %v4572 = vunpack.c.h.b16 %v4404
    %v4573 = vunpack.c.l.b16 %v4405
    %v4574 = vunpack.c.h.b16 %v4405
    %v4575 = vunpack.c.l.b16 %v4406
    %v4576 = vunpack.c.h.b16 %v4406
    %v4577 = vunpack.c.l.b16 %v4407
    %v4578 = vunpack.c.h.b16 %v4407
    %v4579 = vunpack.c.l.b16 %v4408
    %v4580 = vunpack.c.h.b16 %v4408
    %v4581 = vunpack.c.l.b16 %v4409
    %v4582 = vunpack.c.h.b16 %v4409
    %v4583 = vunpack.c.l.b16 %v4410
    %v4584 = vunpack.c.h.b16 %v4410
    %v4585 = vunpack.c.l.b16 %v4411
    %v4586 = vunpack.c.h.b16 %v4411
    %v4587 = vunpack.c.l.b16 %v4412
    %v4588 = vunpack.c.h.b16 %v4412
    %v4589 = vunpack.c.l.b16 %v4413
    %v4590 = vunpack.c.h.b16 %v4413
    %v4591 = vunpack.c.l.b16 %v4414
    %v4592 = vunpack.c.h.b16 %v4414
    %v4593 = vunpack.c.l.b16 %v4415
    %v4594 = vunpack.c.h.b16 %v4415
    %v4595 = vunpack.c.l.b16 %v4416
    %v4596 = vunpack.c.h.b16 %v4416
    %v4597 = vunpack.c.l.b16 %v4417
    %v4598 = vunpack.c.h.b16 %v4417
    %v4599 = vunpack.c.l.b16 %v4418
    %v4600 = vunpack.c.h.b16 %v4418
    %v4601 = vunpack.c.l.b16 %v4419
    %v4602 = vunpack.c.h.b16 %v4419
    %v4603 = vunpack.c.l.b16 %v4420
    %v4604 = vunpack.c.h.b16 %v4420
    %v4605 = vunpack.c.l.b16 %v4421
    %v4606 = vunpack.c.h.b16 %v4421
    %v4607 = vunpack.c.l.b16 %v4422
    %v4608 = vunpack.c.h.b16 %v4422
    %v4609 = vunpack.c.l.b16 %v4423
    %v4610 = vunpack.c.h.b16 %v4423
    %v4611 = vunpack.c.l.b16 %v4424
    %v4612 = vunpack.c.h.b16 %v4424
    %v4613 = vunpack.c.l.b16 %v4425
    %v4614 = vunpack.c.h.b16 %v4425
    %v4615 = vunpack.c.l.b16 %v4426
    %v4616 = vunpack.c.h.b16 %v4426
    %v4617 = vunpack.c.l.b16 %v4427
    %v4618 = vunpack.c.h.b16 %v4427
    %v4619 = vunpack.c.l.b16 %v4428
    %v4620 = vunpack.c.h.b16 %v4428
    %v4621 = vunpack.c.l.b16 %v4429
    %v4622 = vunpack.c.h.b16 %v4429
    %v4623 = vunpack.c.l.b16 %v4430
    %v4624 = vunpack.c.h.b16 %v4430
    %v4625 = vunpack.c.l.b16 %v4431
    %v4626 = vunpack.c.h.b16 %v4431
    %v4627 = vunpack.c.l.b16 %v4432
    %v4628 = vunpack.c.h.b16 %v4432
    %v4629 = vunpack.c.l.b16 %v4433
    %v4630 = vunpack.c.h.b16 %v4433
    %v4631 = vunpack.c.l.b16 %v4434
    %v4632 = vunpack.c.h.b16 %v4434
    %v4633 = vunpack.c.l.b16 %v4435
    %v4634 = vunpack.c.h.b16 %v4435
    %v4635 = vunpack.c.l.b16 %v4436
    %v4636 = vunpack.c.h.b16 %v4436
    %v4637 = vunpack.c.l.b16 %v4437
    %v4638 = vunpack.c.h.b16 %v4437
    %v4639 = vunpack.c.l.b16 %v4438
    %v4640 = vunpack.c.h.b16 %v4438
    %v4641 = vunpack.c.l.b16 %v4439
    %v4642 = vunpack.c.h.b16 %v4439
    %v4643 = vunpack.c.l.b16 %v4440
    %v4644 = vunpack.c.h.b16 %v4440
    %v4645 = vunpack.c.l.b16 %v4441
    %v4646 = vunpack.c.h.b16 %v4441
    %v4647 = vunpack.c.l.b16 %v4442
    %v4648 = vunpack.c.h.b16 %v4442
    %v4649 = vunpack.c.l.b16 %v4443
    %v4650 = vunpack.c.h.b16 %v4443
    %v4651 = vunpack.c.l.b16 %v4444
    %v4652 = vunpack.c.h.b16 %v4444
    %v4653 = vunpack.c.l.b16 %v4445
    %v4654 = vunpack.c.h.b16 %v4445
    %v4655 = vunpack.c.l.b16 %v4446
    %v4656 = vunpack.c.h.b16 %v4446
    %v4657 = vunpack.c.l.b16 %v4447
    %v4658 = vunpack.c.h.b16 %v4447
    %v4659 = vunpack.c.l.b16 %v4448
    %v4660 = vunpack.c.h.b16 %v4448
    %v4661 = vunpack.c.l.b16 %v4449
    %v4662 = vunpack.c.h.b16 %v4449
    %v4663 = vunpack.c.l.b16 %v4450
    %v4664 = vunpack.c.h.b16 %v4450
    %v4665 = vunpack.c.l.b16 %v4451
    %v4666 = vunpack.c.h.b16 %v4451
    %v4667 = vunpack.c.l.b16 %v4452
    %v4668 = vunpack.c.h.b16 %v4452
    %v4669 = vunpack.c.l.b16 %v4453
    %v4670 = vunpack.c.h.b16 %v4453
    %v4671 = vunpack.c.l.b16 %v4454
    %v4672 = vunpack.c.h.b16 %v4454
    %v4673 = vunpack.c.l.b16 %v4455
    %v4674 = vunpack.c.h.b16 %v4455
    %v4675 = vunpack.c.l.b16 %v4456
    %v4676 = vunpack.c.h.b16 %v4456
    %v4677 = vunpack.c.l.b16 %v4457
    %v4678 = vunpack.c.h.b16 %v4457
    %v4679 = vunpack.c.l.b16 %v4458
    %v4680 = vunpack.c.h.b16 %v4458
    %v4681 = vunpack.c.l.b16 %v4459
    %v4682 = vunpack.c.h.b16 %v4459
    %v4683 = vunpack.c.l.b16 %v4460
    %v4684 = vunpack.c.h.b16 %v4460
    %v4685 = vunpack.c.l.b16 %v4461
    %v4686 = vunpack.c.h.b16 %v4461
    %v4687 = vunpack.c.l.b16 %v4462
    %v4688 = vunpack.c.h.b16 %v4462
    %v4689 = vunpack.c.l.b16 %v4463
    %v4690 = vunpack.c.h.b16 %v4463
    %v4691 = vunpack.c.l.b16 %v4464
    %v4692 = vunpack.c.h.b16 %v4464
    %v4693 = vunpack.c.l.b16 %v4465
    %v4694 = vunpack.c.h.b16 %v4465
    %v4695 = vunpack.c.l.b16 %v4466
    %v4696 = vunpack.c.h.b16 %v4466
    %v4697 = vunpack.c.l.b16 %v4467
    %v4698 = vunpack.c.h.b16 %v4467
    %v4699 = vpack.c.b16 %v4573, %v4571
    %v4700 = vpack.c.b16 %v4574, %v4572
    %v4701 = vpack.c.b16 %v4577, %v4575
    %v4702 = vpack.c.b16 %v4578, %v4576
    %v4703 = vpack.c.b16 %v4581, %v4579
    %v4704 = vpack.c.b16 %v4582, %v4580
    %v4705 = vpack.c.b16 %v4585, %v4583
    %v4706 = vpack.c.b16 %v4586, %v4584
    %v4707 = vpack.c.b16 %v4589, %v4587
    %v4708 = vpack.c.b16 %v4590, %v4588
    %v4709 = vpack.c.b16 %v4593, %v4591
    %v4710 = vpack.c.b16 %v4594, %v4592
    %v4711 = vpack.c.b16 %v4597, %v4595
    %v4712 = vpack.c.b16 %v4598, %v4596
    %v4713 = vpack.c.b16 %v4601, %v4599
    %v4714 = vpack.c.b16 %v4602, %v4600
    %v4715 = vpack.c.b16 %v4605, %v4603
    %v4716 = vpack.c.b16 %v4606, %v4604
    %v4717 = vpack.c.b16 %v4609, %v4607
    %v4718 = vpack.c.b16 %v4610, %v4608
    %v4719 = vpack.c.b16 %v4613, %v4611
    %v4720 = vpack.c.b16 %v4614, %v4612
    %v4721 = vpack.c.b16 %v4617, %v4615
    %v4722 = vpack.c.b16 %v4618, %v4616
    %v4723 = vpack.c.b16 %v4621, %v4619
    %v4724 = vpack.c.b16 %v4622, %v4620
    %v4725 = vpack.c.b16 %v4625, %v4623
    %v4726 = vpack.c.b16 %v4626, %v4624
    %v4727 = vpack.c.b16 %v4629, %v4627
    %v4728 = vpack.c.b16 %v4630, %v4628
    %v4729 = vpack.c.b16 %v4633, %v4631
    %v4730 = vpack.c.b16 %v4634, %v4632
    %v4731 = vpack.c.b16 %v4637, %v4635
    %v4732 = vpack.c.b16 %v4638, %v4636
    %v4733 = vpack.c.b16 %v4641, %v4639
    %v4734 = vpack.c.b16 %v4642, %v4640
    %v4735 = vpack.c.b16 %v4645, %v4643
    %v4736 = vpack.c.b16 %v4646, %v4644
    %v4737 = vpack.c.b16 %v4649, %v4647
    %v4738 = vpack.c.b16 %v4650, %v4648
    %v4739 = vpack.c.b16 %v4653, %v4651
    %v4740 = vpack.c.b16 %v4654, %v4652
    %v4741 = vpack.c.b16 %v4657, %v4655
    %v4742 = vpack.c.b16 %v4658, %v4656
    %v4743 = vpack.c.b16 %v4661, %v4659
    %v4744 = vpack.c.b16 %v4662, %v4660
    %v4745 = vpack.c.b16 %v4665, %v4663
    %v4746 = vpack.c.b16 %v4666, %v4664
    %v4747 = vpack.c.b16 %v4669, %v4667
    %v4748 = vpack.c.b16 %v4670, %v4668
    %v4749 = vpack.c.b16 %v4673, %v4671
    %v4750 = vpack.c.b16 %v4674, %v4672
    %v4751 = vpack.c.b16 %v4677, %v4675
    %v4752 = vpack.c.b16 %v4678, %v4676
    %v4753 = vpack.c.b16 %v4681, %v4679
    %v4754 = vpack.c.b16 %v4682, %v4680
    %v4755 = vpack.c.b16 %v4685, %v4683
    %v4756 = vpack.c.b16 %v4686, %v4684
    %v4757 = vpack.c.b16 %v4689, %v4687
    %v4758 = vpack.c.b16 %v4690, %v4688
    %v4759 = vpack.c.b16 %v4693, %v4691
    %v4760 = vpack.c.b16 %v4694, %v4692
    %v4761 = vpack.c.b16 %v4697, %v4695
    %v4762 = vpack.c.b16 %v4698, %v4696
    %v4859 = vunpack.c.l.b16 %v4468
    %v4860 = vunpack.c.l.b16 %v4469
    %v4861 = vunpack.c.l.b16 %v4470
    %v4862 = vunpack.c.l.b16 %v4471
    %v4863 = vunpack.c.l.b16 %v4472
    %v4864 = vunpack.c.l.b16 %v4473
    %v4865 = vunpack.c.l.b16 %v4474
    %v4866 = vunpack.c.l.b16 %v4475
    %v4867 = vunpack.c.l.b16 %v4476
    %v4868 = vunpack.c.l.b16 %v4477
    %v4869 = vunpack.c.l.b16 %v4478
    %v4870 = vunpack.c.l.b16 %v4479
    %v4871 = vunpack.c.l.b16 %v4480
    %v4872 = vunpack.c.l.b16 %v4481
    %v4873 = vunpack.c.l.b16 %v4482
    %v4874 = vunpack.c.l.b16 %v4483
    %v4875 = vunpack.c.l.b16 %v4484
    %v4876 = vunpack.c.l.b16 %v4485
    %v4877 = vunpack.c.l.b16 %v4486
    %v4878 = vunpack.c.l.b16 %v4487
    %v4879 = vunpack.c.l.b16 %v4488
    %v4880 = vunpack.c.l.b16 %v4489
    %v4881 = vunpack.c.l.b16 %v4490
    %v4882 = vunpack.c.l.b16 %v4491
    %v4883 = vunpack.c.l.b16 %v4492
    %v4884 = vunpack.c.l.b16 %v4493
    %v4885 = vunpack.c.l.b16 %v4494
    %v4886 = vunpack.c.l.b16 %v4495
    %v4887 = vunpack.c.l.b16 %v4496
    %v4888 = vunpack.c.l.b16 %v4497
    %v4889 = vunpack.c.l.b16 %v4498
    %v4890 = vunpack.c.l.b16 %v4499
    %v4891 = vpack.c.b16 %v4860, %v4859
    %v4892 = vpack.c.b16 %v4862, %v4861
    %v4893 = vpack.c.b16 %v4864, %v4863
    %v4894 = vpack.c.b16 %v4866, %v4865
    %v4895 = vpack.c.b16 %v4868, %v4867
    %v4896 = vpack.c.b16 %v4870, %v4869
    %v4897 = vpack.c.b16 %v4872, %v4871
    %v4898 = vpack.c.b16 %v4874, %v4873
    %v4899 = vpack.c.b16 %v4876, %v4875
    %v4900 = vpack.c.b16 %v4878, %v4877
    %v4901 = vpack.c.b16 %v4880, %v4879
    %v4902 = vpack.c.b16 %v4882, %v4881
    %v4903 = vpack.c.b16 %v4884, %v4883
    %v4904 = vpack.c.b16 %v4886, %v4885
    %v4905 = vpack.c.b16 %v4888, %v4887
    %v4906 = vpack.c.b16 %v4890, %v4889
    %4923 = vmatprep.subr.bf16.mxu0 0
    %4924 = vmatpush1.bf16.msra.mxu0 %v4891
    %4925 = vmatprep.subr.bf16.mxu0 0
    %4926 = vmatpush1.bf16.msra.mxu0 %v4892
    %4927 = vmatprep.subr.bf16.mxu0 0
    %4928 = vmatpush1.bf16.msra.mxu0 %v4893
    %4929 = vmatprep.subr.bf16.mxu0 0
    %4930 = vmatpush1.bf16.msra.mxu0 %v4894
    %4931 = vmatprep.subr.bf16.mxu0 0
    %4932 = vmatpush1.bf16.msra.mxu0 %v4895
    %4933 = vmatprep.subr.bf16.mxu0 0
    %4934 = vmatpush1.bf16.msra.mxu0 %v4896
    %4935 = vmatprep.subr.bf16.mxu0 0
    %4936 = vmatpush1.bf16.msra.mxu0 %v4897
    %4937 = vmatprep.subr.bf16.mxu0 0
    %4938 = vmatpush1.bf16.msra.mxu0 %v4898
    %4939 = vmatprep.subr.bf16.mxu0 0
    %4940 = vmatpush1.bf16.msra.mxu0 %v4899
    %4941 = vmatprep.subr.bf16.mxu0 0
    %4942 = vmatpush1.bf16.msra.mxu0 %v4900
    %4943 = vmatprep.subr.bf16.mxu0 0
    %4944 = vmatpush1.bf16.msra.mxu0 %v4901
    %4945 = vmatprep.subr.bf16.mxu0 0
    %4946 = vmatpush1.bf16.msra.mxu0 %v4902
    %4947 = vmatprep.subr.bf16.mxu0 0
    %4948 = vmatpush1.bf16.msra.mxu0 %v4903
    %4949 = vmatprep.subr.bf16.mxu0 0
    %4950 = vmatpush1.bf16.msra.mxu0 %v4904
    %4951 = vmatprep.subr.bf16.mxu0 0
    %4952 = vmatpush1.bf16.msra.mxu0 %v4905
    %4953 = vmatprep.subr.bf16.mxu0 0
    %4954 = vmatpush1.bf16.msra.mxu0 %v4906
    %4955 = vmatprep.mubr.bf16.mxu0 %v4700
    %4956 = vmatmul.mubr.bf16.gmra.mrb[0].mxu0 %v4699
    %v4957 = vpop.f32.mrb[0].mxu0
    %v4958 = vadd.f32 %v4505, %v4957
    %v4959 = vpop.f32.mrb[0].mxu0
    %v4960 = vpop.f32.mrb[0].mxu0
    %v4961 = vadd.f32 %v4505, %v4960
    %v4962 = vpop.f32.mrb[0].mxu0
    %4963 = vmatprep.mubr.bf16.mxu0 %v4702
    %4964 = vmatmul.mubr.bf16.gmra.mrb[0].mxu0 %v4701
    %v4965 = vpop.f32.mrb[0].mxu0
    %v4966 = vadd.f32 %v4505, %v4965
    %v4967 = vpop.f32.mrb[0].mxu0
    %v4968 = vpop.f32.mrb[0].mxu0
    %v4969 = vadd.f32 %v4505, %v4968
    %v4970 = vpop.f32.mrb[0].mxu0
    %4971 = vmatprep.mubr.bf16.mxu0 %v4704
    %4972 = vmatmul.mubr.bf16.gmra.mrb[0].mxu0 %v4703
    %v4973 = vpop.f32.mrb[0].mxu0
    %v4974 = vadd.f32 %v4505, %v4973
    %v4975 = vpop.f32.mrb[0].mxu0
    %v4976 = vpop.f32.mrb[0].mxu0
    %v4977 = vadd.f32 %v4505, %v4976
    %v4978 = vpop.f32.mrb[0].mxu0
    %4979 = vmatprep.mubr.bf16.mxu0 %v4706
    %4980 = vmatmul.mubr.bf16.gmra.mrb[0].mxu0 %v4705
    %v4981 = vpop.f32.mrb[0].mxu0
    %v4982 = vadd.f32 %v4505, %v4981
    %v4983 = vpop.f32.mrb[0].mxu0
    %v4984 = vpop.f32.mrb[0].mxu0
    %v4985 = vadd.f32 %v4505, %v4984
    %v4986 = vpop.f32.mrb[0].mxu0
    %4987 = vmatprep.mubr.bf16.mxu0 %v4708
    %4988 = vmatmul.mubr.bf16.gmra.mrb[0].mxu0 %v4707
    %v4989 = vpop.f32.mrb[0].mxu0
    %v4990 = vadd.f32 %v4505, %v4989
    %v4991 = vpop.f32.mrb[0].mxu0
    %v4992 = vpop.f32.mrb[0].mxu0
    %v4993 = vadd.f32 %v4505, %v4992
    %v4994 = vpop.f32.mrb[0].mxu0
    %4995 = vmatprep.mubr.bf16.mxu0 %v4710
    %4996 = vmatmul.mubr.bf16.gmra.mrb[0].mxu0 %v4709
    %v4997 = vpop.f32.mrb[0].mxu0
    %v4998 = vadd.f32 %v4505, %v4997
    %v4999 = vpop.f32.mrb[0].mxu0
    %v5000 = vpop.f32.mrb[0].mxu0
    %v5001 = vadd.f32 %v4505, %v5000
    %v5002 = vpop.f32.mrb[0].mxu0
    %5003 = vmatprep.mubr.bf16.mxu0 %v4712
    %5004 = vmatmul.mubr.bf16.gmra.mrb[0].mxu0 %v4711
    %v5005 = vpop.f32.mrb[0].mxu0
    %v5006 = vadd.f32 %v4505, %v5005
    %v5007 = vpop.f32.mrb[0].mxu0
    %v5008 = vpop.f32.mrb[0].mxu0
    %v5009 = vadd.f32 %v4505, %v5008
    %v5010 = vpop.f32.mrb[0].mxu0
    %5011 = vmatprep.mubr.bf16.mxu0 %v4714
    %5012 = vmatmul.mubr.bf16.gmra.mrb[0].mxu0 %v4713
    %v5013 = vpop.f32.mrb[0].mxu0
    %v5014 = vadd.f32 %v4505, %v5013
    %v5015 = vpop.f32.mrb[0].mxu0
    %v5016 = vpop.f32.mrb[0].mxu0
    %v5017 = vadd.f32 %v4505, %v5016
    %v5018 = vpop.f32.mrb[0].mxu0
    %5019 = vmatprep.mubr.bf16.mxu0 %v4716
    %5020 = vmatmul.mubr.bf16.gmra.mrb[0].mxu0 %v4715
    %v5021 = vpop.f32.mrb[0].mxu0
    %v5022 = vadd.f32 %v4505, %v5021
    %v5023 = vpop.f32.mrb[0].mxu0
    %v5024 = vpop.f32.mrb[0].mxu0
    %v5025 = vadd.f32 %v4505, %v5024
    %v5026 = vpop.f32.mrb[0].mxu0
    %5027 = vmatprep.mubr.bf16.mxu0 %v4718
    %5028 = vmatmul.mubr.bf16.gmra.mrb[0].mxu0 %v4717
    %v5029 = vpop.f32.mrb[0].mxu0
    %v5030 = vadd.f32 %v4505, %v5029
    %v5031 = vpop.f32.mrb[0].mxu0
    %v5032 = vpop.f32.mrb[0].mxu0
    %v5033 = vadd.f32 %v4505, %v5032
    %v5034 = vpop.f32.mrb[0].mxu0
    %5035 = vmatprep.mubr.bf16.mxu0 %v4720
    %5036 = vmatmul.mubr.bf16.gmra.mrb[0].mxu0 %v4719
    %v5037 = vpop.f32.mrb[0].mxu0
    %v5038 = vadd.f32 %v4505, %v5037
    %v5039 = vpop.f32.mrb[0].mxu0
    %v5040 = vpop.f32.mrb[0].mxu0
    %v5041 = vadd.f32 %v4505, %v5040
    %v5042 = vpop.f32.mrb[0].mxu0
    %5043 = vmatprep.mubr.bf16.mxu0 %v4722
    %5044 = vmatmul.mubr.bf16.gmra.mrb[0].mxu0 %v4721
    %v5045 = vpop.f32.mrb[0].mxu0
    %v5046 = vadd.f32 %v4505, %v5045
    %v5047 = vpop.f32.mrb[0].mxu0
    %v5048 = vpop.f32.mrb[0].mxu0
    %v5049 = vadd.f32 %v4505, %v5048
    %v5050 = vpop.f32.mrb[0].mxu0
    %5051 = vmatprep.mubr.bf16.mxu0 %v4724
    %5052 = vmatmul.mubr.bf16.gmra.mrb[0].mxu0 %v4723
    %v5053 = vpop.f32.mrb[0].mxu0
    %v5054 = vadd.f32 %v4505, %v5053
    %v5055 = vpop.f32.mrb[0].mxu0
    %v5056 = vpop.f32.mrb[0].mxu0
    %v5057 = vadd.f32 %v4505, %v5056
    %v5058 = vpop.f32.mrb[0].mxu0
    %5059 = vmatprep.mubr.bf16.mxu0 %v4726
    %5060 = vmatmul.mubr.bf16.gmra.mrb[0].mxu0 %v4725
    %v5061 = vpop.f32.mrb[0].mxu0
    %v5062 = vadd.f32 %v4505, %v5061
    %v5063 = vpop.f32.mrb[0].mxu0
    %v5064 = vpop.f32.mrb[0].mxu0
    %v5065 = vadd.f32 %v4505, %v5064
    %v5066 = vpop.f32.mrb[0].mxu0
    %5067 = vmatprep.mubr.bf16.mxu0 %v4728
    %5068 = vmatmul.mubr.bf16.gmra.mrb[0].mxu0 %v4727
    %v5069 = vpop.f32.mrb[0].mxu0
    %v5070 = vadd.f32 %v4505, %v5069
    %v5071 = vpop.f32.mrb[0].mxu0
    %v5072 = vpop.f32.mrb[0].mxu0
    %v5073 = vadd.f32 %v4505, %v5072
    %v5074 = vpop.f32.mrb[0].mxu0
    %5075 = vmatprep.mubr.bf16.mxu0 %v4730
    %5076 = vmatmul.mubr.bf16.gmra.mrb[0].mxu0 %v4729
    %v5077 = vpop.f32.mrb[0].mxu0
    %v5078 = vadd.f32 %v4505, %v5077
    %v5079 = vpop.f32.mrb[0].mxu0
    %v5080 = vpop.f32.mrb[0].mxu0
    %v5081 = vadd.f32 %v4505, %v5080
    %v5082 = vpop.f32.mrb[0].mxu0
    %5083 = vmatprep.mubr.bf16.mxu0 %v4732
    %5084 = vmatmul.mubr.bf16.gmra.mrb[0].mxu0 %v4731
    %v5085 = vpop.f32.mrb[0].mxu0
    %v5086 = vadd.f32 %v4505, %v5085
    %v5087 = vpop.f32.mrb[0].mxu0
    %v5088 = vpop.f32.mrb[0].mxu0
    %v5089 = vadd.f32 %v4505, %v5088
    %v5090 = vpop.f32.mrb[0].mxu0
    %5091 = vmatprep.mubr.bf16.mxu0 %v4734
    %5092 = vmatmul.mubr.bf16.gmra.mrb[0].mxu0 %v4733
    %v5093 = vpop.f32.mrb[0].mxu0
    %v5094 = vadd.f32 %v4505, %v5093
    %v5095 = vpop.f32.mrb[0].mxu0
    %v5096 = vpop.f32.mrb[0].mxu0
    %v5097 = vadd.f32 %v4505, %v5096
    %v5098 = vpop.f32.mrb[0].mxu0
    %5099 = vmatprep.mubr.bf16.mxu0 %v4736
    %5100 = vmatmul.mubr.bf16.gmra.mrb[0].mxu0 %v4735
    %v5101 = vpop.f32.mrb[0].mxu0
    %v5102 = vadd.f32 %v4505, %v5101
    %v5103 = vpop.f32.mrb[0].mxu0
    %v5104 = vpop.f32.mrb[0].mxu0
    %v5105 = vadd.f32 %v4505, %v5104
    %v5106 = vpop.f32.mrb[0].mxu0
    %5107 = vmatprep.mubr.bf16.mxu0 %v4738
    %5108 = vmatmul.mubr.bf16.gmra.mrb[0].mxu0 %v4737
    %v5109 = vpop.f32.mrb[0].mxu0
    %v5110 = vadd.f32 %v4505, %v5109
    %v5111 = vpop.f32.mrb[0].mxu0
    %v5112 = vpop.f32.mrb[0].mxu0
    %v5113 = vadd.f32 %v4505, %v5112
    %v5114 = vpop.f32.mrb[0].mxu0
    %5115 = vmatprep.mubr.bf16.mxu0 %v4740
    %5116 = vmatmul.mubr.bf16.gmra.mrb[0].mxu0 %v4739
    %v5117 = vpop.f32.mrb[0].mxu0
    %v5118 = vadd.f32 %v4505, %v5117
    %v5119 = vpop.f32.mrb[0].mxu0
    %v5120 = vpop.f32.mrb[0].mxu0
    %v5121 = vadd.f32 %v4505, %v5120
    %v5122 = vpop.f32.mrb[0].mxu0
    %5123 = vmatprep.mubr.bf16.mxu0 %v4742
    %5124 = vmatmul.mubr.bf16.gmra.mrb[0].mxu0 %v4741
    %v5125 = vpop.f32.mrb[0].mxu0
    %v5126 = vadd.f32 %v4505, %v5125
    %v5127 = vpop.f32.mrb[0].mxu0
    %v5128 = vpop.f32.mrb[0].mxu0
    %v5129 = vadd.f32 %v4505, %v5128
    %v5130 = vpop.f32.mrb[0].mxu0
    %5131 = vmatprep.mubr.bf16.mxu0 %v4744
    %5132 = vmatmul.mubr.bf16.gmra.mrb[0].mxu0 %v4743
    %v5133 = vpop.f32.mrb[0].mxu0
    %v5134 = vadd.f32 %v4505, %v5133
    %v5135 = vpop.f32.mrb[0].mxu0
    %v5136 = vpop.f32.mrb[0].mxu0
    %v5137 = vadd.f32 %v4505, %v5136
    %v5138 = vpop.f32.mrb[0].mxu0
    %5139 = vmatprep.mubr.bf16.mxu0 %v4746
    %5140 = vmatmul.mubr.bf16.gmra.mrb[0].mxu0 %v4745
    %v5141 = vpop.f32.mrb[0].mxu0
    %v5142 = vadd.f32 %v4505, %v5141
    %v5143 = vpop.f32.mrb[0].mxu0
    %v5144 = vpop.f32.mrb[0].mxu0
    %v5145 = vadd.f32 %v4505, %v5144
    %v5146 = vpop.f32.mrb[0].mxu0
    %5147 = vmatprep.mubr.bf16.mxu0 %v4748
    %5148 = vmatmul.mubr.bf16.gmra.mrb[0].mxu0 %v4747
    %v5149 = vpop.f32.mrb[0].mxu0
    %v5150 = vadd.f32 %v4505, %v5149
    %v5151 = vpop.f32.mrb[0].mxu0
    %v5152 = vpop.f32.mrb[0].mxu0
    %v5153 = vadd.f32 %v4505, %v5152
    %v5154 = vpop.f32.mrb[0].mxu0
    %5155 = vmatprep.mubr.bf16.mxu0 %v4750
    %5156 = vmatmul.mubr.bf16.gmra.mrb[0].mxu0 %v4749
    %v5157 = vpop.f32.mrb[0].mxu0
    %v5158 = vadd.f32 %v4505, %v5157
    %v5159 = vpop.f32.mrb[0].mxu0
    %v5160 = vpop.f32.mrb[0].mxu0
    %v5161 = vadd.f32 %v4505, %v5160
    %v5162 = vpop.f32.mrb[0].mxu0
    %5163 = vmatprep.mubr.bf16.mxu0 %v4752
    %5164 = vmatmul.mubr.bf16.gmra.mrb[0].mxu0 %v4751
    %v5165 = vpop.f32.mrb[0].mxu0
    %v5166 = vadd.f32 %v4505, %v5165
    %v5167 = vpop.f32.mrb[0].mxu0
    %v5168 = vpop.f32.mrb[0].mxu0
    %v5169 = vadd.f32 %v4505, %v5168
    %v5170 = vpop.f32.mrb[0].mxu0
    %5171 = vmatprep.mubr.bf16.mxu0 %v4754
    %5172 = vmatmul.mubr.bf16.gmra.mrb[0].mxu0 %v4753
    %v5173 = vpop.f32.mrb[0].mxu0
    %v5174 = vadd.f32 %v4505, %v5173
    %v5175 = vpop.f32.mrb[0].mxu0
    %v5176 = vpop.f32.mrb[0].mxu0
    %v5177 = vadd.f32 %v4505, %v5176
    %v5178 = vpop.f32.mrb[0].mxu0
    %5179 = vmatprep.mubr.bf16.mxu0 %v4756
    %5180 = vmatmul.mubr.bf16.gmra.mrb[0].mxu0 %v4755
    %v5181 = vpop.f32.mrb[0].mxu0
    %v5182 = vadd.f32 %v4505, %v5181
    %v5183 = vpop.f32.mrb[0].mxu0
    %v5184 = vpop.f32.mrb[0].mxu0
    %v5185 = vadd.f32 %v4505, %v5184
    %v5186 = vpop.f32.mrb[0].mxu0
    %5187 = vmatprep.mubr.bf16.mxu0 %v4758
    %5188 = vmatmul.mubr.bf16.gmra.mrb[0].mxu0 %v4757
    %v5189 = vpop.f32.mrb[0].mxu0
    %v5190 = vadd.f32 %v4505, %v5189
    %v5191 = vpop.f32.mrb[0].mxu0
    %v5192 = vpop.f32.mrb[0].mxu0
    %v5193 = vadd.f32 %v4505, %v5192
    %v5194 = vpop.f32.mrb[0].mxu0
    %5195 = vmatprep.mubr.bf16.mxu0 %v4760
    %5196 = vmatmul.mubr.bf16.gmra.mrb[0].mxu0 %v4759
    %v5197 = vpop.f32.mrb[0].mxu0
    %v5198 = vadd.f32 %v4505, %v5197
    %v5199 = vpop.f32.mrb[0].mxu0
    %v5200 = vpop.f32.mrb[0].mxu0
    %v5201 = vadd.f32 %v4505, %v5200
    %v5202 = vpop.f32.mrb[0].mxu0
    %5203 = vmatprep.mubr.bf16.mxu0 %v4762
    %5204 = vmatmul.mubr.bf16.gmra.mrb[0].mxu0 %v4761
    %v5205 = vpop.f32.mrb[0].mxu0
    %v5206 = vadd.f32 %v4505, %v5205
    %v5207 = vpop.f32.mrb[0].mxu0
    %v5208 = vpop.f32.mrb[0].mxu0
    %v5209 = vadd.f32 %v4505, %v5208
    %v5210 = vpop.f32.mrb[0].mxu0
    %5211 = vdwg.mxu0
    %v5212 = vxor.u32 %v4958, 2147483648
    %v5213 = vxor.u32 %v4961, 2147483648
    %v5214 = vxor.u32 %v4966, 2147483648
    %v5215 = vxor.u32 %v4969, 2147483648
    %v5216 = vxor.u32 %v4974, 2147483648
    %v5217 = vxor.u32 %v4977, 2147483648
    %v5218 = vxor.u32 %v4982, 2147483648
    %v5219 = vxor.u32 %v4985, 2147483648
    %v5220 = vxor.u32 %v4990, 2147483648
    %v5221 = vxor.u32 %v4993, 2147483648
    %v5222 = vxor.u32 %v4998, 2147483648
    %v5223 = vxor.u32 %v5001, 2147483648
    %v5224 = vxor.u32 %v5006, 2147483648
    %v5225 = vxor.u32 %v5009, 2147483648
    %v5226 = vxor.u32 %v5014, 2147483648
    %v5227 = vxor.u32 %v5017, 2147483648
    %v5228 = vxor.u32 %v5022, 2147483648
    %v5229 = vxor.u32 %v5025, 2147483648
    %v5230 = vxor.u32 %v5030, 2147483648
    %v5231 = vxor.u32 %v5033, 2147483648
    %v5232 = vxor.u32 %v5038, 2147483648
    %v5233 = vxor.u32 %v5041, 2147483648
    %v5234 = vxor.u32 %v5046, 2147483648
    %v5235 = vxor.u32 %v5049, 2147483648
    %v5236 = vxor.u32 %v5054, 2147483648
    %v5237 = vxor.u32 %v5057, 2147483648
    %v5238 = vxor.u32 %v5062, 2147483648
    %v5239 = vxor.u32 %v5065, 2147483648
    %v5240 = vxor.u32 %v5070, 2147483648
    %v5241 = vxor.u32 %v5073, 2147483648
    %v5242 = vxor.u32 %v5078, 2147483648
    %v5243 = vxor.u32 %v5081, 2147483648
    %v5244 = vxor.u32 %v5086, 2147483648
    %v5245 = vxor.u32 %v5089, 2147483648
    %v5246 = vxor.u32 %v5094, 2147483648
    %v5247 = vxor.u32 %v5097, 2147483648
    %v5248 = vxor.u32 %v5102, 2147483648
    %v5249 = vxor.u32 %v5105, 2147483648
    %v5250 = vxor.u32 %v5110, 2147483648
    %v5251 = vxor.u32 %v5113, 2147483648
    %v5252 = vxor.u32 %v5118, 2147483648
    %v5253 = vxor.u32 %v5121, 2147483648
    %v5254 = vxor.u32 %v5126, 2147483648
    %v5255 = vxor.u32 %v5129, 2147483648
    %v5256 = vxor.u32 %v5134, 2147483648
    %v5257 = vxor.u32 %v5137, 2147483648
    %v5258 = vxor.u32 %v5142, 2147483648
    %v5259 = vxor.u32 %v5145, 2147483648
    %v5260 = vxor.u32 %v5150, 2147483648
    %v5261 = vxor.u32 %v5153, 2147483648
    %v5262 = vxor.u32 %v5158, 2147483648
    %v5263 = vxor.u32 %v5161, 2147483648
    %v5264 = vxor.u32 %v5166, 2147483648
    %v5265 = vxor.u32 %v5169, 2147483648
    %v5266 = vxor.u32 %v5174, 2147483648
    %v5267 = vxor.u32 %v5177, 2147483648
    %v5268 = vxor.u32 %v5182, 2147483648
    %v5269 = vxor.u32 %v5185, 2147483648
    %v5270 = vxor.u32 %v5190, 2147483648
    %v5271 = vxor.u32 %v5193, 2147483648
    %v5272 = vxor.u32 %v5198, 2147483648
    %v5273 = vxor.u32 %v5201, 2147483648
    %v5274 = vxor.u32 %v5206, 2147483648
    %v5275 = vxor.u32 %v5209, 2147483648
    %v5276 = vmul.f32 %v5212, 1.442695
    %v5277 = vpow.pop %v5276
    %v5278 = vmul.f32 %v5213, 1.442695
    %v5279 = vpow.pop %v5278
    %v5280 = vmul.f32 %v5214, 1.442695
    %v5281 = vpow.pop %v5280
    %v5282 = vmul.f32 %v5215, 1.442695
    %v5283 = vpow.pop %v5282
    %v5284 = vmul.f32 %v5216, 1.442695
    %v5285 = vpow.pop %v5284
    %v5286 = vmul.f32 %v5217, 1.442695
    %v5287 = vpow.pop %v5286
    %v5288 = vmul.f32 %v5218, 1.442695
    %v5289 = vpow.pop %v5288
    %v5290 = vmul.f32 %v5219, 1.442695
    %v5291 = vpow.pop %v5290
    %v5292 = vmul.f32 %v5220, 1.442695
    %v5293 = vpow.pop %v5292
    %v5294 = vmul.f32 %v5221, 1.442695
    %v5295 = vpow.pop %v5294
    %v5296 = vmul.f32 %v5222, 1.442695
    %v5297 = vpow.pop %v5296
    %v5298 = vmul.f32 %v5223, 1.442695
    %v5299 = vpow.pop %v5298
    %v5300 = vmul.f32 %v5224, 1.442695
    %v5301 = vpow.pop %v5300
    %v5302 = vmul.f32 %v5225, 1.442695
    %v5303 = vpow.pop %v5302
    %v5304 = vmul.f32 %v5226, 1.442695
    %v5305 = vpow.pop %v5304
    %v5306 = vmul.f32 %v5227, 1.442695
    %v5307 = vpow.pop %v5306
    %v5308 = vmul.f32 %v5228, 1.442695
    %v5309 = vpow.pop %v5308
    %v5310 = vmul.f32 %v5229, 1.442695
    %v5311 = vpow.pop %v5310
    %v5312 = vmul.f32 %v5230, 1.442695
    %v5313 = vpow.pop %v5312
    %v5314 = vmul.f32 %v5231, 1.442695
    %v5315 = vpow.pop %v5314
    %v5316 = vmul.f32 %v5232, 1.442695
    %v5317 = vpow.pop %v5316
    %v5318 = vmul.f32 %v5233, 1.442695
    %v5319 = vpow.pop %v5318
    %v5320 = vmul.f32 %v5234, 1.442695
    %v5321 = vpow.pop %v5320
    %v5322 = vmul.f32 %v5235, 1.442695
    %v5323 = vpow.pop %v5322
    %v5324 = vmul.f32 %v5236, 1.442695
    %v5325 = vpow.pop %v5324
    %v5326 = vmul.f32 %v5237, 1.442695
    %v5327 = vpow.pop %v5326
    %v5328 = vmul.f32 %v5238, 1.442695
    %v5329 = vpow.pop %v5328
    %v5330 = vmul.f32 %v5239, 1.442695
    %v5331 = vpow.pop %v5330
    %v5332 = vmul.f32 %v5240, 1.442695
    %v5333 = vpow.pop %v5332
    %v5334 = vmul.f32 %v5241, 1.442695
    %v5335 = vpow.pop %v5334
    %v5336 = vmul.f32 %v5242, 1.442695
    %v5337 = vpow.pop %v5336
    %v5338 = vmul.f32 %v5243, 1.442695
    %v5339 = vpow.pop %v5338
    %v5340 = vmul.f32 %v5244, 1.442695
    %v5341 = vpow.pop %v5340
    %v5342 = vmul.f32 %v5245, 1.442695
    %v5343 = vpow.pop %v5342
    %v5344 = vmul.f32 %v5246, 1.442695
    %v5345 = vpow.pop %v5344
    %v5346 = vmul.f32 %v5247, 1.442695
    %v5347 = vpow.pop %v5346
    %v5348 = vmul.f32 %v5248, 1.442695
    %v5349 = vpow.pop %v5348
    %v5350 = vmul.f32 %v5249, 1.442695
    %v5351 = vpow.pop %v5350
    %v5352 = vmul.f32 %v5250, 1.442695
    %v5353 = vpow.pop %v5352
    %v5354 = vmul.f32 %v5251, 1.442695
    %v5355 = vpow.pop %v5354
    %v5356 = vmul.f32 %v5252, 1.442695
    %v5357 = vpow.pop %v5356
    %v5358 = vmul.f32 %v5253, 1.442695
    %v5359 = vpow.pop %v5358
    %v5360 = vmul.f32 %v5254, 1.442695
    %v5361 = vpow.pop %v5360
    %v5362 = vmul.f32 %v5255, 1.442695
    %v5363 = vpow.pop %v5362
    %v5364 = vmul.f32 %v5256, 1.442695
    %v5365 = vpow.pop %v5364
    %v5366 = vmul.f32 %v5257, 1.442695
    %v5367 = vpow.pop %v5366
    %v5368 = vmul.f32 %v5258, 1.442695
    %v5369 = vpow.pop %v5368
    %v5370 = vmul.f32 %v5259, 1.442695
    %v5371 = vpow.pop %v5370
    %v5372 = vmul.f32 %v5260, 1.442695
    %v5373 = vpow.pop %v5372
    %v5374 = vmul.f32 %v5261, 1.442695
    %v5375 = vpow.pop %v5374
    %v5376 = vmul.f32 %v5262, 1.442695
    %v5377 = vpow.pop %v5376
    %v5378 = vmul.f32 %v5263, 1.442695
    %v5379 = vpow.pop %v5378
    %v5380 = vmul.f32 %v5264, 1.442695
    %v5381 = vpow.pop %v5380
    %v5382 = vmul.f32 %v5265, 1.442695
    %v5383 = vpow.pop %v5382
    %v5384 = vmul.f32 %v5266, 1.442695
    %v5385 = vpow.pop %v5384
    %v5386 = vmul.f32 %v5267, 1.442695
    %v5387 = vpow.pop %v5386
    %v5388 = vmul.f32 %v5268, 1.442695
    %v5389 = vpow.pop %v5388
    %v5390 = vmul.f32 %v5269, 1.442695
    %v5391 = vpow.pop %v5390
    %v5392 = vmul.f32 %v5270, 1.442695
    %v5393 = vpow.pop %v5392
    %v5394 = vmul.f32 %v5271, 1.442695
    %v5395 = vpow.pop %v5394
    %v5396 = vmul.f32 %v5272, 1.442695
    %v5397 = vpow.pop %v5396
    %v5398 = vmul.f32 %v5273, 1.442695
    %v5399 = vpow.pop %v5398
    %v5400 = vmul.f32 %v5274, 1.442695
    %v5401 = vpow.pop %v5400
    %v5402 = vmul.f32 %v5275, 1.442695
    %v5403 = vpow.pop %v5402
    %v5404 = vadd.f32 %v5277, 1.0
    %v5405 = vadd.f32 %v5279, 1.0
    %v5406 = vadd.f32 %v5281, 1.0
    %v5407 = vadd.f32 %v5283, 1.0
    %v5408 = vadd.f32 %v5285, 1.0
    %v5409 = vadd.f32 %v5287, 1.0
    %v5410 = vadd.f32 %v5289, 1.0
    %v5411 = vadd.f32 %v5291, 1.0
    %v5412 = vadd.f32 %v5293, 1.0
    %v5413 = vadd.f32 %v5295, 1.0
    %v5414 = vadd.f32 %v5297, 1.0
    %v5415 = vadd.f32 %v5299, 1.0
    %v5416 = vadd.f32 %v5301, 1.0
    %v5417 = vadd.f32 %v5303, 1.0
    %v5418 = vadd.f32 %v5305, 1.0
    %v5419 = vadd.f32 %v5307, 1.0
    %v5420 = vadd.f32 %v5309, 1.0
    %v5421 = vadd.f32 %v5311, 1.0
    %v5422 = vadd.f32 %v5313, 1.0
    %v5423 = vadd.f32 %v5315, 1.0
    %v5424 = vadd.f32 %v5317, 1.0
    %v5425 = vadd.f32 %v5319, 1.0
    %v5426 = vadd.f32 %v5321, 1.0
    %v5427 = vadd.f32 %v5323, 1.0
    %v5428 = vadd.f32 %v5325, 1.0
    %v5429 = vadd.f32 %v5327, 1.0
    %v5430 = vadd.f32 %v5329, 1.0
    %v5431 = vadd.f32 %v5331, 1.0
    %v5432 = vadd.f32 %v5333, 1.0
    %v5433 = vadd.f32 %v5335, 1.0
    %v5434 = vadd.f32 %v5337, 1.0
    %v5435 = vadd.f32 %v5339, 1.0
    %v5436 = vadd.f32 %v5341, 1.0
    %v5437 = vadd.f32 %v5343, 1.0
    %v5438 = vadd.f32 %v5345, 1.0
    %v5439 = vadd.f32 %v5347, 1.0
    %v5440 = vadd.f32 %v5349, 1.0
    %v5441 = vadd.f32 %v5351, 1.0
    %v5442 = vadd.f32 %v5353, 1.0
    %v5443 = vadd.f32 %v5355, 1.0
    %v5444 = vadd.f32 %v5357, 1.0
    %v5445 = vadd.f32 %v5359, 1.0
    %v5446 = vadd.f32 %v5361, 1.0
    %v5447 = vadd.f32 %v5363, 1.0
    %v5448 = vadd.f32 %v5365, 1.0
    %v5449 = vadd.f32 %v5367, 1.0
    %v5450 = vadd.f32 %v5369, 1.0
    %v5451 = vadd.f32 %v5371, 1.0
    %v5452 = vadd.f32 %v5373, 1.0
    %v5453 = vadd.f32 %v5375, 1.0
    %v5454 = vadd.f32 %v5377, 1.0
    %v5455 = vadd.f32 %v5379, 1.0
    %v5456 = vadd.f32 %v5381, 1.0
    %v5457 = vadd.f32 %v5383, 1.0
    %v5458 = vadd.f32 %v5385, 1.0
    %v5459 = vadd.f32 %v5387, 1.0
    %v5460 = vadd.f32 %v5389, 1.0
    %v5461 = vadd.f32 %v5391, 1.0
    %v5462 = vadd.f32 %v5393, 1.0
    %v5463 = vadd.f32 %v5395, 1.0
    %v5464 = vadd.f32 %v5397, 1.0
    %v5465 = vadd.f32 %v5399, 1.0
    %v5466 = vadd.f32 %v5401, 1.0
    %v5467 = vadd.f32 %v5403, 1.0
    %v5468 = vrcp.pop %v5404
    %v5469 = vmul.f32 1.0, %v5468
    %v5470 = vrcp.pop %v5405
    %v5471 = vmul.f32 1.0, %v5470
    %v5472 = vrcp.pop %v5406
    %v5473 = vmul.f32 1.0, %v5472
    %v5474 = vrcp.pop %v5407
    %v5475 = vmul.f32 1.0, %v5474
    %v5476 = vrcp.pop %v5408
    %v5477 = vmul.f32 1.0, %v5476
    %v5478 = vrcp.pop %v5409
    %v5479 = vmul.f32 1.0, %v5478
    %v5480 = vrcp.pop %v5410
    %v5481 = vmul.f32 1.0, %v5480
    %v5482 = vrcp.pop %v5411
    %v5483 = vmul.f32 1.0, %v5482
    %v5484 = vrcp.pop %v5412
    %v5485 = vmul.f32 1.0, %v5484
    %v5486 = vrcp.pop %v5413
    %v5487 = vmul.f32 1.0, %v5486
    %v5488 = vrcp.pop %v5414
    %v5489 = vmul.f32 1.0, %v5488
    %v5490 = vrcp.pop %v5415
    %v5491 = vmul.f32 1.0, %v5490
    %v5492 = vrcp.pop %v5416
    %v5493 = vmul.f32 1.0, %v5492
    %v5494 = vrcp.pop %v5417
    %v5495 = vmul.f32 1.0, %v5494
    %v5496 = vrcp.pop %v5418
    %v5497 = vmul.f32 1.0, %v5496
    %v5498 = vrcp.pop %v5419
    %v5499 = vmul.f32 1.0, %v5498
    %v5500 = vrcp.pop %v5420
    %v5501 = vmul.f32 1.0, %v5500
    %v5502 = vrcp.pop %v5421
    %v5503 = vmul.f32 1.0, %v5502
    %v5504 = vrcp.pop %v5422
    %v5505 = vmul.f32 1.0, %v5504
    %v5506 = vrcp.pop %v5423
    %v5507 = vmul.f32 1.0, %v5506
    %v5508 = vrcp.pop %v5424
    %v5509 = vmul.f32 1.0, %v5508
    %v5510 = vrcp.pop %v5425
    %v5511 = vmul.f32 1.0, %v5510
    %v5512 = vrcp.pop %v5426
    %v5513 = vmul.f32 1.0, %v5512
    %v5514 = vrcp.pop %v5427
    %v5515 = vmul.f32 1.0, %v5514
    %v5516 = vrcp.pop %v5428
    %v5517 = vmul.f32 1.0, %v5516
    %v5518 = vrcp.pop %v5429
    %v5519 = vmul.f32 1.0, %v5518
    %v5520 = vrcp.pop %v5430
    %v5521 = vmul.f32 1.0, %v5520
    %v5522 = vrcp.pop %v5431
    %v5523 = vmul.f32 1.0, %v5522
    %v5524 = vrcp.pop %v5432
    %v5525 = vmul.f32 1.0, %v5524
    %v5526 = vrcp.pop %v5433
    %v5527 = vmul.f32 1.0, %v5526
    %v5528 = vrcp.pop %v5434
    %v5529 = vmul.f32 1.0, %v5528
    %v5530 = vrcp.pop %v5435
    %v5531 = vmul.f32 1.0, %v5530
    %v5532 = vrcp.pop %v5436
    %v5533 = vmul.f32 1.0, %v5532
    %v5534 = vrcp.pop %v5437
    %v5535 = vmul.f32 1.0, %v5534
    %v5536 = vrcp.pop %v5438
    %v5537 = vmul.f32 1.0, %v5536
    %v5538 = vrcp.pop %v5439
    %v5539 = vmul.f32 1.0, %v5538
    %v5540 = vrcp.pop %v5440
    %v5541 = vmul.f32 1.0, %v5540
    %v5542 = vrcp.pop %v5441
    %v5543 = vmul.f32 1.0, %v5542
    %v5544 = vrcp.pop %v5442
    %v5545 = vmul.f32 1.0, %v5544
    %v5546 = vrcp.pop %v5443
    %v5547 = vmul.f32 1.0, %v5546
    %v5548 = vrcp.pop %v5444
    %v5549 = vmul.f32 1.0, %v5548
    %v5550 = vrcp.pop %v5445
    %v5551 = vmul.f32 1.0, %v5550
    %v5552 = vrcp.pop %v5446
    %v5553 = vmul.f32 1.0, %v5552
    %v5554 = vrcp.pop %v5447
    %v5555 = vmul.f32 1.0, %v5554
    %v5556 = vrcp.pop %v5448
    %v5557 = vmul.f32 1.0, %v5556
    %v5558 = vrcp.pop %v5449
    %v5559 = vmul.f32 1.0, %v5558
    %v5560 = vrcp.pop %v5450
    %v5561 = vmul.f32 1.0, %v5560
    %v5562 = vrcp.pop %v5451
    %v5563 = vmul.f32 1.0, %v5562
    %v5564 = vrcp.pop %v5452
    %v5565 = vmul.f32 1.0, %v5564
    %v5566 = vrcp.pop %v5453
    %v5567 = vmul.f32 1.0, %v5566
    %v5568 = vrcp.pop %v5454
    %v5569 = vmul.f32 1.0, %v5568
    %v5570 = vrcp.pop %v5455
    %v5571 = vmul.f32 1.0, %v5570
    %v5572 = vrcp.pop %v5456
    %v5573 = vmul.f32 1.0, %v5572
    %v5574 = vrcp.pop %v5457
    %v5575 = vmul.f32 1.0, %v5574
    %v5576 = vrcp.pop %v5458
    %v5577 = vmul.f32 1.0, %v5576
    %v5578 = vrcp.pop %v5459
    %v5579 = vmul.f32 1.0, %v5578
    %v5580 = vrcp.pop %v5460
    %v5581 = vmul.f32 1.0, %v5580
    %v5582 = vrcp.pop %v5461
    %v5583 = vmul.f32 1.0, %v5582
    %v5584 = vrcp.pop %v5462
    %v5585 = vmul.f32 1.0, %v5584
    %v5586 = vrcp.pop %v5463
    %v5587 = vmul.f32 1.0, %v5586
    %v5588 = vrcp.pop %v5464
    %v5589 = vmul.f32 1.0, %v5588
    %v5590 = vrcp.pop %v5465
    %v5591 = vmul.f32 1.0, %v5590
    %v5592 = vrcp.pop %v5466
    %v5593 = vmul.f32 1.0, %v5592
    %v5594 = vrcp.pop %v5467
    %v5595 = vmul.f32 1.0, %v5594
    %v5596 = vmul.f32 %v4958, %v5469
    %v5597 = vmul.f32 %v4961, %v5471
    %v5598 = vmul.f32 %v4966, %v5473
    %v5599 = vmul.f32 %v4969, %v5475
    %v5600 = vmul.f32 %v4974, %v5477
    %v5601 = vmul.f32 %v4977, %v5479
    %v5602 = vmul.f32 %v4982, %v5481
    %v5603 = vmul.f32 %v4985, %v5483
    %v5604 = vmul.f32 %v4990, %v5485
    %v5605 = vmul.f32 %v4993, %v5487
    %v5606 = vmul.f32 %v4998, %v5489
    %v5607 = vmul.f32 %v5001, %v5491
    %v5608 = vmul.f32 %v5006, %v5493
    %v5609 = vmul.f32 %v5009, %v5495
    %v5610 = vmul.f32 %v5014, %v5497
    %v5611 = vmul.f32 %v5017, %v5499
    %v5612 = vmul.f32 %v5022, %v5501
    %v5613 = vmul.f32 %v5025, %v5503
    %v5614 = vmul.f32 %v5030, %v5505
    %v5615 = vmul.f32 %v5033, %v5507
    %v5616 = vmul.f32 %v5038, %v5509
    %v5617 = vmul.f32 %v5041, %v5511
    %v5618 = vmul.f32 %v5046, %v5513
    %v5619 = vmul.f32 %v5049, %v5515
    %v5620 = vmul.f32 %v5054, %v5517
    %v5621 = vmul.f32 %v5057, %v5519
    %v5622 = vmul.f32 %v5062, %v5521
    %v5623 = vmul.f32 %v5065, %v5523
    %v5624 = vmul.f32 %v5070, %v5525
    %v5625 = vmul.f32 %v5073, %v5527
    %v5626 = vmul.f32 %v5078, %v5529
    %v5627 = vmul.f32 %v5081, %v5531
    %v5628 = vmul.f32 %v5086, %v5533
    %v5629 = vmul.f32 %v5089, %v5535
    %v5630 = vmul.f32 %v5094, %v5537
    %v5631 = vmul.f32 %v5097, %v5539
    %v5632 = vmul.f32 %v5102, %v5541
    %v5633 = vmul.f32 %v5105, %v5543
    %v5634 = vmul.f32 %v5110, %v5545
    %v5635 = vmul.f32 %v5113, %v5547
    %v5636 = vmul.f32 %v5118, %v5549
    %v5637 = vmul.f32 %v5121, %v5551
    %v5638 = vmul.f32 %v5126, %v5553
    %v5639 = vmul.f32 %v5129, %v5555
    %v5640 = vmul.f32 %v5134, %v5557
    %v5641 = vmul.f32 %v5137, %v5559
    %v5642 = vmul.f32 %v5142, %v5561
    %v5643 = vmul.f32 %v5145, %v5563
    %v5644 = vmul.f32 %v5150, %v5565
    %v5645 = vmul.f32 %v5153, %v5567
    %v5646 = vmul.f32 %v5158, %v5569
    %v5647 = vmul.f32 %v5161, %v5571
    %v5648 = vmul.f32 %v5166, %v5573
    %v5649 = vmul.f32 %v5169, %v5575
    %v5650 = vmul.f32 %v5174, %v5577
    %v5651 = vmul.f32 %v5177, %v5579
    %v5652 = vmul.f32 %v5182, %v5581
    %v5653 = vmul.f32 %v5185, %v5583
    %v5654 = vmul.f32 %v5190, %v5585
    %v5655 = vmul.f32 %v5193, %v5587
    %v5656 = vmul.f32 %v5198, %v5589
    %v5657 = vmul.f32 %v5201, %v5591
    %v5658 = vmul.f32 %v5206, %v5593
    %v5659 = vmul.f32 %v5209, %v5595
    %v5660 = vpack.c.bf16 %v5597, %v5596
    %v5661 = vpack.c.bf16 %v5599, %v5598
    %v5662 = vpack.c.bf16 %v5601, %v5600
    %v5663 = vpack.c.bf16 %v5603, %v5602
    %v5664 = vpack.c.bf16 %v5605, %v5604
    %v5665 = vpack.c.bf16 %v5607, %v5606
    %v5666 = vpack.c.bf16 %v5609, %v5608
    %v5667 = vpack.c.bf16 %v5611, %v5610
    %v5668 = vpack.c.bf16 %v5613, %v5612
    %v5669 = vpack.c.bf16 %v5615, %v5614
    %v5670 = vpack.c.bf16 %v5617, %v5616
    %v5671 = vpack.c.bf16 %v5619, %v5618
    %v5672 = vpack.c.bf16 %v5621, %v5620
    %v5673 = vpack.c.bf16 %v5623, %v5622
    %v5674 = vpack.c.bf16 %v5625, %v5624
    %v5675 = vpack.c.bf16 %v5627, %v5626
    %v5676 = vpack.c.bf16 %v5629, %v5628
    %v5677 = vpack.c.bf16 %v5631, %v5630
    %v5678 = vpack.c.bf16 %v5633, %v5632
    %v5679 = vpack.c.bf16 %v5635, %v5634
    %v5680 = vpack.c.bf16 %v5637, %v5636
    %v5681 = vpack.c.bf16 %v5639, %v5638
    %v5682 = vpack.c.bf16 %v5641, %v5640
    %v5683 = vpack.c.bf16 %v5643, %v5642
    %v5684 = vpack.c.bf16 %v5645, %v5644
    %v5685 = vpack.c.bf16 %v5647, %v5646
    %v5686 = vpack.c.bf16 %v5649, %v5648
    %v5687 = vpack.c.bf16 %v5651, %v5650
    %v5688 = vpack.c.bf16 %v5653, %v5652
    %v5689 = vpack.c.bf16 %v5655, %v5654
    %v5690 = vpack.c.bf16 %v5657, %v5656
    %v5691 = vpack.c.bf16 %v5659, %v5658
    %s5692 = smul.u32 4, 16
    %s5693 = smul.u32 %s5692, 1
    %s5694 = sshll.u32 %s5693, 4
    %5695 = dma.done %s179, %s5694
    %s5696 = smul.u32 %s3503, 1
    %s5697 = sshll.u32 %s5696, 4
    %5698 = dma.done %s191, %s5697
    %v5699 = vld [vmem:[#allocation5] sm:$0xff]
    %v5700 = vld [vmem:[#allocation5 + $0x8] sm:$0xff]
    %v5701 = vld [vmem:[#allocation5 + $0x10] sm:$0xff]
    %v5702 = vld [vmem:[#allocation5 + $0x18] sm:$0xff]
    %v5703 = vld [vmem:[#allocation5 + $0x20] sm:$0xff]
    %v5704 = vld [vmem:[#allocation5 + $0x28] sm:$0xff]
    %v5705 = vld [vmem:[#allocation5 + $0x30] sm:$0xff]
    %v5706 = vld [vmem:[#allocation5 + $0x38] sm:$0xff]
    %v5707 = vld [vmem:[#allocation5 + $0x40] sm:$0xff]
    %v5708 = vld [vmem:[#allocation5 + $0x48] sm:$0xff]
    %v5709 = vld [vmem:[#allocation5 + $0x50] sm:$0xff]
    %v5710 = vld [vmem:[#allocation5 + $0x58] sm:$0xff]
    %v5711 = vld [vmem:[#allocation5 + $0x60] sm:$0xff]
    %v5712 = vld [vmem:[#allocation5 + $0x68] sm:$0xff]
    %v5713 = vld [vmem:[#allocation5 + $0x70] sm:$0xff]
    %v5714 = vld [vmem:[#allocation5 + $0x78] sm:$0xff]
    %5715 = vmatprep.subr.bf16.mxu0 0
    %5716 = vmatpush1.bf16.msra.mxu0 %v5699
    %5717 = vmatprep.subr.bf16.mxu0 0
    %5718 = vmatpush1.bf16.msra.mxu0 %v5700
    %5719 = vmatprep.subr.bf16.mxu0 0
    %5720 = vmatpush1.bf16.msra.mxu0 %v5701
    %5721 = vmatprep.subr.bf16.mxu0 0
    %5722 = vmatpush1.bf16.msra.mxu0 %v5702
    %5723 = vmatprep.subr.bf16.mxu0 0
    %5724 = vmatpush1.bf16.msra.mxu0 %v5703
    %5725 = vmatprep.subr.bf16.mxu0 0
    %5726 = vmatpush1.bf16.msra.mxu0 %v5704
    %5727 = vmatprep.subr.bf16.mxu0 0
    %5728 = vmatpush1.bf16.msra.mxu0 %v5705
    %5729 = vmatprep.subr.bf16.mxu0 0
    %5730 = vmatpush1.bf16.msra.mxu0 %v5706
    %5731 = vmatprep.subr.bf16.mxu0 0
    %5732 = vmatpush1.bf16.msra.mxu0 %v5707
    %5733 = vmatprep.subr.bf16.mxu0 0
    %5734 = vmatpush1.bf16.msra.mxu0 %v5708
    %5735 = vmatprep.subr.bf16.mxu0 0
    %5736 = vmatpush1.bf16.msra.mxu0 %v5709
    %5737 = vmatprep.subr.bf16.mxu0 0
    %5738 = vmatpush1.bf16.msra.mxu0 %v5710
    %5739 = vmatprep.subr.bf16.mxu0 0
    %5740 = vmatpush1.bf16.msra.mxu0 %v5711
    %5741 = vmatprep.subr.bf16.mxu0 0
    %5742 = vmatpush1.bf16.msra.mxu0 %v5712
    %5743 = vmatprep.subr.bf16.mxu0 0
    %5744 = vmatpush1.bf16.msra.mxu0 %v5713
    %5745 = vmatprep.subr.bf16.mxu0 0
    %5746 = vmatpush1.bf16.msra.mxu0 %v5714
    %5747 = vmatprep.mubr.bf16.mxu0 %v4293
    %5748 = vmatmul.mubr.bf16.gmra.mrb[0].mxu0 %v4292
    %v5749 = vpop.f32.mrb[0].mxu0
    %v5750 = vadd.f32 0.0, %v5749
    %v5751 = vpop.f32.mrb[0].mxu0
    %v5752 = vpop.f32.mrb[0].mxu0
    %v5753 = vadd.f32 0.0, %v5752
    %v5754 = vpop.f32.mrb[0].mxu0
    %5755 = vmatprep.mubr.bf16.mxu0 %v4295
    %5756 = vmatmul.mubr.bf16.gmra.mrb[0].mxu0 %v4294
    %v5757 = vpop.f32.mrb[0].mxu0
    %v5758 = vadd.f32 0.0, %v5757
    %v5759 = vpop.f32.mrb[0].mxu0
    %v5760 = vpop.f32.mrb[0].mxu0
    %v5761 = vadd.f32 0.0, %v5760
    %v5762 = vpop.f32.mrb[0].mxu0
    %5763 = vmatprep.mubr.bf16.mxu0 %v4297
    %5764 = vmatmul.mubr.bf16.gmra.mrb[0].mxu0 %v4296
    %v5765 = vpop.f32.mrb[0].mxu0
    %v5766 = vadd.f32 0.0, %v5765
    %v5767 = vpop.f32.mrb[0].mxu0
    %v5768 = vpop.f32.mrb[0].mxu0
    %v5769 = vadd.f32 0.0, %v5768
    %v5770 = vpop.f32.mrb[0].mxu0
    %5771 = vmatprep.mubr.bf16.mxu0 %v4299
    %5772 = vmatmul.mubr.bf16.gmra.mrb[0].mxu0 %v4298
    %v5773 = vpop.f32.mrb[0].mxu0
    %v5774 = vadd.f32 0.0, %v5773
    %v5775 = vpop.f32.mrb[0].mxu0
    %v5776 = vpop.f32.mrb[0].mxu0
    %v5777 = vadd.f32 0.0, %v5776
    %v5778 = vpop.f32.mrb[0].mxu0
    %5779 = vmatprep.mubr.bf16.mxu0 %v4301
    %5780 = vmatmul.mubr.bf16.gmra.mrb[0].mxu0 %v4300
    %v5781 = vpop.f32.mrb[0].mxu0
    %v5782 = vadd.f32 0.0, %v5781
    %v5783 = vpop.f32.mrb[0].mxu0
    %v5784 = vpop.f32.mrb[0].mxu0
    %v5785 = vadd.f32 0.0, %v5784
    %v5786 = vpop.f32.mrb[0].mxu0
    %5787 = vmatprep.mubr.bf16.mxu0 %v4303
    %5788 = vmatmul.mubr.bf16.gmra.mrb[0].mxu0 %v4302
    %v5789 = vpop.f32.mrb[0].mxu0
    %v5790 = vadd.f32 0.0, %v5789
    %v5791 = vpop.f32.mrb[0].mxu0
    %v5792 = vpop.f32.mrb[0].mxu0
    %v5793 = vadd.f32 0.0, %v5792
    %v5794 = vpop.f32.mrb[0].mxu0
    %5795 = vmatprep.mubr.bf16.mxu0 %v4305
    %5796 = vmatmul.mubr.bf16.gmra.mrb[0].mxu0 %v4304
    %v5797 = vpop.f32.mrb[0].mxu0
    %v5798 = vadd.f32 0.0, %v5797
    %v5799 = vpop.f32.mrb[0].mxu0
    %v5800 = vpop.f32.mrb[0].mxu0
    %v5801 = vadd.f32 0.0, %v5800
    %v5802 = vpop.f32.mrb[0].mxu0
    %5803 = vmatprep.mubr.bf16.mxu0 %v4307
    %5804 = vmatmul.mubr.bf16.gmra.mrb[0].mxu0 %v4306
    %v5805 = vpop.f32.mrb[0].mxu0
    %v5806 = vadd.f32 0.0, %v5805
    %v5807 = vpop.f32.mrb[0].mxu0
    %v5808 = vpop.f32.mrb[0].mxu0
    %v5809 = vadd.f32 0.0, %v5808
    %v5810 = vpop.f32.mrb[0].mxu0
    %5811 = vdwg.mxu0
    %v5812 = vld [vmem:[#allocation13] sm:$0xf]
    %v5813 = vld [vmem:[#allocation13 + $0x4] sm:$0xf]
    %v5814 = vld [vmem:[#allocation13 + $0x8] sm:$0xf]
    %v5815 = vld [vmem:[#allocation13 + $0xc] sm:$0xf]
    %v5816 = vld [vmem:[#allocation13 + $0x10] sm:$0xf]
    %v5817 = vld [vmem:[#allocation13 + $0x14] sm:$0xf]
    %v5818 = vld [vmem:[#allocation13 + $0x18] sm:$0xf]
    %v5819 = vld [vmem:[#allocation13 + $0x1c] sm:$0xf]
    %v5820 = vld [vmem:[#allocation13 + $0x20] sm:$0xf]
    %v5821 = vld [vmem:[#allocation13 + $0x24] sm:$0xf]
    %v5822 = vld [vmem:[#allocation13 + $0x28] sm:$0xf]
    %v5823 = vld [vmem:[#allocation13 + $0x2c] sm:$0xf]
    %v5824 = vld [vmem:[#allocation13 + $0x30] sm:$0xf]
    %v5825 = vld [vmem:[#allocation13 + $0x34] sm:$0xf]
    %v5826 = vld [vmem:[#allocation13 + $0x38] sm:$0xf]
    %v5827 = vld [vmem:[#allocation13 + $0x3c] sm:$0xf]
    %v5828 = vld [vmem:[#allocation13 + $0x40] sm:$0xf]
    %v5829 = vld [vmem:[#allocation13 + $0x44] sm:$0xf]
    %v5830 = vld [vmem:[#allocation13 + $0x48] sm:$0xf]
    %v5831 = vld [vmem:[#allocation13 + $0x4c] sm:$0xf]
    %v5832 = vld [vmem:[#allocation13 + $0x50] sm:$0xf]
    %v5833 = vld [vmem:[#allocation13 + $0x54] sm:$0xf]
    %v5834 = vld [vmem:[#allocation13 + $0x58] sm:$0xf]
    %v5835 = vld [vmem:[#allocation13 + $0x5c] sm:$0xf]
    %v5836 = vld [vmem:[#allocation13 + $0x60] sm:$0xf]
    %v5837 = vld [vmem:[#allocation13 + $0x64] sm:$0xf]
    %v5838 = vld [vmem:[#allocation13 + $0x68] sm:$0xf]
    %v5839 = vld [vmem:[#allocation13 + $0x6c] sm:$0xf]
    %v5840 = vld [vmem:[#allocation13 + $0x70] sm:$0xf]
    %v5841 = vld [vmem:[#allocation13 + $0x74] sm:$0xf]
    %v5842 = vld [vmem:[#allocation13 + $0x78] sm:$0xf]
    %v5843 = vld [vmem:[#allocation13 + $0x7c] sm:$0xf]
    %v5844 = vld [vmem:[#allocation13 + $0x80] sm:$0xf]
    %v5845 = vld [vmem:[#allocation13 + $0x84] sm:$0xf]
    %v5846 = vld [vmem:[#allocation13 + $0x88] sm:$0xf]
    %v5847 = vld [vmem:[#allocation13 + $0x8c] sm:$0xf]
    %v5848 = vld [vmem:[#allocation13 + $0x90] sm:$0xf]
    %v5849 = vld [vmem:[#allocation13 + $0x94] sm:$0xf]
    %v5850 = vld [vmem:[#allocation13 + $0x98] sm:$0xf]
    %v5851 = vld [vmem:[#allocation13 + $0x9c] sm:$0xf]
    %v5852 = vld [vmem:[#allocation13 + $0xa0] sm:$0xf]
    %v5853 = vld [vmem:[#allocation13 + $0xa4] sm:$0xf]
    %v5854 = vld [vmem:[#allocation13 + $0xa8] sm:$0xf]
    %v5855 = vld [vmem:[#allocation13 + $0xac] sm:$0xf]
    %v5856 = vld [vmem:[#allocation13 + $0xb0] sm:$0xf]
    %v5857 = vld [vmem:[#allocation13 + $0xb4] sm:$0xf]
    %v5858 = vld [vmem:[#allocation13 + $0xb8] sm:$0xf]
    %v5859 = vld [vmem:[#allocation13 + $0xbc] sm:$0xf]
    %v5860 = vld [vmem:[#allocation13 + $0xc0] sm:$0xf]
    %v5861 = vld [vmem:[#allocation13 + $0xc4] sm:$0xf]
    %v5862 = vld [vmem:[#allocation13 + $0xc8] sm:$0xf]
    %v5863 = vld [vmem:[#allocation13 + $0xcc] sm:$0xf]
    %v5864 = vld [vmem:[#allocation13 + $0xd0] sm:$0xf]
    %v5865 = vld [vmem:[#allocation13 + $0xd4] sm:$0xf]
    %v5866 = vld [vmem:[#allocation13 + $0xd8] sm:$0xf]
    %v5867 = vld [vmem:[#allocation13 + $0xdc] sm:$0xf]
    %v5868 = vld [vmem:[#allocation13 + $0xe0] sm:$0xf]
    %v5869 = vld [vmem:[#allocation13 + $0xe4] sm:$0xf]
    %v5870 = vld [vmem:[#allocation13 + $0xe8] sm:$0xf]
    %v5871 = vld [vmem:[#allocation13 + $0xec] sm:$0xf]
    %v5872 = vld [vmem:[#allocation13 + $0xf0] sm:$0xf]
    %v5873 = vld [vmem:[#allocation13 + $0xf4] sm:$0xf]
    %v5874 = vld [vmem:[#allocation13 + $0xf8] sm:$0xf]
    %v5875 = vld [vmem:[#allocation13 + $0xfc] sm:$0xf]
    %v5876 = vpack.c.bf16 %v5753, %v5750
    %v5877 = vpack.c.bf16 %v5761, %v5758
    %v5878 = vpack.c.bf16 %v5769, %v5766
    %v5879 = vpack.c.bf16 %v5777, %v5774
    %v5880 = vpack.c.bf16 %v5785, %v5782
    %v5881 = vpack.c.bf16 %v5793, %v5790
    %v5882 = vpack.c.bf16 %v5801, %v5798
    %v5883 = vpack.c.bf16 %v5809, %v5806
    %v5948 = vunpack.c.l.b16 %v5812
    %v5949 = vunpack.c.l.b16 %v5813
    %v5950 = vunpack.c.l.b16 %v5814
    %v5951 = vunpack.c.l.b16 %v5815
    %v5952 = vunpack.c.l.b16 %v5816
    %v5953 = vunpack.c.l.b16 %v5817
    %v5954 = vunpack.c.l.b16 %v5818
    %v5955 = vunpack.c.l.b16 %v5819
    %v5956 = vunpack.c.l.b16 %v5820
    %v5957 = vunpack.c.l.b16 %v5821
    %v5958 = vunpack.c.l.b16 %v5822
    %v5959 = vunpack.c.l.b16 %v5823
    %v5960 = vunpack.c.l.b16 %v5824
    %v5961 = vunpack.c.l.b16 %v5825
    %v5962 = vunpack.c.l.b16 %v5826
    %v5963 = vunpack.c.l.b16 %v5827
    %v5964 = vunpack.c.l.b16 %v5828
    %v5965 = vunpack.c.l.b16 %v5829
    %v5966 = vunpack.c.l.b16 %v5830
    %v5967 = vunpack.c.l.b16 %v5831
    %v5968 = vunpack.c.l.b16 %v5832
    %v5969 = vunpack.c.l.b16 %v5833
    %v5970 = vunpack.c.l.b16 %v5834
    %v5971 = vunpack.c.l.b16 %v5835
    %v5972 = vunpack.c.l.b16 %v5836
    %v5973 = vunpack.c.l.b16 %v5837
    %v5974 = vunpack.c.l.b16 %v5838
    %v5975 = vunpack.c.l.b16 %v5839
    %v5976 = vunpack.c.l.b16 %v5840
    %v5977 = vunpack.c.l.b16 %v5841
    %v5978 = vunpack.c.l.b16 %v5842
    %v5979 = vunpack.c.l.b16 %v5843
    %v5980 = vunpack.c.l.b16 %v5844
    %v5981 = vunpack.c.l.b16 %v5845
    %v5982 = vunpack.c.l.b16 %v5846
    %v5983 = vunpack.c.l.b16 %v5847
    %v5984 = vunpack.c.l.b16 %v5848
    %v5985 = vunpack.c.l.b16 %v5849
    %v5986 = vunpack.c.l.b16 %v5850
    %v5987 = vunpack.c.l.b16 %v5851
    %v5988 = vunpack.c.l.b16 %v5852
    %v5989 = vunpack.c.l.b16 %v5853
    %v5990 = vunpack.c.l.b16 %v5854
    %v5991 = vunpack.c.l.b16 %v5855
    %v5992 = vunpack.c.l.b16 %v5856
    %v5993 = vunpack.c.l.b16 %v5857
    %v5994 = vunpack.c.l.b16 %v5858
    %v5995 = vunpack.c.l.b16 %v5859
    %v5996 = vunpack.c.l.b16 %v5860
    %v5997 = vunpack.c.l.b16 %v5861
    %v5998 = vunpack.c.l.b16 %v5862
    %v5999 = vunpack.c.l.b16 %v5863
    %v6000 = vunpack.c.l.b16 %v5864
    %v6001 = vunpack.c.l.b16 %v5865
    %v6002 = vunpack.c.l.b16 %v5866
    %v6003 = vunpack.c.l.b16 %v5867
    %v6004 = vunpack.c.l.b16 %v5868
    %v6005 = vunpack.c.l.b16 %v5869
    %v6006 = vunpack.c.l.b16 %v5870
    %v6007 = vunpack.c.l.b16 %v5871
    %v6008 = vunpack.c.l.b16 %v5872
    %v6009 = vunpack.c.l.b16 %v5873
    %v6010 = vunpack.c.l.b16 %v5874
    %v6011 = vunpack.c.l.b16 %v5875
    %v6012 = vpack.c.b16 %v5949, %v5948
    %v6013 = vpack.c.b16 %v5951, %v5950
    %v6014 = vpack.c.b16 %v5953, %v5952
    %v6015 = vpack.c.b16 %v5955, %v5954
    %v6016 = vpack.c.b16 %v5957, %v5956
    %v6017 = vpack.c.b16 %v5959, %v5958
    %v6018 = vpack.c.b16 %v5961, %v5960
    %v6019 = vpack.c.b16 %v5963, %v5962
    %v6020 = vpack.c.b16 %v5965, %v5964
    %v6021 = vpack.c.b16 %v5967, %v5966
    %v6022 = vpack.c.b16 %v5969, %v5968
    %v6023 = vpack.c.b16 %v5971, %v5970
    %v6024 = vpack.c.b16 %v5973, %v5972
    %v6025 = vpack.c.b16 %v5975, %v5974
    %v6026 = vpack.c.b16 %v5977, %v5976
    %v6027 = vpack.c.b16 %v5979, %v5978
    %v6028 = vpack.c.b16 %v5981, %v5980
    %v6029 = vpack.c.b16 %v5983, %v5982
    %v6030 = vpack.c.b16 %v5985, %v5984
    %v6031 = vpack.c.b16 %v5987, %v5986
    %v6032 = vpack.c.b16 %v5989, %v5988
    %v6033 = vpack.c.b16 %v5991, %v5990
    %v6034 = vpack.c.b16 %v5993, %v5992
    %v6035 = vpack.c.b16 %v5995, %v5994
    %v6036 = vpack.c.b16 %v5997, %v5996
    %v6037 = vpack.c.b16 %v5999, %v5998
    %v6038 = vpack.c.b16 %v6001, %v6000
    %v6039 = vpack.c.b16 %v6003, %v6002
    %v6040 = vpack.c.b16 %v6005, %v6004
    %v6041 = vpack.c.b16 %v6007, %v6006
    %v6042 = vpack.c.b16 %v6009, %v6008
    %v6043 = vpack.c.b16 %v6011, %v6010
    %6076 = vmatprep.subr.bf16.mxu0 0
    %6077 = vmatpush1.bf16.msra.mxu0 %v5876
    %6078 = vmatprep.subr.bf16.mxu0 0
    %6079 = vmatpush1.bf16.msra.mxu0 %v5877
    %6080 = vmatprep.subr.bf16.mxu0 0
    %6081 = vmatpush1.bf16.msra.mxu0 %v5878
    %6082 = vmatprep.subr.bf16.mxu0 0
    %6083 = vmatpush1.bf16.msra.mxu0 %v5879
    %6084 = vmatprep.subr.bf16.mxu0 0
    %6085 = vmatpush1.bf16.msra.mxu0 %v5880
    %6086 = vmatprep.subr.bf16.mxu0 0
    %6087 = vmatpush1.bf16.msra.mxu0 %v5881
    %6088 = vmatprep.subr.bf16.mxu0 0
    %6089 = vmatpush1.bf16.msra.mxu0 %v5882
    %6090 = vmatprep.subr.bf16.mxu0 0
    %6091 = vmatpush1.bf16.msra.mxu0 %v5883
    %6092 = vmatprep.subr.bf16.mxu0 0
    %6093 = vmatpush1.bf16.msra.mxu0 0
    %6094 = vmatprep.subr.bf16.mxu0 0
    %6095 = vmatpush1.bf16.msra.mxu0 0
    %6096 = vmatprep.subr.bf16.mxu0 0
    %6097 = vmatpush1.bf16.msra.mxu0 0
    %6098 = vmatprep.subr.bf16.mxu0 0
    %6099 = vmatpush1.bf16.msra.mxu0 0
    %6100 = vmatprep.subr.bf16.mxu0 0
    %6101 = vmatpush1.bf16.msra.mxu0 0
    %6102 = vmatprep.subr.bf16.mxu0 0
    %6103 = vmatpush1.bf16.msra.mxu0 0
    %6104 = vmatprep.subr.bf16.mxu0 0
    %6105 = vmatpush1.bf16.msra.mxu0 0
    %6106 = vmatprep.subr.bf16.mxu0 0
    %6107 = vmatpush1.bf16.msra.mxu0 0
    %6108 = vmatprep.mubr.bf16.mxu0 0
    %6109 = vmatmul.mubr.bf16.gmra.mrb[0].mxu0 %v6012
    %v6110 = vpop.f32.mrb[0].mxu0
    %v6111 = vadd.f32 0.0, %v6110
    %v6112 = vpop.f32.mrb[0].mxu0
    %v6113 = vpop.f32.mrb[0].mxu0
    %v6114 = vadd.f32 0.0, %v6113
    %v6115 = vpop.f32.mrb[0].mxu0
    %6116 = vmatprep.mubr.bf16.mxu0 0
    %6117 = vmatmul.mubr.bf16.gmra.mrb[0].mxu0 %v6013
    %v6118 = vpop.f32.mrb[0].mxu0
    %v6119 = vadd.f32 0.0, %v6118
    %v6120 = vpop.f32.mrb[0].mxu0
    %v6121 = vpop.f32.mrb[0].mxu0
    %v6122 = vadd.f32 0.0, %v6121
    %v6123 = vpop.f32.mrb[0].mxu0
    %6124 = vmatprep.mubr.bf16.mxu0 0
    %6125 = vmatmul.mubr.bf16.gmra.mrb[0].mxu0 %v6014
    %v6126 = vpop.f32.mrb[0].mxu0
    %v6127 = vadd.f32 0.0, %v6126
    %v6128 = vpop.f32.mrb[0].mxu0
    %v6129 = vpop.f32.mrb[0].mxu0
    %v6130 = vadd.f32 0.0, %v6129
    %v6131 = vpop.f32.mrb[0].mxu0
    %6132 = vmatprep.mubr.bf16.mxu0 0
    %6133 = vmatmul.mubr.bf16.gmra.mrb[0].mxu0 %v6015
    %v6134 = vpop.f32.mrb[0].mxu0
    %v6135 = vadd.f32 0.0, %v6134
    %v6136 = vpop.f32.mrb[0].mxu0
    %v6137 = vpop.f32.mrb[0].mxu0
    %v6138 = vadd.f32 0.0, %v6137
    %v6139 = vpop.f32.mrb[0].mxu0
    %6140 = vmatprep.mubr.bf16.mxu0 0
    %6141 = vmatmul.mubr.bf16.gmra.mrb[0].mxu0 %v6016
    %v6142 = vpop.f32.mrb[0].mxu0
    %v6143 = vadd.f32 0.0, %v6142
    %v6144 = vpop.f32.mrb[0].mxu0
    %v6145 = vpop.f32.mrb[0].mxu0
    %v6146 = vadd.f32 0.0, %v6145
    %v6147 = vpop.f32.mrb[0].mxu0
    %6148 = vmatprep.mubr.bf16.mxu0 0
    %6149 = vmatmul.mubr.bf16.gmra.mrb[0].mxu0 %v6017
    %v6150 = vpop.f32.mrb[0].mxu0
    %v6151 = vadd.f32 0.0, %v6150
    %v6152 = vpop.f32.mrb[0].mxu0
    %v6153 = vpop.f32.mrb[0].mxu0
    %v6154 = vadd.f32 0.0, %v6153
    %v6155 = vpop.f32.mrb[0].mxu0
    %6156 = vmatprep.mubr.bf16.mxu0 0
    %6157 = vmatmul.mubr.bf16.gmra.mrb[0].mxu0 %v6018
    %v6158 = vpop.f32.mrb[0].mxu0
    %v6159 = vadd.f32 0.0, %v6158
    %v6160 = vpop.f32.mrb[0].mxu0
    %v6161 = vpop.f32.mrb[0].mxu0
    %v6162 = vadd.f32 0.0, %v6161
    %v6163 = vpop.f32.mrb[0].mxu0
    %6164 = vmatprep.mubr.bf16.mxu0 0
    %6165 = vmatmul.mubr.bf16.gmra.mrb[0].mxu0 %v6019
    %v6166 = vpop.f32.mrb[0].mxu0
    %v6167 = vadd.f32 0.0, %v6166
    %v6168 = vpop.f32.mrb[0].mxu0
    %v6169 = vpop.f32.mrb[0].mxu0
    %v6170 = vadd.f32 0.0, %v6169
    %v6171 = vpop.f32.mrb[0].mxu0
    %6172 = vmatprep.mubr.bf16.mxu0 0
    %6173 = vmatmul.mubr.bf16.gmra.mrb[0].mxu0 %v6020
    %v6174 = vpop.f32.mrb[0].mxu0
    %v6175 = vadd.f32 0.0, %v6174
    %v6176 = vpop.f32.mrb[0].mxu0
    %v6177 = vpop.f32.mrb[0].mxu0
    %v6178 = vadd.f32 0.0, %v6177
    %v6179 = vpop.f32.mrb[0].mxu0
    %6180 = vmatprep.mubr.bf16.mxu0 0
    %6181 = vmatmul.mubr.bf16.gmra.mrb[0].mxu0 %v6021
    %v6182 = vpop.f32.mrb[0].mxu0
    %v6183 = vadd.f32 0.0, %v6182
    %v6184 = vpop.f32.mrb[0].mxu0
    %v6185 = vpop.f32.mrb[0].mxu0
    %v6186 = vadd.f32 0.0, %v6185
    %v6187 = vpop.f32.mrb[0].mxu0
    %6188 = vmatprep.mubr.bf16.mxu0 0
    %6189 = vmatmul.mubr.bf16.gmra.mrb[0].mxu0 %v6022
    %v6190 = vpop.f32.mrb[0].mxu0
    %v6191 = vadd.f32 0.0, %v6190
    %v6192 = vpop.f32.mrb[0].mxu0
    %v6193 = vpop.f32.mrb[0].mxu0
    %v6194 = vadd.f32 0.0, %v6193
    %v6195 = vpop.f32.mrb[0].mxu0
    %6196 = vmatprep.mubr.bf16.mxu0 0
    %6197 = vmatmul.mubr.bf16.gmra.mrb[0].mxu0 %v6023
    %v6198 = vpop.f32.mrb[0].mxu0
    %v6199 = vadd.f32 0.0, %v6198
    %v6200 = vpop.f32.mrb[0].mxu0
    %v6201 = vpop.f32.mrb[0].mxu0
    %v6202 = vadd.f32 0.0, %v6201
    %v6203 = vpop.f32.mrb[0].mxu0
    %6204 = vmatprep.mubr.bf16.mxu0 0
    %6205 = vmatmul.mubr.bf16.gmra.mrb[0].mxu0 %v6024
    %v6206 = vpop.f32.mrb[0].mxu0
    %v6207 = vadd.f32 0.0, %v6206
    %v6208 = vpop.f32.mrb[0].mxu0
    %v6209 = vpop.f32.mrb[0].mxu0
    %v6210 = vadd.f32 0.0, %v6209
    %v6211 = vpop.f32.mrb[0].mxu0
    %6212 = vmatprep.mubr.bf16.mxu0 0
    %6213 = vmatmul.mubr.bf16.gmra.mrb[0].mxu0 %v6025
    %v6214 = vpop.f32.mrb[0].mxu0
    %v6215 = vadd.f32 0.0, %v6214
    %v6216 = vpop.f32.mrb[0].mxu0
    %v6217 = vpop.f32.mrb[0].mxu0
    %v6218 = vadd.f32 0.0, %v6217
    %v6219 = vpop.f32.mrb[0].mxu0
    %6220 = vmatprep.mubr.bf16.mxu0 0
    %6221 = vmatmul.mubr.bf16.gmra.mrb[0].mxu0 %v6026
    %v6222 = vpop.f32.mrb[0].mxu0
    %v6223 = vadd.f32 0.0, %v6222
    %v6224 = vpop.f32.mrb[0].mxu0
    %v6225 = vpop.f32.mrb[0].mxu0
    %v6226 = vadd.f32 0.0, %v6225
    %v6227 = vpop.f32.mrb[0].mxu0
    %6228 = vmatprep.mubr.bf16.mxu0 0
    %6229 = vmatmul.mubr.bf16.gmra.mrb[0].mxu0 %v6027
    %v6230 = vpop.f32.mrb[0].mxu0
    %v6231 = vadd.f32 0.0, %v6230
    %v6232 = vpop.f32.mrb[0].mxu0
    %v6233 = vpop.f32.mrb[0].mxu0
    %v6234 = vadd.f32 0.0, %v6233
    %v6235 = vpop.f32.mrb[0].mxu0
    %6236 = vmatprep.mubr.bf16.mxu0 0
    %6237 = vmatmul.mubr.bf16.gmra.mrb[0].mxu0 %v6028
    %v6238 = vpop.f32.mrb[0].mxu0
    %v6239 = vadd.f32 0.0, %v6238
    %v6240 = vpop.f32.mrb[0].mxu0
    %v6241 = vpop.f32.mrb[0].mxu0
    %v6242 = vadd.f32 0.0, %v6241
    %v6243 = vpop.f32.mrb[0].mxu0
    %6244 = vmatprep.mubr.bf16.mxu0 0
    %6245 = vmatmul.mubr.bf16.gmra.mrb[0].mxu0 %v6029
    %v6246 = vpop.f32.mrb[0].mxu0
    %v6247 = vadd.f32 0.0, %v6246
    %v6248 = vpop.f32.mrb[0].mxu0
    %v6249 = vpop.f32.mrb[0].mxu0
    %v6250 = vadd.f32 0.0, %v6249
    %v6251 = vpop.f32.mrb[0].mxu0
    %6252 = vmatprep.mubr.bf16.mxu0 0
    %6253 = vmatmul.mubr.bf16.gmra.mrb[0].mxu0 %v6030
    %v6254 = vpop.f32.mrb[0].mxu0
    %v6255 = vadd.f32 0.0, %v6254
    %v6256 = vpop.f32.mrb[0].mxu0
    %v6257 = vpop.f32.mrb[0].mxu0
    %v6258 = vadd.f32 0.0, %v6257
    %v6259 = vpop.f32.mrb[0].mxu0
    %6260 = vmatprep.mubr.bf16.mxu0 0
    %6261 = vmatmul.mubr.bf16.gmra.mrb[0].mxu0 %v6031
    %v6262 = vpop.f32.mrb[0].mxu0
    %v6263 = vadd.f32 0.0, %v6262
    %v6264 = vpop.f32.mrb[0].mxu0
    %v6265 = vpop.f32.mrb[0].mxu0
    %v6266 = vadd.f32 0.0, %v6265
    %v6267 = vpop.f32.mrb[0].mxu0
    %6268 = vmatprep.mubr.bf16.mxu0 0
    %6269 = vmatmul.mubr.bf16.gmra.mrb[0].mxu0 %v6032
    %v6270 = vpop.f32.mrb[0].mxu0
    %v6271 = vadd.f32 0.0, %v6270
    %v6272 = vpop.f32.mrb[0].mxu0
    %v6273 = vpop.f32.mrb[0].mxu0
    %v6274 = vadd.f32 0.0, %v6273
    %v6275 = vpop.f32.mrb[0].mxu0
    %6276 = vmatprep.mubr.bf16.mxu0 0
    %6277 = vmatmul.mubr.bf16.gmra.mrb[0].mxu0 %v6033
    %v6278 = vpop.f32.mrb[0].mxu0
    %v6279 = vadd.f32 0.0, %v6278
    %v6280 = vpop.f32.mrb[0].mxu0
    %v6281 = vpop.f32.mrb[0].mxu0
    %v6282 = vadd.f32 0.0, %v6281
    %v6283 = vpop.f32.mrb[0].mxu0
    %6284 = vmatprep.mubr.bf16.mxu0 0
    %6285 = vmatmul.mubr.bf16.gmra.mrb[0].mxu0 %v6034
    %v6286 = vpop.f32.mrb[0].mxu0
    %v6287 = vadd.f32 0.0, %v6286
    %v6288 = vpop.f32.mrb[0].mxu0
    %v6289 = vpop.f32.mrb[0].mxu0
    %v6290 = vadd.f32 0.0, %v6289
    %v6291 = vpop.f32.mrb[0].mxu0
    %6292 = vmatprep.mubr.bf16.mxu0 0
    %6293 = vmatmul.mubr.bf16.gmra.mrb[0].mxu0 %v6035
    %v6294 = vpop.f32.mrb[0].mxu0
    %v6295 = vadd.f32 0.0, %v6294
    %v6296 = vpop.f32.mrb[0].mxu0
    %v6297 = vpop.f32.mrb[0].mxu0
    %v6298 = vadd.f32 0.0, %v6297
    %v6299 = vpop.f32.mrb[0].mxu0
    %6300 = vmatprep.mubr.bf16.mxu0 0
    %6301 = vmatmul.mubr.bf16.gmra.mrb[0].mxu0 %v6036
    %v6302 = vpop.f32.mrb[0].mxu0
    %v6303 = vadd.f32 0.0, %v6302
    %v6304 = vpop.f32.mrb[0].mxu0
    %v6305 = vpop.f32.mrb[0].mxu0
    %v6306 = vadd.f32 0.0, %v6305
    %v6307 = vpop.f32.mrb[0].mxu0
    %6308 = vmatprep.mubr.bf16.mxu0 0
    %6309 = vmatmul.mubr.bf16.gmra.mrb[0].mxu0 %v6037
    %v6310 = vpop.f32.mrb[0].mxu0
    %v6311 = vadd.f32 0.0, %v6310
    %v6312 = vpop.f32.mrb[0].mxu0
    %v6313 = vpop.f32.mrb[0].mxu0
    %v6314 = vadd.f32 0.0, %v6313
    %v6315 = vpop.f32.mrb[0].mxu0
    %6316 = vmatprep.mubr.bf16.mxu0 0
    %6317 = vmatmul.mubr.bf16.gmra.mrb[0].mxu0 %v6038
    %v6318 = vpop.f32.mrb[0].mxu0
    %v6319 = vadd.f32 0.0, %v6318
    %v6320 = vpop.f32.mrb[0].mxu0
    %v6321 = vpop.f32.mrb[0].mxu0
    %v6322 = vadd.f32 0.0, %v6321
    %v6323 = vpop.f32.mrb[0].mxu0
    %6324 = vmatprep.mubr.bf16.mxu0 0
    %6325 = vmatmul.mubr.bf16.gmra.mrb[0].mxu0 %v6039
    %v6326 = vpop.f32.mrb[0].mxu0
    %v6327 = vadd.f32 0.0, %v6326
    %v6328 = vpop.f32.mrb[0].mxu0
    %v6329 = vpop.f32.mrb[0].mxu0
    %v6330 = vadd.f32 0.0, %v6329
    %v6331 = vpop.f32.mrb[0].mxu0
    %6332 = vmatprep.mubr.bf16.mxu0 0
    %6333 = vmatmul.mubr.bf16.gmra.mrb[0].mxu0 %v6040
    %v6334 = vpop.f32.mrb[0].mxu0
    %v6335 = vadd.f32 0.0, %v6334
    %v6336 = vpop.f32.mrb[0].mxu0
    %v6337 = vpop.f32.mrb[0].mxu0
    %v6338 = vadd.f32 0.0, %v6337
    %v6339 = vpop.f32.mrb[0].mxu0
    %6340 = vmatprep.mubr.bf16.mxu0 0
    %6341 = vmatmul.mubr.bf16.gmra.mrb[0].mxu0 %v6041
    %v6342 = vpop.f32.mrb[0].mxu0
    %v6343 = vadd.f32 0.0, %v6342
    %v6344 = vpop.f32.mrb[0].mxu0
    %v6345 = vpop.f32.mrb[0].mxu0
    %v6346 = vadd.f32 0.0, %v6345
    %v6347 = vpop.f32.mrb[0].mxu0
    %6348 = vmatprep.mubr.bf16.mxu0 0
    %6349 = vmatmul.mubr.bf16.gmra.mrb[0].mxu0 %v6042
    %v6350 = vpop.f32.mrb[0].mxu0
    %v6351 = vadd.f32 0.0, %v6350
    %v6352 = vpop.f32.mrb[0].mxu0
    %v6353 = vpop.f32.mrb[0].mxu0
    %v6354 = vadd.f32 0.0, %v6353
    %v6355 = vpop.f32.mrb[0].mxu0
    %6356 = vmatprep.mubr.bf16.mxu0 0
    %6357 = vmatmul.mubr.bf16.gmra.mrb[0].mxu0 %v6043
    %v6358 = vpop.f32.mrb[0].mxu0
    %v6359 = vadd.f32 0.0, %v6358
    %v6360 = vpop.f32.mrb[0].mxu0
    %v6361 = vpop.f32.mrb[0].mxu0
    %v6362 = vadd.f32 0.0, %v6361
    %v6363 = vpop.f32.mrb[0].mxu0
    %6364 = vdwg.mxu0
    %v6365 = vld [vmem:[#allocation4] sm:$0xff]
    %v6366 = vld [vmem:[#allocation4 + $0x8] sm:$0xff]
    %v6367 = vld [vmem:[#allocation4 + $0x10] sm:$0xff]
    %v6368 = vld [vmem:[#allocation4 + $0x18] sm:$0xff]
    %v6369 = vld [vmem:[#allocation4 + $0x20] sm:$0xff]
    %v6370 = vld [vmem:[#allocation4 + $0x28] sm:$0xff]
    %v6371 = vld [vmem:[#allocation4 + $0x30] sm:$0xff]
    %v6372 = vld [vmem:[#allocation4 + $0x38] sm:$0xff]
    %6373 = vmatprep.subr.bf16.mxu0 0
    %6374 = vmatpush1.bf16.msra.mxu0 %v6365
    %6375 = vmatprep.subr.bf16.mxu0 0
    %6376 = vmatpush1.bf16.msra.mxu0 %v6366
    %6377 = vmatprep.subr.bf16.mxu0 0
    %6378 = vmatpush1.bf16.msra.mxu0 %v6367
    %6379 = vmatprep.subr.bf16.mxu0 0
    %6380 = vmatpush1.bf16.msra.mxu0 %v6368
    %6381 = vmatprep.subr.bf16.mxu0 0
    %6382 = vmatpush1.bf16.msra.mxu0 %v6369
    %6383 = vmatprep.subr.bf16.mxu0 0
    %6384 = vmatpush1.bf16.msra.mxu0 %v6370
    %6385 = vmatprep.subr.bf16.mxu0 0
    %6386 = vmatpush1.bf16.msra.mxu0 %v6371
    %6387 = vmatprep.subr.bf16.mxu0 0
    %6388 = vmatpush1.bf16.msra.mxu0 %v6372
    %6389 = vmatprep.subr.bf16.mxu0 0
    %6390 = vmatpush1.bf16.msra.mxu0 0
    %6391 = vmatprep.subr.bf16.mxu0 0
    %6392 = vmatpush1.bf16.msra.mxu0 0
    %6393 = vmatprep.subr.bf16.mxu0 0
    %6394 = vmatpush1.bf16.msra.mxu0 0
    %6395 = vmatprep.subr.bf16.mxu0 0
    %6396 = vmatpush1.bf16.msra.mxu0 0
    %6397 = vmatprep.subr.bf16.mxu0 0
    %6398 = vmatpush1.bf16.msra.mxu0 0
    %6399 = vmatprep.subr.bf16.mxu0 0
    %6400 = vmatpush1.bf16.msra.mxu0 0
    %6401 = vmatprep.subr.bf16.mxu0 0
    %6402 = vmatpush1.bf16.msra.mxu0 0
    %6403 = vmatprep.subr.bf16.mxu0 0
    %6404 = vmatpush1.bf16.msra.mxu0 0
    %6405 = vmatprep.mubr.bf16.mxu0 0
    %6406 = vmatmul.mubr.bf16.gmra.mrb[0].mxu0 %v5660
    %v6407 = vpop.f32.mrb[0].mxu0
    %v6408 = vadd.f32 %v6111, %v6407
    %v6409 = vpop.f32.mrb[0].mxu0
    %v6410 = vpop.f32.mrb[0].mxu0
    %v6411 = vadd.f32 %v6114, %v6410
    %v6412 = vpop.f32.mrb[0].mxu0
    %6413 = vmatprep.mubr.bf16.mxu0 0
    %6414 = vmatmul.mubr.bf16.gmra.mrb[0].mxu0 %v5661
    %v6415 = vpop.f32.mrb[0].mxu0
    %v6416 = vadd.f32 %v6119, %v6415
    %v6417 = vpop.f32.mrb[0].mxu0
    %v6418 = vpop.f32.mrb[0].mxu0
    %v6419 = vadd.f32 %v6122, %v6418
    %v6420 = vpop.f32.mrb[0].mxu0
    %6421 = vmatprep.mubr.bf16.mxu0 0
    %6422 = vmatmul.mubr.bf16.gmra.mrb[0].mxu0 %v5662
    %v6423 = vpop.f32.mrb[0].mxu0
    %v6424 = vadd.f32 %v6127, %v6423
    %v6425 = vpop.f32.mrb[0].mxu0
    %v6426 = vpop.f32.mrb[0].mxu0
    %v6427 = vadd.f32 %v6130, %v6426
    %v6428 = vpop.f32.mrb[0].mxu0
    %6429 = vmatprep.mubr.bf16.mxu0 0
    %6430 = vmatmul.mubr.bf16.gmra.mrb[0].mxu0 %v5663
    %v6431 = vpop.f32.mrb[0].mxu0
    %v6432 = vadd.f32 %v6135, %v6431
    %v6433 = vpop.f32.mrb[0].mxu0
    %v6434 = vpop.f32.mrb[0].mxu0
    %v6435 = vadd.f32 %v6138, %v6434
    %v6436 = vpop.f32.mrb[0].mxu0
    %6437 = vmatprep.mubr.bf16.mxu0 0
    %6438 = vmatmul.mubr.bf16.gmra.mrb[0].mxu0 %v5664
    %v6439 = vpop.f32.mrb[0].mxu0
    %v6440 = vadd.f32 %v6143, %v6439
    %v6441 = vpop.f32.mrb[0].mxu0
    %v6442 = vpop.f32.mrb[0].mxu0
    %v6443 = vadd.f32 %v6146, %v6442
    %v6444 = vpop.f32.mrb[0].mxu0
    %6445 = vmatprep.mubr.bf16.mxu0 0
    %6446 = vmatmul.mubr.bf16.gmra.mrb[0].mxu0 %v5665
    %v6447 = vpop.f32.mrb[0].mxu0
    %v6448 = vadd.f32 %v6151, %v6447
    %v6449 = vpop.f32.mrb[0].mxu0
    %v6450 = vpop.f32.mrb[0].mxu0
    %v6451 = vadd.f32 %v6154, %v6450
    %v6452 = vpop.f32.mrb[0].mxu0
    %6453 = vmatprep.mubr.bf16.mxu0 0
    %6454 = vmatmul.mubr.bf16.gmra.mrb[0].mxu0 %v5666
    %v6455 = vpop.f32.mrb[0].mxu0
    %v6456 = vadd.f32 %v6159, %v6455
    %v6457 = vpop.f32.mrb[0].mxu0
    %v6458 = vpop.f32.mrb[0].mxu0
    %v6459 = vadd.f32 %v6162, %v6458
    %v6460 = vpop.f32.mrb[0].mxu0
    %6461 = vmatprep.mubr.bf16.mxu0 0
    %6462 = vmatmul.mubr.bf16.gmra.mrb[0].mxu0 %v5667
    %v6463 = vpop.f32.mrb[0].mxu0
    %v6464 = vadd.f32 %v6167, %v6463
    %v6465 = vpop.f32.mrb[0].mxu0
    %v6466 = vpop.f32.mrb[0].mxu0
    %v6467 = vadd.f32 %v6170, %v6466
    %v6468 = vpop.f32.mrb[0].mxu0
    %6469 = vmatprep.mubr.bf16.mxu0 0
    %6470 = vmatmul.mubr.bf16.gmra.mrb[0].mxu0 %v5668
    %v6471 = vpop.f32.mrb[0].mxu0
    %v6472 = vadd.f32 %v6175, %v6471
    %v6473 = vpop.f32.mrb[0].mxu0
    %v6474 = vpop.f32.mrb[0].mxu0
    %v6475 = vadd.f32 %v6178, %v6474
    %v6476 = vpop.f32.mrb[0].mxu0
    %6477 = vmatprep.mubr.bf16.mxu0 0
    %6478 = vmatmul.mubr.bf16.gmra.mrb[0].mxu0 %v5669
    %v6479 = vpop.f32.mrb[0].mxu0
    %v6480 = vadd.f32 %v6183, %v6479
    %v6481 = vpop.f32.mrb[0].mxu0
    %v6482 = vpop.f32.mrb[0].mxu0
    %v6483 = vadd.f32 %v6186, %v6482
    %v6484 = vpop.f32.mrb[0].mxu0
    %6485 = vmatprep.mubr.bf16.mxu0 0
    %6486 = vmatmul.mubr.bf16.gmra.mrb[0].mxu0 %v5670
    %v6487 = vpop.f32.mrb[0].mxu0
    %v6488 = vadd.f32 %v6191, %v6487
    %v6489 = vpop.f32.mrb[0].mxu0
    %v6490 = vpop.f32.mrb[0].mxu0
    %v6491 = vadd.f32 %v6194, %v6490
    %v6492 = vpop.f32.mrb[0].mxu0
    %6493 = vmatprep.mubr.bf16.mxu0 0
    %6494 = vmatmul.mubr.bf16.gmra.mrb[0].mxu0 %v5671
    %v6495 = vpop.f32.mrb[0].mxu0
    %v6496 = vadd.f32 %v6199, %v6495
    %v6497 = vpop.f32.mrb[0].mxu0
    %v6498 = vpop.f32.mrb[0].mxu0
    %v6499 = vadd.f32 %v6202, %v6498
    %v6500 = vpop.f32.mrb[0].mxu0
    %6501 = vmatprep.mubr.bf16.mxu0 0
    %6502 = vmatmul.mubr.bf16.gmra.mrb[0].mxu0 %v5672
    %v6503 = vpop.f32.mrb[0].mxu0
    %v6504 = vadd.f32 %v6207, %v6503
    %v6505 = vpop.f32.mrb[0].mxu0
    %v6506 = vpop.f32.mrb[0].mxu0
    %v6507 = vadd.f32 %v6210, %v6506
    %v6508 = vpop.f32.mrb[0].mxu0
    %6509 = vmatprep.mubr.bf16.mxu0 0
    %6510 = vmatmul.mubr.bf16.gmra.mrb[0].mxu0 %v5673
    %v6511 = vpop.f32.mrb[0].mxu0
    %v6512 = vadd.f32 %v6215, %v6511
    %v6513 = vpop.f32.mrb[0].mxu0
    %v6514 = vpop.f32.mrb[0].mxu0
    %v6515 = vadd.f32 %v6218, %v6514
    %v6516 = vpop.f32.mrb[0].mxu0
    %6517 = vmatprep.mubr.bf16.mxu0 0
    %6518 = vmatmul.mubr.bf16.gmra.mrb[0].mxu0 %v5674
    %v6519 = vpop.f32.mrb[0].mxu0
    %v6520 = vadd.f32 %v6223, %v6519
    %v6521 = vpop.f32.mrb[0].mxu0
    %v6522 = vpop.f32.mrb[0].mxu0
    %v6523 = vadd.f32 %v6226, %v6522
    %v6524 = vpop.f32.mrb[0].mxu0
    %6525 = vmatprep.mubr.bf16.mxu0 0
    %6526 = vmatmul.mubr.bf16.gmra.mrb[0].mxu0 %v5675
    %v6527 = vpop.f32.mrb[0].mxu0
    %v6528 = vadd.f32 %v6231, %v6527
    %v6529 = vpop.f32.mrb[0].mxu0
    %v6530 = vpop.f32.mrb[0].mxu0
    %v6531 = vadd.f32 %v6234, %v6530
    %v6532 = vpop.f32.mrb[0].mxu0
    %6533 = vmatprep.mubr.bf16.mxu0 0
    %6534 = vmatmul.mubr.bf16.gmra.mrb[0].mxu0 %v5676
    %v6535 = vpop.f32.mrb[0].mxu0
    %v6536 = vadd.f32 %v6239, %v6535
    %v6537 = vpop.f32.mrb[0].mxu0
    %v6538 = vpop.f32.mrb[0].mxu0
    %v6539 = vadd.f32 %v6242, %v6538
    %v6540 = vpop.f32.mrb[0].mxu0
    %6541 = vmatprep.mubr.bf16.mxu0 0
    %6542 = vmatmul.mubr.bf16.gmra.mrb[0].mxu0 %v5677
    %v6543 = vpop.f32.mrb[0].mxu0
    %v6544 = vadd.f32 %v6247, %v6543
    %v6545 = vpop.f32.mrb[0].mxu0
    %v6546 = vpop.f32.mrb[0].mxu0
    %v6547 = vadd.f32 %v6250, %v6546
    %v6548 = vpop.f32.mrb[0].mxu0
    %6549 = vmatprep.mubr.bf16.mxu0 0
    %6550 = vmatmul.mubr.bf16.gmra.mrb[0].mxu0 %v5678
    %v6551 = vpop.f32.mrb[0].mxu0
    %v6552 = vadd.f32 %v6255, %v6551
    %v6553 = vpop.f32.mrb[0].mxu0
    %v6554 = vpop.f32.mrb[0].mxu0
    %v6555 = vadd.f32 %v6258, %v6554
    %v6556 = vpop.f32.mrb[0].mxu0
    %6557 = vmatprep.mubr.bf16.mxu0 0
    %6558 = vmatmul.mubr.bf16.gmra.mrb[0].mxu0 %v5679
    %v6559 = vpop.f32.mrb[0].mxu0
    %v6560 = vadd.f32 %v6263, %v6559
    %v6561 = vpop.f32.mrb[0].mxu0
    %v6562 = vpop.f32.mrb[0].mxu0
    %v6563 = vadd.f32 %v6266, %v6562
    %v6564 = vpop.f32.mrb[0].mxu0
    %6565 = vmatprep.mubr.bf16.mxu0 0
    %6566 = vmatmul.mubr.bf16.gmra.mrb[0].mxu0 %v5680
    %v6567 = vpop.f32.mrb[0].mxu0
    %v6568 = vadd.f32 %v6271, %v6567
    %v6569 = vpop.f32.mrb[0].mxu0
    %v6570 = vpop.f32.mrb[0].mxu0
    %v6571 = vadd.f32 %v6274, %v6570
    %v6572 = vpop.f32.mrb[0].mxu0
    %6573 = vmatprep.mubr.bf16.mxu0 0
    %6574 = vmatmul.mubr.bf16.gmra.mrb[0].mxu0 %v5681
    %v6575 = vpop.f32.mrb[0].mxu0
    %v6576 = vadd.f32 %v6279, %v6575
    %v6577 = vpop.f32.mrb[0].mxu0
    %v6578 = vpop.f32.mrb[0].mxu0
    %v6579 = vadd.f32 %v6282, %v6578
    %v6580 = vpop.f32.mrb[0].mxu0
    %6581 = vmatprep.mubr.bf16.mxu0 0
    %6582 = vmatmul.mubr.bf16.gmra.mrb[0].mxu0 %v5682
    %v6583 = vpop.f32.mrb[0].mxu0
    %v6584 = vadd.f32 %v6287, %v6583
    %v6585 = vpop.f32.mrb[0].mxu0
    %v6586 = vpop.f32.mrb[0].mxu0
    %v6587 = vadd.f32 %v6290, %v6586
    %v6588 = vpop.f32.mrb[0].mxu0
    %6589 = vmatprep.mubr.bf16.mxu0 0
    %6590 = vmatmul.mubr.bf16.gmra.mrb[0].mxu0 %v5683
    %v6591 = vpop.f32.mrb[0].mxu0
    %v6592 = vadd.f32 %v6295, %v6591
    %v6593 = vpop.f32.mrb[0].mxu0
    %v6594 = vpop.f32.mrb[0].mxu0
    %v6595 = vadd.f32 %v6298, %v6594
    %v6596 = vpop.f32.mrb[0].mxu0
    %6597 = vmatprep.mubr.bf16.mxu0 0
    %6598 = vmatmul.mubr.bf16.gmra.mrb[0].mxu0 %v5684
    %v6599 = vpop.f32.mrb[0].mxu0
    %v6600 = vadd.f32 %v6303, %v6599
    %v6601 = vpop.f32.mrb[0].mxu0
    %v6602 = vpop.f32.mrb[0].mxu0
    %v6603 = vadd.f32 %v6306, %v6602
    %v6604 = vpop.f32.mrb[0].mxu0
    %6605 = vmatprep.mubr.bf16.mxu0 0
    %6606 = vmatmul.mubr.bf16.gmra.mrb[0].mxu0 %v5685
    %v6607 = vpop.f32.mrb[0].mxu0
    %v6608 = vadd.f32 %v6311, %v6607
    %v6609 = vpop.f32.mrb[0].mxu0
    %v6610 = vpop.f32.mrb[0].mxu0
    %v6611 = vadd.f32 %v6314, %v6610
    %v6612 = vpop.f32.mrb[0].mxu0
    %6613 = vmatprep.mubr.bf16.mxu0 0
    %6614 = vmatmul.mubr.bf16.gmra.mrb[0].mxu0 %v5686
    %v6615 = vpop.f32.mrb[0].mxu0
    %v6616 = vadd.f32 %v6319, %v6615
    %v6617 = vpop.f32.mrb[0].mxu0
    %v6618 = vpop.f32.mrb[0].mxu0
    %v6619 = vadd.f32 %v6322, %v6618
    %v6620 = vpop.f32.mrb[0].mxu0
    %6621 = vmatprep.mubr.bf16.mxu0 0
    %6622 = vmatmul.mubr.bf16.gmra.mrb[0].mxu0 %v5687
    %v6623 = vpop.f32.mrb[0].mxu0
    %v6624 = vadd.f32 %v6327, %v6623
    %v6625 = vpop.f32.mrb[0].mxu0
    %v6626 = vpop.f32.mrb[0].mxu0
    %v6627 = vadd.f32 %v6330, %v6626
    %v6628 = vpop.f32.mrb[0].mxu0
    %6629 = vmatprep.mubr.bf16.mxu0 0
    %6630 = vmatmul.mubr.bf16.gmra.mrb[0].mxu0 %v5688
    %v6631 = vpop.f32.mrb[0].mxu0
    %v6632 = vadd.f32 %v6335, %v6631
    %v6633 = vpop.f32.mrb[0].mxu0
    %v6634 = vpop.f32.mrb[0].mxu0
    %v6635 = vadd.f32 %v6338, %v6634
    %v6636 = vpop.f32.mrb[0].mxu0
    %6637 = vmatprep.mubr.bf16.mxu0 0
    %6638 = vmatmul.mubr.bf16.gmra.mrb[0].mxu0 %v5689
    %v6639 = vpop.f32.mrb[0].mxu0
    %v6640 = vadd.f32 %v6343, %v6639
    %v6641 = vpop.f32.mrb[0].mxu0
    %v6642 = vpop.f32.mrb[0].mxu0
    %v6643 = vadd.f32 %v6346, %v6642
    %v6644 = vpop.f32.mrb[0].mxu0
    %6645 = vmatprep.mubr.bf16.mxu0 0
    %6646 = vmatmul.mubr.bf16.gmra.mrb[0].mxu0 %v5690
    %v6647 = vpop.f32.mrb[0].mxu0
    %v6648 = vadd.f32 %v6351, %v6647
    %v6649 = vpop.f32.mrb[0].mxu0
    %v6650 = vpop.f32.mrb[0].mxu0
    %v6651 = vadd.f32 %v6354, %v6650
    %v6652 = vpop.f32.mrb[0].mxu0
    %6653 = vmatprep.mubr.bf16.mxu0 0
    %6654 = vmatmul.mubr.bf16.gmra.mrb[0].mxu0 %v5691
    %v6655 = vpop.f32.mrb[0].mxu0
    %v6656 = vadd.f32 %v6359, %v6655
    %v6657 = vpop.f32.mrb[0].mxu0
    %v6658 = vpop.f32.mrb[0].mxu0
    %v6659 = vadd.f32 %v6362, %v6658
    %v6660 = vpop.f32.mrb[0].mxu0
    %6661 = vdwg.mxu0
    %v6662 = vld [vmem:[%s10] sm:$0x1]
    %v6664 = vlaneseq
    %v6665 = vshrl.u32 %v6664, 7
    %v6666 = vsub.s32 0, %v6665
    %v6667 = vrot.slane %v6662, %v6666
    %v6669 = vadd.f32 %v6408, %v6667
    %v6670 = vadd.f32 %v6411, %v6667
    %v6671 = vadd.f32 %v6416, %v6667
    %v6672 = vadd.f32 %v6419, %v6667
    %v6673 = vadd.f32 %v6424, %v6667
    %v6674 = vadd.f32 %v6427, %v6667
    %v6675 = vadd.f32 %v6432, %v6667
    %v6676 = vadd.f32 %v6435, %v6667
    %v6677 = vadd.f32 %v6440, %v6667
    %v6678 = vadd.f32 %v6443, %v6667
    %v6679 = vadd.f32 %v6448, %v6667
    %v6680 = vadd.f32 %v6451, %v6667
    %v6681 = vadd.f32 %v6456, %v6667
    %v6682 = vadd.f32 %v6459, %v6667
    %v6683 = vadd.f32 %v6464, %v6667
    %v6684 = vadd.f32 %v6467, %v6667
    %v6685 = vadd.f32 %v6472, %v6667
    %v6686 = vadd.f32 %v6475, %v6667
    %v6687 = vadd.f32 %v6480, %v6667
    %v6688 = vadd.f32 %v6483, %v6667
    %v6689 = vadd.f32 %v6488, %v6667
    %v6690 = vadd.f32 %v6491, %v6667
    %v6691 = vadd.f32 %v6496, %v6667
    %v6692 = vadd.f32 %v6499, %v6667
    %v6693 = vadd.f32 %v6504, %v6667
    %v6694 = vadd.f32 %v6507, %v6667
    %v6695 = vadd.f32 %v6512, %v6667
    %v6696 = vadd.f32 %v6515, %v6667
    %v6697 = vadd.f32 %v6520, %v6667
    %v6698 = vadd.f32 %v6523, %v6667
    %v6699 = vadd.f32 %v6528, %v6667
    %v6700 = vadd.f32 %v6531, %v6667
    %v6701 = vadd.f32 %v6536, %v6667
    %v6702 = vadd.f32 %v6539, %v6667
    %v6703 = vadd.f32 %v6544, %v6667
    %v6704 = vadd.f32 %v6547, %v6667
    %v6705 = vadd.f32 %v6552, %v6667
    %v6706 = vadd.f32 %v6555, %v6667
    %v6707 = vadd.f32 %v6560, %v6667
    %v6708 = vadd.f32 %v6563, %v6667
    %v6709 = vadd.f32 %v6568, %v6667
    %v6710 = vadd.f32 %v6571, %v6667
    %v6711 = vadd.f32 %v6576, %v6667
    %v6712 = vadd.f32 %v6579, %v6667
    %v6713 = vadd.f32 %v6584, %v6667
    %v6714 = vadd.f32 %v6587, %v6667
    %v6715 = vadd.f32 %v6592, %v6667
    %v6716 = vadd.f32 %v6595, %v6667
    %v6717 = vadd.f32 %v6600, %v6667
    %v6718 = vadd.f32 %v6603, %v6667
    %v6719 = vadd.f32 %v6608, %v6667
    %v6720 = vadd.f32 %v6611, %v6667
    %v6721 = vadd.f32 %v6616, %v6667
    %v6722 = vadd.f32 %v6619, %v6667
    %v6723 = vadd.f32 %v6624, %v6667
    %v6724 = vadd.f32 %v6627, %v6667
    %v6725 = vadd.f32 %v6632, %v6667
    %v6726 = vadd.f32 %v6635, %v6667
    %v6727 = vadd.f32 %v6640, %v6667
    %v6728 = vadd.f32 %v6643, %v6667
    %v6729 = vadd.f32 %v6648, %v6667
    %v6730 = vadd.f32 %v6651, %v6667
    %v6731 = vadd.f32 %v6656, %v6667
    %v6732 = vadd.f32 %v6659, %v6667
    %v6733 = vxor.u32 %v6669, 2147483648
    %v6734 = vxor.u32 %v6670, 2147483648
    %v6735 = vxor.u32 %v6671, 2147483648
    %v6736 = vxor.u32 %v6672, 2147483648
    %v6737 = vxor.u32 %v6673, 2147483648
    %v6738 = vxor.u32 %v6674, 2147483648
    %v6739 = vxor.u32 %v6675, 2147483648
    %v6740 = vxor.u32 %v6676, 2147483648
    %v6741 = vxor.u32 %v6677, 2147483648
    %v6742 = vxor.u32 %v6678, 2147483648
    %v6743 = vxor.u32 %v6679, 2147483648
    %v6744 = vxor.u32 %v6680, 2147483648
    %v6745 = vxor.u32 %v6681, 2147483648
    %v6746 = vxor.u32 %v6682, 2147483648
    %v6747 = vxor.u32 %v6683, 2147483648
    %v6748 = vxor.u32 %v6684, 2147483648
    %v6749 = vxor.u32 %v6685, 2147483648
    %v6750 = vxor.u32 %v6686, 2147483648
    %v6751 = vxor.u32 %v6687, 2147483648
    %v6752 = vxor.u32 %v6688, 2147483648
    %v6753 = vxor.u32 %v6689, 2147483648
    %v6754 = vxor.u32 %v6690, 2147483648
    %v6755 = vxor.u32 %v6691, 2147483648
    %v6756 = vxor.u32 %v6692, 2147483648
    %v6757 = vxor.u32 %v6693, 2147483648
    %v6758 = vxor.u32 %v6694, 2147483648
    %v6759 = vxor.u32 %v6695, 2147483648
    %v6760 = vxor.u32 %v6696, 2147483648
    %v6761 = vxor.u32 %v6697, 2147483648
    %v6762 = vxor.u32 %v6698, 2147483648
    %v6763 = vxor.u32 %v6699, 2147483648
    %v6764 = vxor.u32 %v6700, 2147483648
    %v6765 = vxor.u32 %v6701, 2147483648
    %v6766 = vxor.u32 %v6702, 2147483648
    %v6767 = vxor.u32 %v6703, 2147483648
    %v6768 = vxor.u32 %v6704, 2147483648
    %v6769 = vxor.u32 %v6705, 2147483648
    %v6770 = vxor.u32 %v6706, 2147483648
    %v6771 = vxor.u32 %v6707, 2147483648
    %v6772 = vxor.u32 %v6708, 2147483648
    %v6773 = vxor.u32 %v6709, 2147483648
    %v6774 = vxor.u32 %v6710, 2147483648
    %v6775 = vxor.u32 %v6711, 2147483648
    %v6776 = vxor.u32 %v6712, 2147483648
    %v6777 = vxor.u32 %v6713, 2147483648
    %v6778 = vxor.u32 %v6714, 2147483648
    %v6779 = vxor.u32 %v6715, 2147483648
    %v6780 = vxor.u32 %v6716, 2147483648
    %v6781 = vxor.u32 %v6717, 2147483648
    %v6782 = vxor.u32 %v6718, 2147483648
    %v6783 = vxor.u32 %v6719, 2147483648
    %v6784 = vxor.u32 %v6720, 2147483648
    %v6785 = vxor.u32 %v6721, 2147483648
    %v6786 = vxor.u32 %v6722, 2147483648
    %v6787 = vxor.u32 %v6723, 2147483648
    %v6788 = vxor.u32 %v6724, 2147483648
    %v6789 = vxor.u32 %v6725, 2147483648
    %v6790 = vxor.u32 %v6726, 2147483648
    %v6791 = vxor.u32 %v6727, 2147483648
    %v6792 = vxor.u32 %v6728, 2147483648
    %v6793 = vxor.u32 %v6729, 2147483648
    %v6794 = vxor.u32 %v6730, 2147483648
    %v6795 = vxor.u32 %v6731, 2147483648
    %v6796 = vxor.u32 %v6732, 2147483648
    %v6797 = vmul.f32 %v6733, 1.442695
    %v6798 = vpow.pop %v6797
    %v6799 = vmul.f32 %v6734, 1.442695
    %v6800 = vpow.pop %v6799
    %v6801 = vmul.f32 %v6735, 1.442695
    %v6802 = vpow.pop %v6801
    %v6803 = vmul.f32 %v6736, 1.442695
    %v6804 = vpow.pop %v6803
    %v6805 = vmul.f32 %v6737, 1.442695
    %v6806 = vpow.pop %v6805
    %v6807 = vmul.f32 %v6738, 1.442695
    %v6808 = vpow.pop %v6807
    %v6809 = vmul.f32 %v6739, 1.442695
    %v6810 = vpow.pop %v6809
    %v6811 = vmul.f32 %v6740, 1.442695
    %v6812 = vpow.pop %v6811
    %v6813 = vmul.f32 %v6741, 1.442695
    %v6814 = vpow.pop %v6813
    %v6815 = vmul.f32 %v6742, 1.442695
    %v6816 = vpow.pop %v6815
    %v6817 = vmul.f32 %v6743, 1.442695
    %v6818 = vpow.pop %v6817
    %v6819 = vmul.f32 %v6744, 1.442695
    %v6820 = vpow.pop %v6819
    %v6821 = vmul.f32 %v6745, 1.442695
    %v6822 = vpow.pop %v6821
    %v6823 = vmul.f32 %v6746, 1.442695
    %v6824 = vpow.pop %v6823
    %v6825 = vmul.f32 %v6747, 1.442695
    %v6826 = vpow.pop %v6825
    %v6827 = vmul.f32 %v6748, 1.442695
    %v6828 = vpow.pop %v6827
    %v6829 = vmul.f32 %v6749, 1.442695
    %v6830 = vpow.pop %v6829
    %v6831 = vmul.f32 %v6750, 1.442695
    %v6832 = vpow.pop %v6831
    %v6833 = vmul.f32 %v6751, 1.442695
    %v6834 = vpow.pop %v6833
    %v6835 = vmul.f32 %v6752, 1.442695
    %v6836 = vpow.pop %v6835
    %v6837 = vmul.f32 %v6753, 1.442695
    %v6838 = vpow.pop %v6837
    %v6839 = vmul.f32 %v6754, 1.442695
    %v6840 = vpow.pop %v6839
    %v6841 = vmul.f32 %v6755, 1.442695
    %v6842 = vpow.pop %v6841
    %v6843 = vmul.f32 %v6756, 1.442695
    %v6844 = vpow.pop %v6843
    %v6845 = vmul.f32 %v6757, 1.442695
    %v6846 = vpow.pop %v6845
    %v6847 = vmul.f32 %v6758, 1.442695
    %v6848 = vpow.pop %v6847
    %v6849 = vmul.f32 %v6759, 1.442695
    %v6850 = vpow.pop %v6849
    %v6851 = vmul.f32 %v6760, 1.442695
    %v6852 = vpow.pop %v6851
    %v6853 = vmul.f32 %v6761, 1.442695
    %v6854 = vpow.pop %v6853
    %v6855 = vmul.f32 %v6762, 1.442695
    %v6856 = vpow.pop %v6855
    %v6857 = vmul.f32 %v6763, 1.442695
    %v6858 = vpow.pop %v6857
    %v6859 = vmul.f32 %v6764, 1.442695
    %v6860 = vpow.pop %v6859
    %v6861 = vmul.f32 %v6765, 1.442695
    %v6862 = vpow.pop %v6861
    %v6863 = vmul.f32 %v6766, 1.442695
    %v6864 = vpow.pop %v6863
    %v6865 = vmul.f32 %v6767, 1.442695
    %v6866 = vpow.pop %v6865
    %v6867 = vmul.f32 %v6768, 1.442695
    %v6868 = vpow.pop %v6867
    %v6869 = vmul.f32 %v6769, 1.442695
    %v6870 = vpow.pop %v6869
    %v6871 = vmul.f32 %v6770, 1.442695
    %v6872 = vpow.pop %v6871
    %v6873 = vmul.f32 %v6771, 1.442695
    %v6874 = vpow.pop %v6873
    %v6875 = vmul.f32 %v6772, 1.442695
    %v6876 = vpow.pop %v6875
    %v6877 = vmul.f32 %v6773, 1.442695
    %v6878 = vpow.pop %v6877
    %v6879 = vmul.f32 %v6774, 1.442695
    %v6880 = vpow.pop %v6879
    %v6881 = vmul.f32 %v6775, 1.442695
    %v6882 = vpow.pop %v6881
    %v6883 = vmul.f32 %v6776, 1.442695
    %v6884 = vpow.pop %v6883
    %v6885 = vmul.f32 %v6777, 1.442695
    %v6886 = vpow.pop %v6885
    %v6887 = vmul.f32 %v6778, 1.442695
    %v6888 = vpow.pop %v6887
    %v6889 = vmul.f32 %v6779, 1.442695
    %v6890 = vpow.pop %v6889
    %v6891 = vmul.f32 %v6780, 1.442695
    %v6892 = vpow.pop %v6891
    %v6893 = vmul.f32 %v6781, 1.442695
    %v6894 = vpow.pop %v6893
    %v6895 = vmul.f32 %v6782, 1.442695
    %v6896 = vpow.pop %v6895
    %v6897 = vmul.f32 %v6783, 1.442695
    %v6898 = vpow.pop %v6897
    %v6899 = vmul.f32 %v6784, 1.442695
    %v6900 = vpow.pop %v6899
    %v6901 = vmul.f32 %v6785, 1.442695
    %v6902 = vpow.pop %v6901
    %v6903 = vmul.f32 %v6786, 1.442695
    %v6904 = vpow.pop %v6903
    %v6905 = vmul.f32 %v6787, 1.442695
    %v6906 = vpow.pop %v6905
    %v6907 = vmul.f32 %v6788, 1.442695
    %v6908 = vpow.pop %v6907
    %v6909 = vmul.f32 %v6789, 1.442695
    %v6910 = vpow.pop %v6909
    %v6911 = vmul.f32 %v6790, 1.442695
    %v6912 = vpow.pop %v6911
    %v6913 = vmul.f32 %v6791, 1.442695
    %v6914 = vpow.pop %v6913
    %v6915 = vmul.f32 %v6792, 1.442695
    %v6916 = vpow.pop %v6915
    %v6917 = vmul.f32 %v6793, 1.442695
    %v6918 = vpow.pop %v6917
    %v6919 = vmul.f32 %v6794, 1.442695
    %v6920 = vpow.pop %v6919
    %v6921 = vmul.f32 %v6795, 1.442695
    %v6922 = vpow.pop %v6921
    %v6923 = vmul.f32 %v6796, 1.442695
    %v6924 = vpow.pop %v6923
    %v6925 = vadd.f32 %v6798, 1.0
    %v6926 = vadd.f32 %v6800, 1.0
    %v6927 = vadd.f32 %v6802, 1.0
    %v6928 = vadd.f32 %v6804, 1.0
    %v6929 = vadd.f32 %v6806, 1.0
    %v6930 = vadd.f32 %v6808, 1.0
    %v6931 = vadd.f32 %v6810, 1.0
    %v6932 = vadd.f32 %v6812, 1.0
    %v6933 = vadd.f32 %v6814, 1.0
    %v6934 = vadd.f32 %v6816, 1.0
    %v6935 = vadd.f32 %v6818, 1.0
    %v6936 = vadd.f32 %v6820, 1.0
    %v6937 = vadd.f32 %v6822, 1.0
    %v6938 = vadd.f32 %v6824, 1.0
    %v6939 = vadd.f32 %v6826, 1.0
    %v6940 = vadd.f32 %v6828, 1.0
    %v6941 = vadd.f32 %v6830, 1.0
    %v6942 = vadd.f32 %v6832, 1.0
    %v6943 = vadd.f32 %v6834, 1.0
    %v6944 = vadd.f32 %v6836, 1.0
    %v6945 = vadd.f32 %v6838, 1.0
    %v6946 = vadd.f32 %v6840, 1.0
    %v6947 = vadd.f32 %v6842, 1.0
    %v6948 = vadd.f32 %v6844, 1.0
    %v6949 = vadd.f32 %v6846, 1.0
    %v6950 = vadd.f32 %v6848, 1.0
    %v6951 = vadd.f32 %v6850, 1.0
    %v6952 = vadd.f32 %v6852, 1.0
    %v6953 = vadd.f32 %v6854, 1.0
    %v6954 = vadd.f32 %v6856, 1.0
    %v6955 = vadd.f32 %v6858, 1.0
    %v6956 = vadd.f32 %v6860, 1.0
    %v6957 = vadd.f32 %v6862, 1.0
    %v6958 = vadd.f32 %v6864, 1.0
    %v6959 = vadd.f32 %v6866, 1.0
    %v6960 = vadd.f32 %v6868, 1.0
    %v6961 = vadd.f32 %v6870, 1.0
    %v6962 = vadd.f32 %v6872, 1.0
    %v6963 = vadd.f32 %v6874, 1.0
    %v6964 = vadd.f32 %v6876, 1.0
    %v6965 = vadd.f32 %v6878, 1.0
    %v6966 = vadd.f32 %v6880, 1.0
    %v6967 = vadd.f32 %v6882, 1.0
    %v6968 = vadd.f32 %v6884, 1.0
    %v6969 = vadd.f32 %v6886, 1.0
    %v6970 = vadd.f32 %v6888, 1.0
    %v6971 = vadd.f32 %v6890, 1.0
    %v6972 = vadd.f32 %v6892, 1.0
    %v6973 = vadd.f32 %v6894, 1.0
    %v6974 = vadd.f32 %v6896, 1.0
    %v6975 = vadd.f32 %v6898, 1.0
    %v6976 = vadd.f32 %v6900, 1.0
    %v6977 = vadd.f32 %v6902, 1.0
    %v6978 = vadd.f32 %v6904, 1.0
    %v6979 = vadd.f32 %v6906, 1.0
    %v6980 = vadd.f32 %v6908, 1.0
    %v6981 = vadd.f32 %v6910, 1.0
    %v6982 = vadd.f32 %v6912, 1.0
    %v6983 = vadd.f32 %v6914, 1.0
    %v6984 = vadd.f32 %v6916, 1.0
    %v6985 = vadd.f32 %v6918, 1.0
    %v6986 = vadd.f32 %v6920, 1.0
    %v6987 = vadd.f32 %v6922, 1.0
    %v6988 = vadd.f32 %v6924, 1.0
    %v6989 = vrcp.pop %v6925
    %v6990 = vmul.f32 1.0, %v6989
    %v6991 = vrcp.pop %v6926
    %v6992 = vmul.f32 1.0, %v6991
    %v6993 = vrcp.pop %v6927
    %v6994 = vmul.f32 1.0, %v6993
    %v6995 = vrcp.pop %v6928
    %v6996 = vmul.f32 1.0, %v6995
    %v6997 = vrcp.pop %v6929
    %v6998 = vmul.f32 1.0, %v6997
    %v6999 = vrcp.pop %v6930
    %v7000 = vmul.f32 1.0, %v6999
    %v7001 = vrcp.pop %v6931
    %v7002 = vmul.f32 1.0, %v7001
    %v7003 = vrcp.pop %v6932
    %v7004 = vmul.f32 1.0, %v7003
    %v7005 = vrcp.pop %v6933
    %v7006 = vmul.f32 1.0, %v7005
    %v7007 = vrcp.pop %v6934
    %v7008 = vmul.f32 1.0, %v7007
    %v7009 = vrcp.pop %v6935
    %v7010 = vmul.f32 1.0, %v7009
    %v7011 = vrcp.pop %v6936
    %v7012 = vmul.f32 1.0, %v7011
    %v7013 = vrcp.pop %v6937
    %v7014 = vmul.f32 1.0, %v7013
    %v7015 = vrcp.pop %v6938
    %v7016 = vmul.f32 1.0, %v7015
    %v7017 = vrcp.pop %v6939
    %v7018 = vmul.f32 1.0, %v7017
    %v7019 = vrcp.pop %v6940
    %v7020 = vmul.f32 1.0, %v7019
    %v7021 = vrcp.pop %v6941
    %v7022 = vmul.f32 1.0, %v7021
    %v7023 = vrcp.pop %v6942
    %v7024 = vmul.f32 1.0, %v7023
    %v7025 = vrcp.pop %v6943
    %v7026 = vmul.f32 1.0, %v7025
    %v7027 = vrcp.pop %v6944
    %v7028 = vmul.f32 1.0, %v7027
    %v7029 = vrcp.pop %v6945
    %v7030 = vmul.f32 1.0, %v7029
    %v7031 = vrcp.pop %v6946
    %v7032 = vmul.f32 1.0, %v7031
    %v7033 = vrcp.pop %v6947
    %v7034 = vmul.f32 1.0, %v7033
    %v7035 = vrcp.pop %v6948
    %v7036 = vmul.f32 1.0, %v7035
    %v7037 = vrcp.pop %v6949
    %v7038 = vmul.f32 1.0, %v7037
    %v7039 = vrcp.pop %v6950
    %v7040 = vmul.f32 1.0, %v7039
    %v7041 = vrcp.pop %v6951
    %v7042 = vmul.f32 1.0, %v7041
    %v7043 = vrcp.pop %v6952
    %v7044 = vmul.f32 1.0, %v7043
    %v7045 = vrcp.pop %v6953
    %v7046 = vmul.f32 1.0, %v7045
    %v7047 = vrcp.pop %v6954
    %v7048 = vmul.f32 1.0, %v7047
    %v7049 = vrcp.pop %v6955
    %v7050 = vmul.f32 1.0, %v7049
    %v7051 = vrcp.pop %v6956
    %v7052 = vmul.f32 1.0, %v7051
    %v7053 = vrcp.pop %v6957
    %v7054 = vmul.f32 1.0, %v7053
    %v7055 = vrcp.pop %v6958
    %v7056 = vmul.f32 1.0, %v7055
    %v7057 = vrcp.pop %v6959
    %v7058 = vmul.f32 1.0, %v7057
    %v7059 = vrcp.pop %v6960
    %v7060 = vmul.f32 1.0, %v7059
    %v7061 = vrcp.pop %v6961
    %v7062 = vmul.f32 1.0, %v7061
    %v7063 = vrcp.pop %v6962
    %v7064 = vmul.f32 1.0, %v7063
    %v7065 = vrcp.pop %v6963
    %v7066 = vmul.f32 1.0, %v7065
    %v7067 = vrcp.pop %v6964
    %v7068 = vmul.f32 1.0, %v7067
    %v7069 = vrcp.pop %v6965
    %v7070 = vmul.f32 1.0, %v7069
    %v7071 = vrcp.pop %v6966
    %v7072 = vmul.f32 1.0, %v7071
    %v7073 = vrcp.pop %v6967
    %v7074 = vmul.f32 1.0, %v7073
    %v7075 = vrcp.pop %v6968
    %v7076 = vmul.f32 1.0, %v7075
    %v7077 = vrcp.pop %v6969
    %v7078 = vmul.f32 1.0, %v7077
    %v7079 = vrcp.pop %v6970
    %v7080 = vmul.f32 1.0, %v7079
    %v7081 = vrcp.pop %v6971
    %v7082 = vmul.f32 1.0, %v7081
    %v7083 = vrcp.pop %v6972
    %v7084 = vmul.f32 1.0, %v7083
    %v7085 = vrcp.pop %v6973
    %v7086 = vmul.f32 1.0, %v7085
    %v7087 = vrcp.pop %v6974
    %v7088 = vmul.f32 1.0, %v7087
    %v7089 = vrcp.pop %v6975
    %v7090 = vmul.f32 1.0, %v7089
    %v7091 = vrcp.pop %v6976
    %v7092 = vmul.f32 1.0, %v7091
    %v7093 = vrcp.pop %v6977
    %v7094 = vmul.f32 1.0, %v7093
    %v7095 = vrcp.pop %v6978
    %v7096 = vmul.f32 1.0, %v7095
    %v7097 = vrcp.pop %v6979
    %v7098 = vmul.f32 1.0, %v7097
    %v7099 = vrcp.pop %v6980
    %v7100 = vmul.f32 1.0, %v7099
    %v7101 = vrcp.pop %v6981
    %v7102 = vmul.f32 1.0, %v7101
    %v7103 = vrcp.pop %v6982
    %v7104 = vmul.f32 1.0, %v7103
    %v7105 = vrcp.pop %v6983
    %v7106 = vmul.f32 1.0, %v7105
    %v7107 = vrcp.pop %v6984
    %v7108 = vmul.f32 1.0, %v7107
    %v7109 = vrcp.pop %v6985
    %v7110 = vmul.f32 1.0, %v7109
    %v7111 = vrcp.pop %v6986
    %v7112 = vmul.f32 1.0, %v7111
    %v7113 = vrcp.pop %v6987
    %v7114 = vmul.f32 1.0, %v7113
    %v7115 = vrcp.pop %v6988
    %v7116 = vmul.f32 1.0, %v7115
    %v7117 = vmul.f32 %v6669, %v6990
    %v7118 = vmul.f32 %v6670, %v6992
    %v7119 = vmul.f32 %v6671, %v6994
    %v7120 = vmul.f32 %v6672, %v6996
    %v7121 = vmul.f32 %v6673, %v6998
    %v7122 = vmul.f32 %v6674, %v7000
    %v7123 = vmul.f32 %v6675, %v7002
    %v7124 = vmul.f32 %v6676, %v7004
    %v7125 = vmul.f32 %v6677, %v7006
    %v7126 = vmul.f32 %v6678, %v7008
    %v7127 = vmul.f32 %v6679, %v7010
    %v7128 = vmul.f32 %v6680, %v7012
    %v7129 = vmul.f32 %v6681, %v7014
    %v7130 = vmul.f32 %v6682, %v7016
    %v7131 = vmul.f32 %v6683, %v7018
    %v7132 = vmul.f32 %v6684, %v7020
    %v7133 = vmul.f32 %v6685, %v7022
    %v7134 = vmul.f32 %v6686, %v7024
    %v7135 = vmul.f32 %v6687, %v7026
    %v7136 = vmul.f32 %v6688, %v7028
    %v7137 = vmul.f32 %v6689, %v7030
    %v7138 = vmul.f32 %v6690, %v7032
    %v7139 = vmul.f32 %v6691, %v7034
    %v7140 = vmul.f32 %v6692, %v7036
    %v7141 = vmul.f32 %v6693, %v7038
    %v7142 = vmul.f32 %v6694, %v7040
    %v7143 = vmul.f32 %v6695, %v7042
    %v7144 = vmul.f32 %v6696, %v7044
    %v7145 = vmul.f32 %v6697, %v7046
    %v7146 = vmul.f32 %v6698, %v7048
    %v7147 = vmul.f32 %v6699, %v7050
    %v7148 = vmul.f32 %v6700, %v7052
    %v7149 = vmul.f32 %v6701, %v7054
    %v7150 = vmul.f32 %v6702, %v7056
    %v7151 = vmul.f32 %v6703, %v7058
    %v7152 = vmul.f32 %v6704, %v7060
    %v7153 = vmul.f32 %v6705, %v7062
    %v7154 = vmul.f32 %v6706, %v7064
    %v7155 = vmul.f32 %v6707, %v7066
    %v7156 = vmul.f32 %v6708, %v7068
    %v7157 = vmul.f32 %v6709, %v7070
    %v7158 = vmul.f32 %v6710, %v7072
    %v7159 = vmul.f32 %v6711, %v7074
    %v7160 = vmul.f32 %v6712, %v7076
    %v7161 = vmul.f32 %v6713, %v7078
    %v7162 = vmul.f32 %v6714, %v7080
    %v7163 = vmul.f32 %v6715, %v7082
    %v7164 = vmul.f32 %v6716, %v7084
    %v7165 = vmul.f32 %v6717, %v7086
    %v7166 = vmul.f32 %v6718, %v7088
    %v7167 = vmul.f32 %v6719, %v7090
    %v7168 = vmul.f32 %v6720, %v7092
    %v7169 = vmul.f32 %v6721, %v7094
    %v7170 = vmul.f32 %v6722, %v7096
    %v7171 = vmul.f32 %v6723, %v7098
    %v7172 = vmul.f32 %v6724, %v7100
    %v7173 = vmul.f32 %v6725, %v7102
    %v7174 = vmul.f32 %v6726, %v7104
    %v7175 = vmul.f32 %v6727, %v7106
    %v7176 = vmul.f32 %v6728, %v7108
    %v7177 = vmul.f32 %v6729, %v7110
    %v7178 = vmul.f32 %v6730, %v7112
    %v7179 = vmul.f32 %v6731, %v7114
    %v7180 = vmul.f32 %v6732, %v7116
    %v7181 = vpack.c.bf16 %v7118, %v7117
    %v7182 = vpack.c.bf16 %v7120, %v7119
    %v7183 = vpack.c.bf16 %v7122, %v7121
    %v7184 = vpack.c.bf16 %v7124, %v7123
    %v7185 = vpack.c.bf16 %v7126, %v7125
    %v7186 = vpack.c.bf16 %v7128, %v7127
    %v7187 = vpack.c.bf16 %v7130, %v7129
    %v7188 = vpack.c.bf16 %v7132, %v7131
    %v7189 = vpack.c.bf16 %v7134, %v7133
    %v7190 = vpack.c.bf16 %v7136, %v7135
    %v7191 = vpack.c.bf16 %v7138, %v7137
    %v7192 = vpack.c.bf16 %v7140, %v7139
    %v7193 = vpack.c.bf16 %v7142, %v7141
    %v7194 = vpack.c.bf16 %v7144, %v7143
    %v7195 = vpack.c.bf16 %v7146, %v7145
    %v7196 = vpack.c.bf16 %v7148, %v7147
    %v7197 = vpack.c.bf16 %v7150, %v7149
    %v7198 = vpack.c.bf16 %v7152, %v7151
    %v7199 = vpack.c.bf16 %v7154, %v7153
    %v7200 = vpack.c.bf16 %v7156, %v7155
    %v7201 = vpack.c.bf16 %v7158, %v7157
    %v7202 = vpack.c.bf16 %v7160, %v7159
    %v7203 = vpack.c.bf16 %v7162, %v7161
    %v7204 = vpack.c.bf16 %v7164, %v7163
    %v7205 = vpack.c.bf16 %v7166, %v7165
    %v7206 = vpack.c.bf16 %v7168, %v7167
    %v7207 = vpack.c.bf16 %v7170, %v7169
    %v7208 = vpack.c.bf16 %v7172, %v7171
    %v7209 = vpack.c.bf16 %v7174, %v7173
    %v7210 = vpack.c.bf16 %v7176, %v7175
    %v7211 = vpack.c.bf16 %v7178, %v7177
    %v7212 = vpack.c.bf16 %v7180, %v7179
    %v7245 = vunpack.c.l.b16 %v7181
    %v7246 = vunpack.c.h.b16 %v7181
    %v7247 = vunpack.c.l.b16 %v7182
    %v7248 = vunpack.c.h.b16 %v7182
    %v7249 = vunpack.c.l.b16 %v7183
    %v7250 = vunpack.c.h.b16 %v7183
    %v7251 = vunpack.c.l.b16 %v7184
    %v7252 = vunpack.c.h.b16 %v7184
    %v7253 = vunpack.c.l.b16 %v7185
    %v7254 = vunpack.c.h.b16 %v7185
    %v7255 = vunpack.c.l.b16 %v7186
    %v7256 = vunpack.c.h.b16 %v7186
    %v7257 = vunpack.c.l.b16 %v7187
    %v7258 = vunpack.c.h.b16 %v7187
    %v7259 = vunpack.c.l.b16 %v7188
    %v7260 = vunpack.c.h.b16 %v7188
    %v7261 = vunpack.c.l.b16 %v7189
    %v7262 = vunpack.c.h.b16 %v7189
    %v7263 = vunpack.c.l.b16 %v7190
    %v7264 = vunpack.c.h.b16 %v7190
    %v7265 = vunpack.c.l.b16 %v7191
    %v7266 = vunpack.c.h.b16 %v7191
    %v7267 = vunpack.c.l.b16 %v7192
    %v7268 = vunpack.c.h.b16 %v7192
    %v7269 = vunpack.c.l.b16 %v7193
    %v7270 = vunpack.c.h.b16 %v7193
    %v7271 = vunpack.c.l.b16 %v7194
    %v7272 = vunpack.c.h.b16 %v7194
    %v7273 = vunpack.c.l.b16 %v7195
    %v7274 = vunpack.c.h.b16 %v7195
    %v7275 = vunpack.c.l.b16 %v7196
    %v7276 = vunpack.c.h.b16 %v7196
    %v7277 = vunpack.c.l.b16 %v7197
    %v7278 = vunpack.c.h.b16 %v7197
    %v7279 = vunpack.c.l.b16 %v7198
    %v7280 = vunpack.c.h.b16 %v7198
    %v7281 = vunpack.c.l.b16 %v7199
    %v7282 = vunpack.c.h.b16 %v7199
    %v7283 = vunpack.c.l.b16 %v7200
    %v7284 = vunpack.c.h.b16 %v7200
    %v7285 = vunpack.c.l.b16 %v7201
    %v7286 = vunpack.c.h.b16 %v7201
    %v7287 = vunpack.c.l.b16 %v7202
    %v7288 = vunpack.c.h.b16 %v7202
    %v7289 = vunpack.c.l.b16 %v7203
    %v7290 = vunpack.c.h.b16 %v7203
    %v7291 = vunpack.c.l.b16 %v7204
    %v7292 = vunpack.c.h.b16 %v7204
    %v7293 = vunpack.c.l.b16 %v7205
    %v7294 = vunpack.c.h.b16 %v7205
    %v7295 = vunpack.c.l.b16 %v7206
    %v7296 = vunpack.c.h.b16 %v7206
    %v7297 = vunpack.c.l.b16 %v7207
    %v7298 = vunpack.c.h.b16 %v7207
    %v7299 = vunpack.c.l.b16 %v7208
    %v7300 = vunpack.c.h.b16 %v7208
    %v7301 = vunpack.c.l.b16 %v7209
    %v7302 = vunpack.c.h.b16 %v7209
    %v7303 = vunpack.c.l.b16 %v7210
    %v7304 = vunpack.c.h.b16 %v7210
    %v7305 = vunpack.c.l.b16 %v7211
    %v7306 = vunpack.c.h.b16 %v7211
    %v7307 = vunpack.c.l.b16 %v7212
    %v7308 = vunpack.c.h.b16 %v7212
    %v7309 = vpack.c.b16 %v7245, %v7245
    %v7310 = vpack.c.b16 %v7246, %v7246
    %v7311 = vpack.c.b16 %v7247, %v7247
    %v7312 = vpack.c.b16 %v7248, %v7248
    %v7313 = vpack.c.b16 %v7249, %v7249
    %v7314 = vpack.c.b16 %v7250, %v7250
    %v7315 = vpack.c.b16 %v7251, %v7251
    %v7316 = vpack.c.b16 %v7252, %v7252
    %v7317 = vpack.c.b16 %v7253, %v7253
    %v7318 = vpack.c.b16 %v7254, %v7254
    %v7319 = vpack.c.b16 %v7255, %v7255
    %v7320 = vpack.c.b16 %v7256, %v7256
    %v7321 = vpack.c.b16 %v7257, %v7257
    %v7322 = vpack.c.b16 %v7258, %v7258
    %v7323 = vpack.c.b16 %v7259, %v7259
    %v7324 = vpack.c.b16 %v7260, %v7260
    %v7325 = vpack.c.b16 %v7261, %v7261
    %v7326 = vpack.c.b16 %v7262, %v7262
    %v7327 = vpack.c.b16 %v7263, %v7263
    %v7328 = vpack.c.b16 %v7264, %v7264
    %v7329 = vpack.c.b16 %v7265, %v7265
    %v7330 = vpack.c.b16 %v7266, %v7266
    %v7331 = vpack.c.b16 %v7267, %v7267
    %v7332 = vpack.c.b16 %v7268, %v7268
    %v7333 = vpack.c.b16 %v7269, %v7269
    %v7334 = vpack.c.b16 %v7270, %v7270
    %v7335 = vpack.c.b16 %v7271, %v7271
    %v7336 = vpack.c.b16 %v7272, %v7272
    %v7337 = vpack.c.b16 %v7273, %v7273
    %v7338 = vpack.c.b16 %v7274, %v7274
    %v7339 = vpack.c.b16 %v7275, %v7275
    %v7340 = vpack.c.b16 %v7276, %v7276
    %v7341 = vpack.c.b16 %v7277, %v7277
    %v7342 = vpack.c.b16 %v7278, %v7278
    %v7343 = vpack.c.b16 %v7279, %v7279
    %v7344 = vpack.c.b16 %v7280, %v7280
    %v7345 = vpack.c.b16 %v7281, %v7281
    %v7346 = vpack.c.b16 %v7282, %v7282
    %v7347 = vpack.c.b16 %v7283, %v7283
    %v7348 = vpack.c.b16 %v7284, %v7284
    %v7349 = vpack.c.b16 %v7285, %v7285
    %v7350 = vpack.c.b16 %v7286, %v7286
    %v7351 = vpack.c.b16 %v7287, %v7287
    %v7352 = vpack.c.b16 %v7288, %v7288
    %v7353 = vpack.c.b16 %v7289, %v7289
    %v7354 = vpack.c.b16 %v7290, %v7290
    %v7355 = vpack.c.b16 %v7291, %v7291
    %v7356 = vpack.c.b16 %v7292, %v7292
    %v7357 = vpack.c.b16 %v7293, %v7293
    %v7358 = vpack.c.b16 %v7294, %v7294
    %v7359 = vpack.c.b16 %v7295, %v7295
    %v7360 = vpack.c.b16 %v7296, %v7296
    %v7361 = vpack.c.b16 %v7297, %v7297
    %v7362 = vpack.c.b16 %v7298, %v7298
    %v7363 = vpack.c.b16 %v7299, %v7299
    %v7364 = vpack.c.b16 %v7300, %v7300
    %v7365 = vpack.c.b16 %v7301, %v7301
    %v7366 = vpack.c.b16 %v7302, %v7302
    %v7367 = vpack.c.b16 %v7303, %v7303
    %v7368 = vpack.c.b16 %v7304, %v7304
    %v7369 = vpack.c.b16 %v7305, %v7305
    %v7370 = vpack.c.b16 %v7306, %v7306
    %v7371 = vpack.c.b16 %v7307, %v7307
    %v7372 = vpack.c.b16 %v7308, %v7308
    %7437 = vst [vmem:[#allocation15] sm:$0xf] %v7309
    %7438 = vst [vmem:[#allocation15 + $0x4] sm:$0xf] %v7310
    %7439 = vst [vmem:[#allocation15 + $0x8] sm:$0xf] %v7311
    %7440 = vst [vmem:[#allocation15 + $0xc] sm:$0xf] %v7312
    %7441 = vst [vmem:[#allocation15 + $0x10] sm:$0xf] %v7313
    %7442 = vst [vmem:[#allocation15 + $0x14] sm:$0xf] %v7314
    %7443 = vst [vmem:[#allocation15 + $0x18] sm:$0xf] %v7315
    %7444 = vst [vmem:[#allocation15 + $0x1c] sm:$0xf] %v7316
    %7445 = vst [vmem:[#allocation15 + $0x20] sm:$0xf] %v7317
    %7446 = vst [vmem:[#allocation15 + $0x24] sm:$0xf] %v7318
    %7447 = vst [vmem:[#allocation15 + $0x28] sm:$0xf] %v7319
    %7448 = vst [vmem:[#allocation15 + $0x2c] sm:$0xf] %v7320
    %7449 = vst [vmem:[#allocation15 + $0x30] sm:$0xf] %v7321
    %7450 = vst [vmem:[#allocation15 + $0x34] sm:$0xf] %v7322
    %7451 = vst [vmem:[#allocation15 + $0x38] sm:$0xf] %v7323
    %7452 = vst [vmem:[#allocation15 + $0x3c] sm:$0xf] %v7324
    %7453 = vst [vmem:[#allocation15 + $0x40] sm:$0xf] %v7325
    %7454 = vst [vmem:[#allocation15 + $0x44] sm:$0xf] %v7326
    %7455 = vst [vmem:[#allocation15 + $0x48] sm:$0xf] %v7327
    %7456 = vst [vmem:[#allocation15 + $0x4c] sm:$0xf] %v7328
    %7457 = vst [vmem:[#allocation15 + $0x50] sm:$0xf] %v7329
    %7458 = vst [vmem:[#allocation15 + $0x54] sm:$0xf] %v7330
    %7459 = vst [vmem:[#allocation15 + $0x58] sm:$0xf] %v7331
    %7460 = vst [vmem:[#allocation15 + $0x5c] sm:$0xf] %v7332
    %7461 = vst [vmem:[#allocation15 + $0x60] sm:$0xf] %v7333
    %7462 = vst [vmem:[#allocation15 + $0x64] sm:$0xf] %v7334
    %7463 = vst [vmem:[#allocation15 + $0x68] sm:$0xf] %v7335
    %7464 = vst [vmem:[#allocation15 + $0x6c] sm:$0xf] %v7336
    %7465 = vst [vmem:[#allocation15 + $0x70] sm:$0xf] %v7337
    %7466 = vst [vmem:[#allocation15 + $0x74] sm:$0xf] %v7338
    %7467 = vst [vmem:[#allocation15 + $0x78] sm:$0xf] %v7339
    %7468 = vst [vmem:[#allocation15 + $0x7c] sm:$0xf] %v7340
    %7469 = vst [vmem:[#allocation15 + $0x80] sm:$0xf] %v7341
    %7470 = vst [vmem:[#allocation15 + $0x84] sm:$0xf] %v7342
    %7471 = vst [vmem:[#allocation15 + $0x88] sm:$0xf] %v7343
    %7472 = vst [vmem:[#allocation15 + $0x8c] sm:$0xf] %v7344
    %7473 = vst [vmem:[#allocation15 + $0x90] sm:$0xf] %v7345
    %7474 = vst [vmem:[#allocation15 + $0x94] sm:$0xf] %v7346
    %7475 = vst [vmem:[#allocation15 + $0x98] sm:$0xf] %v7347
    %7476 = vst [vmem:[#allocation15 + $0x9c] sm:$0xf] %v7348
    %7477 = vst [vmem:[#allocation15 + $0xa0] sm:$0xf] %v7349
    %7478 = vst [vmem:[#allocation15 + $0xa4] sm:$0xf] %v7350
    %7479 = vst [vmem:[#allocation15 + $0xa8] sm:$0xf] %v7351
    %7480 = vst [vmem:[#allocation15 + $0xac] sm:$0xf] %v7352
    %7481 = vst [vmem:[#allocation15 + $0xb0] sm:$0xf] %v7353
    %7482 = vst [vmem:[#allocation15 + $0xb4] sm:$0xf] %v7354
    %7483 = vst [vmem:[#allocation15 + $0xb8] sm:$0xf] %v7355
    %7484 = vst [vmem:[#allocation15 + $0xbc] sm:$0xf] %v7356
    %7485 = vst [vmem:[#allocation15 + $0xc0] sm:$0xf] %v7357
    %7486 = vst [vmem:[#allocation15 + $0xc4] sm:$0xf] %v7358
    %7487 = vst [vmem:[#allocation15 + $0xc8] sm:$0xf] %v7359
    %7488 = vst [vmem:[#allocation15 + $0xcc] sm:$0xf] %v7360
    %7489 = vst [vmem:[#allocation15 + $0xd0] sm:$0xf] %v7361
    %7490 = vst [vmem:[#allocation15 + $0xd4] sm:$0xf] %v7362
    %7491 = vst [vmem:[#allocation15 + $0xd8] sm:$0xf] %v7363
    %7492 = vst [vmem:[#allocation15 + $0xdc] sm:$0xf] %v7364
    %7493 = vst [vmem:[#allocation15 + $0xe0] sm:$0xf] %v7365
    %7494 = vst [vmem:[#allocation15 + $0xe4] sm:$0xf] %v7366
    %7495 = vst [vmem:[#allocation15 + $0xe8] sm:$0xf] %v7367
    %7496 = vst [vmem:[#allocation15 + $0xec] sm:$0xf] %v7368
    %7497 = vst [vmem:[#allocation15 + $0xf0] sm:$0xf] %v7369
    %7498 = vst [vmem:[#allocation15 + $0xf4] sm:$0xf] %v7370
    %7499 = vst [vmem:[#allocation15 + $0xf8] sm:$0xf] %v7371
    %7500 = vst [vmem:[#allocation15 + $0xfc] sm:$0xf] %v7372
    // Predicated region
    $region78: #{neck_concat_forward_nhwc.1} parent=1 // pred_check
      _
    $region79: #{neck_concat_forward_nhwc.1} parent=1 // pred_check_branch
      %7502 = sbr.rel (0) target = $region81
    $region80: #{neck_concat_forward_nhwc.1} parent=1 // pred_region
      %s7504 = ssub.s32 4096, 4096
      %7505 = vsyncadd [#allocation9], %s7504
      %s7506 = sshll.u32 [#allocation15], 4
      %s7507 = int_to_ptr.vmem [resolvable:$true] %s7506
      %7512 = dma.vmem_to_hbm [thread:$0]  %s7507, 4096, %s17, [#allocation9], 64, 64, 4
    $region81: #{neck_concat_forward_nhwc.1} parent=1 // pred_fallthru
      _
    // Predicated region
    $region82: #{neck_concat_forward_nhwc.1} parent=1 // pred_check
      _
    $region83: #{neck_concat_forward_nhwc.1} parent=1 // pred_check_branch
      %7514 = sbr.rel (0) target = $region85
    $region84: #{neck_concat_forward_nhwc.1} parent=1 // pred_region
      %s7516 = ssub.s32 2048, 2048
      %7517 = vsyncadd [#allocation17], %s7516
      %s7518 = sshll.u32 [#allocation16], 4
      %s7519 = int_to_ptr.vmem [resolvable:$true] %s7518
      %7524 = dma.vmem_to_hbm [thread:$0]  %s7519, 2048, %s18, [#allocation17], 128, 128, 8
    $region85: #{neck_concat_forward_nhwc.1} parent=1 // pred_fallthru
      _
    // Predicated region
    $region86: #{neck_concat_forward_nhwc.1} parent=1 // pred_check
      _
    $region87: #{neck_concat_forward_nhwc.1} parent=1 // pred_check_branch
      %7526 = sbr.rel (0) target = $region89
    $region88: #{neck_concat_forward_nhwc.1} parent=1 // pred_region
      _
    $region89: #{neck_concat_forward_nhwc.1} parent=1 // pred_fallthru
      _
    // Predicated region
    $region90: #{neck_concat_forward_nhwc.1} parent=1 // pred_check
      _
    $region91: #{neck_concat_forward_nhwc.1} parent=1 // pred_check_branch
      %7528 = sbr.rel (0) target = $region93
    $region92: #{neck_concat_forward_nhwc.1} parent=1 // pred_region
      %7529 = dma.done [#allocation9], 4096
    $region93: #{neck_concat_forward_nhwc.1} parent=1 // pred_fallthru
      _
    // Predicated region
    $region94: #{neck_concat_forward_nhwc.1} parent=1 // pred_check
      _
    $region95: #{neck_concat_forward_nhwc.1} parent=1 // pred_check_branch
      %7531 = sbr.rel (0) target = $region97
    $region96: #{neck_concat_forward_nhwc.1} parent=1 // pred_region
      %7532 = dma.done [#allocation17], 2048
    $region97: #{neck_concat_forward_nhwc.1} parent=1 // pred_fallthru
      _
    // Predicated region
    $region98: #{neck_concat_forward_nhwc.1} parent=1 // pred_check
      _
    $region99: #{neck_concat_forward_nhwc.1} parent=1 // pred_check_branch
      %7534 = sbr.rel (0) target = $region101
    $region100: #{neck_concat_forward_nhwc.1} parent=1 // pred_region
      _
    $region101: #{neck_concat_forward_nhwc.1} parent=1 // pred_fallthru
      _
    %7535 = vsyncpa [#allocation8], 1
    %7536 = vsyncpa [#allocation11], 1
    %7537 = vsyncpa [#allocation14], 1
    %7538 = vsyncpa [#allocation9], 1
    %7539 = vsyncpa [#allocation17], 1
  %7540 = vsyncmov [#allocation6]
  %s7541 = vpop.sfrf %7540
  %p7542 = scmp.eq.s32.totalorder %s7541, 0
  %p7543 = pneg %p7542
  %7545 = shalt.err (%p7543)
  %s7546 = scalar_lea.sflag [#allocation6], 1
  %7547 = vsyncmov %s7546
  %s7548 = vpop.sfrf %7547
  %p7549 = scmp.eq.s32.totalorder %s7548, 0
  %p7550 = pneg %p7549
  %7552 = shalt.err (%p7550)
  %s7553 = scalar_lea.sflag [#allocation6], 2
  %7554 = vsyncmov %s7553
  %s7555 = vpop.sfrf %7554
  %p7556 = scmp.eq.s32.totalorder %s7555, 0
  %p7557 = pneg %p7556
  %7559 = shalt.err (%p7557)
  %s7560 = scalar_lea.sflag [#allocation6], 3
  %7561 = vsyncmov %s7560
  %s7562 = vpop.sfrf %7561
  %p7563 = scmp.eq.s32.totalorder %s7562, 0
  %p7564 = pneg %p7563
  %7566 = shalt.err (%p7564)

</llo_original>
